<compile_context>
chip_gen: v7x
topology: tpu7x:2x2x1
jax: 0.10.0
libtpu: 0.0.40
codegen_flags: <defaults>
</compile_context>

<pallas_src>
import math
import functools

import jax
import jax.numpy as jnp
from jax.experimental import pallas as pl
from jax.experimental.pallas import tpu as pltpu

# ---- model hyperparameters (module defaults) --------------------------------
D_MODEL = 256
NHEAD = 2
D_HID = 569
D_HID_PAD = 640            # zero-padded FFN inner dim (multiple of 128)
NLAYERS = 4
HEAD_DIM = D_MODEL // NHEAD
LN_EPS = 1e-5
MAX_LEN = 500


def _layer_norm(x, gamma, beta):
    mu = jnp.mean(x, axis=-1, keepdims=True)
    var = jnp.mean(jnp.square(x - mu), axis=-1, keepdims=True)
    return (x - mu) * jax.lax.rsqrt(var + LN_EPS) * gamma + beta


# ---- single fused kernel: all encoder layers + classifier head ---------------
def _fused_encoder_kernel(B, S,
                          x_ref, wqkv_ref, bqkv_ref, wo_ref, bo_ref,
                          w1_ref, b1_ref, w2_ref, b2_ref,
                          g1_ref, be1_ref, g2_ref, be2_ref,
                          clsw_ref, clsb_ref,
                          o_ref):
    scale = 1.0 / math.sqrt(HEAD_DIM)
    x = x_ref[...]                                         # [B*S, D] f32, resident value

    for l in range(NLAYERS):                               # static unroll, weights in VMEM
        # ---- fused QKV projection: one [BS,D] x [D,3D] bf16 matmul ----------
        xb = x.astype(jnp.bfloat16)
        qkv = jnp.dot(xb, wqkv_ref[l],
                      preferred_element_type=jnp.float32) + bqkv_ref[l]

        # ---- attention per head (static loop, NHEAD=2, 128-lane aligned) ----
        heads = []
        for h in range(NHEAD):
            lo = h * HEAD_DIM
            qh = qkv[:, lo:lo + HEAD_DIM].reshape(B, S, HEAD_DIM)
            kh = qkv[:, D_MODEL + lo:D_MODEL + lo + HEAD_DIM].reshape(B, S, HEAD_DIM)
            vh = qkv[:, 2 * D_MODEL + lo:2 * D_MODEL + lo + HEAD_DIM].reshape(B, S, HEAD_DIM)

            s = jnp.einsum('bqd,bkd->bqk',
                           qh.astype(jnp.bfloat16), kh.astype(jnp.bfloat16),
                           preferred_element_type=jnp.float32) * scale
            # softmax kept in f32 (VPU/EUP); EUP reciprocal for the denominator
            s = s - jnp.max(s, axis=-1, keepdims=True)
            p = jnp.exp(s)
            p = p * pl.reciprocal(jnp.sum(p, axis=-1, keepdims=True), approx=True)
            oh = jnp.einsum('bqk,bkd->bqd',
                            p.astype(jnp.bfloat16), vh.astype(jnp.bfloat16),
                            preferred_element_type=jnp.float32)
            heads.append(oh.reshape(B * S, HEAD_DIM))

        # ---- output projection: single K=256 matmul (no per-head accum) -----
        attn = jnp.concatenate(heads, axis=-1).astype(jnp.bfloat16)
        attn = jnp.dot(attn, wo_ref[l],
                       preferred_element_type=jnp.float32) + bo_ref[l]

        # ---- residual + LayerNorm 1 (f32) ------------------------------------
        x1 = _layer_norm(x + attn, g1_ref[l], be1_ref[l])

        # ---- FFN: Linear(D -> 640 padded) -> ReLU -> Linear(640 -> D) -------
        h1 = jnp.dot(x1.astype(jnp.bfloat16), w1_ref[l],
                     preferred_element_type=jnp.float32) + b1_ref[l]
        h1 = jnp.maximum(h1, 0.0)
        ff = jnp.dot(h1.astype(jnp.bfloat16), w2_ref[l],
                     preferred_element_type=jnp.float32) + b2_ref[l]

        # ---- residual + LayerNorm 2 (f32) ------------------------------------
        x = _layer_norm(x1 + ff, g2_ref[l], be2_ref[l])

    # ---- classifier head on the CLS token --------------------------------------
    cls = x.reshape(B, S, D_MODEL)[:, 0, :]                # [B, D]
    o_ref[...] = (jnp.dot(cls, clsw_ref[...],
                          preferred_element_type=jnp.float32) + clsb_ref[...])


def transformer_pallas(x, stacked, cls_w_t, cls_b):
    """x: [B, S, D] f32 activations; stacked: per-layer weights stacked on axis 0."""
    B, S, D = x.shape
    x2d = x.reshape(B * S, D)                              # canonical 2-D layout
    args = (x2d,) + tuple(stacked) + (cls_w_t, cls_b)

    vmem_spec = pl.BlockSpec(memory_space=pltpu.MemorySpace.VMEM)  # whole array in VMEM
    kernel = functools.partial(_fused_encoder_kernel, B, S)

    return pl.pallas_call(
        kernel,
        out_shape=jax.ShapeDtypeStruct((B, 1), jnp.float32),
        in_specs=[vmem_spec] * len(args),
        out_specs=vmem_spec,
        compiler_params=pltpu.CompilerParams(vmem_limit_bytes=32 << 20),
    )(*args)


# ---- parameter construction (deterministic) ----------------------------------
def make_params(key, ntoken):
    def uni(k, shape, lo, hi):
        return jax.random.uniform(k, shape, jnp.float32, lo, hi)

    keys = jax.random.split(key, 2 + NLAYERS * 8)
    params = {}
    params["emb"] = uni(keys[0], (ntoken, D_MODEL), -0.3, 0.3)       # init_weights
    params["cls_w_t"] = uni(keys[1], (D_MODEL, 1), -0.3, 0.3)        # classifier.weight^T
    params["cls_b"] = jnp.zeros((1, 1), jnp.float32)                 # classifier.bias

    pad_c = D_HID_PAD - D_HID
    wqkv, bqkv, wo, bo, w1, b1, w2, b2 = ([] for _ in range(8))
    for l in range(NLAYERS):
        k = keys[2 + l * 8: 2 + (l + 1) * 8]
        wqkv.append(uni(k[0], (D_MODEL, 3 * D_MODEL), -0.05, 0.05))  # in_proj_weight^T
        bqkv.append(uni(k[1], (1, 3 * D_MODEL), -0.05, 0.05))        # in_proj_bias
        wo.append(uni(k[2], (D_MODEL, D_MODEL), -0.05, 0.05))        # out_proj.weight^T
        bo.append(uni(k[3], (1, D_MODEL), -0.05, 0.05))              # out_proj.bias
        w1l = uni(k[4], (D_MODEL, D_HID), -0.05, 0.05)               # linear1.weight^T
        b1l = uni(k[5], (1, D_HID), -0.05, 0.05)                     # linear1.bias
        w2l = uni(k[6], (D_HID, D_MODEL), -0.05, 0.05)               # linear2.weight^T
        b2l = uni(k[7], (1, D_MODEL), -0.05, 0.05)                   # linear2.bias
        # zero-pad FFN inner dim 569 -> 640; exact same math (ReLU(0)=0, zero w2 rows)
        w1.append(jnp.pad(w1l, ((0, 0), (0, pad_c))))
        b1.append(jnp.pad(b1l, ((0, 0), (0, pad_c))))
        w2.append(jnp.pad(w2l, ((0, pad_c), (0, 0))))
        b2.append(b2l)

    ones = jnp.ones((NLAYERS, 1, D_MODEL), jnp.float32)
    zeros = jnp.zeros((NLAYERS, 1, D_MODEL), jnp.float32)
    params["stacked"] = (
        jnp.stack(wqkv).astype(jnp.bfloat16),    # MXU operands in bf16 (halve HBM bytes)
        jnp.stack(bqkv),
        jnp.stack(wo).astype(jnp.bfloat16),
        jnp.stack(bo),
        jnp.stack(w1).astype(jnp.bfloat16),
        jnp.stack(b1),
        jnp.stack(w2).astype(jnp.bfloat16),
        jnp.stack(b2),
        ones, zeros, ones, zeros)                # norm1/norm2 gamma/beta (f32)
    return params


def make_positional_encoding():
    position = jnp.arange(MAX_LEN, dtype=jnp.float32)[:, None]
    div_term = jnp.exp(jnp.arange(0, D_MODEL, 2, dtype=jnp.float32)
                       * (-math.log(10000.0) / D_MODEL))
    pe = jnp.zeros((MAX_LEN, D_MODEL), jnp.float32)
    pe = pe.at[:, 0::2].set(jnp.sin(position * div_term))
    pe = pe.at[:, 1::2].set(jnp.cos(position * div_term))
    return pe


# ---- full forward -------------------------------------------------------------
def transformer_forward(src, src_mask, params, pe):
    # src_mask accepted but unused — the reference forward never passes it on.
    del src_mask
    B, S = src.shape
    x = params["emb"][src] * math.sqrt(D_MODEL)          # embedding gather (glue)
    x = (x + pe[None, :S, :]).astype(jnp.float32)        # positional encoding (glue)
    logits = transformer_pallas(x, params["stacked"],
                                params["cls_w_t"], params["cls_b"])
    return logits[:, 0]                                  # squeeze(-1) -> [B]


if __name__ == "__main__":
    NTOKEN = 50
    B, S = 2, 8

    key = jax.random.PRNGKey(0)
    k_tok, k_param = jax.random.split(key)
    src = jax.random.randint(k_tok, (B, S), 0, NTOKEN, dtype=jnp.int32)
    src_mask = jnp.zeros((S, S), jnp.float32)            # unused, like the reference

    params = make_params(k_param, NTOKEN)
    pe = make_positional_encoding()

    logits = transformer_forward(src, src_mask, params, pe)
    jax.block_until_ready(logits)
    assert logits.shape == (B,)
    print("KERNEL_OK")
</pallas_src>

<mosaic_0001>
module attributes {stable_mosaic.version = 11 : i64} {
  func.func @_fused_encoder_kernel(%arg0: memref<16x256xf32, #tpu.memory_space<vmem>>, %arg1: memref<4x256x768xbf16, #tpu.memory_space<vmem>>, %arg2: memref<4x1x768xf32, #tpu.memory_space<vmem>>, %arg3: memref<4x256x256xbf16, #tpu.memory_space<vmem>>, %arg4: memref<4x1x256xf32, #tpu.memory_space<vmem>>, %arg5: memref<4x256x640xbf16, #tpu.memory_space<vmem>>, %arg6: memref<4x1x640xf32, #tpu.memory_space<vmem>>, %arg7: memref<4x640x256xbf16, #tpu.memory_space<vmem>>, %arg8: memref<4x1x256xf32, #tpu.memory_space<vmem>>, %arg9: memref<4x1x256xf32, #tpu.memory_space<vmem>>, %arg10: memref<4x1x256xf32, #tpu.memory_space<vmem>>, %arg11: memref<4x1x256xf32, #tpu.memory_space<vmem>>, %arg12: memref<4x1x256xf32, #tpu.memory_space<vmem>>, %arg13: memref<256x1xf32, #tpu.memory_space<vmem>>, %arg14: memref<1x1xf32, #tpu.memory_space<vmem>>, %arg15: memref<2x1xf32, #tpu.memory_space<vmem>>) attributes {dimension_semantics = [], scalar_prefetch = 0 : i64, scratch_operands = 0 : i64, tpu.core_type = #tpu.core_type<tc>} {
    %c0 = arith.constant 0 : index
    %c0_0 = arith.constant 0 : index
    %0 = vector.load %arg0[%c0, %c0_0] : memref<16x256xf32, #tpu.memory_space<vmem>>, vector<16x256xf32>
    %1 = arith.truncf %0 : vector<16x256xf32> to vector<16x256xbf16>
    %c0_1 = arith.constant 0 : index
    %c0_2 = arith.constant 0 : index
    %c0_3 = arith.constant 0 : index
    %2 = vector.load %arg1[%c0_1, %c0_2, %c0_3] : memref<4x256x768xbf16, #tpu.memory_space<vmem>>, vector<1x256x768xbf16>
    %3 = vector.shape_cast %2 : vector<1x256x768xbf16> to vector<256x768xbf16>
    %cst = arith.constant dense<0.000000e+00> : vector<16x768xf32>
    %4 = tpu.matmul %1, %3, %cst {dimension_numbers = #tpu.dot_dimension_numbers<[1], [0], [0], [1], [0, 0, 1, 1], [], []>} : vector<16x256xbf16>, vector<256x768xbf16>, vector<16x768xf32> -> vector<16x768xf32>
    %c0_4 = arith.constant 0 : index
    %c0_5 = arith.constant 0 : index
    %c0_6 = arith.constant 0 : index
    %5 = vector.load %arg2[%c0_4, %c0_5, %c0_6] : memref<4x1x768xf32, #tpu.memory_space<vmem>>, vector<1x1x768xf32>
    %6 = vector.shape_cast %5 : vector<1x1x768xf32> to vector<1x768xf32>
    %7 = vector.broadcast %6 : vector<1x768xf32> to vector<16x768xf32>
    %8 = arith.addf %4, %7 : vector<16x768xf32>
    %9 = vector.extract_strided_slice %8 {offsets = [0, 0], sizes = [16, 128], strides = [1, 1]} : vector<16x768xf32> to vector<16x128xf32>
    %10 = vector.shape_cast %9 : vector<16x128xf32> to vector<2x8x128xf32>
    %11 = vector.extract_strided_slice %8 {offsets = [0, 256], sizes = [16, 128], strides = [1, 1]} : vector<16x768xf32> to vector<16x128xf32>
    %12 = vector.shape_cast %11 : vector<16x128xf32> to vector<2x8x128xf32>
    %13 = vector.extract_strided_slice %8 {offsets = [0, 512], sizes = [16, 128], strides = [1, 1]} : vector<16x768xf32> to vector<16x128xf32>
    %14 = vector.shape_cast %13 : vector<16x128xf32> to vector<2x8x128xf32>
    %15 = arith.truncf %10 : vector<2x8x128xf32> to vector<2x8x128xbf16>
    %16 = arith.truncf %12 : vector<2x8x128xf32> to vector<2x8x128xbf16>
    "tpu.trace_start"() <{level = 10 : i32, message = "bqd,bkd->bqk"}> : () -> ()
    %cst_7 = arith.constant dense<0.000000e+00> : vector<2x8x8xf32>
    %17 = tpu.matmul %15, %16, %cst_7 {dimension_numbers = #tpu.dot_dimension_numbers<[2], [2], [1], [1], [0, 0, 0, 1, 1, 1], [0], [0]>} : vector<2x8x128xbf16>, vector<2x8x128xbf16>, vector<2x8x8xf32> -> vector<2x8x8xf32>
    "tpu.trace_stop"() : () -> ()
    %cst_8 = arith.constant 0.0883883461 : f32
    %18 = vector.broadcast %cst_8 : f32 to vector<2x8x8xf32>
    %19 = arith.mulf %17, %18 : vector<2x8x8xf32>
    %cst_9 = arith.constant dense<0xFF800000> : vector<2x8xf32>
    %20 = vector.multi_reduction <maximumf>, %19, %cst_9 [2] : vector<2x8x8xf32> to vector<2x8xf32>
    %21 = vector.shape_cast %20 : vector<2x8xf32> to vector<2x8x1xf32>
    %22 = vector.broadcast %21 : vector<2x8x1xf32> to vector<2x8x8xf32>
    %23 = arith.subf %19, %22 : vector<2x8x8xf32>
    %24 = math.exp %23 : vector<2x8x8xf32>
    %cst_10 = arith.constant dense<0.000000e+00> : vector<2x8xf32>
    %25 = vector.multi_reduction <add>, %24, %cst_10 [2] : vector<2x8x8xf32> to vector<2x8xf32>
    %26 = vector.shape_cast %25 : vector<2x8xf32> to vector<2x8x1xf32>
    %27 = tpu.reciprocal %26 {approx = true} : vector<2x8x1xf32> -> vector<2x8x1xf32>
    %28 = vector.broadcast %27 : vector<2x8x1xf32> to vector<2x8x8xf32>
    %29 = arith.mulf %24, %28 : vector<2x8x8xf32>
    %30 = arith.truncf %29 : vector<2x8x8xf32> to vector<2x8x8xbf16>
    %31 = arith.truncf %14 : vector<2x8x128xf32> to vector<2x8x128xbf16>
    "tpu.trace_start"() <{level = 10 : i32, message = "bqk,bkd->bqd"}> : () -> ()
    %cst_11 = arith.constant dense<0.000000e+00> : vector<2x8x128xf32>
    %32 = tpu.matmul %30, %31, %cst_11 {dimension_numbers = #tpu.dot_dimension_numbers<[2], [1], [1], [2], [0, 0, 0, 1, 1, 2], [0], [0]>} : vector<2x8x8xbf16>, vector<2x8x128xbf16>, vector<2x8x128xf32> -> vector<2x8x128xf32>
    "tpu.trace_stop"() : () -> ()
    %33 = vector.shape_cast %32 : vector<2x8x128xf32> to vector<16x128xf32>
    %34 = vector.extract_strided_slice %8 {offsets = [0, 128], sizes = [16, 128], strides = [1, 1]} : vector<16x768xf32> to vector<16x128xf32>
    %35 = vector.shape_cast %34 : vector<16x128xf32> to vector<2x8x128xf32>
    %36 = vector.extract_strided_slice %8 {offsets = [0, 384], sizes = [16, 128], strides = [1, 1]} : vector<16x768xf32> to vector<16x128xf32>
    %37 = vector.shape_cast %36 : vector<16x128xf32> to vector<2x8x128xf32>
    %38 = vector.extract_strided_slice %8 {offsets = [0, 640], sizes = [16, 128], strides = [1, 1]} : vector<16x768xf32> to vector<16x128xf32>
    %39 = vector.shape_cast %38 : vector<16x128xf32> to vector<2x8x128xf32>
    %40 = arith.truncf %35 : vector<2x8x128xf32> to vector<2x8x128xbf16>
    %41 = arith.truncf %37 : vector<2x8x128xf32> to vector<2x8x128xbf16>
    "tpu.trace_start"() <{level = 10 : i32, message = "bqd,bkd->bqk"}> : () -> ()
    %cst_12 = arith.constant dense<0.000000e+00> : vector<2x8x8xf32>
    %42 = tpu.matmul %40, %41, %cst_12 {dimension_numbers = #tpu.dot_dimension_numbers<[2], [2], [1], [1], [0, 0, 0, 1, 1, 1], [0], [0]>} : vector<2x8x128xbf16>, vector<2x8x128xbf16>, vector<2x8x8xf32> -> vector<2x8x8xf32>
    "tpu.trace_stop"() : () -> ()
    %cst_13 = arith.constant 0.0883883461 : f32
    %43 = vector.broadcast %cst_13 : f32 to vector<2x8x8xf32>
    %44 = arith.mulf %42, %43 : vector<2x8x8xf32>
    %cst_14 = arith.constant dense<0xFF800000> : vector<2x8xf32>
    %45 = vector.multi_reduction <maximumf>, %44, %cst_14 [2] : vector<2x8x8xf32> to vector<2x8xf32>
    %46 = vector.shape_cast %45 : vector<2x8xf32> to vector<2x8x1xf32>
    %47 = vector.broadcast %46 : vector<2x8x1xf32> to vector<2x8x8xf32>
    %48 = arith.subf %44, %47 : vector<2x8x8xf32>
    %49 = math.exp %48 : vector<2x8x8xf32>
    %cst_15 = arith.constant dense<0.000000e+00> : vector<2x8xf32>
    %50 = vector.multi_reduction <add>, %49, %cst_15 [2] : vector<2x8x8xf32> to vector<2x8xf32>
    %51 = vector.shape_cast %50 : vector<2x8xf32> to vector<2x8x1xf32>
    %52 = tpu.reciprocal %51 {approx = true} : vector<2x8x1xf32> -> vector<2x8x1xf32>
    %53 = vector.broadcast %52 : vector<2x8x1xf32> to vector<2x8x8xf32>
    %54 = arith.mulf %49, %53 : vector<2x8x8xf32>
    %55 = arith.truncf %54 : vector<2x8x8xf32> to vector<2x8x8xbf16>
    %56 = arith.truncf %39 : vector<2x8x128xf32> to vector<2x8x128xbf16>
    "tpu.trace_start"() <{level = 10 : i32, message = "bqk,bkd->bqd"}> : () -> ()
    %cst_16 = arith.constant dense<0.000000e+00> : vector<2x8x128xf32>
    %57 = tpu.matmul %55, %56, %cst_16 {dimension_numbers = #tpu.dot_dimension_numbers<[2], [1], [1], [2], [0, 0, 0, 1, 1, 2], [0], [0]>} : vector<2x8x8xbf16>, vector<2x8x128xbf16>, vector<2x8x128xf32> -> vector<2x8x128xf32>
    "tpu.trace_stop"() : () -> ()
    %58 = vector.shape_cast %57 : vector<2x8x128xf32> to vector<16x128xf32>
    %59 = tpu.concatenate %33, %58 in 1 : vector<16x128xf32>, vector<16x128xf32> -> vector<16x256xf32>
    %60 = arith.truncf %59 : vector<16x256xf32> to vector<16x256xbf16>
    %c0_17 = arith.constant 0 : index
    %c0_18 = arith.constant 0 : index
    %c0_19 = arith.constant 0 : index
    %61 = vector.load %arg3[%c0_17, %c0_18, %c0_19] : memref<4x256x256xbf16, #tpu.memory_space<vmem>>, vector<1x256x256xbf16>
    %62 = vector.shape_cast %61 : vector<1x256x256xbf16> to vector<256x256xbf16>
    %cst_20 = arith.constant dense<0.000000e+00> : vector<16x256xf32>
    %63 = tpu.matmul %60, %62, %cst_20 {dimension_numbers = #tpu.dot_dimension_numbers<[1], [0], [0], [1], [0, 0, 1, 1], [], []>} : vector<16x256xbf16>, vector<256x256xbf16>, vector<16x256xf32> -> vector<16x256xf32>
    %c0_21 = arith.constant 0 : index
    %c0_22 = arith.constant 0 : index
    %c0_23 = arith.constant 0 : index
    %64 = vector.load %arg4[%c0_21, %c0_22, %c0_23] : memref<4x1x256xf32, #tpu.memory_space<vmem>>, vector<1x1x256xf32>
    %65 = vector.shape_cast %64 : vector<1x1x256xf32> to vector<1x256xf32>
    %66 = vector.broadcast %65 : vector<1x256xf32> to vector<16x256xf32>
    %67 = arith.addf %63, %66 : vector<16x256xf32>
    %68 = arith.addf %0, %67 : vector<16x256xf32>
    %c0_24 = arith.constant 0 : index
    %c0_25 = arith.constant 0 : index
    %c0_26 = arith.constant 0 : index
    %69 = vector.load %arg9[%c0_24, %c0_25, %c0_26] : memref<4x1x256xf32, #tpu.memory_space<vmem>>, vector<1x1x256xf32>
    %70 = vector.shape_cast %69 : vector<1x1x256xf32> to vector<1x256xf32>
    %c0_27 = arith.constant 0 : index
    %c0_28 = arith.constant 0 : index
    %c0_29 = arith.constant 0 : index
    %71 = vector.load %arg10[%c0_27, %c0_28, %c0_29] : memref<4x1x256xf32, #tpu.memory_space<vmem>>, vector<1x1x256xf32>
    %72 = vector.shape_cast %71 : vector<1x1x256xf32> to vector<1x256xf32>
    %cst_30 = arith.constant dense<0.000000e+00> : vector<16xf32>
    %73 = vector.multi_reduction <add>, %68, %cst_30 [1] : vector<16x256xf32> to vector<16xf32>
    %74 = vector.shape_cast %73 : vector<16xf32> to vector<16x1xf32>
    %cst_31 = arith.constant 2.560000e+02 : f32
    %75 = vector.broadcast %cst_31 : f32 to vector<16x1xf32>
    %76 = arith.divf %74, %75 : vector<16x1xf32>
    %77 = vector.broadcast %76 : vector<16x1xf32> to vector<16x256xf32>
    %78 = arith.subf %68, %77 : vector<16x256xf32>
    %79 = arith.mulf %78, %78 : vector<16x256xf32>
    %cst_32 = arith.constant dense<0.000000e+00> : vector<16xf32>
    %80 = vector.multi_reduction <add>, %79, %cst_32 [1] : vector<16x256xf32> to vector<16xf32>
    %81 = vector.shape_cast %80 : vector<16xf32> to vector<16x1xf32>
    %cst_33 = arith.constant 2.560000e+02 : f32
    %82 = vector.broadcast %cst_33 : f32 to vector<16x1xf32>
    %83 = arith.divf %81, %82 : vector<16x1xf32>
    %84 = vector.broadcast %76 : vector<16x1xf32> to vector<16x256xf32>
    %85 = arith.subf %68, %84 : vector<16x256xf32>
    %cst_34 = arith.constant 9.99999974E-6 : f32
    %86 = vector.broadcast %cst_34 : f32 to vector<16x1xf32>
    %87 = arith.addf %83, %86 : vector<16x1xf32>
    %88 = math.rsqrt %87 : vector<16x1xf32>
    %89 = vector.broadcast %88 : vector<16x1xf32> to vector<16x256xf32>
    %90 = arith.mulf %85, %89 : vector<16x256xf32>
    %91 = vector.broadcast %70 : vector<1x256xf32> to vector<16x256xf32>
    %92 = arith.mulf %90, %91 : vector<16x256xf32>
    %93 = vector.broadcast %72 : vector<1x256xf32> to vector<16x256xf32>
    %94 = arith.addf %92, %93 : vector<16x256xf32>
    %95 = arith.truncf %94 : vector<16x256xf32> to vector<16x256xbf16>
    %c0_35 = arith.constant 0 : index
    %c0_36 = arith.constant 0 : index
    %c0_37 = arith.constant 0 : index
    %96 = vector.load %arg5[%c0_35, %c0_36, %c0_37] : memref<4x256x640xbf16, #tpu.memory_space<vmem>>, vector<1x256x640xbf16>
    %97 = vector.shape_cast %96 : vector<1x256x640xbf16> to vector<256x640xbf16>
    %cst_38 = arith.constant dense<0.000000e+00> : vector<16x640xf32>
    %98 = tpu.matmul %95, %97, %cst_38 {dimension_numbers = #tpu.dot_dimension_numbers<[1], [0], [0], [1], [0, 0, 1, 1], [], []>} : vector<16x256xbf16>, vector<256x640xbf16>, vector<16x640xf32> -> vector<16x640xf32>
    %c0_39 = arith.constant 0 : index
    %c0_40 = arith.constant 0 : index
    %c0_41 = arith.constant 0 : index
    %99 = vector.load %arg6[%c0_39, %c0_40, %c0_41] : memref<4x1x640xf32, #tpu.memory_space<vmem>>, vector<1x1x640xf32>
    %100 = vector.shape_cast %99 : vector<1x1x640xf32> to vector<1x640xf32>
    %101 = vector.broadcast %100 : vector<1x640xf32> to vector<16x640xf32>
    %102 = arith.addf %98, %101 : vector<16x640xf32>
    %cst_42 = arith.constant 0.000000e+00 : f32
    %103 = vector.broadcast %cst_42 : f32 to vector<16x640xf32>
    %104 = arith.maximumf %102, %103 : vector<16x640xf32>
    %105 = arith.truncf %104 : vector<16x640xf32> to vector<16x640xbf16>
    %c0_43 = arith.constant 0 : index
    %c0_44 = arith.constant 0 : index
    %c0_45 = arith.constant 0 : index
    %106 = vector.load %arg7[%c0_43, %c0_44, %c0_45] : memref<4x640x256xbf16, #tpu.memory_space<vmem>>, vector<1x640x256xbf16>
    %107 = vector.shape_cast %106 : vector<1x640x256xbf16> to vector<640x256xbf16>
    %cst_46 = arith.constant dense<0.000000e+00> : vector<16x256xf32>
    %108 = tpu.matmul %105, %107, %cst_46 {dimension_numbers = #tpu.dot_dimension_numbers<[1], [0], [0], [1], [0, 0, 1, 1], [], []>} : vector<16x640xbf16>, vector<640x256xbf16>, vector<16x256xf32> -> vector<16x256xf32>
    %c0_47 = arith.constant 0 : index
    %c0_48 = arith.constant 0 : index
    %c0_49 = arith.constant 0 : index
    %109 = vector.load %arg8[%c0_47, %c0_48, %c0_49] : memref<4x1x256xf32, #tpu.memory_space<vmem>>, vector<1x1x256xf32>
    %110 = vector.shape_cast %109 : vector<1x1x256xf32> to vector<1x256xf32>
    %111 = vector.broadcast %110 : vector<1x256xf32> to vector<16x256xf32>
    %112 = arith.addf %108, %111 : vector<16x256xf32>
    %113 = arith.addf %94, %112 : vector<16x256xf32>
    %c0_50 = arith.constant 0 : index
    %c0_51 = arith.constant 0 : index
    %c0_52 = arith.constant 0 : index
    %114 = vector.load %arg11[%c0_50, %c0_51, %c0_52] : memref<4x1x256xf32, #tpu.memory_space<vmem>>, vector<1x1x256xf32>
    %115 = vector.shape_cast %114 : vector<1x1x256xf32> to vector<1x256xf32>
    %c0_53 = arith.constant 0 : index
    %c0_54 = arith.constant 0 : index
    %c0_55 = arith.constant 0 : index
    %116 = vector.load %arg12[%c0_53, %c0_54, %c0_55] : memref<4x1x256xf32, #tpu.memory_space<vmem>>, vector<1x1x256xf32>
    %117 = vector.shape_cast %116 : vector<1x1x256xf32> to vector<1x256xf32>
    %cst_56 = arith.constant dense<0.000000e+00> : vector<16xf32>
    %118 = vector.multi_reduction <add>, %113, %cst_56 [1] : vector<16x256xf32> to vector<16xf32>
    %119 = vector.shape_cast %118 : vector<16xf32> to vector<16x1xf32>
    %cst_57 = arith.constant 2.560000e+02 : f32
    %120 = vector.broadcast %cst_57 : f32 to vector<16x1xf32>
    %121 = arith.divf %119, %120 : vector<16x1xf32>
    %122 = vector.broadcast %121 : vector<16x1xf32> to vector<16x256xf32>
    %123 = arith.subf %113, %122 : vector<16x256xf32>
    %124 = arith.mulf %123, %123 : vector<16x256xf32>
    %cst_58 = arith.constant dense<0.000000e+00> : vector<16xf32>
    %125 = vector.multi_reduction <add>, %124, %cst_58 [1] : vector<16x256xf32> to vector<16xf32>
    %126 = vector.shape_cast %125 : vector<16xf32> to vector<16x1xf32>
    %cst_59 = arith.constant 2.560000e+02 : f32
    %127 = vector.broadcast %cst_59 : f32 to vector<16x1xf32>
    %128 = arith.divf %126, %127 : vector<16x1xf32>
    %129 = vector.broadcast %121 : vector<16x1xf32> to vector<16x256xf32>
    %130 = arith.subf %113, %129 : vector<16x256xf32>
    %cst_60 = arith.constant 9.99999974E-6 : f32
    %131 = vector.broadcast %cst_60 : f32 to vector<16x1xf32>
    %132 = arith.addf %128, %131 : vector<16x1xf32>
    %133 = math.rsqrt %132 : vector<16x1xf32>
    %134 = vector.broadcast %133 : vector<16x1xf32> to vector<16x256xf32>
    %135 = arith.mulf %130, %134 : vector<16x256xf32>
    %136 = vector.broadcast %115 : vector<1x256xf32> to vector<16x256xf32>
    %137 = arith.mulf %135, %136 : vector<16x256xf32>
    %138 = vector.broadcast %117 : vector<1x256xf32> to vector<16x256xf32>
    %139 = arith.addf %137, %138 : vector<16x256xf32>
    %140 = arith.truncf %139 : vector<16x256xf32> to vector<16x256xbf16>
    %c1 = arith.constant 1 : index
    %c0_61 = arith.constant 0 : index
    %c0_62 = arith.constant 0 : index
    %141 = vector.load %arg1[%c1, %c0_61, %c0_62] : memref<4x256x768xbf16, #tpu.memory_space<vmem>>, vector<1x256x768xbf16>
    %142 = vector.shape_cast %141 : vector<1x256x768xbf16> to vector<256x768xbf16>
    %cst_63 = arith.constant dense<0.000000e+00> : vector<16x768xf32>
    %143 = tpu.matmul %140, %142, %cst_63 {dimension_numbers = #tpu.dot_dimension_numbers<[1], [0], [0], [1], [0, 0, 1, 1], [], []>} : vector<16x256xbf16>, vector<256x768xbf16>, vector<16x768xf32> -> vector<16x768xf32>
    %c1_64 = arith.constant 1 : index
    %c0_65 = arith.constant 0 : index
    %c0_66 = arith.constant 0 : index
    %144 = vector.load %arg2[%c1_64, %c0_65, %c0_66] : memref<4x1x768xf32, #tpu.memory_space<vmem>>, vector<1x1x768xf32>
    %145 = vector.shape_cast %144 : vector<1x1x768xf32> to vector<1x768xf32>
    %146 = vector.broadcast %145 : vector<1x768xf32> to vector<16x768xf32>
    %147 = arith.addf %143, %146 : vector<16x768xf32>
    %148 = vector.extract_strided_slice %147 {offsets = [0, 0], sizes = [16, 128], strides = [1, 1]} : vector<16x768xf32> to vector<16x128xf32>
    %149 = vector.shape_cast %148 : vector<16x128xf32> to vector<2x8x128xf32>
    %150 = vector.extract_strided_slice %147 {offsets = [0, 256], sizes = [16, 128], strides = [1, 1]} : vector<16x768xf32> to vector<16x128xf32>
    %151 = vector.shape_cast %150 : vector<16x128xf32> to vector<2x8x128xf32>
    %152 = vector.extract_strided_slice %147 {offsets = [0, 512], sizes = [16, 128], strides = [1, 1]} : vector<16x768xf32> to vector<16x128xf32>
    %153 = vector.shape_cast %152 : vector<16x128xf32> to vector<2x8x128xf32>
    %154 = arith.truncf %149 : vector<2x8x128xf32> to vector<2x8x128xbf16>
    %155 = arith.truncf %151 : vector<2x8x128xf32> to vector<2x8x128xbf16>
    "tpu.trace_start"() <{level = 10 : i32, message = "bqd,bkd->bqk"}> : () -> ()
    %cst_67 = arith.constant dense<0.000000e+00> : vector<2x8x8xf32>
    %156 = tpu.matmul %154, %155, %cst_67 {dimension_numbers = #tpu.dot_dimension_numbers<[2], [2], [1], [1], [0, 0, 0, 1, 1, 1], [0], [0]>} : vector<2x8x128xbf16>, vector<2x8x128xbf16>, vector<2x8x8xf32> -> vector<2x8x8xf32>
    "tpu.trace_stop"() : () -> ()
    %cst_68 = arith.constant 0.0883883461 : f32
    %157 = vector.broadcast %cst_68 : f32 to vector<2x8x8xf32>
    %158 = arith.mulf %156, %157 : vector<2x8x8xf32>
    %cst_69 = arith.constant dense<0xFF800000> : vector<2x8xf32>
    %159 = vector.multi_reduction <maximumf>, %158, %cst_69 [2] : vector<2x8x8xf32> to vector<2x8xf32>
    %160 = vector.shape_cast %159 : vector<2x8xf32> to vector<2x8x1xf32>
    %161 = vector.broadcast %160 : vector<2x8x1xf32> to vector<2x8x8xf32>
    %162 = arith.subf %158, %161 : vector<2x8x8xf32>
    %163 = math.exp %162 : vector<2x8x8xf32>
    %cst_70 = arith.constant dense<0.000000e+00> : vector<2x8xf32>
    %164 = vector.multi_reduction <add>, %163, %cst_70 [2] : vector<2x8x8xf32> to vector<2x8xf32>
    %165 = vector.shape_cast %164 : vector<2x8xf32> to vector<2x8x1xf32>
    %166 = tpu.reciprocal %165 {approx = true} : vector<2x8x1xf32> -> vector<2x8x1xf32>
    %167 = vector.broadcast %166 : vector<2x8x1xf32> to vector<2x8x8xf32>
    %168 = arith.mulf %163, %167 : vector<2x8x8xf32>
    %169 = arith.truncf %168 : vector<2x8x8xf32> to vector<2x8x8xbf16>
    %170 = arith.truncf %153 : vector<2x8x128xf32> to vector<2x8x128xbf16>
    "tpu.trace_start"() <{level = 10 : i32, message = "bqk,bkd->bqd"}> : () -> ()
    %cst_71 = arith.constant dense<0.000000e+00> : vector<2x8x128xf32>
    %171 = tpu.matmul %169, %170, %cst_71 {dimension_numbers = #tpu.dot_dimension_numbers<[2], [1], [1], [2], [0, 0, 0, 1, 1, 2], [0], [0]>} : vector<2x8x8xbf16>, vector<2x8x128xbf16>, vector<2x8x128xf32> -> vector<2x8x128xf32>
    "tpu.trace_stop"() : () -> ()
    %172 = vector.shape_cast %171 : vector<2x8x128xf32> to vector<16x128xf32>
    %173 = vector.extract_strided_slice %147 {offsets = [0, 128], sizes = [16, 128], strides = [1, 1]} : vector<16x768xf32> to vector<16x128xf32>
    %174 = vector.shape_cast %173 : vector<16x128xf32> to vector<2x8x128xf32>
    %175 = vector.extract_strided_slice %147 {offsets = [0, 384], sizes = [16, 128], strides = [1, 1]} : vector<16x768xf32> to vector<16x128xf32>
    %176 = vector.shape_cast %175 : vector<16x128xf32> to vector<2x8x128xf32>
    %177 = vector.extract_strided_slice %147 {offsets = [0, 640], sizes = [16, 128], strides = [1, 1]} : vector<16x768xf32> to vector<16x128xf32>
    %178 = vector.shape_cast %177 : vector<16x128xf32> to vector<2x8x128xf32>
    %179 = arith.truncf %174 : vector<2x8x128xf32> to vector<2x8x128xbf16>
    %180 = arith.truncf %176 : vector<2x8x128xf32> to vector<2x8x128xbf16>
    "tpu.trace_start"() <{level = 10 : i32, message = "bqd,bkd->bqk"}> : () -> ()
    %cst_72 = arith.constant dense<0.000000e+00> : vector<2x8x8xf32>
    %181 = tpu.matmul %179, %180, %cst_72 {dimension_numbers = #tpu.dot_dimension_numbers<[2], [2], [1], [1], [0, 0, 0, 1, 1, 1], [0], [0]>} : vector<2x8x128xbf16>, vector<2x8x128xbf16>, vector<2x8x8xf32> -> vector<2x8x8xf32>
    "tpu.trace_stop"() : () -> ()
    %cst_73 = arith.constant 0.0883883461 : f32
    %182 = vector.broadcast %cst_73 : f32 to vector<2x8x8xf32>
    %183 = arith.mulf %181, %182 : vector<2x8x8xf32>
    %cst_74 = arith.constant dense<0xFF800000> : vector<2x8xf32>
    %184 = vector.multi_reduction <maximumf>, %183, %cst_74 [2] : vector<2x8x8xf32> to vector<2x8xf32>
    %185 = vector.shape_cast %184 : vector<2x8xf32> to vector<2x8x1xf32>
    %186 = vector.broadcast %185 : vector<2x8x1xf32> to vector<2x8x8xf32>
    %187 = arith.subf %183, %186 : vector<2x8x8xf32>
    %188 = math.exp %187 : vector<2x8x8xf32>
    %cst_75 = arith.constant dense<0.000000e+00> : vector<2x8xf32>
    %189 = vector.multi_reduction <add>, %188, %cst_75 [2] : vector<2x8x8xf32> to vector<2x8xf32>
    %190 = vector.shape_cast %189 : vector<2x8xf32> to vector<2x8x1xf32>
    %191 = tpu.reciprocal %190 {approx = true} : vector<2x8x1xf32> -> vector<2x8x1xf32>
    %192 = vector.broadcast %191 : vector<2x8x1xf32> to vector<2x8x8xf32>
    %193 = arith.mulf %188, %192 : vector<2x8x8xf32>
    %194 = arith.truncf %193 : vector<2x8x8xf32> to vector<2x8x8xbf16>
    %195 = arith.truncf %178 : vector<2x8x128xf32> to vector<2x8x128xbf16>
    "tpu.trace_start"() <{level = 10 : i32, message = "bqk,bkd->bqd"}> : () -> ()
    %cst_76 = arith.constant dense<0.000000e+00> : vector<2x8x128xf32>
    %196 = tpu.matmul %194, %195, %cst_76 {dimension_numbers = #tpu.dot_dimension_numbers<[2], [1], [1], [2], [0, 0, 0, 1, 1, 2], [0], [0]>} : vector<2x8x8xbf16>, vector<2x8x128xbf16>, vector<2x8x128xf32> -> vector<2x8x128xf32>
    "tpu.trace_stop"() : () -> ()
    %197 = vector.shape_cast %196 : vector<2x8x128xf32> to vector<16x128xf32>
    %198 = tpu.concatenate %172, %197 in 1 : vector<16x128xf32>, vector<16x128xf32> -> vector<16x256xf32>
    %199 = arith.truncf %198 : vector<16x256xf32> to vector<16x256xbf16>
    %c1_77 = arith.constant 1 : index
    %c0_78 = arith.constant 0 : index
    %c0_79 = arith.constant 0 : index
    %200 = vector.load %arg3[%c1_77, %c0_78, %c0_79] : memref<4x256x256xbf16, #tpu.memory_space<vmem>>, vector<1x256x256xbf16>
    %201 = vector.shape_cast %200 : vector<1x256x256xbf16> to vector<256x256xbf16>
    %cst_80 = arith.constant dense<0.000000e+00> : vector<16x256xf32>
    %202 = tpu.matmul %199, %201, %cst_80 {dimension_numbers = #tpu.dot_dimension_numbers<[1], [0], [0], [1], [0, 0, 1, 1], [], []>} : vector<16x256xbf16>, vector<256x256xbf16>, vector<16x256xf32> -> vector<16x256xf32>
    %c1_81 = arith.constant 1 : index
    %c0_82 = arith.constant 0 : index
    %c0_83 = arith.constant 0 : index
    %203 = vector.load %arg4[%c1_81, %c0_82, %c0_83] : memref<4x1x256xf32, #tpu.memory_space<vmem>>, vector<1x1x256xf32>
    %204 = vector.shape_cast %203 : vector<1x1x256xf32> to vector<1x256xf32>
    %205 = vector.broadcast %204 : vector<1x256xf32> to vector<16x256xf32>
    %206 = arith.addf %202, %205 : vector<16x256xf32>
    %207 = arith.addf %139, %206 : vector<16x256xf32>
    %c1_84 = arith.constant 1 : index
    %c0_85 = arith.constant 0 : index
    %c0_86 = arith.constant 0 : index
    %208 = vector.load %arg9[%c1_84, %c0_85, %c0_86] : memref<4x1x256xf32, #tpu.memory_space<vmem>>, vector<1x1x256xf32>
    %209 = vector.shape_cast %208 : vector<1x1x256xf32> to vector<1x256xf32>
    %c1_87 = arith.constant 1 : index
    %c0_88 = arith.constant 0 : index
    %c0_89 = arith.constant 0 : index
    %210 = vector.load %arg10[%c1_87, %c0_88, %c0_89] : memref<4x1x256xf32, #tpu.memory_space<vmem>>, vector<1x1x256xf32>
    %211 = vector.shape_cast %210 : vector<1x1x256xf32> to vector<1x256xf32>
    %cst_90 = arith.constant dense<0.000000e+00> : vector<16xf32>
    %212 = vector.multi_reduction <add>, %207, %cst_90 [1] : vector<16x256xf32> to vector<16xf32>
    %213 = vector.shape_cast %212 : vector<16xf32> to vector<16x1xf32>
    %cst_91 = arith.constant 2.560000e+02 : f32
    %214 = vector.broadcast %cst_91 : f32 to vector<16x1xf32>
    %215 = arith.divf %213, %214 : vector<16x1xf32>
    %216 = vector.broadcast %215 : vector<16x1xf32> to vector<16x256xf32>
    %217 = arith.subf %207, %216 : vector<16x256xf32>
    %218 = arith.mulf %217, %217 : vector<16x256xf32>
    %cst_92 = arith.constant dense<0.000000e+00> : vector<16xf32>
    %219 = vector.multi_reduction <add>, %218, %cst_92 [1] : vector<16x256xf32> to vector<16xf32>
    %220 = vector.shape_cast %219 : vector<16xf32> to vector<16x1xf32>
    %cst_93 = arith.constant 2.560000e+02 : f32
    %221 = vector.broadcast %cst_93 : f32 to vector<16x1xf32>
    %222 = arith.divf %220, %221 : vector<16x1xf32>
    %223 = vector.broadcast %215 : vector<16x1xf32> to vector<16x256xf32>
    %224 = arith.subf %207, %223 : vector<16x256xf32>
    %cst_94 = arith.constant 9.99999974E-6 : f32
    %225 = vector.broadcast %cst_94 : f32 to vector<16x1xf32>
    %226 = arith.addf %222, %225 : vector<16x1xf32>
    %227 = math.rsqrt %226 : vector<16x1xf32>
    %228 = vector.broadcast %227 : vector<16x1xf32> to vector<16x256xf32>
    %229 = arith.mulf %224, %228 : vector<16x256xf32>
    %230 = vector.broadcast %209 : vector<1x256xf32> to vector<16x256xf32>
    %231 = arith.mulf %229, %230 : vector<16x256xf32>
    %232 = vector.broadcast %211 : vector<1x256xf32> to vector<16x256xf32>
    %233 = arith.addf %231, %232 : vector<16x256xf32>
    %234 = arith.truncf %233 : vector<16x256xf32> to vector<16x256xbf16>
    %c1_95 = arith.constant 1 : index
    %c0_96 = arith.constant 0 : index
    %c0_97 = arith.constant 0 : index
    %235 = vector.load %arg5[%c1_95, %c0_96, %c0_97] : memref<4x256x640xbf16, #tpu.memory_space<vmem>>, vector<1x256x640xbf16>
    %236 = vector.shape_cast %235 : vector<1x256x640xbf16> to vector<256x640xbf16>
    %cst_98 = arith.constant dense<0.000000e+00> : vector<16x640xf32>
    %237 = tpu.matmul %234, %236, %cst_98 {dimension_numbers = #tpu.dot_dimension_numbers<[1], [0], [0], [1], [0, 0, 1, 1], [], []>} : vector<16x256xbf16>, vector<256x640xbf16>, vector<16x640xf32> -> vector<16x640xf32>
    %c1_99 = arith.constant 1 : index
    %c0_100 = arith.constant 0 : index
    %c0_101 = arith.constant 0 : index
    %238 = vector.load %arg6[%c1_99, %c0_100, %c0_101] : memref<4x1x640xf32, #tpu.memory_space<vmem>>, vector<1x1x640xf32>
    %239 = vector.shape_cast %238 : vector<1x1x640xf32> to vector<1x640xf32>
    %240 = vector.broadcast %239 : vector<1x640xf32> to vector<16x640xf32>
    %241 = arith.addf %237, %240 : vector<16x640xf32>
    %cst_102 = arith.constant 0.000000e+00 : f32
    %242 = vector.broadcast %cst_102 : f32 to vector<16x640xf32>
    %243 = arith.maximumf %241, %242 : vector<16x640xf32>
    %244 = arith.truncf %243 : vector<16x640xf32> to vector<16x640xbf16>
    %c1_103 = arith.constant 1 : index
    %c0_104 = arith.constant 0 : index
    %c0_105 = arith.constant 0 : index
    %245 = vector.load %arg7[%c1_103, %c0_104, %c0_105] : memref<4x640x256xbf16, #tpu.memory_space<vmem>>, vector<1x640x256xbf16>
    %246 = vector.shape_cast %245 : vector<1x640x256xbf16> to vector<640x256xbf16>
    %cst_106 = arith.constant dense<0.000000e+00> : vector<16x256xf32>
    %247 = tpu.matmul %244, %246, %cst_106 {dimension_numbers = #tpu.dot_dimension_numbers<[1], [0], [0], [1], [0, 0, 1, 1], [], []>} : vector<16x640xbf16>, vector<640x256xbf16>, vector<16x256xf32> -> vector<16x256xf32>
    %c1_107 = arith.constant 1 : index
    %c0_108 = arith.constant 0 : index
    %c0_109 = arith.constant 0 : index
    %248 = vector.load %arg8[%c1_107, %c0_108, %c0_109] : memref<4x1x256xf32, #tpu.memory_space<vmem>>, vector<1x1x256xf32>
    %249 = vector.shape_cast %248 : vector<1x1x256xf32> to vector<1x256xf32>
    %250 = vector.broadcast %249 : vector<1x256xf32> to vector<16x256xf32>
    %251 = arith.addf %247, %250 : vector<16x256xf32>
    %252 = arith.addf %233, %251 : vector<16x256xf32>
    %c1_110 = arith.constant 1 : index
    %c0_111 = arith.constant 0 : index
    %c0_112 = arith.constant 0 : index
    %253 = vector.load %arg11[%c1_110, %c0_111, %c0_112] : memref<4x1x256xf32, #tpu.memory_space<vmem>>, vector<1x1x256xf32>
    %254 = vector.shape_cast %253 : vector<1x1x256xf32> to vector<1x256xf32>
    %c1_113 = arith.constant 1 : index
    %c0_114 = arith.constant 0 : index
    %c0_115 = arith.constant 0 : index
    %255 = vector.load %arg12[%c1_113, %c0_114, %c0_115] : memref<4x1x256xf32, #tpu.memory_space<vmem>>, vector<1x1x256xf32>
    %256 = vector.shape_cast %255 : vector<1x1x256xf32> to vector<1x256xf32>
    %cst_116 = arith.constant dense<0.000000e+00> : vector<16xf32>
    %257 = vector.multi_reduction <add>, %252, %cst_116 [1] : vector<16x256xf32> to vector<16xf32>
    %258 = vector.shape_cast %257 : vector<16xf32> to vector<16x1xf32>
    %cst_117 = arith.constant 2.560000e+02 : f32
    %259 = vector.broadcast %cst_117 : f32 to vector<16x1xf32>
    %260 = arith.divf %258, %259 : vector<16x1xf32>
    %261 = vector.broadcast %260 : vector<16x1xf32> to vector<16x256xf32>
    %262 = arith.subf %252, %261 : vector<16x256xf32>
    %263 = arith.mulf %262, %262 : vector<16x256xf32>
    %cst_118 = arith.constant dense<0.000000e+00> : vector<16xf32>
    %264 = vector.multi_reduction <add>, %263, %cst_118 [1] : vector<16x256xf32> to vector<16xf32>
    %265 = vector.shape_cast %264 : vector<16xf32> to vector<16x1xf32>
    %cst_119 = arith.constant 2.560000e+02 : f32
    %266 = vector.broadcast %cst_119 : f32 to vector<16x1xf32>
    %267 = arith.divf %265, %266 : vector<16x1xf32>
    %268 = vector.broadcast %260 : vector<16x1xf32> to vector<16x256xf32>
    %269 = arith.subf %252, %268 : vector<16x256xf32>
    %cst_120 = arith.constant 9.99999974E-6 : f32
    %270 = vector.broadcast %cst_120 : f32 to vector<16x1xf32>
    %271 = arith.addf %267, %270 : vector<16x1xf32>
    %272 = math.rsqrt %271 : vector<16x1xf32>
    %273 = vector.broadcast %272 : vector<16x1xf32> to vector<16x256xf32>
    %274 = arith.mulf %269, %273 : vector<16x256xf32>
    %275 = vector.broadcast %254 : vector<1x256xf32> to vector<16x256xf32>
    %276 = arith.mulf %274, %275 : vector<16x256xf32>
    %277 = vector.broadcast %256 : vector<1x256xf32> to vector<16x256xf32>
    %278 = arith.addf %276, %277 : vector<16x256xf32>
    %279 = arith.truncf %278 : vector<16x256xf32> to vector<16x256xbf16>
    %c2 = arith.constant 2 : index
    %c0_121 = arith.constant 0 : index
    %c0_122 = arith.constant 0 : index
    %280 = vector.load %arg1[%c2, %c0_121, %c0_122] : memref<4x256x768xbf16, #tpu.memory_space<vmem>>, vector<1x256x768xbf16>
    %281 = vector.shape_cast %280 : vector<1x256x768xbf16> to vector<256x768xbf16>
    %cst_123 = arith.constant dense<0.000000e+00> : vector<16x768xf32>
    %282 = tpu.matmul %279, %281, %cst_123 {dimension_numbers = #tpu.dot_dimension_numbers<[1], [0], [0], [1], [0, 0, 1, 1], [], []>} : vector<16x256xbf16>, vector<256x768xbf16>, vector<16x768xf32> -> vector<16x768xf32>
    %c2_124 = arith.constant 2 : index
    %c0_125 = arith.constant 0 : index
    %c0_126 = arith.constant 0 : index
    %283 = vector.load %arg2[%c2_124, %c0_125, %c0_126] : memref<4x1x768xf32, #tpu.memory_space<vmem>>, vector<1x1x768xf32>
    %284 = vector.shape_cast %283 : vector<1x1x768xf32> to vector<1x768xf32>
    %285 = vector.broadcast %284 : vector<1x768xf32> to vector<16x768xf32>
    %286 = arith.addf %282, %285 : vector<16x768xf32>
    %287 = vector.extract_strided_slice %286 {offsets = [0, 0], sizes = [16, 128], strides = [1, 1]} : vector<16x768xf32> to vector<16x128xf32>
    %288 = vector.shape_cast %287 : vector<16x128xf32> to vector<2x8x128xf32>
    %289 = vector.extract_strided_slice %286 {offsets = [0, 256], sizes = [16, 128], strides = [1, 1]} : vector<16x768xf32> to vector<16x128xf32>
    %290 = vector.shape_cast %289 : vector<16x128xf32> to vector<2x8x128xf32>
    %291 = vector.extract_strided_slice %286 {offsets = [0, 512], sizes = [16, 128], strides = [1, 1]} : vector<16x768xf32> to vector<16x128xf32>
    %292 = vector.shape_cast %291 : vector<16x128xf32> to vector<2x8x128xf32>
    %293 = arith.truncf %288 : vector<2x8x128xf32> to vector<2x8x128xbf16>
    %294 = arith.truncf %290 : vector<2x8x128xf32> to vector<2x8x128xbf16>
    "tpu.trace_start"() <{level = 10 : i32, message = "bqd,bkd->bqk"}> : () -> ()
    %cst_127 = arith.constant dense<0.000000e+00> : vector<2x8x8xf32>
    %295 = tpu.matmul %293, %294, %cst_127 {dimension_numbers = #tpu.dot_dimension_numbers<[2], [2], [1], [1], [0, 0, 0, 1, 1, 1], [0], [0]>} : vector<2x8x128xbf16>, vector<2x8x128xbf16>, vector<2x8x8xf32> -> vector<2x8x8xf32>
    "tpu.trace_stop"() : () -> ()
    %cst_128 = arith.constant 0.0883883461 : f32
    %296 = vector.broadcast %cst_128 : f32 to vector<2x8x8xf32>
    %297 = arith.mulf %295, %296 : vector<2x8x8xf32>
    %cst_129 = arith.constant dense<0xFF800000> : vector<2x8xf32>
    %298 = vector.multi_reduction <maximumf>, %297, %cst_129 [2] : vector<2x8x8xf32> to vector<2x8xf32>
    %299 = vector.shape_cast %298 : vector<2x8xf32> to vector<2x8x1xf32>
    %300 = vector.broadcast %299 : vector<2x8x1xf32> to vector<2x8x8xf32>
    %301 = arith.subf %297, %300 : vector<2x8x8xf32>
    %302 = math.exp %301 : vector<2x8x8xf32>
    %cst_130 = arith.constant dense<0.000000e+00> : vector<2x8xf32>
    %303 = vector.multi_reduction <add>, %302, %cst_130 [2] : vector<2x8x8xf32> to vector<2x8xf32>
    %304 = vector.shape_cast %303 : vector<2x8xf32> to vector<2x8x1xf32>
    %305 = tpu.reciprocal %304 {approx = true} : vector<2x8x1xf32> -> vector<2x8x1xf32>
    %306 = vector.broadcast %305 : vector<2x8x1xf32> to vector<2x8x8xf32>
    %307 = arith.mulf %302, %306 : vector<2x8x8xf32>
    %308 = arith.truncf %307 : vector<2x8x8xf32> to vector<2x8x8xbf16>
    %309 = arith.truncf %292 : vector<2x8x128xf32> to vector<2x8x128xbf16>
    "tpu.trace_start"() <{level = 10 : i32, message = "bqk,bkd->bqd"}> : () -> ()
    %cst_131 = arith.constant dense<0.000000e+00> : vector<2x8x128xf32>
    %310 = tpu.matmul %308, %309, %cst_131 {dimension_numbers = #tpu.dot_dimension_numbers<[2], [1], [1], [2], [0, 0, 0, 1, 1, 2], [0], [0]>} : vector<2x8x8xbf16>, vector<2x8x128xbf16>, vector<2x8x128xf32> -> vector<2x8x128xf32>
    "tpu.trace_stop"() : () -> ()
    %311 = vector.shape_cast %310 : vector<2x8x128xf32> to vector<16x128xf32>
    %312 = vector.extract_strided_slice %286 {offsets = [0, 128], sizes = [16, 128], strides = [1, 1]} : vector<16x768xf32> to vector<16x128xf32>
    %313 = vector.shape_cast %312 : vector<16x128xf32> to vector<2x8x128xf32>
    %314 = vector.extract_strided_slice %286 {offsets = [0, 384], sizes = [16, 128], strides = [1, 1]} : vector<16x768xf32> to vector<16x128xf32>
    %315 = vector.shape_cast %314 : vector<16x128xf32> to vector<2x8x128xf32>
    %316 = vector.extract_strided_slice %286 {offsets = [0, 640], sizes = [16, 128], strides = [1, 1]} : vector<16x768xf32> to vector<16x128xf32>
    %317 = vector.shape_cast %316 : vector<16x128xf32> to vector<2x8x128xf32>
    %318 = arith.truncf %313 : vector<2x8x128xf32> to vector<2x8x128xbf16>
    %319 = arith.truncf %315 : vector<2x8x128xf32> to vector<2x8x128xbf16>
    "tpu.trace_start"() <{level = 10 : i32, message = "bqd,bkd->bqk"}> : () -> ()
    %cst_132 = arith.constant dense<0.000000e+00> : vector<2x8x8xf32>
    %320 = tpu.matmul %318, %319, %cst_132 {dimension_numbers = #tpu.dot_dimension_numbers<[2], [2], [1], [1], [0, 0, 0, 1, 1, 1], [0], [0]>} : vector<2x8x128xbf16>, vector<2x8x128xbf16>, vector<2x8x8xf32> -> vector<2x8x8xf32>
    "tpu.trace_stop"() : () -> ()
    %cst_133 = arith.constant 0.0883883461 : f32
    %321 = vector.broadcast %cst_133 : f32 to vector<2x8x8xf32>
    %322 = arith.mulf %320, %321 : vector<2x8x8xf32>
    %cst_134 = arith.constant dense<0xFF800000> : vector<2x8xf32>
    %323 = vector.multi_reduction <maximumf>, %322, %cst_134 [2] : vector<2x8x8xf32> to vector<2x8xf32>
    %324 = vector.shape_cast %323 : vector<2x8xf32> to vector<2x8x1xf32>
    %325 = vector.broadcast %324 : vector<2x8x1xf32> to vector<2x8x8xf32>
    %326 = arith.subf %322, %325 : vector<2x8x8xf32>
    %327 = math.exp %326 : vector<2x8x8xf32>
    %cst_135 = arith.constant dense<0.000000e+00> : vector<2x8xf32>
    %328 = vector.multi_reduction <add>, %327, %cst_135 [2] : vector<2x8x8xf32> to vector<2x8xf32>
    %329 = vector.shape_cast %328 : vector<2x8xf32> to vector<2x8x1xf32>
    %330 = tpu.reciprocal %329 {approx = true} : vector<2x8x1xf32> -> vector<2x8x1xf32>
    %331 = vector.broadcast %330 : vector<2x8x1xf32> to vector<2x8x8xf32>
    %332 = arith.mulf %327, %331 : vector<2x8x8xf32>
    %333 = arith.truncf %332 : vector<2x8x8xf32> to vector<2x8x8xbf16>
    %334 = arith.truncf %317 : vector<2x8x128xf32> to vector<2x8x128xbf16>
    "tpu.trace_start"() <{level = 10 : i32, message = "bqk,bkd->bqd"}> : () -> ()
    %cst_136 = arith.constant dense<0.000000e+00> : vector<2x8x128xf32>
    %335 = tpu.matmul %333, %334, %cst_136 {dimension_numbers = #tpu.dot_dimension_numbers<[2], [1], [1], [2], [0, 0, 0, 1, 1, 2], [0], [0]>} : vector<2x8x8xbf16>, vector<2x8x128xbf16>, vector<2x8x128xf32> -> vector<2x8x128xf32>
    "tpu.trace_stop"() : () -> ()
    %336 = vector.shape_cast %335 : vector<2x8x128xf32> to vector<16x128xf32>
    %337 = tpu.concatenate %311, %336 in 1 : vector<16x128xf32>, vector<16x128xf32> -> vector<16x256xf32>
    %338 = arith.truncf %337 : vector<16x256xf32> to vector<16x256xbf16>
    %c2_137 = arith.constant 2 : index
    %c0_138 = arith.constant 0 : index
    %c0_139 = arith.constant 0 : index
    %339 = vector.load %arg3[%c2_137, %c0_138, %c0_139] : memref<4x256x256xbf16, #tpu.memory_space<vmem>>, vector<1x256x256xbf16>
    %340 = vector.shape_cast %339 : vector<1x256x256xbf16> to vector<256x256xbf16>
    %cst_140 = arith.constant dense<0.000000e+00> : vector<16x256xf32>
    %341 = tpu.matmul %338, %340, %cst_140 {dimension_numbers = #tpu.dot_dimension_numbers<[1], [0], [0], [1], [0, 0, 1, 1], [], []>} : vector<16x256xbf16>, vector<256x256xbf16>, vector<16x256xf32> -> vector<16x256xf32>
    %c2_141 = arith.constant 2 : index
    %c0_142 = arith.constant 0 : index
    %c0_143 = arith.constant 0 : index
    %342 = vector.load %arg4[%c2_141, %c0_142, %c0_143] : memref<4x1x256xf32, #tpu.memory_space<vmem>>, vector<1x1x256xf32>
    %343 = vector.shape_cast %342 : vector<1x1x256xf32> to vector<1x256xf32>
    %344 = vector.broadcast %343 : vector<1x256xf32> to vector<16x256xf32>
    %345 = arith.addf %341, %344 : vector<16x256xf32>
    %346 = arith.addf %278, %345 : vector<16x256xf32>
    %c2_144 = arith.constant 2 : index
    %c0_145 = arith.constant 0 : index
    %c0_146 = arith.constant 0 : index
    %347 = vector.load %arg9[%c2_144, %c0_145, %c0_146] : memref<4x1x256xf32, #tpu.memory_space<vmem>>, vector<1x1x256xf32>
    %348 = vector.shape_cast %347 : vector<1x1x256xf32> to vector<1x256xf32>
    %c2_147 = arith.constant 2 : index
    %c0_148 = arith.constant 0 : index
    %c0_149 = arith.constant 0 : index
    %349 = vector.load %arg10[%c2_147, %c0_148, %c0_149] : memref<4x1x256xf32, #tpu.memory_space<vmem>>, vector<1x1x256xf32>
    %350 = vector.shape_cast %349 : vector<1x1x256xf32> to vector<1x256xf32>
    %cst_150 = arith.constant dense<0.000000e+00> : vector<16xf32>
    %351 = vector.multi_reduction <add>, %346, %cst_150 [1] : vector<16x256xf32> to vector<16xf32>
    %352 = vector.shape_cast %351 : vector<16xf32> to vector<16x1xf32>
    %cst_151 = arith.constant 2.560000e+02 : f32
    %353 = vector.broadcast %cst_151 : f32 to vector<16x1xf32>
    %354 = arith.divf %352, %353 : vector<16x1xf32>
    %355 = vector.broadcast %354 : vector<16x1xf32> to vector<16x256xf32>
    %356 = arith.subf %346, %355 : vector<16x256xf32>
    %357 = arith.mulf %356, %356 : vector<16x256xf32>
    %cst_152 = arith.constant dense<0.000000e+00> : vector<16xf32>
    %358 = vector.multi_reduction <add>, %357, %cst_152 [1] : vector<16x256xf32> to vector<16xf32>
    %359 = vector.shape_cast %358 : vector<16xf32> to vector<16x1xf32>
    %cst_153 = arith.constant 2.560000e+02 : f32
    %360 = vector.broadcast %cst_153 : f32 to vector<16x1xf32>
    %361 = arith.divf %359, %360 : vector<16x1xf32>
    %362 = vector.broadcast %354 : vector<16x1xf32> to vector<16x256xf32>
    %363 = arith.subf %346, %362 : vector<16x256xf32>
    %cst_154 = arith.constant 9.99999974E-6 : f32
    %364 = vector.broadcast %cst_154 : f32 to vector<16x1xf32>
    %365 = arith.addf %361, %364 : vector<16x1xf32>
    %366 = math.rsqrt %365 : vector<16x1xf32>
    %367 = vector.broadcast %366 : vector<16x1xf32> to vector<16x256xf32>
    %368 = arith.mulf %363, %367 : vector<16x256xf32>
    %369 = vector.broadcast %348 : vector<1x256xf32> to vector<16x256xf32>
    %370 = arith.mulf %368, %369 : vector<16x256xf32>
    %371 = vector.broadcast %350 : vector<1x256xf32> to vector<16x256xf32>
    %372 = arith.addf %370, %371 : vector<16x256xf32>
    %373 = arith.truncf %372 : vector<16x256xf32> to vector<16x256xbf16>
    %c2_155 = arith.constant 2 : index
    %c0_156 = arith.constant 0 : index
    %c0_157 = arith.constant 0 : index
    %374 = vector.load %arg5[%c2_155, %c0_156, %c0_157] : memref<4x256x640xbf16, #tpu.memory_space<vmem>>, vector<1x256x640xbf16>
    %375 = vector.shape_cast %374 : vector<1x256x640xbf16> to vector<256x640xbf16>
    %cst_158 = arith.constant dense<0.000000e+00> : vector<16x640xf32>
    %376 = tpu.matmul %373, %375, %cst_158 {dimension_numbers = #tpu.dot_dimension_numbers<[1], [0], [0], [1], [0, 0, 1, 1], [], []>} : vector<16x256xbf16>, vector<256x640xbf16>, vector<16x640xf32> -> vector<16x640xf32>
    %c2_159 = arith.constant 2 : index
    %c0_160 = arith.constant 0 : index
    %c0_161 = arith.constant 0 : index
    %377 = vector.load %arg6[%c2_159, %c0_160, %c0_161] : memref<4x1x640xf32, #tpu.memory_space<vmem>>, vector<1x1x640xf32>
    %378 = vector.shape_cast %377 : vector<1x1x640xf32> to vector<1x640xf32>
    %379 = vector.broadcast %378 : vector<1x640xf32> to vector<16x640xf32>
    %380 = arith.addf %376, %379 : vector<16x640xf32>
    %cst_162 = arith.constant 0.000000e+00 : f32
    %381 = vector.broadcast %cst_162 : f32 to vector<16x640xf32>
    %382 = arith.maximumf %380, %381 : vector<16x640xf32>
    %383 = arith.truncf %382 : vector<16x640xf32> to vector<16x640xbf16>
    %c2_163 = arith.constant 2 : index
    %c0_164 = arith.constant 0 : index
    %c0_165 = arith.constant 0 : index
    %384 = vector.load %arg7[%c2_163, %c0_164, %c0_165] : memref<4x640x256xbf16, #tpu.memory_space<vmem>>, vector<1x640x256xbf16>
    %385 = vector.shape_cast %384 : vector<1x640x256xbf16> to vector<640x256xbf16>
    %cst_166 = arith.constant dense<0.000000e+00> : vector<16x256xf32>
    %386 = tpu.matmul %383, %385, %cst_166 {dimension_numbers = #tpu.dot_dimension_numbers<[1], [0], [0], [1], [0, 0, 1, 1], [], []>} : vector<16x640xbf16>, vector<640x256xbf16>, vector<16x256xf32> -> vector<16x256xf32>
    %c2_167 = arith.constant 2 : index
    %c0_168 = arith.constant 0 : index
    %c0_169 = arith.constant 0 : index
    %387 = vector.load %arg8[%c2_167, %c0_168, %c0_169] : memref<4x1x256xf32, #tpu.memory_space<vmem>>, vector<1x1x256xf32>
    %388 = vector.shape_cast %387 : vector<1x1x256xf32> to vector<1x256xf32>
    %389 = vector.broadcast %388 : vector<1x256xf32> to vector<16x256xf32>
    %390 = arith.addf %386, %389 : vector<16x256xf32>
    %391 = arith.addf %372, %390 : vector<16x256xf32>
    %c2_170 = arith.constant 2 : index
    %c0_171 = arith.constant 0 : index
    %c0_172 = arith.constant 0 : index
    %392 = vector.load %arg11[%c2_170, %c0_171, %c0_172] : memref<4x1x256xf32, #tpu.memory_space<vmem>>, vector<1x1x256xf32>
    %393 = vector.shape_cast %392 : vector<1x1x256xf32> to vector<1x256xf32>
    %c2_173 = arith.constant 2 : index
    %c0_174 = arith.constant 0 : index
    %c0_175 = arith.constant 0 : index
    %394 = vector.load %arg12[%c2_173, %c0_174, %c0_175] : memref<4x1x256xf32, #tpu.memory_space<vmem>>, vector<1x1x256xf32>
    %395 = vector.shape_cast %394 : vector<1x1x256xf32> to vector<1x256xf32>
    %cst_176 = arith.constant dense<0.000000e+00> : vector<16xf32>
    %396 = vector.multi_reduction <add>, %391, %cst_176 [1] : vector<16x256xf32> to vector<16xf32>
    %397 = vector.shape_cast %396 : vector<16xf32> to vector<16x1xf32>
    %cst_177 = arith.constant 2.560000e+02 : f32
    %398 = vector.broadcast %cst_177 : f32 to vector<16x1xf32>
    %399 = arith.divf %397, %398 : vector<16x1xf32>
    %400 = vector.broadcast %399 : vector<16x1xf32> to vector<16x256xf32>
    %401 = arith.subf %391, %400 : vector<16x256xf32>
    %402 = arith.mulf %401, %401 : vector<16x256xf32>
    %cst_178 = arith.constant dense<0.000000e+00> : vector<16xf32>
    %403 = vector.multi_reduction <add>, %402, %cst_178 [1] : vector<16x256xf32> to vector<16xf32>
    %404 = vector.shape_cast %403 : vector<16xf32> to vector<16x1xf32>
    %cst_179 = arith.constant 2.560000e+02 : f32
    %405 = vector.broadcast %cst_179 : f32 to vector<16x1xf32>
    %406 = arith.divf %404, %405 : vector<16x1xf32>
    %407 = vector.broadcast %399 : vector<16x1xf32> to vector<16x256xf32>
    %408 = arith.subf %391, %407 : vector<16x256xf32>
    %cst_180 = arith.constant 9.99999974E-6 : f32
    %409 = vector.broadcast %cst_180 : f32 to vector<16x1xf32>
    %410 = arith.addf %406, %409 : vector<16x1xf32>
    %411 = math.rsqrt %410 : vector<16x1xf32>
    %412 = vector.broadcast %411 : vector<16x1xf32> to vector<16x256xf32>
    %413 = arith.mulf %408, %412 : vector<16x256xf32>
    %414 = vector.broadcast %393 : vector<1x256xf32> to vector<16x256xf32>
    %415 = arith.mulf %413, %414 : vector<16x256xf32>
    %416 = vector.broadcast %395 : vector<1x256xf32> to vector<16x256xf32>
    %417 = arith.addf %415, %416 : vector<16x256xf32>
    %418 = arith.truncf %417 : vector<16x256xf32> to vector<16x256xbf16>
    %c3 = arith.constant 3 : index
    %c0_181 = arith.constant 0 : index
    %c0_182 = arith.constant 0 : index
    %419 = vector.load %arg1[%c3, %c0_181, %c0_182] : memref<4x256x768xbf16, #tpu.memory_space<vmem>>, vector<1x256x768xbf16>
    %420 = vector.shape_cast %419 : vector<1x256x768xbf16> to vector<256x768xbf16>
    %cst_183 = arith.constant dense<0.000000e+00> : vector<16x768xf32>
    %421 = tpu.matmul %418, %420, %cst_183 {dimension_numbers = #tpu.dot_dimension_numbers<[1], [0], [0], [1], [0, 0, 1, 1], [], []>} : vector<16x256xbf16>, vector<256x768xbf16>, vector<16x768xf32> -> vector<16x768xf32>
    %c3_184 = arith.constant 3 : index
    %c0_185 = arith.constant 0 : index
    %c0_186 = arith.constant 0 : index
    %422 = vector.load %arg2[%c3_184, %c0_185, %c0_186] : memref<4x1x768xf32, #tpu.memory_space<vmem>>, vector<1x1x768xf32>
    %423 = vector.shape_cast %422 : vector<1x1x768xf32> to vector<1x768xf32>
    %424 = vector.broadcast %423 : vector<1x768xf32> to vector<16x768xf32>
    %425 = arith.addf %421, %424 : vector<16x768xf32>
    %426 = vector.extract_strided_slice %425 {offsets = [0, 0], sizes = [16, 128], strides = [1, 1]} : vector<16x768xf32> to vector<16x128xf32>
    %427 = vector.shape_cast %426 : vector<16x128xf32> to vector<2x8x128xf32>
    %428 = vector.extract_strided_slice %425 {offsets = [0, 256], sizes = [16, 128], strides = [1, 1]} : vector<16x768xf32> to vector<16x128xf32>
    %429 = vector.shape_cast %428 : vector<16x128xf32> to vector<2x8x128xf32>
    %430 = vector.extract_strided_slice %425 {offsets = [0, 512], sizes = [16, 128], strides = [1, 1]} : vector<16x768xf32> to vector<16x128xf32>
    %431 = vector.shape_cast %430 : vector<16x128xf32> to vector<2x8x128xf32>
    %432 = arith.truncf %427 : vector<2x8x128xf32> to vector<2x8x128xbf16>
    %433 = arith.truncf %429 : vector<2x8x128xf32> to vector<2x8x128xbf16>
    "tpu.trace_start"() <{level = 10 : i32, message = "bqd,bkd->bqk"}> : () -> ()
    %cst_187 = arith.constant dense<0.000000e+00> : vector<2x8x8xf32>
    %434 = tpu.matmul %432, %433, %cst_187 {dimension_numbers = #tpu.dot_dimension_numbers<[2], [2], [1], [1], [0, 0, 0, 1, 1, 1], [0], [0]>} : vector<2x8x128xbf16>, vector<2x8x128xbf16>, vector<2x8x8xf32> -> vector<2x8x8xf32>
    "tpu.trace_stop"() : () -> ()
    %cst_188 = arith.constant 0.0883883461 : f32
    %435 = vector.broadcast %cst_188 : f32 to vector<2x8x8xf32>
    %436 = arith.mulf %434, %435 : vector<2x8x8xf32>
    %cst_189 = arith.constant dense<0xFF800000> : vector<2x8xf32>
    %437 = vector.multi_reduction <maximumf>, %436, %cst_189 [2] : vector<2x8x8xf32> to vector<2x8xf32>
    %438 = vector.shape_cast %437 : vector<2x8xf32> to vector<2x8x1xf32>
    %439 = vector.broadcast %438 : vector<2x8x1xf32> to vector<2x8x8xf32>
    %440 = arith.subf %436, %439 : vector<2x8x8xf32>
    %441 = math.exp %440 : vector<2x8x8xf32>
    %cst_190 = arith.constant dense<0.000000e+00> : vector<2x8xf32>
    %442 = vector.multi_reduction <add>, %441, %cst_190 [2] : vector<2x8x8xf32> to vector<2x8xf32>
    %443 = vector.shape_cast %442 : vector<2x8xf32> to vector<2x8x1xf32>
    %444 = tpu.reciprocal %443 {approx = true} : vector<2x8x1xf32> -> vector<2x8x1xf32>
    %445 = vector.broadcast %444 : vector<2x8x1xf32> to vector<2x8x8xf32>
    %446 = arith.mulf %441, %445 : vector<2x8x8xf32>
    %447 = arith.truncf %446 : vector<2x8x8xf32> to vector<2x8x8xbf16>
    %448 = arith.truncf %431 : vector<2x8x128xf32> to vector<2x8x128xbf16>
    "tpu.trace_start"() <{level = 10 : i32, message = "bqk,bkd->bqd"}> : () -> ()
    %cst_191 = arith.constant dense<0.000000e+00> : vector<2x8x128xf32>
    %449 = tpu.matmul %447, %448, %cst_191 {dimension_numbers = #tpu.dot_dimension_numbers<[2], [1], [1], [2], [0, 0, 0, 1, 1, 2], [0], [0]>} : vector<2x8x8xbf16>, vector<2x8x128xbf16>, vector<2x8x128xf32> -> vector<2x8x128xf32>
    "tpu.trace_stop"() : () -> ()
    %450 = vector.shape_cast %449 : vector<2x8x128xf32> to vector<16x128xf32>
    %451 = vector.extract_strided_slice %425 {offsets = [0, 128], sizes = [16, 128], strides = [1, 1]} : vector<16x768xf32> to vector<16x128xf32>
    %452 = vector.shape_cast %451 : vector<16x128xf32> to vector<2x8x128xf32>
    %453 = vector.extract_strided_slice %425 {offsets = [0, 384], sizes = [16, 128], strides = [1, 1]} : vector<16x768xf32> to vector<16x128xf32>
    %454 = vector.shape_cast %453 : vector<16x128xf32> to vector<2x8x128xf32>
    %455 = vector.extract_strided_slice %425 {offsets = [0, 640], sizes = [16, 128], strides = [1, 1]} : vector<16x768xf32> to vector<16x128xf32>
    %456 = vector.shape_cast %455 : vector<16x128xf32> to vector<2x8x128xf32>
    %457 = arith.truncf %452 : vector<2x8x128xf32> to vector<2x8x128xbf16>
    %458 = arith.truncf %454 : vector<2x8x128xf32> to vector<2x8x128xbf16>
    "tpu.trace_start"() <{level = 10 : i32, message = "bqd,bkd->bqk"}> : () -> ()
    %cst_192 = arith.constant dense<0.000000e+00> : vector<2x8x8xf32>
    %459 = tpu.matmul %457, %458, %cst_192 {dimension_numbers = #tpu.dot_dimension_numbers<[2], [2], [1], [1], [0, 0, 0, 1, 1, 1], [0], [0]>} : vector<2x8x128xbf16>, vector<2x8x128xbf16>, vector<2x8x8xf32> -> vector<2x8x8xf32>
    "tpu.trace_stop"() : () -> ()
    %cst_193 = arith.constant 0.0883883461 : f32
    %460 = vector.broadcast %cst_193 : f32 to vector<2x8x8xf32>
    %461 = arith.mulf %459, %460 : vector<2x8x8xf32>
    %cst_194 = arith.constant dense<0xFF800000> : vector<2x8xf32>
    %462 = vector.multi_reduction <maximumf>, %461, %cst_194 [2] : vector<2x8x8xf32> to vector<2x8xf32>
    %463 = vector.shape_cast %462 : vector<2x8xf32> to vector<2x8x1xf32>
    %464 = vector.broadcast %463 : vector<2x8x1xf32> to vector<2x8x8xf32>
    %465 = arith.subf %461, %464 : vector<2x8x8xf32>
    %466 = math.exp %465 : vector<2x8x8xf32>
    %cst_195 = arith.constant dense<0.000000e+00> : vector<2x8xf32>
    %467 = vector.multi_reduction <add>, %466, %cst_195 [2] : vector<2x8x8xf32> to vector<2x8xf32>
    %468 = vector.shape_cast %467 : vector<2x8xf32> to vector<2x8x1xf32>
    %469 = tpu.reciprocal %468 {approx = true} : vector<2x8x1xf32> -> vector<2x8x1xf32>
    %470 = vector.broadcast %469 : vector<2x8x1xf32> to vector<2x8x8xf32>
    %471 = arith.mulf %466, %470 : vector<2x8x8xf32>
    %472 = arith.truncf %471 : vector<2x8x8xf32> to vector<2x8x8xbf16>
    %473 = arith.truncf %456 : vector<2x8x128xf32> to vector<2x8x128xbf16>
    "tpu.trace_start"() <{level = 10 : i32, message = "bqk,bkd->bqd"}> : () -> ()
    %cst_196 = arith.constant dense<0.000000e+00> : vector<2x8x128xf32>
    %474 = tpu.matmul %472, %473, %cst_196 {dimension_numbers = #tpu.dot_dimension_numbers<[2], [1], [1], [2], [0, 0, 0, 1, 1, 2], [0], [0]>} : vector<2x8x8xbf16>, vector<2x8x128xbf16>, vector<2x8x128xf32> -> vector<2x8x128xf32>
    "tpu.trace_stop"() : () -> ()
    %475 = vector.shape_cast %474 : vector<2x8x128xf32> to vector<16x128xf32>
    %476 = tpu.concatenate %450, %475 in 1 : vector<16x128xf32>, vector<16x128xf32> -> vector<16x256xf32>
    %477 = arith.truncf %476 : vector<16x256xf32> to vector<16x256xbf16>
    %c3_197 = arith.constant 3 : index
    %c0_198 = arith.constant 0 : index
    %c0_199 = arith.constant 0 : index
    %478 = vector.load %arg3[%c3_197, %c0_198, %c0_199] : memref<4x256x256xbf16, #tpu.memory_space<vmem>>, vector<1x256x256xbf16>
    %479 = vector.shape_cast %478 : vector<1x256x256xbf16> to vector<256x256xbf16>
    %cst_200 = arith.constant dense<0.000000e+00> : vector<16x256xf32>
    %480 = tpu.matmul %477, %479, %cst_200 {dimension_numbers = #tpu.dot_dimension_numbers<[1], [0], [0], [1], [0, 0, 1, 1], [], []>} : vector<16x256xbf16>, vector<256x256xbf16>, vector<16x256xf32> -> vector<16x256xf32>
    %c3_201 = arith.constant 3 : index
    %c0_202 = arith.constant 0 : index
    %c0_203 = arith.constant 0 : index
    %481 = vector.load %arg4[%c3_201, %c0_202, %c0_203] : memref<4x1x256xf32, #tpu.memory_space<vmem>>, vector<1x1x256xf32>
    %482 = vector.shape_cast %481 : vector<1x1x256xf32> to vector<1x256xf32>
    %483 = vector.broadcast %482 : vector<1x256xf32> to vector<16x256xf32>
    %484 = arith.addf %480, %483 : vector<16x256xf32>
    %485 = arith.addf %417, %484 : vector<16x256xf32>
    %c3_204 = arith.constant 3 : index
    %c0_205 = arith.constant 0 : index
    %c0_206 = arith.constant 0 : index
    %486 = vector.load %arg9[%c3_204, %c0_205, %c0_206] : memref<4x1x256xf32, #tpu.memory_space<vmem>>, vector<1x1x256xf32>
    %487 = vector.shape_cast %486 : vector<1x1x256xf32> to vector<1x256xf32>
    %c3_207 = arith.constant 3 : index
    %c0_208 = arith.constant 0 : index
    %c0_209 = arith.constant 0 : index
    %488 = vector.load %arg10[%c3_207, %c0_208, %c0_209] : memref<4x1x256xf32, #tpu.memory_space<vmem>>, vector<1x1x256xf32>
    %489 = vector.shape_cast %488 : vector<1x1x256xf32> to vector<1x256xf32>
    %cst_210 = arith.constant dense<0.000000e+00> : vector<16xf32>
    %490 = vector.multi_reduction <add>, %485, %cst_210 [1] : vector<16x256xf32> to vector<16xf32>
    %491 = vector.shape_cast %490 : vector<16xf32> to vector<16x1xf32>
    %cst_211 = arith.constant 2.560000e+02 : f32
    %492 = vector.broadcast %cst_211 : f32 to vector<16x1xf32>
    %493 = arith.divf %491, %492 : vector<16x1xf32>
    %494 = vector.broadcast %493 : vector<16x1xf32> to vector<16x256xf32>
    %495 = arith.subf %485, %494 : vector<16x256xf32>
    %496 = arith.mulf %495, %495 : vector<16x256xf32>
    %cst_212 = arith.constant dense<0.000000e+00> : vector<16xf32>
    %497 = vector.multi_reduction <add>, %496, %cst_212 [1] : vector<16x256xf32> to vector<16xf32>
    %498 = vector.shape_cast %497 : vector<16xf32> to vector<16x1xf32>
    %cst_213 = arith.constant 2.560000e+02 : f32
    %499 = vector.broadcast %cst_213 : f32 to vector<16x1xf32>
    %500 = arith.divf %498, %499 : vector<16x1xf32>
    %501 = vector.broadcast %493 : vector<16x1xf32> to vector<16x256xf32>
    %502 = arith.subf %485, %501 : vector<16x256xf32>
    %cst_214 = arith.constant 9.99999974E-6 : f32
    %503 = vector.broadcast %cst_214 : f32 to vector<16x1xf32>
    %504 = arith.addf %500, %503 : vector<16x1xf32>
    %505 = math.rsqrt %504 : vector<16x1xf32>
    %506 = vector.broadcast %505 : vector<16x1xf32> to vector<16x256xf32>
    %507 = arith.mulf %502, %506 : vector<16x256xf32>
    %508 = vector.broadcast %487 : vector<1x256xf32> to vector<16x256xf32>
    %509 = arith.mulf %507, %508 : vector<16x256xf32>
    %510 = vector.broadcast %489 : vector<1x256xf32> to vector<16x256xf32>
    %511 = arith.addf %509, %510 : vector<16x256xf32>
    %512 = arith.truncf %511 : vector<16x256xf32> to vector<16x256xbf16>
    %c3_215 = arith.constant 3 : index
    %c0_216 = arith.constant 0 : index
    %c0_217 = arith.constant 0 : index
    %513 = vector.load %arg5[%c3_215, %c0_216, %c0_217] : memref<4x256x640xbf16, #tpu.memory_space<vmem>>, vector<1x256x640xbf16>
    %514 = vector.shape_cast %513 : vector<1x256x640xbf16> to vector<256x640xbf16>
    %cst_218 = arith.constant dense<0.000000e+00> : vector<16x640xf32>
    %515 = tpu.matmul %512, %514, %cst_218 {dimension_numbers = #tpu.dot_dimension_numbers<[1], [0], [0], [1], [0, 0, 1, 1], [], []>} : vector<16x256xbf16>, vector<256x640xbf16>, vector<16x640xf32> -> vector<16x640xf32>
    %c3_219 = arith.constant 3 : index
    %c0_220 = arith.constant 0 : index
    %c0_221 = arith.constant 0 : index
    %516 = vector.load %arg6[%c3_219, %c0_220, %c0_221] : memref<4x1x640xf32, #tpu.memory_space<vmem>>, vector<1x1x640xf32>
    %517 = vector.shape_cast %516 : vector<1x1x640xf32> to vector<1x640xf32>
    %518 = vector.broadcast %517 : vector<1x640xf32> to vector<16x640xf32>
    %519 = arith.addf %515, %518 : vector<16x640xf32>
    %cst_222 = arith.constant 0.000000e+00 : f32
    %520 = vector.broadcast %cst_222 : f32 to vector<16x640xf32>
    %521 = arith.maximumf %519, %520 : vector<16x640xf32>
    %522 = arith.truncf %521 : vector<16x640xf32> to vector<16x640xbf16>
    %c3_223 = arith.constant 3 : index
    %c0_224 = arith.constant 0 : index
    %c0_225 = arith.constant 0 : index
    %523 = vector.load %arg7[%c3_223, %c0_224, %c0_225] : memref<4x640x256xbf16, #tpu.memory_space<vmem>>, vector<1x640x256xbf16>
    %524 = vector.shape_cast %523 : vector<1x640x256xbf16> to vector<640x256xbf16>
    %cst_226 = arith.constant dense<0.000000e+00> : vector<16x256xf32>
    %525 = tpu.matmul %522, %524, %cst_226 {dimension_numbers = #tpu.dot_dimension_numbers<[1], [0], [0], [1], [0, 0, 1, 1], [], []>} : vector<16x640xbf16>, vector<640x256xbf16>, vector<16x256xf32> -> vector<16x256xf32>
    %c3_227 = arith.constant 3 : index
    %c0_228 = arith.constant 0 : index
    %c0_229 = arith.constant 0 : index
    %526 = vector.load %arg8[%c3_227, %c0_228, %c0_229] : memref<4x1x256xf32, #tpu.memory_space<vmem>>, vector<1x1x256xf32>
    %527 = vector.shape_cast %526 : vector<1x1x256xf32> to vector<1x256xf32>
    %528 = vector.broadcast %527 : vector<1x256xf32> to vector<16x256xf32>
    %529 = arith.addf %525, %528 : vector<16x256xf32>
    %530 = arith.addf %511, %529 : vector<16x256xf32>
    %c3_230 = arith.constant 3 : index
    %c0_231 = arith.constant 0 : index
    %c0_232 = arith.constant 0 : index
    %531 = vector.load %arg11[%c3_230, %c0_231, %c0_232] : memref<4x1x256xf32, #tpu.memory_space<vmem>>, vector<1x1x256xf32>
    %532 = vector.shape_cast %531 : vector<1x1x256xf32> to vector<1x256xf32>
    %c3_233 = arith.constant 3 : index
    %c0_234 = arith.constant 0 : index
    %c0_235 = arith.constant 0 : index
    %533 = vector.load %arg12[%c3_233, %c0_234, %c0_235] : memref<4x1x256xf32, #tpu.memory_space<vmem>>, vector<1x1x256xf32>
    %534 = vector.shape_cast %533 : vector<1x1x256xf32> to vector<1x256xf32>
    %cst_236 = arith.constant dense<0.000000e+00> : vector<16xf32>
    %535 = vector.multi_reduction <add>, %530, %cst_236 [1] : vector<16x256xf32> to vector<16xf32>
    %536 = vector.shape_cast %535 : vector<16xf32> to vector<16x1xf32>
    %cst_237 = arith.constant 2.560000e+02 : f32
    %537 = vector.broadcast %cst_237 : f32 to vector<16x1xf32>
    %538 = arith.divf %536, %537 : vector<16x1xf32>
    %539 = vector.broadcast %538 : vector<16x1xf32> to vector<16x256xf32>
    %540 = arith.subf %530, %539 : vector<16x256xf32>
    %541 = arith.mulf %540, %540 : vector<16x256xf32>
    %cst_238 = arith.constant dense<0.000000e+00> : vector<16xf32>
    %542 = vector.multi_reduction <add>, %541, %cst_238 [1] : vector<16x256xf32> to vector<16xf32>
    %543 = vector.shape_cast %542 : vector<16xf32> to vector<16x1xf32>
    %cst_239 = arith.constant 2.560000e+02 : f32
    %544 = vector.broadcast %cst_239 : f32 to vector<16x1xf32>
    %545 = arith.divf %543, %544 : vector<16x1xf32>
    %546 = vector.broadcast %538 : vector<16x1xf32> to vector<16x256xf32>
    %547 = arith.subf %530, %546 : vector<16x256xf32>
    %cst_240 = arith.constant 9.99999974E-6 : f32
    %548 = vector.broadcast %cst_240 : f32 to vector<16x1xf32>
    %549 = arith.addf %545, %548 : vector<16x1xf32>
    %550 = math.rsqrt %549 : vector<16x1xf32>
    %551 = vector.broadcast %550 : vector<16x1xf32> to vector<16x256xf32>
    %552 = arith.mulf %547, %551 : vector<16x256xf32>
    %553 = vector.broadcast %532 : vector<1x256xf32> to vector<16x256xf32>
    %554 = arith.mulf %552, %553 : vector<16x256xf32>
    %555 = vector.broadcast %534 : vector<1x256xf32> to vector<16x256xf32>
    %556 = arith.addf %554, %555 : vector<16x256xf32>
    %557 = vector.shape_cast %556 : vector<16x256xf32> to vector<2x8x256xf32>
    %558 = vector.extract_strided_slice %557 {offsets = [0, 0, 0], sizes = [2, 1, 256], strides = [1, 1, 1]} : vector<2x8x256xf32> to vector<2x1x256xf32>
    %559 = vector.shape_cast %558 : vector<2x1x256xf32> to vector<2x256xf32>
    %c0_241 = arith.constant 0 : index
    %c0_242 = arith.constant 0 : index
    %560 = vector.load %arg13[%c0_241, %c0_242] : memref<256x1xf32, #tpu.memory_space<vmem>>, vector<256x1xf32>
    %cst_243 = arith.constant dense<0.000000e+00> : vector<2x1xf32>
    %561 = tpu.matmul %559, %560, %cst_243 {dimension_numbers = #tpu.dot_dimension_numbers<[1], [0], [0], [1], [0, 0, 1, 1], [], []>} : vector<2x256xf32>, vector<256x1xf32>, vector<2x1xf32> -> vector<2x1xf32>
    %c0_244 = arith.constant 0 : index
    %c0_245 = arith.constant 0 : index
    %562 = vector.load %arg14[%c0_244, %c0_245] : memref<1x1xf32, #tpu.memory_space<vmem>>, vector<1x1xf32>
    %563 = vector.broadcast %562 : vector<1x1xf32> to vector<2x1xf32>
    %564 = arith.addf %561, %563 : vector<2x1xf32>
    %c0_246 = arith.constant 0 : index
    %c0_247 = arith.constant 0 : index
    %565 = vector.load %arg15[%c0_246, %c0_247] : memref<2x1xf32, #tpu.memory_space<vmem>>, vector<2x1xf32>
    tpu.vector_store %arg15[%c0_246, %c0_247], %564 {strides = array<i32>} : memref<2x1xf32, #tpu.memory_space<vmem>>, vector<2x1xf32>,
    return
  }
}

</mosaic_0001>

<llo_original>
// kernel: tpu_custom_call.1
$region0: #{tpu_custom_call.1}
  #allocation0 [shape = 'u32[]', space=smem, size = 0x4, offset = 0x4, fixed_abs, tag = 'smem constant byte address 0x4 - core index']
  #allocation1 [shape = 'u32[144,128]{1,0:T(1,128)}', space=vmem, size = 0x12000, scoped, tag = 'internal scratch']
  #allocation2 [shape = 'f32[1,1]{1,0:T(1,128)S(1)}', space=vmem, size = 0x200, scoped, tag = 'scoped memory for tpu_custom_call.1']
  %s0 = inlined_call_operand.hbm [shape: f32[16,256], index: 0, kind: input, shape index: {}]
  %s1 = inlined_call_operand.hbm [shape: bf16[4,256,768], index: 1, kind: input, shape index: {}]
  %s2 = inlined_call_operand.hbm [shape: f32[4,1,768], index: 2, kind: input, shape index: {}]
  %s3 = inlined_call_operand.hbm [shape: bf16[4,256,256], index: 3, kind: input, shape index: {}]
  %s4 = inlined_call_operand.hbm [shape: f32[4,1,256], index: 4, kind: input, shape index: {}]
  %s5 = inlined_call_operand.hbm [shape: bf16[4,256,640], index: 5, kind: input, shape index: {}]
  %s6 = inlined_call_operand.hbm [shape: f32[4,1,640], index: 6, kind: input, shape index: {}]
  %s7 = inlined_call_operand.hbm [shape: bf16[4,640,256], index: 7, kind: input, shape index: {}]
  %s8 = inlined_call_operand.hbm [shape: f32[4,1,256], index: 8, kind: input, shape index: {}]
  %s9 = inlined_call_operand.hbm [shape: f32[4,1,256], index: 9, kind: input, shape index: {}]
  %s10 = inlined_call_operand.hbm [shape: f32[4,1,256], index: 10, kind: input, shape index: {}]
  %s11 = inlined_call_operand.hbm [shape: f32[4,1,256], index: 11, kind: input, shape index: {}]
  %s12 = inlined_call_operand.hbm [shape: f32[4,1,256], index: 12, kind: input, shape index: {}]
  %s13 = inlined_call_operand.vmem [shape: f32[256,1], index: 13, kind: input, shape index: {}]
  %s14 = inlined_call_operand.<no memory space> [shape: f32[1,1], index: 14, kind: input, shape index: {}]
  %s15 = inlined_call_operand.vmem [shape: f32[2,1], index: 15, kind: output, shape index: {}]
  %s16 = sld [smem:[#allocation0]]
  $region122: #{tpu_custom_call.1} parent=0
    _
  %s18 = ssub.s32 1, %s16
  %s19 = scalar_select 0, %s18, %s16
  %v20 = vstv %s14
  %21 = vst [vmem:[#allocation2] sm:$0x1] %v20
  $region1: #{tpu_custom_call.1} parent=0
    #allocation3 [shape = 'u8[16384]{0}', space=vmem, size = 0x4000, scoped, tag = 'input window, operand 0, single buffered']
    #allocation4 [shape = 's32[1]{0}', space=sflag, size = 0x4, scoped, tag = 'scoped memory for tpu_custom_call.1']
    #allocation5 [shape = 'u8[1572864]{0}', space=vmem, size = 0x180000, scoped, tag = 'input window, operand 1, single buffered']
    #allocation6 [shape = 's32[1]{0}', space=sflag, size = 0x4, scoped, tag = 'scoped memory for tpu_custom_call.1']
    #allocation7 [shape = 'u8[12288]{0}', space=vmem, size = 0x3000, scoped, tag = 'input window, operand 2, single buffered']
    #allocation8 [shape = 'u8[524288]{0}', space=vmem, size = 0x80000, scoped, tag = 'input window, operand 3, single buffered']
    #allocation9 [shape = 's32[1]{0}', space=sflag, size = 0x4, scoped, tag = 'scoped memory for tpu_custom_call.1']
    #allocation10 [shape = 'u8[4096]{0}', space=vmem, size = 0x1000, scoped, tag = 'input window, operand 4, single buffered']
    #allocation11 [shape = 'u8[1310720]{0}', space=vmem, size = 0x140000, scoped, tag = 'input window, operand 5, single buffered']
    #allocation12 [shape = 's32[1]{0}', space=sflag, size = 0x4, scoped, tag = 'scoped memory for tpu_custom_call.1']
    #allocation13 [shape = 'u8[10240]{0}', space=vmem, size = 0x2800, scoped, tag = 'input window, operand 6, single buffered']
    #allocation14 [shape = 'u8[1310720]{0}', space=vmem, size = 0x140000, scoped, tag = 'input window, operand 7, single buffered']
    #allocation15 [shape = 's32[1]{0}', space=sflag, size = 0x4, scoped, tag = 'scoped memory for tpu_custom_call.1']
    #allocation16 [shape = 'u8[4096]{0}', space=vmem, size = 0x1000, scoped, tag = 'input window, operand 8, single buffered']
    #allocation17 [shape = 'u8[4096]{0}', space=vmem, size = 0x1000, scoped, tag = 'input window, operand 9, single buffered']
    #allocation18 [shape = 's32[1]{0}', space=sflag, size = 0x4, scoped, tag = 'scoped memory for tpu_custom_call.1']
    #allocation19 [shape = 'u8[4096]{0}', space=vmem, size = 0x1000, scoped, tag = 'input window, operand 10, single buffered']
    #allocation20 [shape = 'u8[4096]{0}', space=vmem, size = 0x1000, scoped, tag = 'input window, operand 11, single buffered']
    #allocation21 [shape = 's32[1]{0}', space=sflag, size = 0x4, scoped, tag = 'scoped memory for tpu_custom_call.1']
    #allocation22 [shape = 'u8[4096]{0}', space=vmem, size = 0x1000, scoped, tag = 'input window, operand 12, single buffered']
    %22 = vsyncpa [#allocation4], 0
    %23 = vsyncpa [#allocation6], 0
    %24 = vsyncpa [#allocation9], 0
    %25 = vsyncpa [#allocation12], 0
    %26 = vsyncpa [#allocation15], 0
    %27 = vsyncpa [#allocation18], 0
    %28 = vsyncpa [#allocation21], 0
    // Predicated region
    $region2: #{tpu_custom_call.1} parent=1 // pred_check
      _
    $region3: #{tpu_custom_call.1} parent=1 // pred_check_branch
      %30 = sbr.rel (0) target = $region5
    $region4: #{tpu_custom_call.1} parent=1 // pred_region
      %s32 = ssub.s32 512, 512
      %33 = vsyncadd [#allocation4], %s32
      %s34 = sshll.u32 [#allocation3], 4
      %s35 = int_to_ptr.vmem [resolvable:$true] %s34
      %40 = dma.hbm_to_vmem [thread:$0]  %s0, 512, %s35, [#allocation4], 256, 256, 16
    $region5: #{tpu_custom_call.1} parent=1 // pred_fallthru
      _
    // Predicated region
    $region6: #{tpu_custom_call.1} parent=1 // pred_check
      _
    $region7: #{tpu_custom_call.1} parent=1 // pred_check_branch
      %42 = sbr.rel (0) target = $region9
    $region8: #{tpu_custom_call.1} parent=1 // pred_region
      %s44 = ssub.s32 49152, 49152
      %45 = vsyncadd [#allocation6], %s44
      %s46 = sshll.u32 [#allocation5], 4
      %s47 = int_to_ptr.vmem [resolvable:$true] %s46
      %52 = dma.hbm_to_vmem [thread:$0]  %s1, 49152, %s47, [#allocation6], 384, 384, 24
    $region9: #{tpu_custom_call.1} parent=1 // pred_fallthru
      _
    // Predicated region
    $region10: #{tpu_custom_call.1} parent=1 // pred_check
      _
    $region11: #{tpu_custom_call.1} parent=1 // pred_check_branch
      %54 = sbr.rel (0) target = $region13
    $region12: #{tpu_custom_call.1} parent=1 // pred_region
      %s56 = ssub.s32 384, 384
      %57 = vsyncadd [#allocation6], %s56
      %s58 = sshll.u32 [#allocation7], 4
      %s59 = int_to_ptr.vmem [resolvable:$true] %s58
      %64 = dma.hbm_to_vmem [thread:$0]  %s2, 384, %s59, [#allocation6], 96, 96, 6
    $region13: #{tpu_custom_call.1} parent=1 // pred_fallthru
      _
    // Predicated region
    $region14: #{tpu_custom_call.1} parent=1 // pred_check
      _
    $region15: #{tpu_custom_call.1} parent=1 // pred_check_branch
      %66 = sbr.rel (0) target = $region17
    $region16: #{tpu_custom_call.1} parent=1 // pred_region
      %s68 = ssub.s32 16384, 16384
      %69 = vsyncadd [#allocation9], %s68
      %s70 = sshll.u32 [#allocation8], 4
      %s71 = int_to_ptr.vmem [resolvable:$true] %s70
      %76 = dma.hbm_to_vmem [thread:$0]  %s3, 16384, %s71, [#allocation9], 128, 128, 8
    $region17: #{tpu_custom_call.1} parent=1 // pred_fallthru
      _
    // Predicated region
    $region18: #{tpu_custom_call.1} parent=1 // pred_check
      _
    $region19: #{tpu_custom_call.1} parent=1 // pred_check_branch
      %78 = sbr.rel (0) target = $region21
    $region20: #{tpu_custom_call.1} parent=1 // pred_region
      %s80 = ssub.s32 128, 128
      %81 = vsyncadd [#allocation9], %s80
      %s82 = sshll.u32 [#allocation10], 4
      %s83 = int_to_ptr.vmem [resolvable:$true] %s82
      %88 = dma.hbm_to_vmem [thread:$0]  %s4, 128, %s83, [#allocation9], 32, 32, 2
    $region21: #{tpu_custom_call.1} parent=1 // pred_fallthru
      _
    // Predicated region
    $region22: #{tpu_custom_call.1} parent=1 // pred_check
      _
    $region23: #{tpu_custom_call.1} parent=1 // pred_check_branch
      %90 = sbr.rel (0) target = $region25
    $region24: #{tpu_custom_call.1} parent=1 // pred_region
      %s92 = ssub.s32 40960, 40960
      %93 = vsyncadd [#allocation12], %s92
      %s94 = sshll.u32 [#allocation11], 4
      %s95 = int_to_ptr.vmem [resolvable:$true] %s94
      %100 = dma.hbm_to_vmem [thread:$0]  %s5, 40960, %s95, [#allocation12], 320, 320, 20
    $region25: #{tpu_custom_call.1} parent=1 // pred_fallthru
      _
    // Predicated region
    $region26: #{tpu_custom_call.1} parent=1 // pred_check
      _
    $region27: #{tpu_custom_call.1} parent=1 // pred_check_branch
      %102 = sbr.rel (0) target = $region29
    $region28: #{tpu_custom_call.1} parent=1 // pred_region
      %s104 = ssub.s32 320, 320
      %105 = vsyncadd [#allocation12], %s104
      %s106 = sshll.u32 [#allocation13], 4
      %s107 = int_to_ptr.vmem [resolvable:$true] %s106
      %112 = dma.hbm_to_vmem [thread:$0]  %s6, 320, %s107, [#allocation12], 80, 80, 5
    $region29: #{tpu_custom_call.1} parent=1 // pred_fallthru
      _
    // Predicated region
    $region30: #{tpu_custom_call.1} parent=1 // pred_check
      _
    $region31: #{tpu_custom_call.1} parent=1 // pred_check_branch
      %114 = sbr.rel (0) target = $region33
    $region32: #{tpu_custom_call.1} parent=1 // pred_region
      %s116 = ssub.s32 40960, 40960
      %117 = vsyncadd [#allocation15], %s116
      %s118 = sshll.u32 [#allocation14], 4
      %s119 = int_to_ptr.vmem [resolvable:$true] %s118
      %124 = dma.hbm_to_vmem [thread:$0]  %s7, 40960, %s119, [#allocation15], 128, 128, 8
    $region33: #{tpu_custom_call.1} parent=1 // pred_fallthru
      _
    // Predicated region
    $region34: #{tpu_custom_call.1} parent=1 // pred_check
      _
    $region35: #{tpu_custom_call.1} parent=1 // pred_check_branch
      %126 = sbr.rel (0) target = $region37
    $region36: #{tpu_custom_call.1} parent=1 // pred_region
      %s128 = ssub.s32 128, 128
      %129 = vsyncadd [#allocation15], %s128
      %s130 = sshll.u32 [#allocation16], 4
      %s131 = int_to_ptr.vmem [resolvable:$true] %s130
      %136 = dma.hbm_to_vmem [thread:$0]  %s8, 128, %s131, [#allocation15], 32, 32, 2
    $region37: #{tpu_custom_call.1} parent=1 // pred_fallthru
      _
    // Predicated region
    $region38: #{tpu_custom_call.1} parent=1 // pred_check
      _
    $region39: #{tpu_custom_call.1} parent=1 // pred_check_branch
      %138 = sbr.rel (0) target = $region41
    $region40: #{tpu_custom_call.1} parent=1 // pred_region
      %s140 = ssub.s32 128, 128
      %141 = vsyncadd [#allocation18], %s140
      %s142 = sshll.u32 [#allocation17], 4
      %s143 = int_to_ptr.vmem [resolvable:$true] %s142
      %148 = dma.hbm_to_vmem [thread:$0]  %s9, 128, %s143, [#allocation18], 32, 32, 2
    $region41: #{tpu_custom_call.1} parent=1 // pred_fallthru
      _
    // Predicated region
    $region42: #{tpu_custom_call.1} parent=1 // pred_check
      _
    $region43: #{tpu_custom_call.1} parent=1 // pred_check_branch
      %150 = sbr.rel (0) target = $region45
    $region44: #{tpu_custom_call.1} parent=1 // pred_region
      %s152 = ssub.s32 128, 128
      %153 = vsyncadd [#allocation18], %s152
      %s154 = sshll.u32 [#allocation19], 4
      %s155 = int_to_ptr.vmem [resolvable:$true] %s154
      %160 = dma.hbm_to_vmem [thread:$0]  %s10, 128, %s155, [#allocation18], 32, 32, 2
    $region45: #{tpu_custom_call.1} parent=1 // pred_fallthru
      _
    // Predicated region
    $region46: #{tpu_custom_call.1} parent=1 // pred_check
      _
    $region47: #{tpu_custom_call.1} parent=1 // pred_check_branch
      %162 = sbr.rel (0) target = $region49
    $region48: #{tpu_custom_call.1} parent=1 // pred_region
      %s164 = ssub.s32 128, 128
      %165 = vsyncadd [#allocation21], %s164
      %s166 = sshll.u32 [#allocation20], 4
      %s167 = int_to_ptr.vmem [resolvable:$true] %s166
      %172 = dma.hbm_to_vmem [thread:$0]  %s11, 128, %s167, [#allocation21], 32, 32, 2
    $region49: #{tpu_custom_call.1} parent=1 // pred_fallthru
      _
    // Predicated region
    $region50: #{tpu_custom_call.1} parent=1 // pred_check
      _
    $region51: #{tpu_custom_call.1} parent=1 // pred_check_branch
      %174 = sbr.rel (0) target = $region53
    $region52: #{tpu_custom_call.1} parent=1 // pred_region
      %s176 = ssub.s32 128, 128
      %177 = vsyncadd [#allocation21], %s176
      %s178 = sshll.u32 [#allocation22], 4
      %s179 = int_to_ptr.vmem [resolvable:$true] %s178
      %184 = dma.hbm_to_vmem [thread:$0]  %s12, 128, %s179, [#allocation21], 32, 32, 2
    $region53: #{tpu_custom_call.1} parent=1 // pred_fallthru
      _
    // Predicated region
    $region54: #{tpu_custom_call.1} parent=1 // pred_check
      _
    $region55: #{tpu_custom_call.1} parent=1 // pred_check_branch
      %186 = sbr.rel (0) target = $region57
    $region56: #{tpu_custom_call.1} parent=1 // pred_region
      _
    $region57: #{tpu_custom_call.1} parent=1 // pred_fallthru
      _
    // Predicated region
    $region58: #{tpu_custom_call.1} parent=1 // pred_check
      _
    $region59: #{tpu_custom_call.1} parent=1 // pred_check_branch
      %188 = sbr.rel (0) target = $region61
    $region60: #{tpu_custom_call.1} parent=1 // pred_region
      _
    $region61: #{tpu_custom_call.1} parent=1 // pred_fallthru
      _
    // Predicated region
    $region62: #{tpu_custom_call.1} parent=1 // pred_check
      _
    $region63: #{tpu_custom_call.1} parent=1 // pred_check_branch
      %190 = sbr.rel (0) target = $region65
    $region64: #{tpu_custom_call.1} parent=1 // pred_region
      %191 = dma.done [#allocation4], 512
    $region65: #{tpu_custom_call.1} parent=1 // pred_fallthru
      _
    // Predicated region
    $region66: #{tpu_custom_call.1} parent=1 // pred_check
      _
    $region67: #{tpu_custom_call.1} parent=1 // pred_check_branch
      %193 = sbr.rel (0) target = $region69
    $region68: #{tpu_custom_call.1} parent=1 // pred_region
      %194 = dma.done [#allocation6], 49152
    $region69: #{tpu_custom_call.1} parent=1 // pred_fallthru
      _
    // Predicated region
    $region70: #{tpu_custom_call.1} parent=1 // pred_check
      _
    $region71: #{tpu_custom_call.1} parent=1 // pred_check_branch
      %196 = sbr.rel (0) target = $region73
    $region72: #{tpu_custom_call.1} parent=1 // pred_region
      %197 = dma.done [#allocation6], 384
    $region73: #{tpu_custom_call.1} parent=1 // pred_fallthru
      _
    // Predicated region
    $region74: #{tpu_custom_call.1} parent=1 // pred_check
      _
    $region75: #{tpu_custom_call.1} parent=1 // pred_check_branch
      %199 = sbr.rel (0) target = $region77
    $region76: #{tpu_custom_call.1} parent=1 // pred_region
      %200 = dma.done [#allocation9], 16384
    $region77: #{tpu_custom_call.1} parent=1 // pred_fallthru
      _
    // Predicated region
    $region78: #{tpu_custom_call.1} parent=1 // pred_check
      _
    $region79: #{tpu_custom_call.1} parent=1 // pred_check_branch
      %202 = sbr.rel (0) target = $region81
    $region80: #{tpu_custom_call.1} parent=1 // pred_region
      %203 = dma.done [#allocation9], 128
    $region81: #{tpu_custom_call.1} parent=1 // pred_fallthru
      _
    // Predicated region
    $region82: #{tpu_custom_call.1} parent=1 // pred_check
      _
    $region83: #{tpu_custom_call.1} parent=1 // pred_check_branch
      %205 = sbr.rel (0) target = $region85
    $region84: #{tpu_custom_call.1} parent=1 // pred_region
      %206 = dma.done [#allocation12], 40960
    $region85: #{tpu_custom_call.1} parent=1 // pred_fallthru
      _
    // Predicated region
    $region86: #{tpu_custom_call.1} parent=1 // pred_check
      _
    $region87: #{tpu_custom_call.1} parent=1 // pred_check_branch
      %208 = sbr.rel (0) target = $region89
    $region88: #{tpu_custom_call.1} parent=1 // pred_region
      %209 = dma.done [#allocation12], 320
    $region89: #{tpu_custom_call.1} parent=1 // pred_fallthru
      _
    // Predicated region
    $region90: #{tpu_custom_call.1} parent=1 // pred_check
      _
    $region91: #{tpu_custom_call.1} parent=1 // pred_check_branch
      %211 = sbr.rel (0) target = $region93
    $region92: #{tpu_custom_call.1} parent=1 // pred_region
      %212 = dma.done [#allocation15], 40960
    $region93: #{tpu_custom_call.1} parent=1 // pred_fallthru
      _
    // Predicated region
    $region94: #{tpu_custom_call.1} parent=1 // pred_check
      _
    $region95: #{tpu_custom_call.1} parent=1 // pred_check_branch
      %214 = sbr.rel (0) target = $region97
    $region96: #{tpu_custom_call.1} parent=1 // pred_region
      %215 = dma.done [#allocation15], 128
    $region97: #{tpu_custom_call.1} parent=1 // pred_fallthru
      _
    // Predicated region
    $region98: #{tpu_custom_call.1} parent=1 // pred_check
      _
    $region99: #{tpu_custom_call.1} parent=1 // pred_check_branch
      %217 = sbr.rel (0) target = $region101
    $region100: #{tpu_custom_call.1} parent=1 // pred_region
      %218 = dma.done [#allocation18], 128
    $region101: #{tpu_custom_call.1} parent=1 // pred_fallthru
      _
    // Predicated region
    $region102: #{tpu_custom_call.1} parent=1 // pred_check
      _
    $region103: #{tpu_custom_call.1} parent=1 // pred_check_branch
      %220 = sbr.rel (0) target = $region105
    $region104: #{tpu_custom_call.1} parent=1 // pred_region
      %221 = dma.done [#allocation18], 128
    $region105: #{tpu_custom_call.1} parent=1 // pred_fallthru
      _
    // Predicated region
    $region106: #{tpu_custom_call.1} parent=1 // pred_check
      _
    $region107: #{tpu_custom_call.1} parent=1 // pred_check_branch
      %223 = sbr.rel (0) target = $region109
    $region108: #{tpu_custom_call.1} parent=1 // pred_region
      %224 = dma.done [#allocation21], 128
    $region109: #{tpu_custom_call.1} parent=1 // pred_fallthru
      _
    // Predicated region
    $region110: #{tpu_custom_call.1} parent=1 // pred_check
      _
    $region111: #{tpu_custom_call.1} parent=1 // pred_check_branch
      %226 = sbr.rel (0) target = $region113
    $region112: #{tpu_custom_call.1} parent=1 // pred_region
      %227 = dma.done [#allocation21], 128
    $region113: #{tpu_custom_call.1} parent=1 // pred_fallthru
      _
    %v229 = vld [vmem:[#allocation3] sm:$0xff]
    %v230 = vld [vmem:[#allocation3 + $0x8] sm:$0xff]
    %v231 = vld [vmem:[#allocation3 + $0x10] sm:$0xff]
    %v232 = vld [vmem:[#allocation3 + $0x18] sm:$0xff]
    %v233 = vpack.c.bf16 %v231, %v229
    %v234 = vpack.c.bf16 %v232, %v230
    %v235 = vld [vmem:[#allocation5] sm:$0xff]
    %v236 = vld [vmem:[#allocation5 + $0x8] sm:$0xff]
    %v237 = vld [vmem:[#allocation5 + $0x10] sm:$0xff]
    %v238 = vld [vmem:[#allocation5 + $0x18] sm:$0xff]
    %v239 = vld [vmem:[#allocation5 + $0x20] sm:$0xff]
    %v240 = vld [vmem:[#allocation5 + $0x28] sm:$0xff]
    %v241 = vld [vmem:[#allocation5 + $0x30] sm:$0xff]
    %v242 = vld [vmem:[#allocation5 + $0x38] sm:$0xff]
    %v243 = vld [vmem:[#allocation5 + $0x40] sm:$0xff]
    %v244 = vld [vmem:[#allocation5 + $0x48] sm:$0xff]
    %v245 = vld [vmem:[#allocation5 + $0x50] sm:$0xff]
    %v246 = vld [vmem:[#allocation5 + $0x58] sm:$0xff]
    %v247 = vld [vmem:[#allocation5 + $0x60] sm:$0xff]
    %v248 = vld [vmem:[#allocation5 + $0x68] sm:$0xff]
    %v249 = vld [vmem:[#allocation5 + $0x70] sm:$0xff]
    %v250 = vld [vmem:[#allocation5 + $0x78] sm:$0xff]
    %v251 = vld [vmem:[#allocation5 + $0x80] sm:$0xff]
    %v252 = vld [vmem:[#allocation5 + $0x88] sm:$0xff]
    %v253 = vld [vmem:[#allocation5 + $0x90] sm:$0xff]
    %v254 = vld [vmem:[#allocation5 + $0x98] sm:$0xff]
    %v255 = vld [vmem:[#allocation5 + $0xa0] sm:$0xff]
    %v256 = vld [vmem:[#allocation5 + $0xa8] sm:$0xff]
    %v257 = vld [vmem:[#allocation5 + $0xb0] sm:$0xff]
    %v258 = vld [vmem:[#allocation5 + $0xb8] sm:$0xff]
    %v259 = vld [vmem:[#allocation5 + $0xc0] sm:$0xff]
    %v260 = vld [vmem:[#allocation5 + $0xc8] sm:$0xff]
    %v261 = vld [vmem:[#allocation5 + $0xd0] sm:$0xff]
    %v262 = vld [vmem:[#allocation5 + $0xd8] sm:$0xff]
    %v263 = vld [vmem:[#allocation5 + $0xe0] sm:$0xff]
    %v264 = vld [vmem:[#allocation5 + $0xe8] sm:$0xff]
    %v265 = vld [vmem:[#allocation5 + $0xf0] sm:$0xff]
    %v266 = vld [vmem:[#allocation5 + $0xf8] sm:$0xff]
    %v267 = vld [vmem:[#allocation5 + $0x100] sm:$0xff]
    %v268 = vld [vmem:[#allocation5 + $0x108] sm:$0xff]
    %v269 = vld [vmem:[#allocation5 + $0x110] sm:$0xff]
    %v270 = vld [vmem:[#allocation5 + $0x118] sm:$0xff]
    %v271 = vld [vmem:[#allocation5 + $0x120] sm:$0xff]
    %v272 = vld [vmem:[#allocation5 + $0x128] sm:$0xff]
    %v273 = vld [vmem:[#allocation5 + $0x130] sm:$0xff]
    %v274 = vld [vmem:[#allocation5 + $0x138] sm:$0xff]
    %v275 = vld [vmem:[#allocation5 + $0x140] sm:$0xff]
    %v276 = vld [vmem:[#allocation5 + $0x148] sm:$0xff]
    %v277 = vld [vmem:[#allocation5 + $0x150] sm:$0xff]
    %v278 = vld [vmem:[#allocation5 + $0x158] sm:$0xff]
    %v279 = vld [vmem:[#allocation5 + $0x160] sm:$0xff]
    %v280 = vld [vmem:[#allocation5 + $0x168] sm:$0xff]
    %v281 = vld [vmem:[#allocation5 + $0x170] sm:$0xff]
    %v282 = vld [vmem:[#allocation5 + $0x178] sm:$0xff]
    %v283 = vld [vmem:[#allocation5 + $0x180] sm:$0xff]
    %v284 = vld [vmem:[#allocation5 + $0x188] sm:$0xff]
    %v285 = vld [vmem:[#allocation5 + $0x190] sm:$0xff]
    %v286 = vld [vmem:[#allocation5 + $0x198] sm:$0xff]
    %v287 = vld [vmem:[#allocation5 + $0x1a0] sm:$0xff]
    %v288 = vld [vmem:[#allocation5 + $0x1a8] sm:$0xff]
    %v289 = vld [vmem:[#allocation5 + $0x1b0] sm:$0xff]
    %v290 = vld [vmem:[#allocation5 + $0x1b8] sm:$0xff]
    %v291 = vld [vmem:[#allocation5 + $0x1c0] sm:$0xff]
    %v292 = vld [vmem:[#allocation5 + $0x1c8] sm:$0xff]
    %v293 = vld [vmem:[#allocation5 + $0x1d0] sm:$0xff]
    %v294 = vld [vmem:[#allocation5 + $0x1d8] sm:$0xff]
    %v295 = vld [vmem:[#allocation5 + $0x1e0] sm:$0xff]
    %v296 = vld [vmem:[#allocation5 + $0x1e8] sm:$0xff]
    %v297 = vld [vmem:[#allocation5 + $0x1f0] sm:$0xff]
    %v298 = vld [vmem:[#allocation5 + $0x1f8] sm:$0xff]
    %v299 = vld [vmem:[#allocation5 + $0x200] sm:$0xff]
    %v300 = vld [vmem:[#allocation5 + $0x208] sm:$0xff]
    %v301 = vld [vmem:[#allocation5 + $0x210] sm:$0xff]
    %v302 = vld [vmem:[#allocation5 + $0x218] sm:$0xff]
    %v303 = vld [vmem:[#allocation5 + $0x220] sm:$0xff]
    %v304 = vld [vmem:[#allocation5 + $0x228] sm:$0xff]
    %v305 = vld [vmem:[#allocation5 + $0x230] sm:$0xff]
    %v306 = vld [vmem:[#allocation5 + $0x238] sm:$0xff]
    %v307 = vld [vmem:[#allocation5 + $0x240] sm:$0xff]
    %v308 = vld [vmem:[#allocation5 + $0x248] sm:$0xff]
    %v309 = vld [vmem:[#allocation5 + $0x250] sm:$0xff]
    %v310 = vld [vmem:[#allocation5 + $0x258] sm:$0xff]
    %v311 = vld [vmem:[#allocation5 + $0x260] sm:$0xff]
    %v312 = vld [vmem:[#allocation5 + $0x268] sm:$0xff]
    %v313 = vld [vmem:[#allocation5 + $0x270] sm:$0xff]
    %v314 = vld [vmem:[#allocation5 + $0x278] sm:$0xff]
    %v315 = vld [vmem:[#allocation5 + $0x280] sm:$0xff]
    %v316 = vld [vmem:[#allocation5 + $0x288] sm:$0xff]
    %v317 = vld [vmem:[#allocation5 + $0x290] sm:$0xff]
    %v318 = vld [vmem:[#allocation5 + $0x298] sm:$0xff]
    %v319 = vld [vmem:[#allocation5 + $0x2a0] sm:$0xff]
    %v320 = vld [vmem:[#allocation5 + $0x2a8] sm:$0xff]
    %v321 = vld [vmem:[#allocation5 + $0x2b0] sm:$0xff]
    %v322 = vld [vmem:[#allocation5 + $0x2b8] sm:$0xff]
    %v323 = vld [vmem:[#allocation5 + $0x2c0] sm:$0xff]
    %v324 = vld [vmem:[#allocation5 + $0x2c8] sm:$0xff]
    %v325 = vld [vmem:[#allocation5 + $0x2d0] sm:$0xff]
    %v326 = vld [vmem:[#allocation5 + $0x2d8] sm:$0xff]
    %v327 = vld [vmem:[#allocation5 + $0x2e0] sm:$0xff]
    %v328 = vld [vmem:[#allocation5 + $0x2e8] sm:$0xff]
    %v329 = vld [vmem:[#allocation5 + $0x2f0] sm:$0xff]
    %v330 = vld [vmem:[#allocation5 + $0x2f8] sm:$0xff]
    %v331 = vld [vmem:[#allocation7] sm:$0x3f]
    %v333 = vlaneseq
    %v334 = vshrl.u32 %v333, 7
    %v335 = vsub.s32 0, %v334
    %v336 = vrot.slane %v331, %v335
    %v337 = vlaneseq
    %v338 = vshrl.u32 %v337, 7
    %v339 = vsub.s32 1, %v338
    %v340 = vrot.slane %v331, %v339
    %v341 = vlaneseq
    %v342 = vshrl.u32 %v341, 7
    %v343 = vsub.s32 2, %v342
    %v344 = vrot.slane %v331, %v343
    %v345 = vlaneseq
    %v346 = vshrl.u32 %v345, 7
    %v347 = vsub.s32 3, %v346
    %v348 = vrot.slane %v331, %v347
    %v349 = vlaneseq
    %v350 = vshrl.u32 %v349, 7
    %v351 = vsub.s32 4, %v350
    %v352 = vrot.slane %v331, %v351
    %v353 = vlaneseq
    %v354 = vshrl.u32 %v353, 7
    %v355 = vsub.s32 5, %v354
    %v356 = vrot.slane %v331, %v355
    %v459 = vunpack.c.l.b16 %v235
    %v460 = vunpack.c.h.b16 %v235
    %v461 = vunpack.c.l.b16 %v236
    %v462 = vunpack.c.h.b16 %v236
    %v463 = vunpack.c.l.b16 %v237
    %v464 = vunpack.c.h.b16 %v237
    %v465 = vunpack.c.l.b16 %v238
    %v466 = vunpack.c.h.b16 %v238
    %v467 = vunpack.c.l.b16 %v239
    %v468 = vunpack.c.h.b16 %v239
    %v469 = vunpack.c.l.b16 %v240
    %v470 = vunpack.c.h.b16 %v240
    %v471 = vunpack.c.l.b16 %v241
    %v472 = vunpack.c.h.b16 %v241
    %v473 = vunpack.c.l.b16 %v242
    %v474 = vunpack.c.h.b16 %v242
    %v475 = vunpack.c.l.b16 %v243
    %v476 = vunpack.c.h.b16 %v243
    %v477 = vunpack.c.l.b16 %v244
    %v478 = vunpack.c.h.b16 %v244
    %v479 = vunpack.c.l.b16 %v245
    %v480 = vunpack.c.h.b16 %v245
    %v481 = vunpack.c.l.b16 %v246
    %v482 = vunpack.c.h.b16 %v246
    %v483 = vunpack.c.l.b16 %v247
    %v484 = vunpack.c.h.b16 %v247
    %v485 = vunpack.c.l.b16 %v248
    %v486 = vunpack.c.h.b16 %v248
    %v487 = vunpack.c.l.b16 %v249
    %v488 = vunpack.c.h.b16 %v249
    %v489 = vunpack.c.l.b16 %v250
    %v490 = vunpack.c.h.b16 %v250
    %v491 = vunpack.c.l.b16 %v251
    %v492 = vunpack.c.h.b16 %v251
    %v493 = vunpack.c.l.b16 %v252
    %v494 = vunpack.c.h.b16 %v252
    %v495 = vunpack.c.l.b16 %v253
    %v496 = vunpack.c.h.b16 %v253
    %v497 = vunpack.c.l.b16 %v254
    %v498 = vunpack.c.h.b16 %v254
    %v499 = vunpack.c.l.b16 %v255
    %v500 = vunpack.c.h.b16 %v255
    %v501 = vunpack.c.l.b16 %v256
    %v502 = vunpack.c.h.b16 %v256
    %v503 = vunpack.c.l.b16 %v257
    %v504 = vunpack.c.h.b16 %v257
    %v505 = vunpack.c.l.b16 %v258
    %v506 = vunpack.c.h.b16 %v258
    %v507 = vunpack.c.l.b16 %v259
    %v508 = vunpack.c.h.b16 %v259
    %v509 = vunpack.c.l.b16 %v260
    %v510 = vunpack.c.h.b16 %v260
    %v511 = vunpack.c.l.b16 %v261
    %v512 = vunpack.c.h.b16 %v261
    %v513 = vunpack.c.l.b16 %v262
    %v514 = vunpack.c.h.b16 %v262
    %v515 = vunpack.c.l.b16 %v263
    %v516 = vunpack.c.h.b16 %v263
    %v517 = vunpack.c.l.b16 %v264
    %v518 = vunpack.c.h.b16 %v264
    %v519 = vunpack.c.l.b16 %v265
    %v520 = vunpack.c.h.b16 %v265
    %v521 = vunpack.c.l.b16 %v266
    %v522 = vunpack.c.h.b16 %v266
    %v523 = vunpack.c.l.b16 %v267
    %v524 = vunpack.c.h.b16 %v267
    %v525 = vunpack.c.l.b16 %v268
    %v526 = vunpack.c.h.b16 %v268
    %v527 = vunpack.c.l.b16 %v269
    %v528 = vunpack.c.h.b16 %v269
    %v529 = vunpack.c.l.b16 %v270
    %v530 = vunpack.c.h.b16 %v270
    %v531 = vunpack.c.l.b16 %v271
    %v532 = vunpack.c.h.b16 %v271
    %v533 = vunpack.c.l.b16 %v272
    %v534 = vunpack.c.h.b16 %v272
    %v535 = vunpack.c.l.b16 %v273
    %v536 = vunpack.c.h.b16 %v273
    %v537 = vunpack.c.l.b16 %v274
    %v538 = vunpack.c.h.b16 %v274
    %v539 = vunpack.c.l.b16 %v275
    %v540 = vunpack.c.h.b16 %v275
    %v541 = vunpack.c.l.b16 %v276
    %v542 = vunpack.c.h.b16 %v276
    %v543 = vunpack.c.l.b16 %v277
    %v544 = vunpack.c.h.b16 %v277
    %v545 = vunpack.c.l.b16 %v278
    %v546 = vunpack.c.h.b16 %v278
    %v547 = vunpack.c.l.b16 %v279
    %v548 = vunpack.c.h.b16 %v279
    %v549 = vunpack.c.l.b16 %v280
    %v550 = vunpack.c.h.b16 %v280
    %v551 = vunpack.c.l.b16 %v281
    %v552 = vunpack.c.h.b16 %v281
    %v553 = vunpack.c.l.b16 %v282
    %v554 = vunpack.c.h.b16 %v282
    %v555 = vunpack.c.l.b16 %v283
    %v556 = vunpack.c.h.b16 %v283
    %v557 = vunpack.c.l.b16 %v284
    %v558 = vunpack.c.h.b16 %v284
    %v559 = vunpack.c.l.b16 %v285
    %v560 = vunpack.c.h.b16 %v285
    %v561 = vunpack.c.l.b16 %v286
    %v562 = vunpack.c.h.b16 %v286
    %v563 = vunpack.c.l.b16 %v287
    %v564 = vunpack.c.h.b16 %v287
    %v565 = vunpack.c.l.b16 %v288
    %v566 = vunpack.c.h.b16 %v288
    %v567 = vunpack.c.l.b16 %v289
    %v568 = vunpack.c.h.b16 %v289
    %v569 = vunpack.c.l.b16 %v290
    %v570 = vunpack.c.h.b16 %v290
    %v571 = vunpack.c.l.b16 %v291
    %v572 = vunpack.c.h.b16 %v291
    %v573 = vunpack.c.l.b16 %v292
    %v574 = vunpack.c.h.b16 %v292
    %v575 = vunpack.c.l.b16 %v293
    %v576 = vunpack.c.h.b16 %v293
    %v577 = vunpack.c.l.b16 %v294
    %v578 = vunpack.c.h.b16 %v294
    %v579 = vunpack.c.l.b16 %v295
    %v580 = vunpack.c.h.b16 %v295
    %v581 = vunpack.c.l.b16 %v296
    %v582 = vunpack.c.h.b16 %v296
    %v583 = vunpack.c.l.b16 %v297
    %v584 = vunpack.c.h.b16 %v297
    %v585 = vunpack.c.l.b16 %v298
    %v586 = vunpack.c.h.b16 %v298
    %v587 = vunpack.c.l.b16 %v299
    %v588 = vunpack.c.h.b16 %v299
    %v589 = vunpack.c.l.b16 %v300
    %v590 = vunpack.c.h.b16 %v300
    %v591 = vunpack.c.l.b16 %v301
    %v592 = vunpack.c.h.b16 %v301
    %v593 = vunpack.c.l.b16 %v302
    %v594 = vunpack.c.h.b16 %v302
    %v595 = vunpack.c.l.b16 %v303
    %v596 = vunpack.c.h.b16 %v303
    %v597 = vunpack.c.l.b16 %v304
    %v598 = vunpack.c.h.b16 %v304
    %v599 = vunpack.c.l.b16 %v305
    %v600 = vunpack.c.h.b16 %v305
    %v601 = vunpack.c.l.b16 %v306
    %v602 = vunpack.c.h.b16 %v306
    %v603 = vunpack.c.l.b16 %v307
    %v604 = vunpack.c.h.b16 %v307
    %v605 = vunpack.c.l.b16 %v308
    %v606 = vunpack.c.h.b16 %v308
    %v607 = vunpack.c.l.b16 %v309
    %v608 = vunpack.c.h.b16 %v309
    %v609 = vunpack.c.l.b16 %v310
    %v610 = vunpack.c.h.b16 %v310
    %v611 = vunpack.c.l.b16 %v311
    %v612 = vunpack.c.h.b16 %v311
    %v613 = vunpack.c.l.b16 %v312
    %v614 = vunpack.c.h.b16 %v312
    %v615 = vunpack.c.l.b16 %v313
    %v616 = vunpack.c.h.b16 %v313
    %v617 = vunpack.c.l.b16 %v314
    %v618 = vunpack.c.h.b16 %v314
    %v619 = vunpack.c.l.b16 %v315
    %v620 = vunpack.c.h.b16 %v315
    %v621 = vunpack.c.l.b16 %v316
    %v622 = vunpack.c.h.b16 %v316
    %v623 = vunpack.c.l.b16 %v317
    %v624 = vunpack.c.h.b16 %v317
    %v625 = vunpack.c.l.b16 %v318
    %v626 = vunpack.c.h.b16 %v318
    %v627 = vunpack.c.l.b16 %v319
    %v628 = vunpack.c.h.b16 %v319
    %v629 = vunpack.c.l.b16 %v320
    %v630 = vunpack.c.h.b16 %v320
    %v631 = vunpack.c.l.b16 %v321
    %v632 = vunpack.c.h.b16 %v321
    %v633 = vunpack.c.l.b16 %v322
    %v634 = vunpack.c.h.b16 %v322
    %v635 = vunpack.c.l.b16 %v323
    %v636 = vunpack.c.h.b16 %v323
    %v637 = vunpack.c.l.b16 %v324
    %v638 = vunpack.c.h.b16 %v324
    %v639 = vunpack.c.l.b16 %v325
    %v640 = vunpack.c.h.b16 %v325
    %v641 = vunpack.c.l.b16 %v326
    %v642 = vunpack.c.h.b16 %v326
    %v643 = vunpack.c.l.b16 %v327
    %v644 = vunpack.c.h.b16 %v327
    %v645 = vunpack.c.l.b16 %v328
    %v646 = vunpack.c.h.b16 %v328
    %v647 = vunpack.c.l.b16 %v329
    %v648 = vunpack.c.h.b16 %v329
    %v649 = vunpack.c.l.b16 %v330
    %v650 = vunpack.c.h.b16 %v330
    %v651 = vpack.c.b16 %v465, %v459
    %v652 = vpack.c.b16 %v466, %v460
    %v653 = vpack.c.b16 %v467, %v461
    %v654 = vpack.c.b16 %v468, %v462
    %v655 = vpack.c.b16 %v469, %v463
    %v656 = vpack.c.b16 %v470, %v464
    %v657 = vpack.c.b16 %v477, %v471
    %v658 = vpack.c.b16 %v478, %v472
    %v659 = vpack.c.b16 %v479, %v473
    %v660 = vpack.c.b16 %v480, %v474
    %v661 = vpack.c.b16 %v481, %v475
    %v662 = vpack.c.b16 %v482, %v476
    %v663 = vpack.c.b16 %v489, %v483
    %v664 = vpack.c.b16 %v490, %v484
    %v665 = vpack.c.b16 %v491, %v485
    %v666 = vpack.c.b16 %v492, %v486
    %v667 = vpack.c.b16 %v493, %v487
    %v668 = vpack.c.b16 %v494, %v488
    %v669 = vpack.c.b16 %v501, %v495
    %v670 = vpack.c.b16 %v502, %v496
    %v671 = vpack.c.b16 %v503, %v497
    %v672 = vpack.c.b16 %v504, %v498
    %v673 = vpack.c.b16 %v505, %v499
    %v674 = vpack.c.b16 %v506, %v500
    %v675 = vpack.c.b16 %v513, %v507
    %v676 = vpack.c.b16 %v514, %v508
    %v677 = vpack.c.b16 %v515, %v509
    %v678 = vpack.c.b16 %v516, %v510
    %v679 = vpack.c.b16 %v517, %v511
    %v680 = vpack.c.b16 %v518, %v512
    %v681 = vpack.c.b16 %v525, %v519
    %v682 = vpack.c.b16 %v526, %v520
    %v683 = vpack.c.b16 %v527, %v521
    %v684 = vpack.c.b16 %v528, %v522
    %v685 = vpack.c.b16 %v529, %v523
    %v686 = vpack.c.b16 %v530, %v524
    %v687 = vpack.c.b16 %v537, %v531
    %v688 = vpack.c.b16 %v538, %v532
    %v689 = vpack.c.b16 %v539, %v533
    %v690 = vpack.c.b16 %v540, %v534
    %v691 = vpack.c.b16 %v541, %v535
    %v692 = vpack.c.b16 %v542, %v536
    %v693 = vpack.c.b16 %v549, %v543
    %v694 = vpack.c.b16 %v550, %v544
    %v695 = vpack.c.b16 %v551, %v545
    %v696 = vpack.c.b16 %v552, %v546
    %v697 = vpack.c.b16 %v553, %v547
    %v698 = vpack.c.b16 %v554, %v548
    %v699 = vpack.c.b16 %v561, %v555
    %v700 = vpack.c.b16 %v562, %v556
    %v701 = vpack.c.b16 %v563, %v557
    %v702 = vpack.c.b16 %v564, %v558
    %v703 = vpack.c.b16 %v565, %v559
    %v704 = vpack.c.b16 %v566, %v560
    %v705 = vpack.c.b16 %v573, %v567
    %v706 = vpack.c.b16 %v574, %v568
    %v707 = vpack.c.b16 %v575, %v569
    %v708 = vpack.c.b16 %v576, %v570
    %v709 = vpack.c.b16 %v577, %v571
    %v710 = vpack.c.b16 %v578, %v572
    %v711 = vpack.c.b16 %v585, %v579
    %v712 = vpack.c.b16 %v586, %v580
    %v713 = vpack.c.b16 %v587, %v581
    %v714 = vpack.c.b16 %v588, %v582
    %v715 = vpack.c.b16 %v589, %v583
    %v716 = vpack.c.b16 %v590, %v584
    %v717 = vpack.c.b16 %v597, %v591
    %v718 = vpack.c.b16 %v598, %v592
    %v719 = vpack.c.b16 %v599, %v593
    %v720 = vpack.c.b16 %v600, %v594
    %v721 = vpack.c.b16 %v601, %v595
    %v722 = vpack.c.b16 %v602, %v596
    %v723 = vpack.c.b16 %v609, %v603
    %v724 = vpack.c.b16 %v610, %v604
    %v725 = vpack.c.b16 %v611, %v605
    %v726 = vpack.c.b16 %v612, %v606
    %v727 = vpack.c.b16 %v613, %v607
    %v728 = vpack.c.b16 %v614, %v608
    %v729 = vpack.c.b16 %v621, %v615
    %v730 = vpack.c.b16 %v622, %v616
    %v731 = vpack.c.b16 %v623, %v617
    %v732 = vpack.c.b16 %v624, %v618
    %v733 = vpack.c.b16 %v625, %v619
    %v734 = vpack.c.b16 %v626, %v620
    %v735 = vpack.c.b16 %v633, %v627
    %v736 = vpack.c.b16 %v634, %v628
    %v737 = vpack.c.b16 %v635, %v629
    %v738 = vpack.c.b16 %v636, %v630
    %v739 = vpack.c.b16 %v637, %v631
    %v740 = vpack.c.b16 %v638, %v632
    %v741 = vpack.c.b16 %v645, %v639
    %v742 = vpack.c.b16 %v646, %v640
    %v743 = vpack.c.b16 %v647, %v641
    %v744 = vpack.c.b16 %v648, %v642
    %v745 = vpack.c.b16 %v649, %v643
    %v746 = vpack.c.b16 %v650, %v644
    %843 = vmatprep.subr.bf16.mxu0 %v652
    %844 = vmatpush1.bf16.msra.mxu0 %v651
    %845 = vmatprep.subr.bf16.mxu0 %v658
    %846 = vmatpush1.bf16.msra.mxu0 %v657
    %847 = vmatprep.subr.bf16.mxu0 %v664
    %848 = vmatpush1.bf16.msra.mxu0 %v663
    %849 = vmatprep.subr.bf16.mxu0 %v670
    %850 = vmatpush1.bf16.msra.mxu0 %v669
    %851 = vmatprep.subr.bf16.mxu0 %v676
    %852 = vmatpush1.bf16.msra.mxu0 %v675
    %853 = vmatprep.subr.bf16.mxu0 %v682
    %854 = vmatpush1.bf16.msra.mxu0 %v681
    %855 = vmatprep.subr.bf16.mxu0 %v688
    %856 = vmatpush1.bf16.msra.mxu0 %v687
    %857 = vmatprep.subr.bf16.mxu0 %v694
    %858 = vmatpush1.bf16.msra.mxu0 %v693
    %859 = vmatprep.subr.bf16.mxu0 %v700
    %860 = vmatpush1.bf16.msra.mxu0 %v699
    %861 = vmatprep.subr.bf16.mxu0 %v706
    %862 = vmatpush1.bf16.msra.mxu0 %v705
    %863 = vmatprep.subr.bf16.mxu0 %v712
    %864 = vmatpush1.bf16.msra.mxu0 %v711
    %865 = vmatprep.subr.bf16.mxu0 %v718
    %866 = vmatpush1.bf16.msra.mxu0 %v717
    %867 = vmatprep.subr.bf16.mxu0 %v724
    %868 = vmatpush1.bf16.msra.mxu0 %v723
    %869 = vmatprep.subr.bf16.mxu0 %v730
    %870 = vmatpush1.bf16.msra.mxu0 %v729
    %871 = vmatprep.subr.bf16.mxu0 %v736
    %872 = vmatpush1.bf16.msra.mxu0 %v735
    %873 = vmatprep.subr.bf16.mxu0 %v742
    %874 = vmatpush1.bf16.msra.mxu0 %v741
    %875 = vmatprep.mubr.bf16.mxu0 %v234
    %876 = vmatmul.mubr.bf16.gmra.mrb[0].mxu0 %v233
    %v877 = vpop.f32.mrb[0].mxu0
    %v878 = vadd.f32 %v336, %v877
    %v879 = vpop.f32.mrb[0].mxu0
    %v880 = vadd.f32 %v340, %v879
    %v881 = vpop.f32.mrb[0].mxu0
    %v882 = vadd.f32 %v336, %v881
    %v883 = vpop.f32.mrb[0].mxu0
    %v884 = vadd.f32 %v340, %v883
    %885 = vdwg.mxu0
    %886 = vmatprep.subr.bf16.mxu0 %v654
    %887 = vmatpush1.bf16.msra.mxu0 %v653
    %888 = vmatprep.subr.bf16.mxu0 %v660
    %889 = vmatpush1.bf16.msra.mxu0 %v659
    %890 = vmatprep.subr.bf16.mxu0 %v666
    %891 = vmatpush1.bf16.msra.mxu0 %v665
    %892 = vmatprep.subr.bf16.mxu0 %v672
    %893 = vmatpush1.bf16.msra.mxu0 %v671
    %894 = vmatprep.subr.bf16.mxu0 %v678
    %895 = vmatpush1.bf16.msra.mxu0 %v677
    %896 = vmatprep.subr.bf16.mxu0 %v684
    %897 = vmatpush1.bf16.msra.mxu0 %v683
    %898 = vmatprep.subr.bf16.mxu0 %v690
    %899 = vmatpush1.bf16.msra.mxu0 %v689
    %900 = vmatprep.subr.bf16.mxu0 %v696
    %901 = vmatpush1.bf16.msra.mxu0 %v695
    %902 = vmatprep.subr.bf16.mxu0 %v702
    %903 = vmatpush1.bf16.msra.mxu0 %v701
    %904 = vmatprep.subr.bf16.mxu0 %v708
    %905 = vmatpush1.bf16.msra.mxu0 %v707
    %906 = vmatprep.subr.bf16.mxu0 %v714
    %907 = vmatpush1.bf16.msra.mxu0 %v713
    %908 = vmatprep.subr.bf16.mxu0 %v720
    %909 = vmatpush1.bf16.msra.mxu0 %v719
    %910 = vmatprep.subr.bf16.mxu0 %v726
    %911 = vmatpush1.bf16.msra.mxu0 %v725
    %912 = vmatprep.subr.bf16.mxu0 %v732
    %913 = vmatpush1.bf16.msra.mxu0 %v731
    %914 = vmatprep.subr.bf16.mxu0 %v738
    %915 = vmatpush1.bf16.msra.mxu0 %v737
    %916 = vmatprep.subr.bf16.mxu0 %v744
    %917 = vmatpush1.bf16.msra.mxu0 %v743
    %918 = vmatprep.mubr.bf16.mxu0 %v234
    %919 = vmatmul.mubr.bf16.gmra.mrb[0].mxu0 %v233
    %v920 = vpop.f32.mrb[0].mxu0
    %v921 = vadd.f32 %v344, %v920
    %v922 = vpop.f32.mrb[0].mxu0
    %v923 = vadd.f32 %v348, %v922
    %v924 = vpop.f32.mrb[0].mxu0
    %v925 = vadd.f32 %v344, %v924
    %v926 = vpop.f32.mrb[0].mxu0
    %v927 = vadd.f32 %v348, %v926
    %928 = vdwg.mxu0
    %929 = vmatprep.subr.bf16.mxu0 %v656
    %930 = vmatpush1.bf16.msra.mxu0 %v655
    %931 = vmatprep.subr.bf16.mxu0 %v662
    %932 = vmatpush1.bf16.msra.mxu0 %v661
    %933 = vmatprep.subr.bf16.mxu0 %v668
    %934 = vmatpush1.bf16.msra.mxu0 %v667
    %935 = vmatprep.subr.bf16.mxu0 %v674
    %936 = vmatpush1.bf16.msra.mxu0 %v673
    %937 = vmatprep.subr.bf16.mxu0 %v680
    %938 = vmatpush1.bf16.msra.mxu0 %v679
    %939 = vmatprep.subr.bf16.mxu0 %v686
    %940 = vmatpush1.bf16.msra.mxu0 %v685
    %941 = vmatprep.subr.bf16.mxu0 %v692
    %942 = vmatpush1.bf16.msra.mxu0 %v691
    %943 = vmatprep.subr.bf16.mxu0 %v698
    %944 = vmatpush1.bf16.msra.mxu0 %v697
    %945 = vmatprep.subr.bf16.mxu0 %v704
    %946 = vmatpush1.bf16.msra.mxu0 %v703
    %947 = vmatprep.subr.bf16.mxu0 %v710
    %948 = vmatpush1.bf16.msra.mxu0 %v709
    %949 = vmatprep.subr.bf16.mxu0 %v716
    %950 = vmatpush1.bf16.msra.mxu0 %v715
    %951 = vmatprep.subr.bf16.mxu0 %v722
    %952 = vmatpush1.bf16.msra.mxu0 %v721
    %953 = vmatprep.subr.bf16.mxu0 %v728
    %954 = vmatpush1.bf16.msra.mxu0 %v727
    %955 = vmatprep.subr.bf16.mxu0 %v734
    %956 = vmatpush1.bf16.msra.mxu0 %v733
    %957 = vmatprep.subr.bf16.mxu0 %v740
    %958 = vmatpush1.bf16.msra.mxu0 %v739
    %959 = vmatprep.subr.bf16.mxu0 %v746
    %960 = vmatpush1.bf16.msra.mxu0 %v745
    %961 = vmatprep.mubr.bf16.mxu0 %v234
    %962 = vmatmul.mubr.bf16.gmra.mrb[0].mxu0 %v233
    %v963 = vpop.f32.mrb[0].mxu0
    %v964 = vadd.f32 %v352, %v963
    %v965 = vpop.f32.mrb[0].mxu0
    %v966 = vadd.f32 %v356, %v965
    %v967 = vpop.f32.mrb[0].mxu0
    %v968 = vadd.f32 %v352, %v967
    %v969 = vpop.f32.mrb[0].mxu0
    %v970 = vadd.f32 %v356, %v969
    %971 = vdwg.mxu0
    %v972 = vpack.c.bf16 %v878, %v878
    %v973 = vpack.c.bf16 %v882, %v882
    %v974 = vpack.c.bf16 %v921, %v921
    %v975 = vpack.c.bf16 %v925, %v925
    %976 = vmatprep.subr.bf16.mxu0 0
    %977 = vmatpush1.bf16.xpose.msra.mxu0 %v974
    %978 = vmatprep.subr.bf16.mxu0 0
    %979 = vmatpush1.bf16.xpose.msra.mxu0 0
    %980 = vmatprep.subr.bf16.mxu0 0
    %981 = vmatpush1.bf16.xpose.msra.mxu0 0
    %982 = vmatprep.subr.bf16.mxu0 0
    %983 = vmatpush1.bf16.xpose.msra.mxu0 0
    %984 = vmatprep.subr.bf16.mxu0 0
    %985 = vmatpush1.bf16.xpose.msra.mxu0 0
    %986 = vmatprep.subr.bf16.mxu0 0
    %987 = vmatpush1.bf16.xpose.msra.mxu0 0
    %988 = vmatprep.subr.bf16.mxu0 0
    %989 = vmatpush1.bf16.xpose.msra.mxu0 0
    %990 = vmatprep.subr.bf16.mxu0 0
    %991 = vmatpush1.bf16.xpose.msra.mxu0 0
    %992 = vmatprep.subr.bf16.mxu0 0
    %993 = vmatpush1.bf16.xpose.msra.mxu0 0
    %994 = vmatprep.subr.bf16.mxu0 0
    %995 = vmatpush1.bf16.xpose.msra.mxu0 0
    %996 = vmatprep.subr.bf16.mxu0 0
    %997 = vmatpush1.bf16.xpose.msra.mxu0 0
    %998 = vmatprep.subr.bf16.mxu0 0
    %999 = vmatpush1.bf16.xpose.msra.mxu0 0
    %1000 = vmatprep.subr.bf16.mxu0 0
    %1001 = vmatpush1.bf16.xpose.msra.mxu0 0
    %1002 = vmatprep.subr.bf16.mxu0 0
    %1003 = vmatpush1.bf16.xpose.msra.mxu0 0
    %1004 = vmatprep.subr.bf16.mxu0 0
    %1005 = vmatpush1.bf16.xpose.msra.mxu0 0
    %1006 = vmatprep.subr.bf16.mxu0 0
    %1007 = vmatpush1.bf16.xpose.msra.mxu0 0
    %1008 = vmatprep.mubr.bf16.mxu0 0
    %1009 = vmatmul.mubr.bf16.gmra.mrb[0].mxu0 %v972
    %v1010 = vpop.f32.mrb[0].mxu0
    %v1011 = vadd.f32 0.0, %v1010
    %v1012 = vpop.f32.mrb[0].mxu0
    %v1013 = vpop.f32.mrb[0].mxu0
    %v1014 = vpop.f32.mrb[0].mxu0
    %1015 = vdwg.mxu0
    %1016 = vmatprep.subr.bf16.mxu0 0
    %1017 = vmatpush1.bf16.xpose.msra.mxu0 %v975
    %1018 = vmatprep.subr.bf16.mxu0 0
    %1019 = vmatpush1.bf16.xpose.msra.mxu0 0
    %1020 = vmatprep.subr.bf16.mxu0 0
    %1021 = vmatpush1.bf16.xpose.msra.mxu0 0
    %1022 = vmatprep.subr.bf16.mxu0 0
    %1023 = vmatpush1.bf16.xpose.msra.mxu0 0
    %1024 = vmatprep.subr.bf16.mxu0 0
    %1025 = vmatpush1.bf16.xpose.msra.mxu0 0
    %1026 = vmatprep.subr.bf16.mxu0 0
    %1027 = vmatpush1.bf16.xpose.msra.mxu0 0
    %1028 = vmatprep.subr.bf16.mxu0 0
    %1029 = vmatpush1.bf16.xpose.msra.mxu0 0
    %1030 = vmatprep.subr.bf16.mxu0 0
    %1031 = vmatpush1.bf16.xpose.msra.mxu0 0
    %1032 = vmatprep.subr.bf16.mxu0 0
    %1033 = vmatpush1.bf16.xpose.msra.mxu0 0
    %1034 = vmatprep.subr.bf16.mxu0 0
    %1035 = vmatpush1.bf16.xpose.msra.mxu0 0
    %1036 = vmatprep.subr.bf16.mxu0 0
    %1037 = vmatpush1.bf16.xpose.msra.mxu0 0
    %1038 = vmatprep.subr.bf16.mxu0 0
    %1039 = vmatpush1.bf16.xpose.msra.mxu0 0
    %1040 = vmatprep.subr.bf16.mxu0 0
    %1041 = vmatpush1.bf16.xpose.msra.mxu0 0
    %1042 = vmatprep.subr.bf16.mxu0 0
    %1043 = vmatpush1.bf16.xpose.msra.mxu0 0
    %1044 = vmatprep.subr.bf16.mxu0 0
    %1045 = vmatpush1.bf16.xpose.msra.mxu0 0
    %1046 = vmatprep.subr.bf16.mxu0 0
    %1047 = vmatpush1.bf16.xpose.msra.mxu0 0
    %1048 = vmatprep.mubr.bf16.mxu0 0
    %1049 = vmatmul.mubr.bf16.gmra.mrb[0].mxu0 %v973
    %v1050 = vpop.f32.mrb[0].mxu0
    %v1051 = vadd.f32 0.0, %v1050
    %v1052 = vpop.f32.mrb[0].mxu0
    %v1053 = vpop.f32.mrb[0].mxu0
    %v1054 = vpop.f32.mrb[0].mxu0
    %1055 = vdwg.mxu0
    %v1056 = vmul.f32 %v1011, 0.088388346
    %v1057 = vmul.f32 %v1051, 0.088388346
    %vm1058 = vcmask 64512
    %v1059 = vsel %vm1058, %v1056, -inf
    %1060 = vmax.xlane.f32.xlu0 %v1059
    %v1061 = vpop.xlane.xlu0 %1060
    %v1062 = vsel %vm1058, %v1057, -inf
    %1063 = vmax.xlane.f32.xlu0 %v1062
    %v1064 = vpop.xlane.xlu0 %1063
    %v1065 = vsub.f32 %v1056, %v1061
    %v1066 = vsub.f32 %v1057, %v1064
    %v1067 = vmul.f32 %v1065, 1.442695
    %v1068 = vpow.pop %v1067
    %v1069 = vmul.f32 %v1066, 1.442695
    %v1070 = vpow.pop %v1069
    %v1071 = vsel %vm1058, %v1068, 0.0
    %1072 = vadd.xlane.f32.xlu0 %v1071
    %v1073 = vpop.xlane.xlu0 %1072
    %v1074 = vsel %vm1058, %v1070, 0.0
    %1075 = vadd.xlane.f32.xlu0 %v1074
    %v1076 = vpop.xlane.xlu0 %1075
    %v1077 = vrcp.pop %v1073
    %v1078 = vrcp.pop %v1076
    %v1079 = vmul.f32 %v1068, %v1077
    %v1080 = vmul.f32 %v1070, %v1078
    %v1081 = vpack.c.bf16 %v1079, %v1079
    %v1082 = vpack.c.bf16 %v1080, %v1080
    %v1083 = vpack.c.bf16 %v964, %v964
    %v1084 = vpack.c.bf16 %v968, %v968
    %v1086 = vsel %vm1058, %v1081, 0
    %vm1088 = vcmask 1043456
    %v1090 = vsel %vm1088, %v1083, 0
    %1092 = vmatprep.subr.bf16.mxu0 0
    %1093 = vmatpush1.bf16.msra.mxu0 %v1090
    %1094 = vmatprep.subr.bf16.mxu0 0
    %1095 = vmatpush1.bf16.msra.mxu0 0
    %1096 = vmatprep.subr.bf16.mxu0 0
    %1097 = vmatpush1.bf16.msra.mxu0 0
    %1098 = vmatprep.subr.bf16.mxu0 0
    %1099 = vmatpush1.bf16.msra.mxu0 0
    %1100 = vmatprep.subr.bf16.mxu0 0
    %1101 = vmatpush1.bf16.msra.mxu0 0
    %1102 = vmatprep.subr.bf16.mxu0 0
    %1103 = vmatpush1.bf16.msra.mxu0 0
    %1104 = vmatprep.subr.bf16.mxu0 0
    %1105 = vmatpush1.bf16.msra.mxu0 0
    %1106 = vmatprep.subr.bf16.mxu0 0
    %1107 = vmatpush1.bf16.msra.mxu0 0
    %1108 = vmatprep.subr.bf16.mxu0 0
    %1109 = vmatpush1.bf16.msra.mxu0 0
    %1110 = vmatprep.subr.bf16.mxu0 0
    %1111 = vmatpush1.bf16.msra.mxu0 0
    %1112 = vmatprep.subr.bf16.mxu0 0
    %1113 = vmatpush1.bf16.msra.mxu0 0
    %1114 = vmatprep.subr.bf16.mxu0 0
    %1115 = vmatpush1.bf16.msra.mxu0 0
    %1116 = vmatprep.subr.bf16.mxu0 0
    %1117 = vmatpush1.bf16.msra.mxu0 0
    %1118 = vmatprep.subr.bf16.mxu0 0
    %1119 = vmatpush1.bf16.msra.mxu0 0
    %1120 = vmatprep.subr.bf16.mxu0 0
    %1121 = vmatpush1.bf16.msra.mxu0 0
    %1122 = vmatprep.subr.bf16.mxu0 0
    %1123 = vmatpush1.bf16.msra.mxu0 0
    %1124 = vmatprep.mubr.bf16.mxu0 0
    %1125 = vmatmul.mubr.bf16.gmra.mrb[0].mxu0 %v1086
    %v1126 = vpop.f32.mrb[0].mxu0
    %v1127 = vadd.f32 0.0, %v1126
    %v1128 = vpop.f32.mrb[0].mxu0
    %v1129 = vpop.f32.mrb[0].mxu0
    %v1130 = vpop.f32.mrb[0].mxu0
    %1131 = vdwg.mxu0
    %v1133 = vsel %vm1058, %v1082, 0
    %v1136 = vsel %vm1088, %v1084, 0
    %1138 = vmatprep.subr.bf16.mxu0 0
    %1139 = vmatpush1.bf16.msra.mxu0 %v1136
    %1140 = vmatprep.subr.bf16.mxu0 0
    %1141 = vmatpush1.bf16.msra.mxu0 0
    %1142 = vmatprep.subr.bf16.mxu0 0
    %1143 = vmatpush1.bf16.msra.mxu0 0
    %1144 = vmatprep.subr.bf16.mxu0 0
    %1145 = vmatpush1.bf16.msra.mxu0 0
    %1146 = vmatprep.subr.bf16.mxu0 0
    %1147 = vmatpush1.bf16.msra.mxu0 0
    %1148 = vmatprep.subr.bf16.mxu0 0
    %1149 = vmatpush1.bf16.msra.mxu0 0
    %1150 = vmatprep.subr.bf16.mxu0 0
    %1151 = vmatpush1.bf16.msra.mxu0 0
    %1152 = vmatprep.subr.bf16.mxu0 0
    %1153 = vmatpush1.bf16.msra.mxu0 0
    %1154 = vmatprep.subr.bf16.mxu0 0
    %1155 = vmatpush1.bf16.msra.mxu0 0
    %1156 = vmatprep.subr.bf16.mxu0 0
    %1157 = vmatpush1.bf16.msra.mxu0 0
    %1158 = vmatprep.subr.bf16.mxu0 0
    %1159 = vmatpush1.bf16.msra.mxu0 0
    %1160 = vmatprep.subr.bf16.mxu0 0
    %1161 = vmatpush1.bf16.msra.mxu0 0
    %1162 = vmatprep.subr.bf16.mxu0 0
    %1163 = vmatpush1.bf16.msra.mxu0 0
    %1164 = vmatprep.subr.bf16.mxu0 0
    %1165 = vmatpush1.bf16.msra.mxu0 0
    %1166 = vmatprep.subr.bf16.mxu0 0
    %1167 = vmatpush1.bf16.msra.mxu0 0
    %1168 = vmatprep.subr.bf16.mxu0 0
    %1169 = vmatpush1.bf16.msra.mxu0 0
    %1170 = vmatprep.mubr.bf16.mxu0 0
    %1171 = vmatmul.mubr.bf16.gmra.mrb[0].mxu0 %v1133
    %v1172 = vpop.f32.mrb[0].mxu0
    %v1173 = vadd.f32 0.0, %v1172
    %v1174 = vpop.f32.mrb[0].mxu0
    %v1175 = vpop.f32.mrb[0].mxu0
    %v1176 = vpop.f32.mrb[0].mxu0
    %1177 = vdwg.mxu0
    %v1178 = vpack.c.bf16 %v880, %v880
    %v1179 = vpack.c.bf16 %v884, %v884
    %v1180 = vpack.c.bf16 %v923, %v923
    %v1181 = vpack.c.bf16 %v927, %v927
    %1182 = vmatprep.subr.bf16.mxu0 0
    %1183 = vmatpush1.bf16.xpose.msra.mxu0 %v1180
    %1184 = vmatprep.subr.bf16.mxu0 0
    %1185 = vmatpush1.bf16.xpose.msra.mxu0 0
    %1186 = vmatprep.subr.bf16.mxu0 0
    %1187 = vmatpush1.bf16.xpose.msra.mxu0 0
    %1188 = vmatprep.subr.bf16.mxu0 0
    %1189 = vmatpush1.bf16.xpose.msra.mxu0 0
    %1190 = vmatprep.subr.bf16.mxu0 0
    %1191 = vmatpush1.bf16.xpose.msra.mxu0 0
    %1192 = vmatprep.subr.bf16.mxu0 0
    %1193 = vmatpush1.bf16.xpose.msra.mxu0 0
    %1194 = vmatprep.subr.bf16.mxu0 0
    %1195 = vmatpush1.bf16.xpose.msra.mxu0 0
    %1196 = vmatprep.subr.bf16.mxu0 0
    %1197 = vmatpush1.bf16.xpose.msra.mxu0 0
    %1198 = vmatprep.subr.bf16.mxu0 0
    %1199 = vmatpush1.bf16.xpose.msra.mxu0 0
    %1200 = vmatprep.subr.bf16.mxu0 0
    %1201 = vmatpush1.bf16.xpose.msra.mxu0 0
    %1202 = vmatprep.subr.bf16.mxu0 0
    %1203 = vmatpush1.bf16.xpose.msra.mxu0 0
    %1204 = vmatprep.subr.bf16.mxu0 0
    %1205 = vmatpush1.bf16.xpose.msra.mxu0 0
    %1206 = vmatprep.subr.bf16.mxu0 0
    %1207 = vmatpush1.bf16.xpose.msra.mxu0 0
    %1208 = vmatprep.subr.bf16.mxu0 0
    %1209 = vmatpush1.bf16.xpose.msra.mxu0 0
    %1210 = vmatprep.subr.bf16.mxu0 0
    %1211 = vmatpush1.bf16.xpose.msra.mxu0 0
    %1212 = vmatprep.subr.bf16.mxu0 0
    %1213 = vmatpush1.bf16.xpose.msra.mxu0 0
    %1214 = vmatprep.mubr.bf16.mxu0 0
    %1215 = vmatmul.mubr.bf16.gmra.mrb[0].mxu0 %v1178
    %v1216 = vpop.f32.mrb[0].mxu0
    %v1217 = vadd.f32 0.0, %v1216
    %v1218 = vpop.f32.mrb[0].mxu0
    %v1219 = vpop.f32.mrb[0].mxu0
    %v1220 = vpop.f32.mrb[0].mxu0
    %1221 = vdwg.mxu0
    %1222 = vmatprep.subr.bf16.mxu0 0
    %1223 = vmatpush1.bf16.xpose.msra.mxu0 %v1181
    %1224 = vmatprep.subr.bf16.mxu0 0
    %1225 = vmatpush1.bf16.xpose.msra.mxu0 0
    %1226 = vmatprep.subr.bf16.mxu0 0
    %1227 = vmatpush1.bf16.xpose.msra.mxu0 0
    %1228 = vmatprep.subr.bf16.mxu0 0
    %1229 = vmatpush1.bf16.xpose.msra.mxu0 0
    %1230 = vmatprep.subr.bf16.mxu0 0
    %1231 = vmatpush1.bf16.xpose.msra.mxu0 0
    %1232 = vmatprep.subr.bf16.mxu0 0
    %1233 = vmatpush1.bf16.xpose.msra.mxu0 0
    %1234 = vmatprep.subr.bf16.mxu0 0
    %1235 = vmatpush1.bf16.xpose.msra.mxu0 0
    %1236 = vmatprep.subr.bf16.mxu0 0
    %1237 = vmatpush1.bf16.xpose.msra.mxu0 0
    %1238 = vmatprep.subr.bf16.mxu0 0
    %1239 = vmatpush1.bf16.xpose.msra.mxu0 0
    %1240 = vmatprep.subr.bf16.mxu0 0
    %1241 = vmatpush1.bf16.xpose.msra.mxu0 0
    %1242 = vmatprep.subr.bf16.mxu0 0
    %1243 = vmatpush1.bf16.xpose.msra.mxu0 0
    %1244 = vmatprep.subr.bf16.mxu0 0
    %1245 = vmatpush1.bf16.xpose.msra.mxu0 0
    %1246 = vmatprep.subr.bf16.mxu0 0
    %1247 = vmatpush1.bf16.xpose.msra.mxu0 0
    %1248 = vmatprep.subr.bf16.mxu0 0
    %1249 = vmatpush1.bf16.xpose.msra.mxu0 0
    %1250 = vmatprep.subr.bf16.mxu0 0
    %1251 = vmatpush1.bf16.xpose.msra.mxu0 0
    %1252 = vmatprep.subr.bf16.mxu0 0
    %1253 = vmatpush1.bf16.xpose.msra.mxu0 0
    %1254 = vmatprep.mubr.bf16.mxu0 0
    %1255 = vmatmul.mubr.bf16.gmra.mrb[0].mxu0 %v1179
    %v1256 = vpop.f32.mrb[0].mxu0
    %v1257 = vadd.f32 0.0, %v1256
    %v1258 = vpop.f32.mrb[0].mxu0
    %v1259 = vpop.f32.mrb[0].mxu0
    %v1260 = vpop.f32.mrb[0].mxu0
    %1261 = vdwg.mxu0
    %v1262 = vmul.f32 %v1217, 0.088388346
    %v1263 = vmul.f32 %v1257, 0.088388346
    %v1264 = vsel %vm1058, %v1262, -inf
    %1265 = vmax.xlane.f32.xlu0 %v1264
    %v1266 = vpop.xlane.xlu0 %1265
    %v1267 = vsel %vm1058, %v1263, -inf
    %1268 = vmax.xlane.f32.xlu0 %v1267
    %v1269 = vpop.xlane.xlu0 %1268
    %v1270 = vsub.f32 %v1262, %v1266
    %v1271 = vsub.f32 %v1263, %v1269
    %v1272 = vmul.f32 %v1270, 1.442695
    %v1273 = vpow.pop %v1272
    %v1274 = vmul.f32 %v1271, 1.442695
    %v1275 = vpow.pop %v1274
    %v1276 = vsel %vm1058, %v1273, 0.0
    %1277 = vadd.xlane.f32.xlu0 %v1276
    %v1278 = vpop.xlane.xlu0 %1277
    %v1279 = vsel %vm1058, %v1275, 0.0
    %1280 = vadd.xlane.f32.xlu0 %v1279
    %v1281 = vpop.xlane.xlu0 %1280
    %v1282 = vrcp.pop %v1278
    %v1283 = vrcp.pop %v1281
    %v1284 = vmul.f32 %v1273, %v1282
    %v1285 = vmul.f32 %v1275, %v1283
    %v1286 = vpack.c.bf16 %v1284, %v1284
    %v1287 = vpack.c.bf16 %v1285, %v1285
    %v1288 = vpack.c.bf16 %v966, %v966
    %v1289 = vpack.c.bf16 %v970, %v970
    %v1291 = vsel %vm1058, %v1286, 0
    %v1294 = vsel %vm1088, %v1288, 0
    %1296 = vmatprep.subr.bf16.mxu0 0
    %1297 = vmatpush1.bf16.msra.mxu0 %v1294
    %1298 = vmatprep.subr.bf16.mxu0 0
    %1299 = vmatpush1.bf16.msra.mxu0 0
    %1300 = vmatprep.subr.bf16.mxu0 0
    %1301 = vmatpush1.bf16.msra.mxu0 0
    %1302 = vmatprep.subr.bf16.mxu0 0
    %1303 = vmatpush1.bf16.msra.mxu0 0
    %1304 = vmatprep.subr.bf16.mxu0 0
    %1305 = vmatpush1.bf16.msra.mxu0 0
    %1306 = vmatprep.subr.bf16.mxu0 0
    %1307 = vmatpush1.bf16.msra.mxu0 0
    %1308 = vmatprep.subr.bf16.mxu0 0
    %1309 = vmatpush1.bf16.msra.mxu0 0
    %1310 = vmatprep.subr.bf16.mxu0 0
    %1311 = vmatpush1.bf16.msra.mxu0 0
    %1312 = vmatprep.subr.bf16.mxu0 0
    %1313 = vmatpush1.bf16.msra.mxu0 0
    %1314 = vmatprep.subr.bf16.mxu0 0
    %1315 = vmatpush1.bf16.msra.mxu0 0
    %1316 = vmatprep.subr.bf16.mxu0 0
    %1317 = vmatpush1.bf16.msra.mxu0 0
    %1318 = vmatprep.subr.bf16.mxu0 0
    %1319 = vmatpush1.bf16.msra.mxu0 0
    %1320 = vmatprep.subr.bf16.mxu0 0
    %1321 = vmatpush1.bf16.msra.mxu0 0
    %1322 = vmatprep.subr.bf16.mxu0 0
    %1323 = vmatpush1.bf16.msra.mxu0 0
    %1324 = vmatprep.subr.bf16.mxu0 0
    %1325 = vmatpush1.bf16.msra.mxu0 0
    %1326 = vmatprep.subr.bf16.mxu0 0
    %1327 = vmatpush1.bf16.msra.mxu0 0
    %1328 = vmatprep.mubr.bf16.mxu0 0
    %1329 = vmatmul.mubr.bf16.gmra.mrb[0].mxu0 %v1291
    %v1330 = vpop.f32.mrb[0].mxu0
    %v1331 = vadd.f32 0.0, %v1330
    %v1332 = vpop.f32.mrb[0].mxu0
    %v1333 = vpop.f32.mrb[0].mxu0
    %v1334 = vpop.f32.mrb[0].mxu0
    %1335 = vdwg.mxu0
    %v1337 = vsel %vm1058, %v1287, 0
    %v1340 = vsel %vm1088, %v1289, 0
    %1342 = vmatprep.subr.bf16.mxu0 0
    %1343 = vmatpush1.bf16.msra.mxu0 %v1340
    %1344 = vmatprep.subr.bf16.mxu0 0
    %1345 = vmatpush1.bf16.msra.mxu0 0
    %1346 = vmatprep.subr.bf16.mxu0 0
    %1347 = vmatpush1.bf16.msra.mxu0 0
    %1348 = vmatprep.subr.bf16.mxu0 0
    %1349 = vmatpush1.bf16.msra.mxu0 0
    %1350 = vmatprep.subr.bf16.mxu0 0
    %1351 = vmatpush1.bf16.msra.mxu0 0
    %1352 = vmatprep.subr.bf16.mxu0 0
    %1353 = vmatpush1.bf16.msra.mxu0 0
    %1354 = vmatprep.subr.bf16.mxu0 0
    %1355 = vmatpush1.bf16.msra.mxu0 0
    %1356 = vmatprep.subr.bf16.mxu0 0
    %1357 = vmatpush1.bf16.msra.mxu0 0
    %1358 = vmatprep.subr.bf16.mxu0 0
    %1359 = vmatpush1.bf16.msra.mxu0 0
    %1360 = vmatprep.subr.bf16.mxu0 0
    %1361 = vmatpush1.bf16.msra.mxu0 0
    %1362 = vmatprep.subr.bf16.mxu0 0
    %1363 = vmatpush1.bf16.msra.mxu0 0
    %1364 = vmatprep.subr.bf16.mxu0 0
    %1365 = vmatpush1.bf16.msra.mxu0 0
    %1366 = vmatprep.subr.bf16.mxu0 0
    %1367 = vmatpush1.bf16.msra.mxu0 0
    %1368 = vmatprep.subr.bf16.mxu0 0
    %1369 = vmatpush1.bf16.msra.mxu0 0
    %1370 = vmatprep.subr.bf16.mxu0 0
    %1371 = vmatpush1.bf16.msra.mxu0 0
    %1372 = vmatprep.subr.bf16.mxu0 0
    %1373 = vmatpush1.bf16.msra.mxu0 0
    %1374 = vmatprep.mubr.bf16.mxu0 0
    %1375 = vmatmul.mubr.bf16.gmra.mrb[0].mxu0 %v1337
    %v1376 = vpop.f32.mrb[0].mxu0
    %v1377 = vadd.f32 0.0, %v1376
    %v1378 = vpop.f32.mrb[0].mxu0
    %v1379 = vpop.f32.mrb[0].mxu0
    %v1380 = vpop.f32.mrb[0].mxu0
    %1381 = vdwg.mxu0
    %v1382 = vpack.c.bf16 %v1173, %v1127
    %v1383 = vpack.c.bf16 %v1377, %v1331
    %v1384 = vld [vmem:[#allocation8] sm:$0xff]
    %v1385 = vld [vmem:[#allocation8 + $0x8] sm:$0xff]
    %v1386 = vld [vmem:[#allocation8 + $0x10] sm:$0xff]
    %v1387 = vld [vmem:[#allocation8 + $0x18] sm:$0xff]
    %v1388 = vld [vmem:[#allocation8 + $0x20] sm:$0xff]
    %v1389 = vld [vmem:[#allocation8 + $0x28] sm:$0xff]
    %v1390 = vld [vmem:[#allocation8 + $0x30] sm:$0xff]
    %v1391 = vld [vmem:[#allocation8 + $0x38] sm:$0xff]
    %v1392 = vld [vmem:[#allocation8 + $0x40] sm:$0xff]
    %v1393 = vld [vmem:[#allocation8 + $0x48] sm:$0xff]
    %v1394 = vld [vmem:[#allocation8 + $0x50] sm:$0xff]
    %v1395 = vld [vmem:[#allocation8 + $0x58] sm:$0xff]
    %v1396 = vld [vmem:[#allocation8 + $0x60] sm:$0xff]
    %v1397 = vld [vmem:[#allocation8 + $0x68] sm:$0xff]
    %v1398 = vld [vmem:[#allocation8 + $0x70] sm:$0xff]
    %v1399 = vld [vmem:[#allocation8 + $0x78] sm:$0xff]
    %v1400 = vld [vmem:[#allocation8 + $0x80] sm:$0xff]
    %v1401 = vld [vmem:[#allocation8 + $0x88] sm:$0xff]
    %v1402 = vld [vmem:[#allocation8 + $0x90] sm:$0xff]
    %v1403 = vld [vmem:[#allocation8 + $0x98] sm:$0xff]
    %v1404 = vld [vmem:[#allocation8 + $0xa0] sm:$0xff]
    %v1405 = vld [vmem:[#allocation8 + $0xa8] sm:$0xff]
    %v1406 = vld [vmem:[#allocation8 + $0xb0] sm:$0xff]
    %v1407 = vld [vmem:[#allocation8 + $0xb8] sm:$0xff]
    %v1408 = vld [vmem:[#allocation8 + $0xc0] sm:$0xff]
    %v1409 = vld [vmem:[#allocation8 + $0xc8] sm:$0xff]
    %v1410 = vld [vmem:[#allocation8 + $0xd0] sm:$0xff]
    %v1411 = vld [vmem:[#allocation8 + $0xd8] sm:$0xff]
    %v1412 = vld [vmem:[#allocation8 + $0xe0] sm:$0xff]
    %v1413 = vld [vmem:[#allocation8 + $0xe8] sm:$0xff]
    %v1414 = vld [vmem:[#allocation8 + $0xf0] sm:$0xff]
    %v1415 = vld [vmem:[#allocation8 + $0xf8] sm:$0xff]
    %v1416 = vld [vmem:[#allocation10] sm:$0x3]
    %v1418 = vlaneseq
    %v1419 = vshrl.u32 %v1418, 7
    %v1420 = vsub.s32 0, %v1419
    %v1421 = vrot.slane %v1416, %v1420
    %v1422 = vlaneseq
    %v1423 = vshrl.u32 %v1422, 7
    %v1424 = vsub.s32 1, %v1423
    %v1425 = vrot.slane %v1416, %v1424
    %v1460 = vunpack.c.l.b16 %v1384
    %v1461 = vunpack.c.h.b16 %v1384
    %v1462 = vunpack.c.l.b16 %v1385
    %v1463 = vunpack.c.h.b16 %v1385
    %v1464 = vunpack.c.l.b16 %v1386
    %v1465 = vunpack.c.h.b16 %v1386
    %v1466 = vunpack.c.l.b16 %v1387
    %v1467 = vunpack.c.h.b16 %v1387
    %v1468 = vunpack.c.l.b16 %v1388
    %v1469 = vunpack.c.h.b16 %v1388
    %v1470 = vunpack.c.l.b16 %v1389
    %v1471 = vunpack.c.h.b16 %v1389
    %v1472 = vunpack.c.l.b16 %v1390
    %v1473 = vunpack.c.h.b16 %v1390
    %v1474 = vunpack.c.l.b16 %v1391
    %v1475 = vunpack.c.h.b16 %v1391
    %v1476 = vunpack.c.l.b16 %v1392
    %v1477 = vunpack.c.h.b16 %v1392
    %v1478 = vunpack.c.l.b16 %v1393
    %v1479 = vunpack.c.h.b16 %v1393
    %v1480 = vunpack.c.l.b16 %v1394
    %v1481 = vunpack.c.h.b16 %v1394
    %v1482 = vunpack.c.l.b16 %v1395
    %v1483 = vunpack.c.h.b16 %v1395
    %v1484 = vunpack.c.l.b16 %v1396
    %v1485 = vunpack.c.h.b16 %v1396
    %v1486 = vunpack.c.l.b16 %v1397
    %v1487 = vunpack.c.h.b16 %v1397
    %v1488 = vunpack.c.l.b16 %v1398
    %v1489 = vunpack.c.h.b16 %v1398
    %v1490 = vunpack.c.l.b16 %v1399
    %v1491 = vunpack.c.h.b16 %v1399
    %v1492 = vunpack.c.l.b16 %v1400
    %v1493 = vunpack.c.h.b16 %v1400
    %v1494 = vunpack.c.l.b16 %v1401
    %v1495 = vunpack.c.h.b16 %v1401
    %v1496 = vunpack.c.l.b16 %v1402
    %v1497 = vunpack.c.h.b16 %v1402
    %v1498 = vunpack.c.l.b16 %v1403
    %v1499 = vunpack.c.h.b16 %v1403
    %v1500 = vunpack.c.l.b16 %v1404
    %v1501 = vunpack.c.h.b16 %v1404
    %v1502 = vunpack.c.l.b16 %v1405
    %v1503 = vunpack.c.h.b16 %v1405
    %v1504 = vunpack.c.l.b16 %v1406
    %v1505 = vunpack.c.h.b16 %v1406
    %v1506 = vunpack.c.l.b16 %v1407
    %v1507 = vunpack.c.h.b16 %v1407
    %v1508 = vunpack.c.l.b16 %v1408
    %v1509 = vunpack.c.h.b16 %v1408
    %v1510 = vunpack.c.l.b16 %v1409
    %v1511 = vunpack.c.h.b16 %v1409
    %v1512 = vunpack.c.l.b16 %v1410
    %v1513 = vunpack.c.h.b16 %v1410
    %v1514 = vunpack.c.l.b16 %v1411
    %v1515 = vunpack.c.h.b16 %v1411
    %v1516 = vunpack.c.l.b16 %v1412
    %v1517 = vunpack.c.h.b16 %v1412
    %v1518 = vunpack.c.l.b16 %v1413
    %v1519 = vunpack.c.h.b16 %v1413
    %v1520 = vunpack.c.l.b16 %v1414
    %v1521 = vunpack.c.h.b16 %v1414
    %v1522 = vunpack.c.l.b16 %v1415
    %v1523 = vunpack.c.h.b16 %v1415
    %v1524 = vpack.c.b16 %v1462, %v1460
    %v1525 = vpack.c.b16 %v1463, %v1461
    %v1526 = vpack.c.b16 %v1466, %v1464
    %v1527 = vpack.c.b16 %v1467, %v1465
    %v1528 = vpack.c.b16 %v1470, %v1468
    %v1529 = vpack.c.b16 %v1471, %v1469
    %v1530 = vpack.c.b16 %v1474, %v1472
    %v1531 = vpack.c.b16 %v1475, %v1473
    %v1532 = vpack.c.b16 %v1478, %v1476
    %v1533 = vpack.c.b16 %v1479, %v1477
    %v1534 = vpack.c.b16 %v1482, %v1480
    %v1535 = vpack.c.b16 %v1483, %v1481
    %v1536 = vpack.c.b16 %v1486, %v1484
    %v1537 = vpack.c.b16 %v1487, %v1485
    %v1538 = vpack.c.b16 %v1490, %v1488
    %v1539 = vpack.c.b16 %v1491, %v1489
    %v1540 = vpack.c.b16 %v1494, %v1492
    %v1541 = vpack.c.b16 %v1495, %v1493
    %v1542 = vpack.c.b16 %v1498, %v1496
    %v1543 = vpack.c.b16 %v1499, %v1497
    %v1544 = vpack.c.b16 %v1502, %v1500
    %v1545 = vpack.c.b16 %v1503, %v1501
    %v1546 = vpack.c.b16 %v1506, %v1504
    %v1547 = vpack.c.b16 %v1507, %v1505
    %v1548 = vpack.c.b16 %v1510, %v1508
    %v1549 = vpack.c.b16 %v1511, %v1509
    %v1550 = vpack.c.b16 %v1514, %v1512
    %v1551 = vpack.c.b16 %v1515, %v1513
    %v1552 = vpack.c.b16 %v1518, %v1516
    %v1553 = vpack.c.b16 %v1519, %v1517
    %v1554 = vpack.c.b16 %v1522, %v1520
    %v1555 = vpack.c.b16 %v1523, %v1521
    %1588 = vmatprep.subr.bf16.mxu0 %v1525
    %1589 = vmatpush1.bf16.msra.mxu0 %v1524
    %1590 = vmatprep.subr.bf16.mxu0 %v1527
    %1591 = vmatpush1.bf16.msra.mxu0 %v1526
    %1592 = vmatprep.subr.bf16.mxu0 %v1529
    %1593 = vmatpush1.bf16.msra.mxu0 %v1528
    %1594 = vmatprep.subr.bf16.mxu0 %v1531
    %1595 = vmatpush1.bf16.msra.mxu0 %v1530
    %1596 = vmatprep.subr.bf16.mxu0 %v1533
    %1597 = vmatpush1.bf16.msra.mxu0 %v1532
    %1598 = vmatprep.subr.bf16.mxu0 %v1535
    %1599 = vmatpush1.bf16.msra.mxu0 %v1534
    %1600 = vmatprep.subr.bf16.mxu0 %v1537
    %1601 = vmatpush1.bf16.msra.mxu0 %v1536
    %1602 = vmatprep.subr.bf16.mxu0 %v1539
    %1603 = vmatpush1.bf16.msra.mxu0 %v1538
    %1604 = vmatprep.subr.bf16.mxu0 %v1541
    %1605 = vmatpush1.bf16.msra.mxu0 %v1540
    %1606 = vmatprep.subr.bf16.mxu0 %v1543
    %1607 = vmatpush1.bf16.msra.mxu0 %v1542
    %1608 = vmatprep.subr.bf16.mxu0 %v1545
    %1609 = vmatpush1.bf16.msra.mxu0 %v1544
    %1610 = vmatprep.subr.bf16.mxu0 %v1547
    %1611 = vmatpush1.bf16.msra.mxu0 %v1546
    %1612 = vmatprep.subr.bf16.mxu0 %v1549
    %1613 = vmatpush1.bf16.msra.mxu0 %v1548
    %1614 = vmatprep.subr.bf16.mxu0 %v1551
    %1615 = vmatpush1.bf16.msra.mxu0 %v1550
    %1616 = vmatprep.subr.bf16.mxu0 %v1553
    %1617 = vmatpush1.bf16.msra.mxu0 %v1552
    %1618 = vmatprep.subr.bf16.mxu0 %v1555
    %1619 = vmatpush1.bf16.msra.mxu0 %v1554
    %1620 = vmatprep.mubr.bf16.mxu0 %v1383
    %1621 = vmatmul.mubr.bf16.gmra.mrb[0].mxu0 %v1382
    %v1622 = vpop.f32.mrb[0].mxu0
    %v1623 = vadd.f32 %v1421, %v1622
    %v1624 = vpop.f32.mrb[0].mxu0
    %v1625 = vadd.f32 %v1425, %v1624
    %v1626 = vpop.f32.mrb[0].mxu0
    %v1627 = vadd.f32 %v1421, %v1626
    %v1628 = vpop.f32.mrb[0].mxu0
    %v1629 = vadd.f32 %v1425, %v1628
    %1630 = vdwg.mxu0
    %v1631 = vadd.f32 %v229, %v1623
    %v1632 = vadd.f32 %v230, %v1625
    %v1633 = vadd.f32 %v231, %v1627
    %v1634 = vadd.f32 %v232, %v1629
    %v1635 = vld [vmem:[#allocation17] sm:$0x3]
    %v1636 = vld [vmem:[#allocation19] sm:$0x3]
    %v1637 = vadd.f32 %v1631, %v1632
    %1638 = vadd.xlane.f32.xlu0 %v1637
    %v1639 = vpop.xlane.xlu0 %1638
    %v1640 = vadd.f32 %v1633, %v1634
    %1641 = vadd.xlane.f32.xlu0 %v1640
    %v1642 = vpop.xlane.xlu0 %1641
    %v1643 = vrcp.pop 256.0
    %v1644 = vmul.f32 %v1639, %v1643
    %v1645 = vmul.f32 %v1642, %v1643
    %v1646 = vsub.f32 %v1631, %v1644
    %v1647 = vsub.f32 %v1632, %v1644
    %v1648 = vsub.f32 %v1633, %v1645
    %v1649 = vsub.f32 %v1634, %v1645
    %v1650 = vmul.f32 %v1646, %v1646
    %v1651 = vmul.f32 %v1647, %v1647
    %v1652 = vmul.f32 %v1648, %v1648
    %v1653 = vmul.f32 %v1649, %v1649
    %v1654 = vadd.f32 %v1650, %v1651
    %1655 = vadd.xlane.f32.xlu0 %v1654
    %v1656 = vpop.xlane.xlu0 %1655
    %v1657 = vadd.f32 %v1652, %v1653
    %1658 = vadd.xlane.f32.xlu0 %v1657
    %v1659 = vpop.xlane.xlu0 %1658
    %v1660 = vmul.f32 %v1656, %v1643
    %v1661 = vmul.f32 %v1659, %v1643
    %v1662 = vadd.f32 %v1660, 1e-05
    %v1663 = vadd.f32 %v1661, 1e-05
    %v1664 = vrsqrt.pop %v1662
    %v1665 = vrsqrt.pop %v1663
    %v1666 = vmul.f32 %v1646, %v1664
    %v1667 = vmul.f32 %v1647, %v1664
    %v1668 = vmul.f32 %v1648, %v1665
    %v1669 = vmul.f32 %v1649, %v1665
    %v1671 = vlaneseq
    %v1672 = vshrl.u32 %v1671, 7
    %v1673 = vsub.s32 0, %v1672
    %v1674 = vrot.slane %v1635, %v1673
    %v1675 = vlaneseq
    %v1676 = vshrl.u32 %v1675, 7
    %v1677 = vsub.s32 1, %v1676
    %v1678 = vrot.slane %v1635, %v1677
    %v1681 = vmul.f32 %v1666, %v1674
    %v1682 = vmul.f32 %v1667, %v1678
    %v1683 = vmul.f32 %v1668, %v1674
    %v1684 = vmul.f32 %v1669, %v1678
    %v1686 = vlaneseq
    %v1687 = vshrl.u32 %v1686, 7
    %v1688 = vsub.s32 0, %v1687
    %v1689 = vrot.slane %v1636, %v1688
    %v1690 = vlaneseq
    %v1691 = vshrl.u32 %v1690, 7
    %v1692 = vsub.s32 1, %v1691
    %v1693 = vrot.slane %v1636, %v1692
    %v1696 = vadd.f32 %v1681, %v1689
    %v1697 = vadd.f32 %v1682, %v1693
    %v1698 = vadd.f32 %v1683, %v1689
    %v1699 = vadd.f32 %v1684, %v1693
    %v1700 = vpack.c.bf16 %v1698, %v1696
    %v1701 = vpack.c.bf16 %v1699, %v1697
    %v1702 = vld [vmem:[#allocation11] sm:$0xff]
    %v1703 = vld [vmem:[#allocation11 + $0x8] sm:$0xff]
    %v1704 = vld [vmem:[#allocation11 + $0x10] sm:$0xf]
    %v1705 = vld [vmem:[#allocation11 + $0x14] sm:$0xff]
    %v1706 = vld [vmem:[#allocation11 + $0x1c] sm:$0xff]
    %v1707 = vld [vmem:[#allocation11 + $0x24] sm:$0xf]
    %v1708 = vld [vmem:[#allocation11 + $0x28] sm:$0xff]
    %v1709 = vld [vmem:[#allocation11 + $0x30] sm:$0xff]
    %v1710 = vld [vmem:[#allocation11 + $0x38] sm:$0xf]
    %v1711 = vld [vmem:[#allocation11 + $0x3c] sm:$0xff]
    %v1712 = vld [vmem:[#allocation11 + $0x44] sm:$0xff]
    %v1713 = vld [vmem:[#allocation11 + $0x4c] sm:$0xf]
    %v1714 = vld [vmem:[#allocation11 + $0x50] sm:$0xff]
    %v1715 = vld [vmem:[#allocation11 + $0x58] sm:$0xff]
    %v1716 = vld [vmem:[#allocation11 + $0x60] sm:$0xf]
    %v1717 = vld [vmem:[#allocation11 + $0x64] sm:$0xff]
    %v1718 = vld [vmem:[#allocation11 + $0x6c] sm:$0xff]
    %v1719 = vld [vmem:[#allocation11 + $0x74] sm:$0xf]
    %v1720 = vld [vmem:[#allocation11 + $0x78] sm:$0xff]
    %v1721 = vld [vmem:[#allocation11 + $0x80] sm:$0xff]
    %v1722 = vld [vmem:[#allocation11 + $0x88] sm:$0xf]
    %v1723 = vld [vmem:[#allocation11 + $0x8c] sm:$0xff]
    %v1724 = vld [vmem:[#allocation11 + $0x94] sm:$0xff]
    %v1725 = vld [vmem:[#allocation11 + $0x9c] sm:$0xf]
    %v1726 = vld [vmem:[#allocation11 + $0xa0] sm:$0xff]
    %v1727 = vld [vmem:[#allocation11 + $0xa8] sm:$0xff]
    %v1728 = vld [vmem:[#allocation11 + $0xb0] sm:$0xf]
    %v1729 = vld [vmem:[#allocation11 + $0xb4] sm:$0xff]
    %v1730 = vld [vmem:[#allocation11 + $0xbc] sm:$0xff]
    %v1731 = vld [vmem:[#allocation11 + $0xc4] sm:$0xf]
    %v1732 = vld [vmem:[#allocation11 + $0xc8] sm:$0xff]
    %v1733 = vld [vmem:[#allocation11 + $0xd0] sm:$0xff]
    %v1734 = vld [vmem:[#allocation11 + $0xd8] sm:$0xf]
    %v1735 = vld [vmem:[#allocation11 + $0xdc] sm:$0xff]
    %v1736 = vld [vmem:[#allocation11 + $0xe4] sm:$0xff]
    %v1737 = vld [vmem:[#allocation11 + $0xec] sm:$0xf]
    %v1738 = vld [vmem:[#allocation11 + $0xf0] sm:$0xff]
    %v1739 = vld [vmem:[#allocation11 + $0xf8] sm:$0xff]
    %v1740 = vld [vmem:[#allocation11 + $0x100] sm:$0xf]
    %v1741 = vld [vmem:[#allocation11 + $0x104] sm:$0xff]
    %v1742 = vld [vmem:[#allocation11 + $0x10c] sm:$0xff]
    %v1743 = vld [vmem:[#allocation11 + $0x114] sm:$0xf]
    %v1744 = vld [vmem:[#allocation11 + $0x118] sm:$0xff]
    %v1745 = vld [vmem:[#allocation11 + $0x120] sm:$0xff]
    %v1746 = vld [vmem:[#allocation11 + $0x128] sm:$0xf]
    %v1747 = vld [vmem:[#allocation11 + $0x12c] sm:$0xff]
    %v1748 = vld [vmem:[#allocation11 + $0x134] sm:$0xff]
    %v1749 = vld [vmem:[#allocation11 + $0x13c] sm:$0xf]
    %v1750 = vld [vmem:[#allocation11 + $0x140] sm:$0xff]
    %v1751 = vld [vmem:[#allocation11 + $0x148] sm:$0xff]
    %v1752 = vld [vmem:[#allocation11 + $0x150] sm:$0xf]
    %v1753 = vld [vmem:[#allocation11 + $0x154] sm:$0xff]
    %v1754 = vld [vmem:[#allocation11 + $0x15c] sm:$0xff]
    %v1755 = vld [vmem:[#allocation11 + $0x164] sm:$0xf]
    %v1756 = vld [vmem:[#allocation11 + $0x168] sm:$0xff]
    %v1757 = vld [vmem:[#allocation11 + $0x170] sm:$0xff]
    %v1758 = vld [vmem:[#allocation11 + $0x178] sm:$0xf]
    %v1759 = vld [vmem:[#allocation11 + $0x17c] sm:$0xff]
    %v1760 = vld [vmem:[#allocation11 + $0x184] sm:$0xff]
    %v1761 = vld [vmem:[#allocation11 + $0x18c] sm:$0xf]
    %v1762 = vld [vmem:[#allocation11 + $0x190] sm:$0xff]
    %v1763 = vld [vmem:[#allocation11 + $0x198] sm:$0xff]
    %v1764 = vld [vmem:[#allocation11 + $0x1a0] sm:$0xf]
    %v1765 = vld [vmem:[#allocation11 + $0x1a4] sm:$0xff]
    %v1766 = vld [vmem:[#allocation11 + $0x1ac] sm:$0xff]
    %v1767 = vld [vmem:[#allocation11 + $0x1b4] sm:$0xf]
    %v1768 = vld [vmem:[#allocation11 + $0x1b8] sm:$0xff]
    %v1769 = vld [vmem:[#allocation11 + $0x1c0] sm:$0xff]
    %v1770 = vld [vmem:[#allocation11 + $0x1c8] sm:$0xf]
    %v1771 = vld [vmem:[#allocation11 + $0x1cc] sm:$0xff]
    %v1772 = vld [vmem:[#allocation11 + $0x1d4] sm:$0xff]
    %v1773 = vld [vmem:[#allocation11 + $0x1dc] sm:$0xf]
    %v1774 = vld [vmem:[#allocation11 + $0x1e0] sm:$0xff]
    %v1775 = vld [vmem:[#allocation11 + $0x1e8] sm:$0xff]
    %v1776 = vld [vmem:[#allocation11 + $0x1f0] sm:$0xf]
    %v1777 = vld [vmem:[#allocation11 + $0x1f4] sm:$0xff]
    %v1778 = vld [vmem:[#allocation11 + $0x1fc] sm:$0xff]
    %v1779 = vld [vmem:[#allocation11 + $0x204] sm:$0xf]
    %v1780 = vld [vmem:[#allocation11 + $0x208] sm:$0xff]
    %v1781 = vld [vmem:[#allocation11 + $0x210] sm:$0xff]
    %v1782 = vld [vmem:[#allocation11 + $0x218] sm:$0xf]
    %v1783 = vld [vmem:[#allocation11 + $0x21c] sm:$0xff]
    %v1784 = vld [vmem:[#allocation11 + $0x224] sm:$0xff]
    %v1785 = vld [vmem:[#allocation11 + $0x22c] sm:$0xf]
    %v1786 = vld [vmem:[#allocation11 + $0x230] sm:$0xff]
    %v1787 = vld [vmem:[#allocation11 + $0x238] sm:$0xff]
    %v1788 = vld [vmem:[#allocation11 + $0x240] sm:$0xf]
    %v1789 = vld [vmem:[#allocation11 + $0x244] sm:$0xff]
    %v1790 = vld [vmem:[#allocation11 + $0x24c] sm:$0xff]
    %v1791 = vld [vmem:[#allocation11 + $0x254] sm:$0xf]
    %v1792 = vld [vmem:[#allocation11 + $0x258] sm:$0xff]
    %v1793 = vld [vmem:[#allocation11 + $0x260] sm:$0xff]
    %v1794 = vld [vmem:[#allocation11 + $0x268] sm:$0xf]
    %v1795 = vld [vmem:[#allocation11 + $0x26c] sm:$0xff]
    %v1796 = vld [vmem:[#allocation11 + $0x274] sm:$0xff]
    %v1797 = vld [vmem:[#allocation11 + $0x27c] sm:$0xf]
    %v1798 = vld [vmem:[#allocation13] sm:$0x1f]
    %v1800 = vlaneseq
    %v1801 = vshrl.u32 %v1800, 7
    %v1802 = vsub.s32 0, %v1801
    %v1803 = vrot.slane %v1798, %v1802
    %v1804 = vlaneseq
    %v1805 = vshrl.u32 %v1804, 7
    %v1806 = vsub.s32 1, %v1805
    %v1807 = vrot.slane %v1798, %v1806
    %v1808 = vlaneseq
    %v1809 = vshrl.u32 %v1808, 7
    %v1810 = vsub.s32 2, %v1809
    %v1811 = vrot.slane %v1798, %v1810
    %v1812 = vlaneseq
    %v1813 = vshrl.u32 %v1812, 7
    %v1814 = vsub.s32 3, %v1813
    %v1815 = vrot.slane %v1798, %v1814
    %v1816 = vlaneseq
    %v1817 = vshrl.u32 %v1816, 7
    %v1818 = vsub.s32 4, %v1817
    %v1819 = vrot.slane %v1798, %v1818
    %v1921 = vunpack.c.l.b16 %v1702
    %v1922 = vunpack.c.h.b16 %v1702
    %v1923 = vunpack.c.l.b16 %v1703
    %v1924 = vunpack.c.h.b16 %v1703
    %v1925 = vunpack.c.l.b16 %v1704
    %v1926 = vunpack.c.l.b16 %v1705
    %v1927 = vunpack.c.h.b16 %v1705
    %v1928 = vunpack.c.l.b16 %v1706
    %v1929 = vunpack.c.h.b16 %v1706
    %v1930 = vunpack.c.l.b16 %v1707
    %v1931 = vunpack.c.l.b16 %v1708
    %v1932 = vunpack.c.h.b16 %v1708
    %v1933 = vunpack.c.l.b16 %v1709
    %v1934 = vunpack.c.h.b16 %v1709
    %v1935 = vunpack.c.l.b16 %v1710
    %v1936 = vunpack.c.l.b16 %v1711
    %v1937 = vunpack.c.h.b16 %v1711
    %v1938 = vunpack.c.l.b16 %v1712
    %v1939 = vunpack.c.h.b16 %v1712
    %v1940 = vunpack.c.l.b16 %v1713
    %v1941 = vunpack.c.l.b16 %v1714
    %v1942 = vunpack.c.h.b16 %v1714
    %v1943 = vunpack.c.l.b16 %v1715
    %v1944 = vunpack.c.h.b16 %v1715
    %v1945 = vunpack.c.l.b16 %v1716
    %v1946 = vunpack.c.l.b16 %v1717
    %v1947 = vunpack.c.h.b16 %v1717
    %v1948 = vunpack.c.l.b16 %v1718
    %v1949 = vunpack.c.h.b16 %v1718
    %v1950 = vunpack.c.l.b16 %v1719
    %v1951 = vunpack.c.l.b16 %v1720
    %v1952 = vunpack.c.h.b16 %v1720
    %v1953 = vunpack.c.l.b16 %v1721
    %v1954 = vunpack.c.h.b16 %v1721
    %v1955 = vunpack.c.l.b16 %v1722
    %v1956 = vunpack.c.l.b16 %v1723
    %v1957 = vunpack.c.h.b16 %v1723
    %v1958 = vunpack.c.l.b16 %v1724
    %v1959 = vunpack.c.h.b16 %v1724
    %v1960 = vunpack.c.l.b16 %v1725
    %v1961 = vunpack.c.l.b16 %v1726
    %v1962 = vunpack.c.h.b16 %v1726
    %v1963 = vunpack.c.l.b16 %v1727
    %v1964 = vunpack.c.h.b16 %v1727
    %v1965 = vunpack.c.l.b16 %v1728
    %v1966 = vunpack.c.l.b16 %v1729
    %v1967 = vunpack.c.h.b16 %v1729
    %v1968 = vunpack.c.l.b16 %v1730
    %v1969 = vunpack.c.h.b16 %v1730
    %v1970 = vunpack.c.l.b16 %v1731
    %v1971 = vunpack.c.l.b16 %v1732
    %v1972 = vunpack.c.h.b16 %v1732
    %v1973 = vunpack.c.l.b16 %v1733
    %v1974 = vunpack.c.h.b16 %v1733
    %v1975 = vunpack.c.l.b16 %v1734
    %v1976 = vunpack.c.l.b16 %v1735
    %v1977 = vunpack.c.h.b16 %v1735
    %v1978 = vunpack.c.l.b16 %v1736
    %v1979 = vunpack.c.h.b16 %v1736
    %v1980 = vunpack.c.l.b16 %v1737
    %v1981 = vunpack.c.l.b16 %v1738
    %v1982 = vunpack.c.h.b16 %v1738
    %v1983 = vunpack.c.l.b16 %v1739
    %v1984 = vunpack.c.h.b16 %v1739
    %v1985 = vunpack.c.l.b16 %v1740
    %v1986 = vunpack.c.l.b16 %v1741
    %v1987 = vunpack.c.h.b16 %v1741
    %v1988 = vunpack.c.l.b16 %v1742
    %v1989 = vunpack.c.h.b16 %v1742
    %v1990 = vunpack.c.l.b16 %v1743
    %v1991 = vunpack.c.l.b16 %v1744
    %v1992 = vunpack.c.h.b16 %v1744
    %v1993 = vunpack.c.l.b16 %v1745
    %v1994 = vunpack.c.h.b16 %v1745
    %v1995 = vunpack.c.l.b16 %v1746
    %v1996 = vunpack.c.l.b16 %v1747
    %v1997 = vunpack.c.h.b16 %v1747
    %v1998 = vunpack.c.l.b16 %v1748
    %v1999 = vunpack.c.h.b16 %v1748
    %v2000 = vunpack.c.l.b16 %v1749
    %v2001 = vunpack.c.l.b16 %v1750
    %v2002 = vunpack.c.h.b16 %v1750
    %v2003 = vunpack.c.l.b16 %v1751
    %v2004 = vunpack.c.h.b16 %v1751
    %v2005 = vunpack.c.l.b16 %v1752
    %v2006 = vunpack.c.l.b16 %v1753
    %v2007 = vunpack.c.h.b16 %v1753
    %v2008 = vunpack.c.l.b16 %v1754
    %v2009 = vunpack.c.h.b16 %v1754
    %v2010 = vunpack.c.l.b16 %v1755
    %v2011 = vunpack.c.l.b16 %v1756
    %v2012 = vunpack.c.h.b16 %v1756
    %v2013 = vunpack.c.l.b16 %v1757
    %v2014 = vunpack.c.h.b16 %v1757
    %v2015 = vunpack.c.l.b16 %v1758
    %v2016 = vunpack.c.l.b16 %v1759
    %v2017 = vunpack.c.h.b16 %v1759
    %v2018 = vunpack.c.l.b16 %v1760
    %v2019 = vunpack.c.h.b16 %v1760
    %v2020 = vunpack.c.l.b16 %v1761
    %v2021 = vunpack.c.l.b16 %v1762
    %v2022 = vunpack.c.h.b16 %v1762
    %v2023 = vunpack.c.l.b16 %v1763
    %v2024 = vunpack.c.h.b16 %v1763
    %v2025 = vunpack.c.l.b16 %v1764
    %v2026 = vunpack.c.l.b16 %v1765
    %v2027 = vunpack.c.h.b16 %v1765
    %v2028 = vunpack.c.l.b16 %v1766
    %v2029 = vunpack.c.h.b16 %v1766
    %v2030 = vunpack.c.l.b16 %v1767
    %v2031 = vunpack.c.l.b16 %v1768
    %v2032 = vunpack.c.h.b16 %v1768
    %v2033 = vunpack.c.l.b16 %v1769
    %v2034 = vunpack.c.h.b16 %v1769
    %v2035 = vunpack.c.l.b16 %v1770
    %v2036 = vunpack.c.l.b16 %v1771
    %v2037 = vunpack.c.h.b16 %v1771
    %v2038 = vunpack.c.l.b16 %v1772
    %v2039 = vunpack.c.h.b16 %v1772
    %v2040 = vunpack.c.l.b16 %v1773
    %v2041 = vunpack.c.l.b16 %v1774
    %v2042 = vunpack.c.h.b16 %v1774
    %v2043 = vunpack.c.l.b16 %v1775
    %v2044 = vunpack.c.h.b16 %v1775
    %v2045 = vunpack.c.l.b16 %v1776
    %v2046 = vunpack.c.l.b16 %v1777
    %v2047 = vunpack.c.h.b16 %v1777
    %v2048 = vunpack.c.l.b16 %v1778
    %v2049 = vunpack.c.h.b16 %v1778
    %v2050 = vunpack.c.l.b16 %v1779
    %v2051 = vunpack.c.l.b16 %v1780
    %v2052 = vunpack.c.h.b16 %v1780
    %v2053 = vunpack.c.l.b16 %v1781
    %v2054 = vunpack.c.h.b16 %v1781
    %v2055 = vunpack.c.l.b16 %v1782
    %v2056 = vunpack.c.l.b16 %v1783
    %v2057 = vunpack.c.h.b16 %v1783
    %v2058 = vunpack.c.l.b16 %v1784
    %v2059 = vunpack.c.h.b16 %v1784
    %v2060 = vunpack.c.l.b16 %v1785
    %v2061 = vunpack.c.l.b16 %v1786
    %v2062 = vunpack.c.h.b16 %v1786
    %v2063 = vunpack.c.l.b16 %v1787
    %v2064 = vunpack.c.h.b16 %v1787
    %v2065 = vunpack.c.l.b16 %v1788
    %v2066 = vunpack.c.l.b16 %v1789
    %v2067 = vunpack.c.h.b16 %v1789
    %v2068 = vunpack.c.l.b16 %v1790
    %v2069 = vunpack.c.h.b16 %v1790
    %v2070 = vunpack.c.l.b16 %v1791
    %v2071 = vunpack.c.l.b16 %v1792
    %v2072 = vunpack.c.h.b16 %v1792
    %v2073 = vunpack.c.l.b16 %v1793
    %v2074 = vunpack.c.h.b16 %v1793
    %v2075 = vunpack.c.l.b16 %v1794
    %v2076 = vunpack.c.l.b16 %v1795
    %v2077 = vunpack.c.h.b16 %v1795
    %v2078 = vunpack.c.l.b16 %v1796
    %v2079 = vunpack.c.h.b16 %v1796
    %v2080 = vunpack.c.l.b16 %v1797
    %v2081 = vpack.c.b16 %v1926, %v1921
    %v2082 = vpack.c.b16 %v1927, %v1922
    %v2083 = vpack.c.b16 %v1928, %v1923
    %v2084 = vpack.c.b16 %v1929, %v1924
    %v2085 = vpack.c.b16 %v1930, %v1925
    %v2086 = vpack.c.b16 %v1936, %v1931
    %v2087 = vpack.c.b16 %v1937, %v1932
    %v2088 = vpack.c.b16 %v1938, %v1933
    %v2089 = vpack.c.b16 %v1939, %v1934
    %v2090 = vpack.c.b16 %v1940, %v1935
    %v2091 = vpack.c.b16 %v1946, %v1941
    %v2092 = vpack.c.b16 %v1947, %v1942
    %v2093 = vpack.c.b16 %v1948, %v1943
    %v2094 = vpack.c.b16 %v1949, %v1944
    %v2095 = vpack.c.b16 %v1950, %v1945
    %v2096 = vpack.c.b16 %v1956, %v1951
    %v2097 = vpack.c.b16 %v1957, %v1952
    %v2098 = vpack.c.b16 %v1958, %v1953
    %v2099 = vpack.c.b16 %v1959, %v1954
    %v2100 = vpack.c.b16 %v1960, %v1955
    %v2101 = vpack.c.b16 %v1966, %v1961
    %v2102 = vpack.c.b16 %v1967, %v1962
    %v2103 = vpack.c.b16 %v1968, %v1963
    %v2104 = vpack.c.b16 %v1969, %v1964
    %v2105 = vpack.c.b16 %v1970, %v1965
    %v2106 = vpack.c.b16 %v1976, %v1971
    %v2107 = vpack.c.b16 %v1977, %v1972
    %v2108 = vpack.c.b16 %v1978, %v1973
    %v2109 = vpack.c.b16 %v1979, %v1974
    %v2110 = vpack.c.b16 %v1980, %v1975
    %v2111 = vpack.c.b16 %v1986, %v1981
    %v2112 = vpack.c.b16 %v1987, %v1982
    %v2113 = vpack.c.b16 %v1988, %v1983
    %v2114 = vpack.c.b16 %v1989, %v1984
    %v2115 = vpack.c.b16 %v1990, %v1985
    %v2116 = vpack.c.b16 %v1996, %v1991
    %v2117 = vpack.c.b16 %v1997, %v1992
    %v2118 = vpack.c.b16 %v1998, %v1993
    %v2119 = vpack.c.b16 %v1999, %v1994
    %v2120 = vpack.c.b16 %v2000, %v1995
    %v2121 = vpack.c.b16 %v2006, %v2001
    %v2122 = vpack.c.b16 %v2007, %v2002
    %v2123 = vpack.c.b16 %v2008, %v2003
    %v2124 = vpack.c.b16 %v2009, %v2004
    %v2125 = vpack.c.b16 %v2010, %v2005
    %v2126 = vpack.c.b16 %v2016, %v2011
    %v2127 = vpack.c.b16 %v2017, %v2012
    %v2128 = vpack.c.b16 %v2018, %v2013
    %v2129 = vpack.c.b16 %v2019, %v2014
    %v2130 = vpack.c.b16 %v2020, %v2015
    %v2131 = vpack.c.b16 %v2026, %v2021
    %v2132 = vpack.c.b16 %v2027, %v2022
    %v2133 = vpack.c.b16 %v2028, %v2023
    %v2134 = vpack.c.b16 %v2029, %v2024
    %v2135 = vpack.c.b16 %v2030, %v2025
    %v2136 = vpack.c.b16 %v2036, %v2031
    %v2137 = vpack.c.b16 %v2037, %v2032
    %v2138 = vpack.c.b16 %v2038, %v2033
    %v2139 = vpack.c.b16 %v2039, %v2034
    %v2140 = vpack.c.b16 %v2040, %v2035
    %v2141 = vpack.c.b16 %v2046, %v2041
    %v2142 = vpack.c.b16 %v2047, %v2042
    %v2143 = vpack.c.b16 %v2048, %v2043
    %v2144 = vpack.c.b16 %v2049, %v2044
    %v2145 = vpack.c.b16 %v2050, %v2045
    %v2146 = vpack.c.b16 %v2056, %v2051
    %v2147 = vpack.c.b16 %v2057, %v2052
    %v2148 = vpack.c.b16 %v2058, %v2053
    %v2149 = vpack.c.b16 %v2059, %v2054
    %v2150 = vpack.c.b16 %v2060, %v2055
    %v2151 = vpack.c.b16 %v2066, %v2061
    %v2152 = vpack.c.b16 %v2067, %v2062
    %v2153 = vpack.c.b16 %v2068, %v2063
    %v2154 = vpack.c.b16 %v2069, %v2064
    %v2155 = vpack.c.b16 %v2070, %v2065
    %v2156 = vpack.c.b16 %v2076, %v2071
    %v2157 = vpack.c.b16 %v2077, %v2072
    %v2158 = vpack.c.b16 %v2078, %v2073
    %v2159 = vpack.c.b16 %v2079, %v2074
    %v2160 = vpack.c.b16 %v2080, %v2075
    %2241 = vmatprep.subr.bf16.mxu0 %v2082
    %2242 = vmatpush1.bf16.msra.mxu0 %v2081
    %2243 = vmatprep.subr.bf16.mxu0 %v2087
    %2244 = vmatpush1.bf16.msra.mxu0 %v2086
    %2245 = vmatprep.subr.bf16.mxu0 %v2092
    %2246 = vmatpush1.bf16.msra.mxu0 %v2091
    %2247 = vmatprep.subr.bf16.mxu0 %v2097
    %2248 = vmatpush1.bf16.msra.mxu0 %v2096
    %2249 = vmatprep.subr.bf16.mxu0 %v2102
    %2250 = vmatpush1.bf16.msra.mxu0 %v2101
    %2251 = vmatprep.subr.bf16.mxu0 %v2107
    %2252 = vmatpush1.bf16.msra.mxu0 %v2106
    %2253 = vmatprep.subr.bf16.mxu0 %v2112
    %2254 = vmatpush1.bf16.msra.mxu0 %v2111
    %2255 = vmatprep.subr.bf16.mxu0 %v2117
    %2256 = vmatpush1.bf16.msra.mxu0 %v2116
    %2257 = vmatprep.subr.bf16.mxu0 %v2122
    %2258 = vmatpush1.bf16.msra.mxu0 %v2121
    %2259 = vmatprep.subr.bf16.mxu0 %v2127
    %2260 = vmatpush1.bf16.msra.mxu0 %v2126
    %2261 = vmatprep.subr.bf16.mxu0 %v2132
    %2262 = vmatpush1.bf16.msra.mxu0 %v2131
    %2263 = vmatprep.subr.bf16.mxu0 %v2137
    %2264 = vmatpush1.bf16.msra.mxu0 %v2136
    %2265 = vmatprep.subr.bf16.mxu0 %v2142
    %2266 = vmatpush1.bf16.msra.mxu0 %v2141
    %2267 = vmatprep.subr.bf16.mxu0 %v2147
    %2268 = vmatpush1.bf16.msra.mxu0 %v2146
    %2269 = vmatprep.subr.bf16.mxu0 %v2152
    %2270 = vmatpush1.bf16.msra.mxu0 %v2151
    %2271 = vmatprep.subr.bf16.mxu0 %v2157
    %2272 = vmatpush1.bf16.msra.mxu0 %v2156
    %2273 = vmatprep.mubr.bf16.mxu0 %v1701
    %2274 = vmatmul.mubr.bf16.gmra.mrb[0].mxu0 %v1700
    %v2275 = vpop.f32.mrb[0].mxu0
    %v2276 = vadd.f32 %v1803, %v2275
    %v2277 = vpop.f32.mrb[0].mxu0
    %v2278 = vadd.f32 %v1807, %v2277
    %v2279 = vpop.f32.mrb[0].mxu0
    %v2280 = vadd.f32 %v1803, %v2279
    %v2281 = vpop.f32.mrb[0].mxu0
    %v2282 = vadd.f32 %v1807, %v2281
    %2283 = vdwg.mxu0
    %2284 = vmatprep.subr.bf16.mxu0 %v2084
    %2285 = vmatpush1.bf16.msra.mxu0 %v2083
    %2286 = vmatprep.subr.bf16.mxu0 %v2089
    %2287 = vmatpush1.bf16.msra.mxu0 %v2088
    %2288 = vmatprep.subr.bf16.mxu0 %v2094
    %2289 = vmatpush1.bf16.msra.mxu0 %v2093
    %2290 = vmatprep.subr.bf16.mxu0 %v2099
    %2291 = vmatpush1.bf16.msra.mxu0 %v2098
    %2292 = vmatprep.subr.bf16.mxu0 %v2104
    %2293 = vmatpush1.bf16.msra.mxu0 %v2103
    %2294 = vmatprep.subr.bf16.mxu0 %v2109
    %2295 = vmatpush1.bf16.msra.mxu0 %v2108
    %2296 = vmatprep.subr.bf16.mxu0 %v2114
    %2297 = vmatpush1.bf16.msra.mxu0 %v2113
    %2298 = vmatprep.subr.bf16.mxu0 %v2119
    %2299 = vmatpush1.bf16.msra.mxu0 %v2118
    %2300 = vmatprep.subr.bf16.mxu0 %v2124
    %2301 = vmatpush1.bf16.msra.mxu0 %v2123
    %2302 = vmatprep.subr.bf16.mxu0 %v2129
    %2303 = vmatpush1.bf16.msra.mxu0 %v2128
    %2304 = vmatprep.subr.bf16.mxu0 %v2134
    %2305 = vmatpush1.bf16.msra.mxu0 %v2133
    %2306 = vmatprep.subr.bf16.mxu0 %v2139
    %2307 = vmatpush1.bf16.msra.mxu0 %v2138
    %2308 = vmatprep.subr.bf16.mxu0 %v2144
    %2309 = vmatpush1.bf16.msra.mxu0 %v2143
    %2310 = vmatprep.subr.bf16.mxu0 %v2149
    %2311 = vmatpush1.bf16.msra.mxu0 %v2148
    %2312 = vmatprep.subr.bf16.mxu0 %v2154
    %2313 = vmatpush1.bf16.msra.mxu0 %v2153
    %2314 = vmatprep.subr.bf16.mxu0 %v2159
    %2315 = vmatpush1.bf16.msra.mxu0 %v2158
    %2316 = vmatprep.mubr.bf16.mxu0 %v1701
    %2317 = vmatmul.mubr.bf16.gmra.mrb[0].mxu0 %v1700
    %v2318 = vpop.f32.mrb[0].mxu0
    %v2319 = vadd.f32 %v1811, %v2318
    %v2320 = vpop.f32.mrb[0].mxu0
    %v2321 = vadd.f32 %v1815, %v2320
    %v2322 = vpop.f32.mrb[0].mxu0
    %v2323 = vadd.f32 %v1811, %v2322
    %v2324 = vpop.f32.mrb[0].mxu0
    %v2325 = vadd.f32 %v1815, %v2324
    %2326 = vdwg.mxu0
    %2327 = vmatprep.subr.bf16.mxu0 0
    %2328 = vmatpush1.bf16.msra.mxu0 %v2085
    %2329 = vmatprep.subr.bf16.mxu0 0
    %2330 = vmatpush1.bf16.msra.mxu0 %v2090
    %2331 = vmatprep.subr.bf16.mxu0 0
    %2332 = vmatpush1.bf16.msra.mxu0 %v2095
    %2333 = vmatprep.subr.bf16.mxu0 0
    %2334 = vmatpush1.bf16.msra.mxu0 %v2100
    %2335 = vmatprep.subr.bf16.mxu0 0
    %2336 = vmatpush1.bf16.msra.mxu0 %v2105
    %2337 = vmatprep.subr.bf16.mxu0 0
    %2338 = vmatpush1.bf16.msra.mxu0 %v2110
    %2339 = vmatprep.subr.bf16.mxu0 0
    %2340 = vmatpush1.bf16.msra.mxu0 %v2115
    %2341 = vmatprep.subr.bf16.mxu0 0
    %2342 = vmatpush1.bf16.msra.mxu0 %v2120
    %2343 = vmatprep.subr.bf16.mxu0 0
    %2344 = vmatpush1.bf16.msra.mxu0 %v2125
    %2345 = vmatprep.subr.bf16.mxu0 0
    %2346 = vmatpush1.bf16.msra.mxu0 %v2130
    %2347 = vmatprep.subr.bf16.mxu0 0
    %2348 = vmatpush1.bf16.msra.mxu0 %v2135
    %2349 = vmatprep.subr.bf16.mxu0 0
    %2350 = vmatpush1.bf16.msra.mxu0 %v2140
    %2351 = vmatprep.subr.bf16.mxu0 0
    %2352 = vmatpush1.bf16.msra.mxu0 %v2145
    %2353 = vmatprep.subr.bf16.mxu0 0
    %2354 = vmatpush1.bf16.msra.mxu0 %v2150
    %2355 = vmatprep.subr.bf16.mxu0 0
    %2356 = vmatpush1.bf16.msra.mxu0 %v2155
    %2357 = vmatprep.subr.bf16.mxu0 0
    %2358 = vmatpush1.bf16.msra.mxu0 %v2160
    %2359 = vmatprep.mubr.bf16.mxu0 %v1701
    %2360 = vmatmul.mubr.bf16.gmra.mrb[0].mxu0 %v1700
    %v2361 = vpop.f32.mrb[0].mxu0
    %v2362 = vadd.f32 %v1819, %v2361
    %v2363 = vpop.f32.mrb[0].mxu0
    %v2364 = vpop.f32.mrb[0].mxu0
    %v2365 = vadd.f32 %v1819, %v2364
    %v2366 = vpop.f32.mrb[0].mxu0
    %2367 = vdwg.mxu0
    %v2368 = vmax.f32 %v2276, 0.0
    %v2369 = vmax.f32 %v2278, 0.0
    %v2370 = vmax.f32 %v2319, 0.0
    %v2371 = vmax.f32 %v2321, 0.0
    %v2372 = vmax.f32 %v2362, 0.0
    %v2373 = vmax.f32 %v2280, 0.0
    %v2374 = vmax.f32 %v2282, 0.0
    %v2375 = vmax.f32 %v2323, 0.0
    %v2376 = vmax.f32 %v2325, 0.0
    %v2377 = vmax.f32 %v2365, 0.0
    %v2378 = vpack.c.bf16 %v2373, %v2368
    %v2379 = vpack.c.bf16 %v2374, %v2369
    %v2380 = vpack.c.bf16 %v2375, %v2370
    %v2381 = vpack.c.bf16 %v2376, %v2371
    %v2382 = vpack.c.bf16 %v2377, %v2372
    %v2383 = vld [vmem:[#allocation14] sm:$0xff]
    %v2384 = vld [vmem:[#allocation14 + $0x8] sm:$0xff]
    %v2385 = vld [vmem:[#allocation14 + $0x10] sm:$0xff]
    %v2386 = vld [vmem:[#allocation14 + $0x18] sm:$0xff]
    %v2387 = vld [vmem:[#allocation14 + $0x20] sm:$0xff]
    %v2388 = vld [vmem:[#allocation14 + $0x28] sm:$0xff]
    %v2389 = vld [vmem:[#allocation14 + $0x30] sm:$0xff]
    %v2390 = vld [vmem:[#allocation14 + $0x38] sm:$0xff]
    %v2391 = vld [vmem:[#allocation14 + $0x40] sm:$0xff]
    %v2392 = vld [vmem:[#allocation14 + $0x48] sm:$0xff]
    %v2393 = vld [vmem:[#allocation14 + $0x50] sm:$0xff]
    %v2394 = vld [vmem:[#allocation14 + $0x58] sm:$0xff]
    %v2395 = vld [vmem:[#allocation14 + $0x60] sm:$0xff]
    %v2396 = vld [vmem:[#allocation14 + $0x68] sm:$0xff]
    %v2397 = vld [vmem:[#allocation14 + $0x70] sm:$0xff]
    %v2398 = vld [vmem:[#allocation14 + $0x78] sm:$0xff]
    %v2399 = vld [vmem:[#allocation14 + $0x80] sm:$0xff]
    %v2400 = vld [vmem:[#allocation14 + $0x88] sm:$0xff]
    %v2401 = vld [vmem:[#allocation14 + $0x90] sm:$0xff]
    %v2402 = vld [vmem:[#allocation14 + $0x98] sm:$0xff]
    %v2403 = vld [vmem:[#allocation14 + $0xa0] sm:$0xff]
    %v2404 = vld [vmem:[#allocation14 + $0xa8] sm:$0xff]
    %v2405 = vld [vmem:[#allocation14 + $0xb0] sm:$0xff]
    %v2406 = vld [vmem:[#allocation14 + $0xb8] sm:$0xff]
    %v2407 = vld [vmem:[#allocation14 + $0xc0] sm:$0xff]
    %v2408 = vld [vmem:[#allocation14 + $0xc8] sm:$0xff]
    %v2409 = vld [vmem:[#allocation14 + $0xd0] sm:$0xff]
    %v2410 = vld [vmem:[#allocation14 + $0xd8] sm:$0xff]
    %v2411 = vld [vmem:[#allocation14 + $0xe0] sm:$0xff]
    %v2412 = vld [vmem:[#allocation14 + $0xe8] sm:$0xff]
    %v2413 = vld [vmem:[#allocation14 + $0xf0] sm:$0xff]
    %v2414 = vld [vmem:[#allocation14 + $0xf8] sm:$0xff]
    %v2415 = vld [vmem:[#allocation14 + $0x100] sm:$0xff]
    %v2416 = vld [vmem:[#allocation14 + $0x108] sm:$0xff]
    %v2417 = vld [vmem:[#allocation14 + $0x110] sm:$0xff]
    %v2418 = vld [vmem:[#allocation14 + $0x118] sm:$0xff]
    %v2419 = vld [vmem:[#allocation14 + $0x120] sm:$0xff]
    %v2420 = vld [vmem:[#allocation14 + $0x128] sm:$0xff]
    %v2421 = vld [vmem:[#allocation14 + $0x130] sm:$0xff]
    %v2422 = vld [vmem:[#allocation14 + $0x138] sm:$0xff]
    %v2423 = vld [vmem:[#allocation14 + $0x140] sm:$0xff]
    %v2424 = vld [vmem:[#allocation14 + $0x148] sm:$0xff]
    %v2425 = vld [vmem:[#allocation14 + $0x150] sm:$0xff]
    %v2426 = vld [vmem:[#allocation14 + $0x158] sm:$0xff]
    %v2427 = vld [vmem:[#allocation14 + $0x160] sm:$0xff]
    %v2428 = vld [vmem:[#allocation14 + $0x168] sm:$0xff]
    %v2429 = vld [vmem:[#allocation14 + $0x170] sm:$0xff]
    %v2430 = vld [vmem:[#allocation14 + $0x178] sm:$0xff]
    %v2431 = vld [vmem:[#allocation14 + $0x180] sm:$0xff]
    %v2432 = vld [vmem:[#allocation14 + $0x188] sm:$0xff]
    %v2433 = vld [vmem:[#allocation14 + $0x190] sm:$0xff]
    %v2434 = vld [vmem:[#allocation14 + $0x198] sm:$0xff]
    %v2435 = vld [vmem:[#allocation14 + $0x1a0] sm:$0xff]
    %v2436 = vld [vmem:[#allocation14 + $0x1a8] sm:$0xff]
    %v2437 = vld [vmem:[#allocation14 + $0x1b0] sm:$0xff]
    %v2438 = vld [vmem:[#allocation14 + $0x1b8] sm:$0xff]
    %v2439 = vld [vmem:[#allocation14 + $0x1c0] sm:$0xff]
    %v2440 = vld [vmem:[#allocation14 + $0x1c8] sm:$0xff]
    %v2441 = vld [vmem:[#allocation14 + $0x1d0] sm:$0xff]
    %v2442 = vld [vmem:[#allocation14 + $0x1d8] sm:$0xff]
    %v2443 = vld [vmem:[#allocation14 + $0x1e0] sm:$0xff]
    %v2444 = vld [vmem:[#allocation14 + $0x1e8] sm:$0xff]
    %v2445 = vld [vmem:[#allocation14 + $0x1f0] sm:$0xff]
    %v2446 = vld [vmem:[#allocation14 + $0x1f8] sm:$0xff]
    %v2447 = vld [vmem:[#allocation14 + $0x200] sm:$0xff]
    %v2448 = vld [vmem:[#allocation14 + $0x208] sm:$0xff]
    %v2449 = vld [vmem:[#allocation14 + $0x210] sm:$0xff]
    %v2450 = vld [vmem:[#allocation14 + $0x218] sm:$0xff]
    %v2451 = vld [vmem:[#allocation14 + $0x220] sm:$0xff]
    %v2452 = vld [vmem:[#allocation14 + $0x228] sm:$0xff]
    %v2453 = vld [vmem:[#allocation14 + $0x230] sm:$0xff]
    %v2454 = vld [vmem:[#allocation14 + $0x238] sm:$0xff]
    %v2455 = vld [vmem:[#allocation14 + $0x240] sm:$0xff]
    %v2456 = vld [vmem:[#allocation14 + $0x248] sm:$0xff]
    %v2457 = vld [vmem:[#allocation14 + $0x250] sm:$0xff]
    %v2458 = vld [vmem:[#allocation14 + $0x258] sm:$0xff]
    %v2459 = vld [vmem:[#allocation14 + $0x260] sm:$0xff]
    %v2460 = vld [vmem:[#allocation14 + $0x268] sm:$0xff]
    %v2461 = vld [vmem:[#allocation14 + $0x270] sm:$0xff]
    %v2462 = vld [vmem:[#allocation14 + $0x278] sm:$0xff]
    %v2463 = vld [vmem:[#allocation16] sm:$0x3]
    %v2465 = vlaneseq
    %v2466 = vshrl.u32 %v2465, 7
    %v2467 = vsub.s32 0, %v2466
    %v2468 = vrot.slane %v2463, %v2467
    %v2469 = vlaneseq
    %v2470 = vshrl.u32 %v2469, 7
    %v2471 = vsub.s32 1, %v2470
    %v2472 = vrot.slane %v2463, %v2471
    %v2555 = vunpack.c.l.b16 %v2383
    %v2556 = vunpack.c.h.b16 %v2383
    %v2557 = vunpack.c.l.b16 %v2384
    %v2558 = vunpack.c.h.b16 %v2384
    %v2559 = vunpack.c.l.b16 %v2385
    %v2560 = vunpack.c.h.b16 %v2385
    %v2561 = vunpack.c.l.b16 %v2386
    %v2562 = vunpack.c.h.b16 %v2386
    %v2563 = vunpack.c.l.b16 %v2387
    %v2564 = vunpack.c.h.b16 %v2387
    %v2565 = vunpack.c.l.b16 %v2388
    %v2566 = vunpack.c.h.b16 %v2388
    %v2567 = vunpack.c.l.b16 %v2389
    %v2568 = vunpack.c.h.b16 %v2389
    %v2569 = vunpack.c.l.b16 %v2390
    %v2570 = vunpack.c.h.b16 %v2390
    %v2571 = vunpack.c.l.b16 %v2391
    %v2572 = vunpack.c.h.b16 %v2391
    %v2573 = vunpack.c.l.b16 %v2392
    %v2574 = vunpack.c.h.b16 %v2392
    %v2575 = vunpack.c.l.b16 %v2393
    %v2576 = vunpack.c.h.b16 %v2393
    %v2577 = vunpack.c.l.b16 %v2394
    %v2578 = vunpack.c.h.b16 %v2394
    %v2579 = vunpack.c.l.b16 %v2395
    %v2580 = vunpack.c.h.b16 %v2395
    %v2581 = vunpack.c.l.b16 %v2396
    %v2582 = vunpack.c.h.b16 %v2396
    %v2583 = vunpack.c.l.b16 %v2397
    %v2584 = vunpack.c.h.b16 %v2397
    %v2585 = vunpack.c.l.b16 %v2398
    %v2586 = vunpack.c.h.b16 %v2398
    %v2587 = vunpack.c.l.b16 %v2399
    %v2588 = vunpack.c.h.b16 %v2399
    %v2589 = vunpack.c.l.b16 %v2400
    %v2590 = vunpack.c.h.b16 %v2400
    %v2591 = vunpack.c.l.b16 %v2401
    %v2592 = vunpack.c.h.b16 %v2401
    %v2593 = vunpack.c.l.b16 %v2402
    %v2594 = vunpack.c.h.b16 %v2402
    %v2595 = vunpack.c.l.b16 %v2403
    %v2596 = vunpack.c.h.b16 %v2403
    %v2597 = vunpack.c.l.b16 %v2404
    %v2598 = vunpack.c.h.b16 %v2404
    %v2599 = vunpack.c.l.b16 %v2405
    %v2600 = vunpack.c.h.b16 %v2405
    %v2601 = vunpack.c.l.b16 %v2406
    %v2602 = vunpack.c.h.b16 %v2406
    %v2603 = vunpack.c.l.b16 %v2407
    %v2604 = vunpack.c.h.b16 %v2407
    %v2605 = vunpack.c.l.b16 %v2408
    %v2606 = vunpack.c.h.b16 %v2408
    %v2607 = vunpack.c.l.b16 %v2409
    %v2608 = vunpack.c.h.b16 %v2409
    %v2609 = vunpack.c.l.b16 %v2410
    %v2610 = vunpack.c.h.b16 %v2410
    %v2611 = vunpack.c.l.b16 %v2411
    %v2612 = vunpack.c.h.b16 %v2411
    %v2613 = vunpack.c.l.b16 %v2412
    %v2614 = vunpack.c.h.b16 %v2412
    %v2615 = vunpack.c.l.b16 %v2413
    %v2616 = vunpack.c.h.b16 %v2413
    %v2617 = vunpack.c.l.b16 %v2414
    %v2618 = vunpack.c.h.b16 %v2414
    %v2619 = vunpack.c.l.b16 %v2415
    %v2620 = vunpack.c.h.b16 %v2415
    %v2621 = vunpack.c.l.b16 %v2416
    %v2622 = vunpack.c.h.b16 %v2416
    %v2623 = vunpack.c.l.b16 %v2417
    %v2624 = vunpack.c.h.b16 %v2417
    %v2625 = vunpack.c.l.b16 %v2418
    %v2626 = vunpack.c.h.b16 %v2418
    %v2627 = vunpack.c.l.b16 %v2419
    %v2628 = vunpack.c.h.b16 %v2419
    %v2629 = vunpack.c.l.b16 %v2420
    %v2630 = vunpack.c.h.b16 %v2420
    %v2631 = vunpack.c.l.b16 %v2421
    %v2632 = vunpack.c.h.b16 %v2421
    %v2633 = vunpack.c.l.b16 %v2422
    %v2634 = vunpack.c.h.b16 %v2422
    %v2635 = vunpack.c.l.b16 %v2423
    %v2636 = vunpack.c.h.b16 %v2423
    %v2637 = vunpack.c.l.b16 %v2424
    %v2638 = vunpack.c.h.b16 %v2424
    %v2639 = vunpack.c.l.b16 %v2425
    %v2640 = vunpack.c.h.b16 %v2425
    %v2641 = vunpack.c.l.b16 %v2426
    %v2642 = vunpack.c.h.b16 %v2426
    %v2643 = vunpack.c.l.b16 %v2427
    %v2644 = vunpack.c.h.b16 %v2427
    %v2645 = vunpack.c.l.b16 %v2428
    %v2646 = vunpack.c.h.b16 %v2428
    %v2647 = vunpack.c.l.b16 %v2429
    %v2648 = vunpack.c.h.b16 %v2429
    %v2649 = vunpack.c.l.b16 %v2430
    %v2650 = vunpack.c.h.b16 %v2430
    %v2651 = vunpack.c.l.b16 %v2431
    %v2652 = vunpack.c.h.b16 %v2431
    %v2653 = vunpack.c.l.b16 %v2432
    %v2654 = vunpack.c.h.b16 %v2432
    %v2655 = vunpack.c.l.b16 %v2433
    %v2656 = vunpack.c.h.b16 %v2433
    %v2657 = vunpack.c.l.b16 %v2434
    %v2658 = vunpack.c.h.b16 %v2434
    %v2659 = vunpack.c.l.b16 %v2435
    %v2660 = vunpack.c.h.b16 %v2435
    %v2661 = vunpack.c.l.b16 %v2436
    %v2662 = vunpack.c.h.b16 %v2436
    %v2663 = vunpack.c.l.b16 %v2437
    %v2664 = vunpack.c.h.b16 %v2437
    %v2665 = vunpack.c.l.b16 %v2438
    %v2666 = vunpack.c.h.b16 %v2438
    %v2667 = vunpack.c.l.b16 %v2439
    %v2668 = vunpack.c.h.b16 %v2439
    %v2669 = vunpack.c.l.b16 %v2440
    %v2670 = vunpack.c.h.b16 %v2440
    %v2671 = vunpack.c.l.b16 %v2441
    %v2672 = vunpack.c.h.b16 %v2441
    %v2673 = vunpack.c.l.b16 %v2442
    %v2674 = vunpack.c.h.b16 %v2442
    %v2675 = vunpack.c.l.b16 %v2443
    %v2676 = vunpack.c.h.b16 %v2443
    %v2677 = vunpack.c.l.b16 %v2444
    %v2678 = vunpack.c.h.b16 %v2444
    %v2679 = vunpack.c.l.b16 %v2445
    %v2680 = vunpack.c.h.b16 %v2445
    %v2681 = vunpack.c.l.b16 %v2446
    %v2682 = vunpack.c.h.b16 %v2446
    %v2683 = vunpack.c.l.b16 %v2447
    %v2684 = vunpack.c.h.b16 %v2447
    %v2685 = vunpack.c.l.b16 %v2448
    %v2686 = vunpack.c.h.b16 %v2448
    %v2687 = vunpack.c.l.b16 %v2449
    %v2688 = vunpack.c.h.b16 %v2449
    %v2689 = vunpack.c.l.b16 %v2450
    %v2690 = vunpack.c.h.b16 %v2450
    %v2691 = vunpack.c.l.b16 %v2451
    %v2692 = vunpack.c.h.b16 %v2451
    %v2693 = vunpack.c.l.b16 %v2452
    %v2694 = vunpack.c.h.b16 %v2452
    %v2695 = vunpack.c.l.b16 %v2453
    %v2696 = vunpack.c.h.b16 %v2453
    %v2697 = vunpack.c.l.b16 %v2454
    %v2698 = vunpack.c.h.b16 %v2454
    %v2699 = vunpack.c.l.b16 %v2455
    %v2700 = vunpack.c.h.b16 %v2455
    %v2701 = vunpack.c.l.b16 %v2456
    %v2702 = vunpack.c.h.b16 %v2456
    %v2703 = vunpack.c.l.b16 %v2457
    %v2704 = vunpack.c.h.b16 %v2457
    %v2705 = vunpack.c.l.b16 %v2458
    %v2706 = vunpack.c.h.b16 %v2458
    %v2707 = vunpack.c.l.b16 %v2459
    %v2708 = vunpack.c.h.b16 %v2459
    %v2709 = vunpack.c.l.b16 %v2460
    %v2710 = vunpack.c.h.b16 %v2460
    %v2711 = vunpack.c.l.b16 %v2461
    %v2712 = vunpack.c.h.b16 %v2461
    %v2713 = vunpack.c.l.b16 %v2462
    %v2714 = vunpack.c.h.b16 %v2462
    %v2715 = vpack.c.b16 %v2557, %v2555
    %v2716 = vpack.c.b16 %v2558, %v2556
    %v2717 = vpack.c.b16 %v2561, %v2559
    %v2718 = vpack.c.b16 %v2562, %v2560
    %v2719 = vpack.c.b16 %v2565, %v2563
    %v2720 = vpack.c.b16 %v2566, %v2564
    %v2721 = vpack.c.b16 %v2569, %v2567
    %v2722 = vpack.c.b16 %v2570, %v2568
    %v2723 = vpack.c.b16 %v2573, %v2571
    %v2724 = vpack.c.b16 %v2574, %v2572
    %v2725 = vpack.c.b16 %v2577, %v2575
    %v2726 = vpack.c.b16 %v2578, %v2576
    %v2727 = vpack.c.b16 %v2581, %v2579
    %v2728 = vpack.c.b16 %v2582, %v2580
    %v2729 = vpack.c.b16 %v2585, %v2583
    %v2730 = vpack.c.b16 %v2586, %v2584
    %v2731 = vpack.c.b16 %v2589, %v2587
    %v2732 = vpack.c.b16 %v2590, %v2588
    %v2733 = vpack.c.b16 %v2593, %v2591
    %v2734 = vpack.c.b16 %v2594, %v2592
    %v2735 = vpack.c.b16 %v2597, %v2595
    %v2736 = vpack.c.b16 %v2598, %v2596
    %v2737 = vpack.c.b16 %v2601, %v2599
    %v2738 = vpack.c.b16 %v2602, %v2600
    %v2739 = vpack.c.b16 %v2605, %v2603
    %v2740 = vpack.c.b16 %v2606, %v2604
    %v2741 = vpack.c.b16 %v2609, %v2607
    %v2742 = vpack.c.b16 %v2610, %v2608
    %v2743 = vpack.c.b16 %v2613, %v2611
    %v2744 = vpack.c.b16 %v2614, %v2612
    %v2745 = vpack.c.b16 %v2617, %v2615
    %v2746 = vpack.c.b16 %v2618, %v2616
    %v2747 = vpack.c.b16 %v2621, %v2619
    %v2748 = vpack.c.b16 %v2622, %v2620
    %v2749 = vpack.c.b16 %v2625, %v2623
    %v2750 = vpack.c.b16 %v2626, %v2624
    %v2751 = vpack.c.b16 %v2629, %v2627
    %v2752 = vpack.c.b16 %v2630, %v2628
    %v2753 = vpack.c.b16 %v2633, %v2631
    %v2754 = vpack.c.b16 %v2634, %v2632
    %v2755 = vpack.c.b16 %v2637, %v2635
    %v2756 = vpack.c.b16 %v2638, %v2636
    %v2757 = vpack.c.b16 %v2641, %v2639
    %v2758 = vpack.c.b16 %v2642, %v2640
    %v2759 = vpack.c.b16 %v2645, %v2643
    %v2760 = vpack.c.b16 %v2646, %v2644
    %v2761 = vpack.c.b16 %v2649, %v2647
    %v2762 = vpack.c.b16 %v2650, %v2648
    %v2763 = vpack.c.b16 %v2653, %v2651
    %v2764 = vpack.c.b16 %v2654, %v2652
    %v2765 = vpack.c.b16 %v2657, %v2655
    %v2766 = vpack.c.b16 %v2658, %v2656
    %v2767 = vpack.c.b16 %v2661, %v2659
    %v2768 = vpack.c.b16 %v2662, %v2660
    %v2769 = vpack.c.b16 %v2665, %v2663
    %v2770 = vpack.c.b16 %v2666, %v2664
    %v2771 = vpack.c.b16 %v2669, %v2667
    %v2772 = vpack.c.b16 %v2670, %v2668
    %v2773 = vpack.c.b16 %v2673, %v2671
    %v2774 = vpack.c.b16 %v2674, %v2672
    %v2775 = vpack.c.b16 %v2677, %v2675
    %v2776 = vpack.c.b16 %v2678, %v2676
    %v2777 = vpack.c.b16 %v2681, %v2679
    %v2778 = vpack.c.b16 %v2682, %v2680
    %v2779 = vpack.c.b16 %v2685, %v2683
    %v2780 = vpack.c.b16 %v2686, %v2684
    %v2781 = vpack.c.b16 %v2689, %v2687
    %v2782 = vpack.c.b16 %v2690, %v2688
    %v2783 = vpack.c.b16 %v2693, %v2691
    %v2784 = vpack.c.b16 %v2694, %v2692
    %v2785 = vpack.c.b16 %v2697, %v2695
    %v2786 = vpack.c.b16 %v2698, %v2696
    %v2787 = vpack.c.b16 %v2701, %v2699
    %v2788 = vpack.c.b16 %v2702, %v2700
    %v2789 = vpack.c.b16 %v2705, %v2703
    %v2790 = vpack.c.b16 %v2706, %v2704
    %v2791 = vpack.c.b16 %v2709, %v2707
    %v2792 = vpack.c.b16 %v2710, %v2708
    %v2793 = vpack.c.b16 %v2713, %v2711
    %v2794 = vpack.c.b16 %v2714, %v2712
    %2875 = vmatprep.subr.bf16.mxu0 %v2716
    %2876 = vmatpush1.bf16.msra.mxu0 %v2715
    %2877 = vmatprep.subr.bf16.mxu0 %v2718
    %2878 = vmatpush1.bf16.msra.mxu0 %v2717
    %2879 = vmatprep.subr.bf16.mxu0 %v2720
    %2880 = vmatpush1.bf16.msra.mxu0 %v2719
    %2881 = vmatprep.subr.bf16.mxu0 %v2722
    %2882 = vmatpush1.bf16.msra.mxu0 %v2721
    %2883 = vmatprep.subr.bf16.mxu0 %v2724
    %2884 = vmatpush1.bf16.msra.mxu0 %v2723
    %2885 = vmatprep.subr.bf16.mxu0 %v2726
    %2886 = vmatpush1.bf16.msra.mxu0 %v2725
    %2887 = vmatprep.subr.bf16.mxu0 %v2728
    %2888 = vmatpush1.bf16.msra.mxu0 %v2727
    %2889 = vmatprep.subr.bf16.mxu0 %v2730
    %2890 = vmatpush1.bf16.msra.mxu0 %v2729
    %2891 = vmatprep.subr.bf16.mxu0 %v2732
    %2892 = vmatpush1.bf16.msra.mxu0 %v2731
    %2893 = vmatprep.subr.bf16.mxu0 %v2734
    %2894 = vmatpush1.bf16.msra.mxu0 %v2733
    %2895 = vmatprep.subr.bf16.mxu0 %v2736
    %2896 = vmatpush1.bf16.msra.mxu0 %v2735
    %2897 = vmatprep.subr.bf16.mxu0 %v2738
    %2898 = vmatpush1.bf16.msra.mxu0 %v2737
    %2899 = vmatprep.subr.bf16.mxu0 %v2740
    %2900 = vmatpush1.bf16.msra.mxu0 %v2739
    %2901 = vmatprep.subr.bf16.mxu0 %v2742
    %2902 = vmatpush1.bf16.msra.mxu0 %v2741
    %2903 = vmatprep.subr.bf16.mxu0 %v2744
    %2904 = vmatpush1.bf16.msra.mxu0 %v2743
    %2905 = vmatprep.subr.bf16.mxu0 %v2746
    %2906 = vmatpush1.bf16.msra.mxu0 %v2745
    %2907 = vmatprep.mubr.bf16.mxu0 %v2379
    %2908 = vmatmul.mubr.bf16.gmra.mrb[0].mxu0 %v2378
    %v2909 = vpop.f32.mrb[0].mxu0
    %v2910 = vadd.f32 %v2468, %v2909
    %v2911 = vpop.f32.mrb[0].mxu0
    %v2912 = vadd.f32 %v2472, %v2911
    %v2913 = vpop.f32.mrb[0].mxu0
    %v2914 = vadd.f32 %v2468, %v2913
    %v2915 = vpop.f32.mrb[0].mxu0
    %v2916 = vadd.f32 %v2472, %v2915
    %2917 = vdwg.mxu0
    %2918 = vmatprep.subr.bf16.mxu0 %v2748
    %2919 = vmatpush1.bf16.msra.mxu0 %v2747
    %2920 = vmatprep.subr.bf16.mxu0 %v2750
    %2921 = vmatpush1.bf16.msra.mxu0 %v2749
    %2922 = vmatprep.subr.bf16.mxu0 %v2752
    %2923 = vmatpush1.bf16.msra.mxu0 %v2751
    %2924 = vmatprep.subr.bf16.mxu0 %v2754
    %2925 = vmatpush1.bf16.msra.mxu0 %v2753
    %2926 = vmatprep.subr.bf16.mxu0 %v2756
    %2927 = vmatpush1.bf16.msra.mxu0 %v2755
    %2928 = vmatprep.subr.bf16.mxu0 %v2758
    %2929 = vmatpush1.bf16.msra.mxu0 %v2757
    %2930 = vmatprep.subr.bf16.mxu0 %v2760
    %2931 = vmatpush1.bf16.msra.mxu0 %v2759
    %2932 = vmatprep.subr.bf16.mxu0 %v2762
    %2933 = vmatpush1.bf16.msra.mxu0 %v2761
    %2934 = vmatprep.subr.bf16.mxu0 %v2764
    %2935 = vmatpush1.bf16.msra.mxu0 %v2763
    %2936 = vmatprep.subr.bf16.mxu0 %v2766
    %2937 = vmatpush1.bf16.msra.mxu0 %v2765
    %2938 = vmatprep.subr.bf16.mxu0 %v2768
    %2939 = vmatpush1.bf16.msra.mxu0 %v2767
    %2940 = vmatprep.subr.bf16.mxu0 %v2770
    %2941 = vmatpush1.bf16.msra.mxu0 %v2769
    %2942 = vmatprep.subr.bf16.mxu0 %v2772
    %2943 = vmatpush1.bf16.msra.mxu0 %v2771
    %2944 = vmatprep.subr.bf16.mxu0 %v2774
    %2945 = vmatpush1.bf16.msra.mxu0 %v2773
    %2946 = vmatprep.subr.bf16.mxu0 %v2776
    %2947 = vmatpush1.bf16.msra.mxu0 %v2775
    %2948 = vmatprep.subr.bf16.mxu0 %v2778
    %2949 = vmatpush1.bf16.msra.mxu0 %v2777
    %2950 = vmatprep.mubr.bf16.mxu0 %v2381
    %2951 = vmatmul.mubr.bf16.gmra.mrb[0].mxu0 %v2380
    %v2952 = vpop.f32.mrb[0].mxu0
    %v2953 = vadd.f32 %v2910, %v2952
    %v2954 = vpop.f32.mrb[0].mxu0
    %v2955 = vadd.f32 %v2912, %v2954
    %v2956 = vpop.f32.mrb[0].mxu0
    %v2957 = vadd.f32 %v2914, %v2956
    %v2958 = vpop.f32.mrb[0].mxu0
    %v2959 = vadd.f32 %v2916, %v2958
    %2960 = vdwg.mxu0
    %2961 = vmatprep.subr.bf16.mxu0 %v2780
    %2962 = vmatpush1.bf16.msra.mxu0 %v2779
    %2963 = vmatprep.subr.bf16.mxu0 %v2782
    %2964 = vmatpush1.bf16.msra.mxu0 %v2781
    %2965 = vmatprep.subr.bf16.mxu0 %v2784
    %2966 = vmatpush1.bf16.msra.mxu0 %v2783
    %2967 = vmatprep.subr.bf16.mxu0 %v2786
    %2968 = vmatpush1.bf16.msra.mxu0 %v2785
    %2969 = vmatprep.subr.bf16.mxu0 %v2788
    %2970 = vmatpush1.bf16.msra.mxu0 %v2787
    %2971 = vmatprep.subr.bf16.mxu0 %v2790
    %2972 = vmatpush1.bf16.msra.mxu0 %v2789
    %2973 = vmatprep.subr.bf16.mxu0 %v2792
    %2974 = vmatpush1.bf16.msra.mxu0 %v2791
    %2975 = vmatprep.subr.bf16.mxu0 %v2794
    %2976 = vmatpush1.bf16.msra.mxu0 %v2793
    %2977 = vmatprep.subr.bf16.mxu0 0
    %2978 = vmatpush1.bf16.msra.mxu0 0
    %2979 = vmatprep.subr.bf16.mxu0 0
    %2980 = vmatpush1.bf16.msra.mxu0 0
    %2981 = vmatprep.subr.bf16.mxu0 0
    %2982 = vmatpush1.bf16.msra.mxu0 0
    %2983 = vmatprep.subr.bf16.mxu0 0
    %2984 = vmatpush1.bf16.msra.mxu0 0
    %2985 = vmatprep.subr.bf16.mxu0 0
    %2986 = vmatpush1.bf16.msra.mxu0 0
    %2987 = vmatprep.subr.bf16.mxu0 0
    %2988 = vmatpush1.bf16.msra.mxu0 0
    %2989 = vmatprep.subr.bf16.mxu0 0
    %2990 = vmatpush1.bf16.msra.mxu0 0
    %2991 = vmatprep.subr.bf16.mxu0 0
    %2992 = vmatpush1.bf16.msra.mxu0 0
    %2993 = vmatprep.mubr.bf16.mxu0 0
    %2994 = vmatmul.mubr.bf16.gmra.mrb[0].mxu0 %v2382
    %v2995 = vpop.f32.mrb[0].mxu0
    %v2996 = vadd.f32 %v2953, %v2995
    %v2997 = vpop.f32.mrb[0].mxu0
    %v2998 = vadd.f32 %v2955, %v2997
    %v2999 = vpop.f32.mrb[0].mxu0
    %v3000 = vadd.f32 %v2957, %v2999
    %v3001 = vpop.f32.mrb[0].mxu0
    %v3002 = vadd.f32 %v2959, %v3001
    %3003 = vdwg.mxu0
    %v3004 = vadd.f32 %v1696, %v2996
    %v3005 = vadd.f32 %v1697, %v2998
    %v3006 = vadd.f32 %v1698, %v3000
    %v3007 = vadd.f32 %v1699, %v3002
    %v3008 = vld [vmem:[#allocation20] sm:$0x3]
    %v3009 = vld [vmem:[#allocation22] sm:$0x3]
    %v3010 = vadd.f32 %v3004, %v3005
    %3011 = vadd.xlane.f32.xlu0 %v3010
    %v3012 = vpop.xlane.xlu0 %3011
    %v3013 = vadd.f32 %v3006, %v3007
    %3014 = vadd.xlane.f32.xlu0 %v3013
    %v3015 = vpop.xlane.xlu0 %3014
    %v3016 = vmul.f32 %v3012, %v1643
    %v3017 = vmul.f32 %v3015, %v1643
    %v3018 = vsub.f32 %v3004, %v3016
    %v3019 = vsub.f32 %v3005, %v3016
    %v3020 = vsub.f32 %v3006, %v3017
    %v3021 = vsub.f32 %v3007, %v3017
    %v3022 = vmul.f32 %v3018, %v3018
    %v3023 = vmul.f32 %v3019, %v3019
    %v3024 = vmul.f32 %v3020, %v3020
    %v3025 = vmul.f32 %v3021, %v3021
    %v3026 = vadd.f32 %v3022, %v3023
    %3027 = vadd.xlane.f32.xlu0 %v3026
    %v3028 = vpop.xlane.xlu0 %3027
    %v3029 = vadd.f32 %v3024, %v3025
    %3030 = vadd.xlane.f32.xlu0 %v3029
    %v3031 = vpop.xlane.xlu0 %3030
    %v3032 = vmul.f32 %v3028, %v1643
    %v3033 = vmul.f32 %v3031, %v1643
    %v3034 = vadd.f32 %v3032, 1e-05
    %v3035 = vadd.f32 %v3033, 1e-05
    %v3036 = vrsqrt.pop %v3034
    %v3037 = vrsqrt.pop %v3035
    %v3038 = vmul.f32 %v3018, %v3036
    %v3039 = vmul.f32 %v3019, %v3036
    %v3040 = vmul.f32 %v3020, %v3037
    %v3041 = vmul.f32 %v3021, %v3037
    %v3043 = vlaneseq
    %v3044 = vshrl.u32 %v3043, 7
    %v3045 = vsub.s32 0, %v3044
    %v3046 = vrot.slane %v3008, %v3045
    %v3047 = vlaneseq
    %v3048 = vshrl.u32 %v3047, 7
    %v3049 = vsub.s32 1, %v3048
    %v3050 = vrot.slane %v3008, %v3049
    %v3053 = vmul.f32 %v3038, %v3046
    %v3054 = vmul.f32 %v3039, %v3050
    %v3055 = vmul.f32 %v3040, %v3046
    %v3056 = vmul.f32 %v3041, %v3050
    %v3058 = vlaneseq
    %v3059 = vshrl.u32 %v3058, 7
    %v3060 = vsub.s32 0, %v3059
    %v3061 = vrot.slane %v3009, %v3060
    %v3062 = vlaneseq
    %v3063 = vshrl.u32 %v3062, 7
    %v3064 = vsub.s32 1, %v3063
    %v3065 = vrot.slane %v3009, %v3064
    %v3068 = vadd.f32 %v3053, %v3061
    %v3069 = vadd.f32 %v3054, %v3065
    %v3070 = vadd.f32 %v3055, %v3061
    %v3071 = vadd.f32 %v3056, %v3065
    %v3072 = vpack.c.bf16 %v3070, %v3068
    %v3073 = vpack.c.bf16 %v3071, %v3069
    %s3074 = scalar_lea.vmem [#allocation5], 768
    %v3075 = vld [vmem:[%s3074] sm:$0xff]
    %v3076 = vld [vmem:[%s3074 + $0x8] sm:$0xff]
    %v3077 = vld [vmem:[%s3074 + $0x10] sm:$0xff]
    %v3078 = vld [vmem:[%s3074 + $0x18] sm:$0xff]
    %v3079 = vld [vmem:[%s3074 + $0x20] sm:$0xff]
    %v3080 = vld [vmem:[%s3074 + $0x28] sm:$0xff]
    %v3081 = vld [vmem:[%s3074 + $0x30] sm:$0xff]
    %v3082 = vld [vmem:[%s3074 + $0x38] sm:$0xff]
    %v3083 = vld [vmem:[%s3074 + $0x40] sm:$0xff]
    %v3084 = vld [vmem:[%s3074 + $0x48] sm:$0xff]
    %v3085 = vld [vmem:[%s3074 + $0x50] sm:$0xff]
    %v3086 = vld [vmem:[%s3074 + $0x58] sm:$0xff]
    %v3087 = vld [vmem:[%s3074 + $0x60] sm:$0xff]
    %v3088 = vld [vmem:[%s3074 + $0x68] sm:$0xff]
    %v3089 = vld [vmem:[%s3074 + $0x70] sm:$0xff]
    %v3090 = vld [vmem:[%s3074 + $0x78] sm:$0xff]
    %v3091 = vld [vmem:[%s3074 + $0x80] sm:$0xff]
    %v3092 = vld [vmem:[%s3074 + $0x88] sm:$0xff]
    %v3093 = vld [vmem:[%s3074 + $0x90] sm:$0xff]
    %v3094 = vld [vmem:[%s3074 + $0x98] sm:$0xff]
    %v3095 = vld [vmem:[%s3074 + $0xa0] sm:$0xff]
    %v3096 = vld [vmem:[%s3074 + $0xa8] sm:$0xff]
    %v3097 = vld [vmem:[%s3074 + $0xb0] sm:$0xff]
    %v3098 = vld [vmem:[%s3074 + $0xb8] sm:$0xff]
    %v3099 = vld [vmem:[%s3074 + $0xc0] sm:$0xff]
    %v3100 = vld [vmem:[%s3074 + $0xc8] sm:$0xff]
    %v3101 = vld [vmem:[%s3074 + $0xd0] sm:$0xff]
    %v3102 = vld [vmem:[%s3074 + $0xd8] sm:$0xff]
    %v3103 = vld [vmem:[%s3074 + $0xe0] sm:$0xff]
    %v3104 = vld [vmem:[%s3074 + $0xe8] sm:$0xff]
    %v3105 = vld [vmem:[%s3074 + $0xf0] sm:$0xff]
    %v3106 = vld [vmem:[%s3074 + $0xf8] sm:$0xff]
    %v3107 = vld [vmem:[%s3074 + $0x100] sm:$0xff]
    %v3108 = vld [vmem:[%s3074 + $0x108] sm:$0xff]
    %v3109 = vld [vmem:[%s3074 + $0x110] sm:$0xff]
    %v3110 = vld [vmem:[%s3074 + $0x118] sm:$0xff]
    %v3111 = vld [vmem:[%s3074 + $0x120] sm:$0xff]
    %v3112 = vld [vmem:[%s3074 + $0x128] sm:$0xff]
    %v3113 = vld [vmem:[%s3074 + $0x130] sm:$0xff]
    %v3114 = vld [vmem:[%s3074 + $0x138] sm:$0xff]
    %v3115 = vld [vmem:[%s3074 + $0x140] sm:$0xff]
    %v3116 = vld [vmem:[%s3074 + $0x148] sm:$0xff]
    %v3117 = vld [vmem:[%s3074 + $0x150] sm:$0xff]
    %v3118 = vld [vmem:[%s3074 + $0x158] sm:$0xff]
    %v3119 = vld [vmem:[%s3074 + $0x160] sm:$0xff]
    %v3120 = vld [vmem:[%s3074 + $0x168] sm:$0xff]
    %v3121 = vld [vmem:[%s3074 + $0x170] sm:$0xff]
    %v3122 = vld [vmem:[%s3074 + $0x178] sm:$0xff]
    %v3123 = vld [vmem:[%s3074 + $0x180] sm:$0xff]
    %v3124 = vld [vmem:[%s3074 + $0x188] sm:$0xff]
    %v3125 = vld [vmem:[%s3074 + $0x190] sm:$0xff]
    %v3126 = vld [vmem:[%s3074 + $0x198] sm:$0xff]
    %v3127 = vld [vmem:[%s3074 + $0x1a0] sm:$0xff]
    %v3128 = vld [vmem:[%s3074 + $0x1a8] sm:$0xff]
    %v3129 = vld [vmem:[%s3074 + $0x1b0] sm:$0xff]
    %v3130 = vld [vmem:[%s3074 + $0x1b8] sm:$0xff]
    %v3131 = vld [vmem:[%s3074 + $0x1c0] sm:$0xff]
    %v3132 = vld [vmem:[%s3074 + $0x1c8] sm:$0xff]
    %v3133 = vld [vmem:[%s3074 + $0x1d0] sm:$0xff]
    %v3134 = vld [vmem:[%s3074 + $0x1d8] sm:$0xff]
    %v3135 = vld [vmem:[%s3074 + $0x1e0] sm:$0xff]
    %v3136 = vld [vmem:[%s3074 + $0x1e8] sm:$0xff]
    %v3137 = vld [vmem:[%s3074 + $0x1f0] sm:$0xff]
    %v3138 = vld [vmem:[%s3074 + $0x1f8] sm:$0xff]
    %v3139 = vld [vmem:[%s3074 + $0x200] sm:$0xff]
    %v3140 = vld [vmem:[%s3074 + $0x208] sm:$0xff]
    %v3141 = vld [vmem:[%s3074 + $0x210] sm:$0xff]
    %v3142 = vld [vmem:[%s3074 + $0x218] sm:$0xff]
    %v3143 = vld [vmem:[%s3074 + $0x220] sm:$0xff]
    %v3144 = vld [vmem:[%s3074 + $0x228] sm:$0xff]
    %v3145 = vld [vmem:[%s3074 + $0x230] sm:$0xff]
    %v3146 = vld [vmem:[%s3074 + $0x238] sm:$0xff]
    %v3147 = vld [vmem:[%s3074 + $0x240] sm:$0xff]
    %v3148 = vld [vmem:[%s3074 + $0x248] sm:$0xff]
    %v3149 = vld [vmem:[%s3074 + $0x250] sm:$0xff]
    %v3150 = vld [vmem:[%s3074 + $0x258] sm:$0xff]
    %v3151 = vld [vmem:[%s3074 + $0x260] sm:$0xff]
    %v3152 = vld [vmem:[%s3074 + $0x268] sm:$0xff]
    %v3153 = vld [vmem:[%s3074 + $0x270] sm:$0xff]
    %v3154 = vld [vmem:[%s3074 + $0x278] sm:$0xff]
    %v3155 = vld [vmem:[%s3074 + $0x280] sm:$0xff]
    %v3156 = vld [vmem:[%s3074 + $0x288] sm:$0xff]
    %v3157 = vld [vmem:[%s3074 + $0x290] sm:$0xff]
    %v3158 = vld [vmem:[%s3074 + $0x298] sm:$0xff]
    %v3159 = vld [vmem:[%s3074 + $0x2a0] sm:$0xff]
    %v3160 = vld [vmem:[%s3074 + $0x2a8] sm:$0xff]
    %v3161 = vld [vmem:[%s3074 + $0x2b0] sm:$0xff]
    %v3162 = vld [vmem:[%s3074 + $0x2b8] sm:$0xff]
    %v3163 = vld [vmem:[%s3074 + $0x2c0] sm:$0xff]
    %v3164 = vld [vmem:[%s3074 + $0x2c8] sm:$0xff]
    %v3165 = vld [vmem:[%s3074 + $0x2d0] sm:$0xff]
    %v3166 = vld [vmem:[%s3074 + $0x2d8] sm:$0xff]
    %v3167 = vld [vmem:[%s3074 + $0x2e0] sm:$0xff]
    %v3168 = vld [vmem:[%s3074 + $0x2e8] sm:$0xff]
    %v3169 = vld [vmem:[%s3074 + $0x2f0] sm:$0xff]
    %v3170 = vld [vmem:[%s3074 + $0x2f8] sm:$0xff]
    %s3171 = scalar_lea.vmem [#allocation7], 6
    %v3172 = vld [vmem:[%s3171] sm:$0x3f]
    %v3174 = vlaneseq
    %v3175 = vshrl.u32 %v3174, 7
    %v3176 = vsub.s32 0, %v3175
    %v3177 = vrot.slane %v3172, %v3176
    %v3178 = vlaneseq
    %v3179 = vshrl.u32 %v3178, 7
    %v3180 = vsub.s32 1, %v3179
    %v3181 = vrot.slane %v3172, %v3180
    %v3182 = vlaneseq
    %v3183 = vshrl.u32 %v3182, 7
    %v3184 = vsub.s32 2, %v3183
    %v3185 = vrot.slane %v3172, %v3184
    %v3186 = vlaneseq
    %v3187 = vshrl.u32 %v3186, 7
    %v3188 = vsub.s32 3, %v3187
    %v3189 = vrot.slane %v3172, %v3188
    %v3190 = vlaneseq
    %v3191 = vshrl.u32 %v3190, 7
    %v3192 = vsub.s32 4, %v3191
    %v3193 = vrot.slane %v3172, %v3192
    %v3194 = vlaneseq
    %v3195 = vshrl.u32 %v3194, 7
    %v3196 = vsub.s32 5, %v3195
    %v3197 = vrot.slane %v3172, %v3196
    %v3300 = vunpack.c.l.b16 %v3075
    %v3301 = vunpack.c.h.b16 %v3075
    %v3302 = vunpack.c.l.b16 %v3076
    %v3303 = vunpack.c.h.b16 %v3076
    %v3304 = vunpack.c.l.b16 %v3077
    %v3305 = vunpack.c.h.b16 %v3077
    %v3306 = vunpack.c.l.b16 %v3078
    %v3307 = vunpack.c.h.b16 %v3078
    %v3308 = vunpack.c.l.b16 %v3079
    %v3309 = vunpack.c.h.b16 %v3079
    %v3310 = vunpack.c.l.b16 %v3080
    %v3311 = vunpack.c.h.b16 %v3080
    %v3312 = vunpack.c.l.b16 %v3081
    %v3313 = vunpack.c.h.b16 %v3081
    %v3314 = vunpack.c.l.b16 %v3082
    %v3315 = vunpack.c.h.b16 %v3082
    %v3316 = vunpack.c.l.b16 %v3083
    %v3317 = vunpack.c.h.b16 %v3083
    %v3318 = vunpack.c.l.b16 %v3084
    %v3319 = vunpack.c.h.b16 %v3084
    %v3320 = vunpack.c.l.b16 %v3085
    %v3321 = vunpack.c.h.b16 %v3085
    %v3322 = vunpack.c.l.b16 %v3086
    %v3323 = vunpack.c.h.b16 %v3086
    %v3324 = vunpack.c.l.b16 %v3087
    %v3325 = vunpack.c.h.b16 %v3087
    %v3326 = vunpack.c.l.b16 %v3088
    %v3327 = vunpack.c.h.b16 %v3088
    %v3328 = vunpack.c.l.b16 %v3089
    %v3329 = vunpack.c.h.b16 %v3089
    %v3330 = vunpack.c.l.b16 %v3090
    %v3331 = vunpack.c.h.b16 %v3090
    %v3332 = vunpack.c.l.b16 %v3091
    %v3333 = vunpack.c.h.b16 %v3091
    %v3334 = vunpack.c.l.b16 %v3092
    %v3335 = vunpack.c.h.b16 %v3092
    %v3336 = vunpack.c.l.b16 %v3093
    %v3337 = vunpack.c.h.b16 %v3093
    %v3338 = vunpack.c.l.b16 %v3094
    %v3339 = vunpack.c.h.b16 %v3094
    %v3340 = vunpack.c.l.b16 %v3095
    %v3341 = vunpack.c.h.b16 %v3095
    %v3342 = vunpack.c.l.b16 %v3096
    %v3343 = vunpack.c.h.b16 %v3096
    %v3344 = vunpack.c.l.b16 %v3097
    %v3345 = vunpack.c.h.b16 %v3097
    %v3346 = vunpack.c.l.b16 %v3098
    %v3347 = vunpack.c.h.b16 %v3098
    %v3348 = vunpack.c.l.b16 %v3099
    %v3349 = vunpack.c.h.b16 %v3099
    %v3350 = vunpack.c.l.b16 %v3100
    %v3351 = vunpack.c.h.b16 %v3100
    %v3352 = vunpack.c.l.b16 %v3101
    %v3353 = vunpack.c.h.b16 %v3101
    %v3354 = vunpack.c.l.b16 %v3102
    %v3355 = vunpack.c.h.b16 %v3102
    %v3356 = vunpack.c.l.b16 %v3103
    %v3357 = vunpack.c.h.b16 %v3103
    %v3358 = vunpack.c.l.b16 %v3104
    %v3359 = vunpack.c.h.b16 %v3104
    %v3360 = vunpack.c.l.b16 %v3105
    %v3361 = vunpack.c.h.b16 %v3105
    %v3362 = vunpack.c.l.b16 %v3106
    %v3363 = vunpack.c.h.b16 %v3106
    %v3364 = vunpack.c.l.b16 %v3107
    %v3365 = vunpack.c.h.b16 %v3107
    %v3366 = vunpack.c.l.b16 %v3108
    %v3367 = vunpack.c.h.b16 %v3108
    %v3368 = vunpack.c.l.b16 %v3109
    %v3369 = vunpack.c.h.b16 %v3109
    %v3370 = vunpack.c.l.b16 %v3110
    %v3371 = vunpack.c.h.b16 %v3110
    %v3372 = vunpack.c.l.b16 %v3111
    %v3373 = vunpack.c.h.b16 %v3111
    %v3374 = vunpack.c.l.b16 %v3112
    %v3375 = vunpack.c.h.b16 %v3112
    %v3376 = vunpack.c.l.b16 %v3113
    %v3377 = vunpack.c.h.b16 %v3113
    %v3378 = vunpack.c.l.b16 %v3114
    %v3379 = vunpack.c.h.b16 %v3114
    %v3380 = vunpack.c.l.b16 %v3115
    %v3381 = vunpack.c.h.b16 %v3115
    %v3382 = vunpack.c.l.b16 %v3116
    %v3383 = vunpack.c.h.b16 %v3116
    %v3384 = vunpack.c.l.b16 %v3117
    %v3385 = vunpack.c.h.b16 %v3117
    %v3386 = vunpack.c.l.b16 %v3118
    %v3387 = vunpack.c.h.b16 %v3118
    %v3388 = vunpack.c.l.b16 %v3119
    %v3389 = vunpack.c.h.b16 %v3119
    %v3390 = vunpack.c.l.b16 %v3120
    %v3391 = vunpack.c.h.b16 %v3120
    %v3392 = vunpack.c.l.b16 %v3121
    %v3393 = vunpack.c.h.b16 %v3121
    %v3394 = vunpack.c.l.b16 %v3122
    %v3395 = vunpack.c.h.b16 %v3122
    %v3396 = vunpack.c.l.b16 %v3123
    %v3397 = vunpack.c.h.b16 %v3123
    %v3398 = vunpack.c.l.b16 %v3124
    %v3399 = vunpack.c.h.b16 %v3124
    %v3400 = vunpack.c.l.b16 %v3125
    %v3401 = vunpack.c.h.b16 %v3125
    %v3402 = vunpack.c.l.b16 %v3126
    %v3403 = vunpack.c.h.b16 %v3126
    %v3404 = vunpack.c.l.b16 %v3127
    %v3405 = vunpack.c.h.b16 %v3127
    %v3406 = vunpack.c.l.b16 %v3128
    %v3407 = vunpack.c.h.b16 %v3128
    %v3408 = vunpack.c.l.b16 %v3129
    %v3409 = vunpack.c.h.b16 %v3129
    %v3410 = vunpack.c.l.b16 %v3130
    %v3411 = vunpack.c.h.b16 %v3130
    %v3412 = vunpack.c.l.b16 %v3131
    %v3413 = vunpack.c.h.b16 %v3131
    %v3414 = vunpack.c.l.b16 %v3132
    %v3415 = vunpack.c.h.b16 %v3132
    %v3416 = vunpack.c.l.b16 %v3133
    %v3417 = vunpack.c.h.b16 %v3133
    %v3418 = vunpack.c.l.b16 %v3134
    %v3419 = vunpack.c.h.b16 %v3134
    %v3420 = vunpack.c.l.b16 %v3135
    %v3421 = vunpack.c.h.b16 %v3135
    %v3422 = vunpack.c.l.b16 %v3136
    %v3423 = vunpack.c.h.b16 %v3136
    %v3424 = vunpack.c.l.b16 %v3137
    %v3425 = vunpack.c.h.b16 %v3137
    %v3426 = vunpack.c.l.b16 %v3138
    %v3427 = vunpack.c.h.b16 %v3138
    %v3428 = vunpack.c.l.b16 %v3139
    %v3429 = vunpack.c.h.b16 %v3139
    %v3430 = vunpack.c.l.b16 %v3140
    %v3431 = vunpack.c.h.b16 %v3140
    %v3432 = vunpack.c.l.b16 %v3141
    %v3433 = vunpack.c.h.b16 %v3141
    %v3434 = vunpack.c.l.b16 %v3142
    %v3435 = vunpack.c.h.b16 %v3142
    %v3436 = vunpack.c.l.b16 %v3143
    %v3437 = vunpack.c.h.b16 %v3143
    %v3438 = vunpack.c.l.b16 %v3144
    %v3439 = vunpack.c.h.b16 %v3144
    %v3440 = vunpack.c.l.b16 %v3145
    %v3441 = vunpack.c.h.b16 %v3145
    %v3442 = vunpack.c.l.b16 %v3146
    %v3443 = vunpack.c.h.b16 %v3146
    %v3444 = vunpack.c.l.b16 %v3147
    %v3445 = vunpack.c.h.b16 %v3147
    %v3446 = vunpack.c.l.b16 %v3148
    %v3447 = vunpack.c.h.b16 %v3148
    %v3448 = vunpack.c.l.b16 %v3149
    %v3449 = vunpack.c.h.b16 %v3149
    %v3450 = vunpack.c.l.b16 %v3150
    %v3451 = vunpack.c.h.b16 %v3150
    %v3452 = vunpack.c.l.b16 %v3151
    %v3453 = vunpack.c.h.b16 %v3151
    %v3454 = vunpack.c.l.b16 %v3152
    %v3455 = vunpack.c.h.b16 %v3152
    %v3456 = vunpack.c.l.b16 %v3153
    %v3457 = vunpack.c.h.b16 %v3153
    %v3458 = vunpack.c.l.b16 %v3154
    %v3459 = vunpack.c.h.b16 %v3154
    %v3460 = vunpack.c.l.b16 %v3155
    %v3461 = vunpack.c.h.b16 %v3155
    %v3462 = vunpack.c.l.b16 %v3156
    %v3463 = vunpack.c.h.b16 %v3156
    %v3464 = vunpack.c.l.b16 %v3157
    %v3465 = vunpack.c.h.b16 %v3157
    %v3466 = vunpack.c.l.b16 %v3158
    %v3467 = vunpack.c.h.b16 %v3158
    %v3468 = vunpack.c.l.b16 %v3159
    %v3469 = vunpack.c.h.b16 %v3159
    %v3470 = vunpack.c.l.b16 %v3160
    %v3471 = vunpack.c.h.b16 %v3160
    %v3472 = vunpack.c.l.b16 %v3161
    %v3473 = vunpack.c.h.b16 %v3161
    %v3474 = vunpack.c.l.b16 %v3162
    %v3475 = vunpack.c.h.b16 %v3162
    %v3476 = vunpack.c.l.b16 %v3163
    %v3477 = vunpack.c.h.b16 %v3163
    %v3478 = vunpack.c.l.b16 %v3164
    %v3479 = vunpack.c.h.b16 %v3164
    %v3480 = vunpack.c.l.b16 %v3165
    %v3481 = vunpack.c.h.b16 %v3165
    %v3482 = vunpack.c.l.b16 %v3166
    %v3483 = vunpack.c.h.b16 %v3166
    %v3484 = vunpack.c.l.b16 %v3167
    %v3485 = vunpack.c.h.b16 %v3167
    %v3486 = vunpack.c.l.b16 %v3168
    %v3487 = vunpack.c.h.b16 %v3168
    %v3488 = vunpack.c.l.b16 %v3169
    %v3489 = vunpack.c.h.b16 %v3169
    %v3490 = vunpack.c.l.b16 %v3170
    %v3491 = vunpack.c.h.b16 %v3170
    %v3492 = vpack.c.b16 %v3306, %v3300
    %v3493 = vpack.c.b16 %v3307, %v3301
    %v3494 = vpack.c.b16 %v3308, %v3302
    %v3495 = vpack.c.b16 %v3309, %v3303
    %v3496 = vpack.c.b16 %v3310, %v3304
    %v3497 = vpack.c.b16 %v3311, %v3305
    %v3498 = vpack.c.b16 %v3318, %v3312
    %v3499 = vpack.c.b16 %v3319, %v3313
    %v3500 = vpack.c.b16 %v3320, %v3314
    %v3501 = vpack.c.b16 %v3321, %v3315
    %v3502 = vpack.c.b16 %v3322, %v3316
    %v3503 = vpack.c.b16 %v3323, %v3317
    %v3504 = vpack.c.b16 %v3330, %v3324
    %v3505 = vpack.c.b16 %v3331, %v3325
    %v3506 = vpack.c.b16 %v3332, %v3326
    %v3507 = vpack.c.b16 %v3333, %v3327
    %v3508 = vpack.c.b16 %v3334, %v3328
    %v3509 = vpack.c.b16 %v3335, %v3329
    %v3510 = vpack.c.b16 %v3342, %v3336
    %v3511 = vpack.c.b16 %v3343, %v3337
    %v3512 = vpack.c.b16 %v3344, %v3338
    %v3513 = vpack.c.b16 %v3345, %v3339
    %v3514 = vpack.c.b16 %v3346, %v3340
    %v3515 = vpack.c.b16 %v3347, %v3341
    %v3516 = vpack.c.b16 %v3354, %v3348
    %v3517 = vpack.c.b16 %v3355, %v3349
    %v3518 = vpack.c.b16 %v3356, %v3350
    %v3519 = vpack.c.b16 %v3357, %v3351
    %v3520 = vpack.c.b16 %v3358, %v3352
    %v3521 = vpack.c.b16 %v3359, %v3353
    %v3522 = vpack.c.b16 %v3366, %v3360
    %v3523 = vpack.c.b16 %v3367, %v3361
    %v3524 = vpack.c.b16 %v3368, %v3362
    %v3525 = vpack.c.b16 %v3369, %v3363
    %v3526 = vpack.c.b16 %v3370, %v3364
    %v3527 = vpack.c.b16 %v3371, %v3365
    %v3528 = vpack.c.b16 %v3378, %v3372
    %v3529 = vpack.c.b16 %v3379, %v3373
    %v3530 = vpack.c.b16 %v3380, %v3374
    %v3531 = vpack.c.b16 %v3381, %v3375
    %v3532 = vpack.c.b16 %v3382, %v3376
    %v3533 = vpack.c.b16 %v3383, %v3377
    %v3534 = vpack.c.b16 %v3390, %v3384
    %v3535 = vpack.c.b16 %v3391, %v3385
    %v3536 = vpack.c.b16 %v3392, %v3386
    %v3537 = vpack.c.b16 %v3393, %v3387
    %v3538 = vpack.c.b16 %v3394, %v3388
    %v3539 = vpack.c.b16 %v3395, %v3389
    %v3540 = vpack.c.b16 %v3402, %v3396
    %v3541 = vpack.c.b16 %v3403, %v3397
    %v3542 = vpack.c.b16 %v3404, %v3398
    %v3543 = vpack.c.b16 %v3405, %v3399
    %v3544 = vpack.c.b16 %v3406, %v3400
    %v3545 = vpack.c.b16 %v3407, %v3401
    %v3546 = vpack.c.b16 %v3414, %v3408
    %v3547 = vpack.c.b16 %v3415, %v3409
    %v3548 = vpack.c.b16 %v3416, %v3410
    %v3549 = vpack.c.b16 %v3417, %v3411
    %v3550 = vpack.c.b16 %v3418, %v3412
    %v3551 = vpack.c.b16 %v3419, %v3413
    %v3552 = vpack.c.b16 %v3426, %v3420
    %v3553 = vpack.c.b16 %v3427, %v3421
    %v3554 = vpack.c.b16 %v3428, %v3422
    %v3555 = vpack.c.b16 %v3429, %v3423
    %v3556 = vpack.c.b16 %v3430, %v3424
    %v3557 = vpack.c.b16 %v3431, %v3425
    %v3558 = vpack.c.b16 %v3438, %v3432
    %v3559 = vpack.c.b16 %v3439, %v3433
    %v3560 = vpack.c.b16 %v3440, %v3434
    %v3561 = vpack.c.b16 %v3441, %v3435
    %v3562 = vpack.c.b16 %v3442, %v3436
    %v3563 = vpack.c.b16 %v3443, %v3437
    %v3564 = vpack.c.b16 %v3450, %v3444
    %v3565 = vpack.c.b16 %v3451, %v3445
    %v3566 = vpack.c.b16 %v3452, %v3446
    %v3567 = vpack.c.b16 %v3453, %v3447
    %v3568 = vpack.c.b16 %v3454, %v3448
    %v3569 = vpack.c.b16 %v3455, %v3449
    %v3570 = vpack.c.b16 %v3462, %v3456
    %v3571 = vpack.c.b16 %v3463, %v3457
    %v3572 = vpack.c.b16 %v3464, %v3458
    %v3573 = vpack.c.b16 %v3465, %v3459
    %v3574 = vpack.c.b16 %v3466, %v3460
    %v3575 = vpack.c.b16 %v3467, %v3461
    %v3576 = vpack.c.b16 %v3474, %v3468
    %v3577 = vpack.c.b16 %v3475, %v3469
    %v3578 = vpack.c.b16 %v3476, %v3470
    %v3579 = vpack.c.b16 %v3477, %v3471
    %v3580 = vpack.c.b16 %v3478, %v3472
    %v3581 = vpack.c.b16 %v3479, %v3473
    %v3582 = vpack.c.b16 %v3486, %v3480
    %v3583 = vpack.c.b16 %v3487, %v3481
    %v3584 = vpack.c.b16 %v3488, %v3482
    %v3585 = vpack.c.b16 %v3489, %v3483
    %v3586 = vpack.c.b16 %v3490, %v3484
    %v3587 = vpack.c.b16 %v3491, %v3485
    %3684 = vmatprep.subr.bf16.mxu0 %v3493
    %3685 = vmatpush1.bf16.msra.mxu0 %v3492
    %3686 = vmatprep.subr.bf16.mxu0 %v3499
    %3687 = vmatpush1.bf16.msra.mxu0 %v3498
    %3688 = vmatprep.subr.bf16.mxu0 %v3505
    %3689 = vmatpush1.bf16.msra.mxu0 %v3504
    %3690 = vmatprep.subr.bf16.mxu0 %v3511
    %3691 = vmatpush1.bf16.msra.mxu0 %v3510
    %3692 = vmatprep.subr.bf16.mxu0 %v3517
    %3693 = vmatpush1.bf16.msra.mxu0 %v3516
    %3694 = vmatprep.subr.bf16.mxu0 %v3523
    %3695 = vmatpush1.bf16.msra.mxu0 %v3522
    %3696 = vmatprep.subr.bf16.mxu0 %v3529
    %3697 = vmatpush1.bf16.msra.mxu0 %v3528
    %3698 = vmatprep.subr.bf16.mxu0 %v3535
    %3699 = vmatpush1.bf16.msra.mxu0 %v3534
    %3700 = vmatprep.subr.bf16.mxu0 %v3541
    %3701 = vmatpush1.bf16.msra.mxu0 %v3540
    %3702 = vmatprep.subr.bf16.mxu0 %v3547
    %3703 = vmatpush1.bf16.msra.mxu0 %v3546
    %3704 = vmatprep.subr.bf16.mxu0 %v3553
    %3705 = vmatpush1.bf16.msra.mxu0 %v3552
    %3706 = vmatprep.subr.bf16.mxu0 %v3559
    %3707 = vmatpush1.bf16.msra.mxu0 %v3558
    %3708 = vmatprep.subr.bf16.mxu0 %v3565
    %3709 = vmatpush1.bf16.msra.mxu0 %v3564
    %3710 = vmatprep.subr.bf16.mxu0 %v3571
    %3711 = vmatpush1.bf16.msra.mxu0 %v3570
    %3712 = vmatprep.subr.bf16.mxu0 %v3577
    %3713 = vmatpush1.bf16.msra.mxu0 %v3576
    %3714 = vmatprep.subr.bf16.mxu0 %v3583
    %3715 = vmatpush1.bf16.msra.mxu0 %v3582
    %3716 = vmatprep.mubr.bf16.mxu0 %v3073
    %3717 = vmatmul.mubr.bf16.gmra.mrb[0].mxu0 %v3072
    %v3718 = vpop.f32.mrb[0].mxu0
    %v3719 = vadd.f32 %v3177, %v3718
    %v3720 = vpop.f32.mrb[0].mxu0
    %v3721 = vadd.f32 %v3181, %v3720
    %v3722 = vpop.f32.mrb[0].mxu0
    %v3723 = vadd.f32 %v3177, %v3722
    %v3724 = vpop.f32.mrb[0].mxu0
    %v3725 = vadd.f32 %v3181, %v3724
    %3726 = vdwg.mxu0
    %3727 = vmatprep.subr.bf16.mxu0 %v3495
    %3728 = vmatpush1.bf16.msra.mxu0 %v3494
    %3729 = vmatprep.subr.bf16.mxu0 %v3501
    %3730 = vmatpush1.bf16.msra.mxu0 %v3500
    %3731 = vmatprep.subr.bf16.mxu0 %v3507
    %3732 = vmatpush1.bf16.msra.mxu0 %v3506
    %3733 = vmatprep.subr.bf16.mxu0 %v3513
    %3734 = vmatpush1.bf16.msra.mxu0 %v3512
    %3735 = vmatprep.subr.bf16.mxu0 %v3519
    %3736 = vmatpush1.bf16.msra.mxu0 %v3518
    %3737 = vmatprep.subr.bf16.mxu0 %v3525
    %3738 = vmatpush1.bf16.msra.mxu0 %v3524
    %3739 = vmatprep.subr.bf16.mxu0 %v3531
    %3740 = vmatpush1.bf16.msra.mxu0 %v3530
    %3741 = vmatprep.subr.bf16.mxu0 %v3537
    %3742 = vmatpush1.bf16.msra.mxu0 %v3536
    %3743 = vmatprep.subr.bf16.mxu0 %v3543
    %3744 = vmatpush1.bf16.msra.mxu0 %v3542
    %3745 = vmatprep.subr.bf16.mxu0 %v3549
    %3746 = vmatpush1.bf16.msra.mxu0 %v3548
    %3747 = vmatprep.subr.bf16.mxu0 %v3555
    %3748 = vmatpush1.bf16.msra.mxu0 %v3554
    %3749 = vmatprep.subr.bf16.mxu0 %v3561
    %3750 = vmatpush1.bf16.msra.mxu0 %v3560
    %3751 = vmatprep.subr.bf16.mxu0 %v3567
    %3752 = vmatpush1.bf16.msra.mxu0 %v3566
    %3753 = vmatprep.subr.bf16.mxu0 %v3573
    %3754 = vmatpush1.bf16.msra.mxu0 %v3572
    %3755 = vmatprep.subr.bf16.mxu0 %v3579
    %3756 = vmatpush1.bf16.msra.mxu0 %v3578
    %3757 = vmatprep.subr.bf16.mxu0 %v3585
    %3758 = vmatpush1.bf16.msra.mxu0 %v3584
    %3759 = vmatprep.mubr.bf16.mxu0 %v3073
    %3760 = vmatmul.mubr.bf16.gmra.mrb[0].mxu0 %v3072
    %v3761 = vpop.f32.mrb[0].mxu0
    %v3762 = vadd.f32 %v3185, %v3761
    %v3763 = vpop.f32.mrb[0].mxu0
    %v3764 = vadd.f32 %v3189, %v3763
    %v3765 = vpop.f32.mrb[0].mxu0
    %v3766 = vadd.f32 %v3185, %v3765
    %v3767 = vpop.f32.mrb[0].mxu0
    %v3768 = vadd.f32 %v3189, %v3767
    %3769 = vdwg.mxu0
    %3770 = vmatprep.subr.bf16.mxu0 %v3497
    %3771 = vmatpush1.bf16.msra.mxu0 %v3496
    %3772 = vmatprep.subr.bf16.mxu0 %v3503
    %3773 = vmatpush1.bf16.msra.mxu0 %v3502
    %3774 = vmatprep.subr.bf16.mxu0 %v3509
    %3775 = vmatpush1.bf16.msra.mxu0 %v3508
    %3776 = vmatprep.subr.bf16.mxu0 %v3515
    %3777 = vmatpush1.bf16.msra.mxu0 %v3514
    %3778 = vmatprep.subr.bf16.mxu0 %v3521
    %3779 = vmatpush1.bf16.msra.mxu0 %v3520
    %3780 = vmatprep.subr.bf16.mxu0 %v3527
    %3781 = vmatpush1.bf16.msra.mxu0 %v3526
    %3782 = vmatprep.subr.bf16.mxu0 %v3533
    %3783 = vmatpush1.bf16.msra.mxu0 %v3532
    %3784 = vmatprep.subr.bf16.mxu0 %v3539
    %3785 = vmatpush1.bf16.msra.mxu0 %v3538
    %3786 = vmatprep.subr.bf16.mxu0 %v3545
    %3787 = vmatpush1.bf16.msra.mxu0 %v3544
    %3788 = vmatprep.subr.bf16.mxu0 %v3551
    %3789 = vmatpush1.bf16.msra.mxu0 %v3550
    %3790 = vmatprep.subr.bf16.mxu0 %v3557
    %3791 = vmatpush1.bf16.msra.mxu0 %v3556
    %3792 = vmatprep.subr.bf16.mxu0 %v3563
    %3793 = vmatpush1.bf16.msra.mxu0 %v3562
    %3794 = vmatprep.subr.bf16.mxu0 %v3569
    %3795 = vmatpush1.bf16.msra.mxu0 %v3568
    %3796 = vmatprep.subr.bf16.mxu0 %v3575
    %3797 = vmatpush1.bf16.msra.mxu0 %v3574
    %3798 = vmatprep.subr.bf16.mxu0 %v3581
    %3799 = vmatpush1.bf16.msra.mxu0 %v3580
    %3800 = vmatprep.subr.bf16.mxu0 %v3587
    %3801 = vmatpush1.bf16.msra.mxu0 %v3586
    %3802 = vmatprep.mubr.bf16.mxu0 %v3073
    %3803 = vmatmul.mubr.bf16.gmra.mrb[0].mxu0 %v3072
    %v3804 = vpop.f32.mrb[0].mxu0
    %v3805 = vadd.f32 %v3193, %v3804
    %v3806 = vpop.f32.mrb[0].mxu0
    %v3807 = vadd.f32 %v3197, %v3806
    %v3808 = vpop.f32.mrb[0].mxu0
    %v3809 = vadd.f32 %v3193, %v3808
    %v3810 = vpop.f32.mrb[0].mxu0
    %v3811 = vadd.f32 %v3197, %v3810
    %3812 = vdwg.mxu0
    %v3813 = vpack.c.bf16 %v3719, %v3719
    %v3814 = vpack.c.bf16 %v3723, %v3723
    %v3815 = vpack.c.bf16 %v3762, %v3762
    %v3816 = vpack.c.bf16 %v3766, %v3766
    %3817 = vmatprep.subr.bf16.mxu0 0
    %3818 = vmatpush1.bf16.xpose.msra.mxu0 %v3815
    %3819 = vmatprep.subr.bf16.mxu0 0
    %3820 = vmatpush1.bf16.xpose.msra.mxu0 0
    %3821 = vmatprep.subr.bf16.mxu0 0
    %3822 = vmatpush1.bf16.xpose.msra.mxu0 0
    %3823 = vmatprep.subr.bf16.mxu0 0
    %3824 = vmatpush1.bf16.xpose.msra.mxu0 0
    %3825 = vmatprep.subr.bf16.mxu0 0
    %3826 = vmatpush1.bf16.xpose.msra.mxu0 0
    %3827 = vmatprep.subr.bf16.mxu0 0
    %3828 = vmatpush1.bf16.xpose.msra.mxu0 0
    %3829 = vmatprep.subr.bf16.mxu0 0
    %3830 = vmatpush1.bf16.xpose.msra.mxu0 0
    %3831 = vmatprep.subr.bf16.mxu0 0
    %3832 = vmatpush1.bf16.xpose.msra.mxu0 0
    %3833 = vmatprep.subr.bf16.mxu0 0
    %3834 = vmatpush1.bf16.xpose.msra.mxu0 0
    %3835 = vmatprep.subr.bf16.mxu0 0
    %3836 = vmatpush1.bf16.xpose.msra.mxu0 0
    %3837 = vmatprep.subr.bf16.mxu0 0
    %3838 = vmatpush1.bf16.xpose.msra.mxu0 0
    %3839 = vmatprep.subr.bf16.mxu0 0
    %3840 = vmatpush1.bf16.xpose.msra.mxu0 0
    %3841 = vmatprep.subr.bf16.mxu0 0
    %3842 = vmatpush1.bf16.xpose.msra.mxu0 0
    %3843 = vmatprep.subr.bf16.mxu0 0
    %3844 = vmatpush1.bf16.xpose.msra.mxu0 0
    %3845 = vmatprep.subr.bf16.mxu0 0
    %3846 = vmatpush1.bf16.xpose.msra.mxu0 0
    %3847 = vmatprep.subr.bf16.mxu0 0
    %3848 = vmatpush1.bf16.xpose.msra.mxu0 0
    %3849 = vmatprep.mubr.bf16.mxu0 0
    %3850 = vmatmul.mubr.bf16.gmra.mrb[0].mxu0 %v3813
    %v3851 = vpop.f32.mrb[0].mxu0
    %v3852 = vadd.f32 0.0, %v3851
    %v3853 = vpop.f32.mrb[0].mxu0
    %v3854 = vpop.f32.mrb[0].mxu0
    %v3855 = vpop.f32.mrb[0].mxu0
    %3856 = vdwg.mxu0
    %3857 = vmatprep.subr.bf16.mxu0 0
    %3858 = vmatpush1.bf16.xpose.msra.mxu0 %v3816
    %3859 = vmatprep.subr.bf16.mxu0 0
    %3860 = vmatpush1.bf16.xpose.msra.mxu0 0
    %3861 = vmatprep.subr.bf16.mxu0 0
    %3862 = vmatpush1.bf16.xpose.msra.mxu0 0
    %3863 = vmatprep.subr.bf16.mxu0 0
    %3864 = vmatpush1.bf16.xpose.msra.mxu0 0
    %3865 = vmatprep.subr.bf16.mxu0 0
    %3866 = vmatpush1.bf16.xpose.msra.mxu0 0
    %3867 = vmatprep.subr.bf16.mxu0 0
    %3868 = vmatpush1.bf16.xpose.msra.mxu0 0
    %3869 = vmatprep.subr.bf16.mxu0 0
    %3870 = vmatpush1.bf16.xpose.msra.mxu0 0
    %3871 = vmatprep.subr.bf16.mxu0 0
    %3872 = vmatpush1.bf16.xpose.msra.mxu0 0
    %3873 = vmatprep.subr.bf16.mxu0 0
    %3874 = vmatpush1.bf16.xpose.msra.mxu0 0
    %3875 = vmatprep.subr.bf16.mxu0 0
    %3876 = vmatpush1.bf16.xpose.msra.mxu0 0
    %3877 = vmatprep.subr.bf16.mxu0 0
    %3878 = vmatpush1.bf16.xpose.msra.mxu0 0
    %3879 = vmatprep.subr.bf16.mxu0 0
    %3880 = vmatpush1.bf16.xpose.msra.mxu0 0
    %3881 = vmatprep.subr.bf16.mxu0 0
    %3882 = vmatpush1.bf16.xpose.msra.mxu0 0
    %3883 = vmatprep.subr.bf16.mxu0 0
    %3884 = vmatpush1.bf16.xpose.msra.mxu0 0
    %3885 = vmatprep.subr.bf16.mxu0 0
    %3886 = vmatpush1.bf16.xpose.msra.mxu0 0
    %3887 = vmatprep.subr.bf16.mxu0 0
    %3888 = vmatpush1.bf16.xpose.msra.mxu0 0
    %3889 = vmatprep.mubr.bf16.mxu0 0
    %3890 = vmatmul.mubr.bf16.gmra.mrb[0].mxu0 %v3814
    %v3891 = vpop.f32.mrb[0].mxu0
    %v3892 = vadd.f32 0.0, %v3891
    %v3893 = vpop.f32.mrb[0].mxu0
    %v3894 = vpop.f32.mrb[0].mxu0
    %v3895 = vpop.f32.mrb[0].mxu0
    %3896 = vdwg.mxu0
    %v3897 = vmul.f32 %v3852, 0.088388346
    %v3898 = vmul.f32 %v3892, 0.088388346
    %v3899 = vsel %vm1058, %v3897, -inf
    %3900 = vmax.xlane.f32.xlu0 %v3899
    %v3901 = vpop.xlane.xlu0 %3900
    %v3902 = vsel %vm1058, %v3898, -inf
    %3903 = vmax.xlane.f32.xlu0 %v3902
    %v3904 = vpop.xlane.xlu0 %3903
    %v3905 = vsub.f32 %v3897, %v3901
    %v3906 = vsub.f32 %v3898, %v3904
    %v3907 = vmul.f32 %v3905, 1.442695
    %v3908 = vpow.pop %v3907
    %v3909 = vmul.f32 %v3906, 1.442695
    %v3910 = vpow.pop %v3909
    %v3911 = vsel %vm1058, %v3908, 0.0
    %3912 = vadd.xlane.f32.xlu0 %v3911
    %v3913 = vpop.xlane.xlu0 %3912
    %v3914 = vsel %vm1058, %v3910, 0.0
    %3915 = vadd.xlane.f32.xlu0 %v3914
    %v3916 = vpop.xlane.xlu0 %3915
    %v3917 = vrcp.pop %v3913
    %v3918 = vrcp.pop %v3916
    %v3919 = vmul.f32 %v3908, %v3917
    %v3920 = vmul.f32 %v3910, %v3918
    %v3921 = vpack.c.bf16 %v3919, %v3919
    %v3922 = vpack.c.bf16 %v3920, %v3920
    %v3923 = vpack.c.bf16 %v3805, %v3805
    %v3924 = vpack.c.bf16 %v3809, %v3809
    %v3926 = vsel %vm1058, %v3921, 0
    %v3929 = vsel %vm1088, %v3923, 0
    %3931 = vmatprep.subr.bf16.mxu0 0
    %3932 = vmatpush1.bf16.msra.mxu0 %v3929
    %3933 = vmatprep.subr.bf16.mxu0 0
    %3934 = vmatpush1.bf16.msra.mxu0 0
    %3935 = vmatprep.subr.bf16.mxu0 0
    %3936 = vmatpush1.bf16.msra.mxu0 0
    %3937 = vmatprep.subr.bf16.mxu0 0
    %3938 = vmatpush1.bf16.msra.mxu0 0
    %3939 = vmatprep.subr.bf16.mxu0 0
    %3940 = vmatpush1.bf16.msra.mxu0 0
    %3941 = vmatprep.subr.bf16.mxu0 0
    %3942 = vmatpush1.bf16.msra.mxu0 0
    %3943 = vmatprep.subr.bf16.mxu0 0
    %3944 = vmatpush1.bf16.msra.mxu0 0
    %3945 = vmatprep.subr.bf16.mxu0 0
    %3946 = vmatpush1.bf16.msra.mxu0 0
    %3947 = vmatprep.subr.bf16.mxu0 0
    %3948 = vmatpush1.bf16.msra.mxu0 0
    %3949 = vmatprep.subr.bf16.mxu0 0
    %3950 = vmatpush1.bf16.msra.mxu0 0
    %3951 = vmatprep.subr.bf16.mxu0 0
    %3952 = vmatpush1.bf16.msra.mxu0 0
    %3953 = vmatprep.subr.bf16.mxu0 0
    %3954 = vmatpush1.bf16.msra.mxu0 0
    %3955 = vmatprep.subr.bf16.mxu0 0
    %3956 = vmatpush1.bf16.msra.mxu0 0
    %3957 = vmatprep.subr.bf16.mxu0 0
    %3958 = vmatpush1.bf16.msra.mxu0 0
    %3959 = vmatprep.subr.bf16.mxu0 0
    %3960 = vmatpush1.bf16.msra.mxu0 0
    %3961 = vmatprep.subr.bf16.mxu0 0
    %3962 = vmatpush1.bf16.msra.mxu0 0
    %3963 = vmatprep.mubr.bf16.mxu0 0
    %3964 = vmatmul.mubr.bf16.gmra.mrb[0].mxu0 %v3926
    %v3965 = vpop.f32.mrb[0].mxu0
    %v3966 = vadd.f32 0.0, %v3965
    %v3967 = vpop.f32.mrb[0].mxu0
    %v3968 = vpop.f32.mrb[0].mxu0
    %v3969 = vpop.f32.mrb[0].mxu0
    %3970 = vdwg.mxu0
    %v3972 = vsel %vm1058, %v3922, 0
    %v3975 = vsel %vm1088, %v3924, 0
    %3977 = vmatprep.subr.bf16.mxu0 0
    %3978 = vmatpush1.bf16.msra.mxu0 %v3975
    %3979 = vmatprep.subr.bf16.mxu0 0
    %3980 = vmatpush1.bf16.msra.mxu0 0
    %3981 = vmatprep.subr.bf16.mxu0 0
    %3982 = vmatpush1.bf16.msra.mxu0 0
    %3983 = vmatprep.subr.bf16.mxu0 0
    %3984 = vmatpush1.bf16.msra.mxu0 0
    %3985 = vmatprep.subr.bf16.mxu0 0
    %3986 = vmatpush1.bf16.msra.mxu0 0
    %3987 = vmatprep.subr.bf16.mxu0 0
    %3988 = vmatpush1.bf16.msra.mxu0 0
    %3989 = vmatprep.subr.bf16.mxu0 0
    %3990 = vmatpush1.bf16.msra.mxu0 0
    %3991 = vmatprep.subr.bf16.mxu0 0
    %3992 = vmatpush1.bf16.msra.mxu0 0
    %3993 = vmatprep.subr.bf16.mxu0 0
    %3994 = vmatpush1.bf16.msra.mxu0 0
    %3995 = vmatprep.subr.bf16.mxu0 0
    %3996 = vmatpush1.bf16.msra.mxu0 0
    %3997 = vmatprep.subr.bf16.mxu0 0
    %3998 = vmatpush1.bf16.msra.mxu0 0
    %3999 = vmatprep.subr.bf16.mxu0 0
    %4000 = vmatpush1.bf16.msra.mxu0 0
    %4001 = vmatprep.subr.bf16.mxu0 0
    %4002 = vmatpush1.bf16.msra.mxu0 0
    %4003 = vmatprep.subr.bf16.mxu0 0
    %4004 = vmatpush1.bf16.msra.mxu0 0
    %4005 = vmatprep.subr.bf16.mxu0 0
    %4006 = vmatpush1.bf16.msra.mxu0 0
    %4007 = vmatprep.subr.bf16.mxu0 0
    %4008 = vmatpush1.bf16.msra.mxu0 0
    %4009 = vmatprep.mubr.bf16.mxu0 0
    %4010 = vmatmul.mubr.bf16.gmra.mrb[0].mxu0 %v3972
    %v4011 = vpop.f32.mrb[0].mxu0
    %v4012 = vadd.f32 0.0, %v4011
    %v4013 = vpop.f32.mrb[0].mxu0
    %v4014 = vpop.f32.mrb[0].mxu0
    %v4015 = vpop.f32.mrb[0].mxu0
    %4016 = vdwg.mxu0
    %v4017 = vpack.c.bf16 %v3721, %v3721
    %v4018 = vpack.c.bf16 %v3725, %v3725
    %v4019 = vpack.c.bf16 %v3764, %v3764
    %v4020 = vpack.c.bf16 %v3768, %v3768
    %4021 = vmatprep.subr.bf16.mxu0 0
    %4022 = vmatpush1.bf16.xpose.msra.mxu0 %v4019
    %4023 = vmatprep.subr.bf16.mxu0 0
    %4024 = vmatpush1.bf16.xpose.msra.mxu0 0
    %4025 = vmatprep.subr.bf16.mxu0 0
    %4026 = vmatpush1.bf16.xpose.msra.mxu0 0
    %4027 = vmatprep.subr.bf16.mxu0 0
    %4028 = vmatpush1.bf16.xpose.msra.mxu0 0
    %4029 = vmatprep.subr.bf16.mxu0 0
    %4030 = vmatpush1.bf16.xpose.msra.mxu0 0
    %4031 = vmatprep.subr.bf16.mxu0 0
    %4032 = vmatpush1.bf16.xpose.msra.mxu0 0
    %4033 = vmatprep.subr.bf16.mxu0 0
    %4034 = vmatpush1.bf16.xpose.msra.mxu0 0
    %4035 = vmatprep.subr.bf16.mxu0 0
    %4036 = vmatpush1.bf16.xpose.msra.mxu0 0
    %4037 = vmatprep.subr.bf16.mxu0 0
    %4038 = vmatpush1.bf16.xpose.msra.mxu0 0
    %4039 = vmatprep.subr.bf16.mxu0 0
    %4040 = vmatpush1.bf16.xpose.msra.mxu0 0
    %4041 = vmatprep.subr.bf16.mxu0 0
    %4042 = vmatpush1.bf16.xpose.msra.mxu0 0
    %4043 = vmatprep.subr.bf16.mxu0 0
    %4044 = vmatpush1.bf16.xpose.msra.mxu0 0
    %4045 = vmatprep.subr.bf16.mxu0 0
    %4046 = vmatpush1.bf16.xpose.msra.mxu0 0
    %4047 = vmatprep.subr.bf16.mxu0 0
    %4048 = vmatpush1.bf16.xpose.msra.mxu0 0
    %4049 = vmatprep.subr.bf16.mxu0 0
    %4050 = vmatpush1.bf16.xpose.msra.mxu0 0
    %4051 = vmatprep.subr.bf16.mxu0 0
    %4052 = vmatpush1.bf16.xpose.msra.mxu0 0
    %4053 = vmatprep.mubr.bf16.mxu0 0
    %4054 = vmatmul.mubr.bf16.gmra.mrb[0].mxu0 %v4017
    %v4055 = vpop.f32.mrb[0].mxu0
    %v4056 = vadd.f32 0.0, %v4055
    %v4057 = vpop.f32.mrb[0].mxu0
    %v4058 = vpop.f32.mrb[0].mxu0
    %v4059 = vpop.f32.mrb[0].mxu0
    %4060 = vdwg.mxu0
    %4061 = vmatprep.subr.bf16.mxu0 0
    %4062 = vmatpush1.bf16.xpose.msra.mxu0 %v4020
    %4063 = vmatprep.subr.bf16.mxu0 0
    %4064 = vmatpush1.bf16.xpose.msra.mxu0 0
    %4065 = vmatprep.subr.bf16.mxu0 0
    %4066 = vmatpush1.bf16.xpose.msra.mxu0 0
    %4067 = vmatprep.subr.bf16.mxu0 0
    %4068 = vmatpush1.bf16.xpose.msra.mxu0 0
    %4069 = vmatprep.subr.bf16.mxu0 0
    %4070 = vmatpush1.bf16.xpose.msra.mxu0 0
    %4071 = vmatprep.subr.bf16.mxu0 0
    %4072 = vmatpush1.bf16.xpose.msra.mxu0 0
    %4073 = vmatprep.subr.bf16.mxu0 0
    %4074 = vmatpush1.bf16.xpose.msra.mxu0 0
    %4075 = vmatprep.subr.bf16.mxu0 0
    %4076 = vmatpush1.bf16.xpose.msra.mxu0 0
    %4077 = vmatprep.subr.bf16.mxu0 0
    %4078 = vmatpush1.bf16.xpose.msra.mxu0 0
    %4079 = vmatprep.subr.bf16.mxu0 0
    %4080 = vmatpush1.bf16.xpose.msra.mxu0 0
    %4081 = vmatprep.subr.bf16.mxu0 0
    %4082 = vmatpush1.bf16.xpose.msra.mxu0 0
    %4083 = vmatprep.subr.bf16.mxu0 0
    %4084 = vmatpush1.bf16.xpose.msra.mxu0 0
    %4085 = vmatprep.subr.bf16.mxu0 0
    %4086 = vmatpush1.bf16.xpose.msra.mxu0 0
    %4087 = vmatprep.subr.bf16.mxu0 0
    %4088 = vmatpush1.bf16.xpose.msra.mxu0 0
    %4089 = vmatprep.subr.bf16.mxu0 0
    %4090 = vmatpush1.bf16.xpose.msra.mxu0 0
    %4091 = vmatprep.subr.bf16.mxu0 0
    %4092 = vmatpush1.bf16.xpose.msra.mxu0 0
    %4093 = vmatprep.mubr.bf16.mxu0 0
    %4094 = vmatmul.mubr.bf16.gmra.mrb[0].mxu0 %v4018
    %v4095 = vpop.f32.mrb[0].mxu0
    %v4096 = vadd.f32 0.0, %v4095
    %v4097 = vpop.f32.mrb[0].mxu0
    %v4098 = vpop.f32.mrb[0].mxu0
    %v4099 = vpop.f32.mrb[0].mxu0
    %4100 = vdwg.mxu0
    %v4101 = vmul.f32 %v4056, 0.088388346
    %v4102 = vmul.f32 %v4096, 0.088388346
    %v4103 = vsel %vm1058, %v4101, -inf
    %4104 = vmax.xlane.f32.xlu0 %v4103
    %v4105 = vpop.xlane.xlu0 %4104
    %v4106 = vsel %vm1058, %v4102, -inf
    %4107 = vmax.xlane.f32.xlu0 %v4106
    %v4108 = vpop.xlane.xlu0 %4107
    %v4109 = vsub.f32 %v4101, %v4105
    %v4110 = vsub.f32 %v4102, %v4108
    %v4111 = vmul.f32 %v4109, 1.442695
    %v4112 = vpow.pop %v4111
    %v4113 = vmul.f32 %v4110, 1.442695
    %v4114 = vpow.pop %v4113
    %v4115 = vsel %vm1058, %v4112, 0.0
    %4116 = vadd.xlane.f32.xlu0 %v4115
    %v4117 = vpop.xlane.xlu0 %4116
    %v4118 = vsel %vm1058, %v4114, 0.0
    %4119 = vadd.xlane.f32.xlu0 %v4118
    %v4120 = vpop.xlane.xlu0 %4119
    %v4121 = vrcp.pop %v4117
    %v4122 = vrcp.pop %v4120
    %v4123 = vmul.f32 %v4112, %v4121
    %v4124 = vmul.f32 %v4114, %v4122
    %v4125 = vpack.c.bf16 %v4123, %v4123
    %v4126 = vpack.c.bf16 %v4124, %v4124
    %v4127 = vpack.c.bf16 %v3807, %v3807
    %v4128 = vpack.c.bf16 %v3811, %v3811
    %v4130 = vsel %vm1058, %v4125, 0
    %v4133 = vsel %vm1088, %v4127, 0
    %4135 = vmatprep.subr.bf16.mxu0 0
    %4136 = vmatpush1.bf16.msra.mxu0 %v4133
    %4137 = vmatprep.subr.bf16.mxu0 0
    %4138 = vmatpush1.bf16.msra.mxu0 0
    %4139 = vmatprep.subr.bf16.mxu0 0
    %4140 = vmatpush1.bf16.msra.mxu0 0
    %4141 = vmatprep.subr.bf16.mxu0 0
    %4142 = vmatpush1.bf16.msra.mxu0 0
    %4143 = vmatprep.subr.bf16.mxu0 0
    %4144 = vmatpush1.bf16.msra.mxu0 0
    %4145 = vmatprep.subr.bf16.mxu0 0
    %4146 = vmatpush1.bf16.msra.mxu0 0
    %4147 = vmatprep.subr.bf16.mxu0 0
    %4148 = vmatpush1.bf16.msra.mxu0 0
    %4149 = vmatprep.subr.bf16.mxu0 0
    %4150 = vmatpush1.bf16.msra.mxu0 0
    %4151 = vmatprep.subr.bf16.mxu0 0
    %4152 = vmatpush1.bf16.msra.mxu0 0
    %4153 = vmatprep.subr.bf16.mxu0 0
    %4154 = vmatpush1.bf16.msra.mxu0 0
    %4155 = vmatprep.subr.bf16.mxu0 0
    %4156 = vmatpush1.bf16.msra.mxu0 0
    %4157 = vmatprep.subr.bf16.mxu0 0
    %4158 = vmatpush1.bf16.msra.mxu0 0
    %4159 = vmatprep.subr.bf16.mxu0 0
    %4160 = vmatpush1.bf16.msra.mxu0 0
    %4161 = vmatprep.subr.bf16.mxu0 0
    %4162 = vmatpush1.bf16.msra.mxu0 0
    %4163 = vmatprep.subr.bf16.mxu0 0
    %4164 = vmatpush1.bf16.msra.mxu0 0
    %4165 = vmatprep.subr.bf16.mxu0 0
    %4166 = vmatpush1.bf16.msra.mxu0 0
    %4167 = vmatprep.mubr.bf16.mxu0 0
    %4168 = vmatmul.mubr.bf16.gmra.mrb[0].mxu0 %v4130
    %v4169 = vpop.f32.mrb[0].mxu0
    %v4170 = vadd.f32 0.0, %v4169
    %v4171 = vpop.f32.mrb[0].mxu0
    %v4172 = vpop.f32.mrb[0].mxu0
    %v4173 = vpop.f32.mrb[0].mxu0
    %4174 = vdwg.mxu0
    %v4176 = vsel %vm1058, %v4126, 0
    %v4179 = vsel %vm1088, %v4128, 0
    %4181 = vmatprep.subr.bf16.mxu0 0
    %4182 = vmatpush1.bf16.msra.mxu0 %v4179
    %4183 = vmatprep.subr.bf16.mxu0 0
    %4184 = vmatpush1.bf16.msra.mxu0 0
    %4185 = vmatprep.subr.bf16.mxu0 0
    %4186 = vmatpush1.bf16.msra.mxu0 0
    %4187 = vmatprep.subr.bf16.mxu0 0
    %4188 = vmatpush1.bf16.msra.mxu0 0
    %4189 = vmatprep.subr.bf16.mxu0 0
    %4190 = vmatpush1.bf16.msra.mxu0 0
    %4191 = vmatprep.subr.bf16.mxu0 0
    %4192 = vmatpush1.bf16.msra.mxu0 0
    %4193 = vmatprep.subr.bf16.mxu0 0
    %4194 = vmatpush1.bf16.msra.mxu0 0
    %4195 = vmatprep.subr.bf16.mxu0 0
    %4196 = vmatpush1.bf16.msra.mxu0 0
    %4197 = vmatprep.subr.bf16.mxu0 0
    %4198 = vmatpush1.bf16.msra.mxu0 0
    %4199 = vmatprep.subr.bf16.mxu0 0
    %4200 = vmatpush1.bf16.msra.mxu0 0
    %4201 = vmatprep.subr.bf16.mxu0 0
    %4202 = vmatpush1.bf16.msra.mxu0 0
    %4203 = vmatprep.subr.bf16.mxu0 0
    %4204 = vmatpush1.bf16.msra.mxu0 0
    %4205 = vmatprep.subr.bf16.mxu0 0
    %4206 = vmatpush1.bf16.msra.mxu0 0
    %4207 = vmatprep.subr.bf16.mxu0 0
    %4208 = vmatpush1.bf16.msra.mxu0 0
    %4209 = vmatprep.subr.bf16.mxu0 0
    %4210 = vmatpush1.bf16.msra.mxu0 0
    %4211 = vmatprep.subr.bf16.mxu0 0
    %4212 = vmatpush1.bf16.msra.mxu0 0
    %4213 = vmatprep.mubr.bf16.mxu0 0
    %4214 = vmatmul.mubr.bf16.gmra.mrb[0].mxu0 %v4176
    %v4215 = vpop.f32.mrb[0].mxu0
    %v4216 = vadd.f32 0.0, %v4215
    %v4217 = vpop.f32.mrb[0].mxu0
    %v4218 = vpop.f32.mrb[0].mxu0
    %v4219 = vpop.f32.mrb[0].mxu0
    %4220 = vdwg.mxu0
    %v4221 = vpack.c.bf16 %v4012, %v3966
    %v4222 = vpack.c.bf16 %v4216, %v4170
    %s4223 = scalar_lea.vmem [#allocation8], 256
    %v4224 = vld [vmem:[%s4223] sm:$0xff]
    %v4225 = vld [vmem:[%s4223 + $0x8] sm:$0xff]
    %v4226 = vld [vmem:[%s4223 + $0x10] sm:$0xff]
    %v4227 = vld [vmem:[%s4223 + $0x18] sm:$0xff]
    %v4228 = vld [vmem:[%s4223 + $0x20] sm:$0xff]
    %v4229 = vld [vmem:[%s4223 + $0x28] sm:$0xff]
    %v4230 = vld [vmem:[%s4223 + $0x30] sm:$0xff]
    %v4231 = vld [vmem:[%s4223 + $0x38] sm:$0xff]
    %v4232 = vld [vmem:[%s4223 + $0x40] sm:$0xff]
    %v4233 = vld [vmem:[%s4223 + $0x48] sm:$0xff]
    %v4234 = vld [vmem:[%s4223 + $0x50] sm:$0xff]
    %v4235 = vld [vmem:[%s4223 + $0x58] sm:$0xff]
    %v4236 = vld [vmem:[%s4223 + $0x60] sm:$0xff]
    %v4237 = vld [vmem:[%s4223 + $0x68] sm:$0xff]
    %v4238 = vld [vmem:[%s4223 + $0x70] sm:$0xff]
    %v4239 = vld [vmem:[%s4223 + $0x78] sm:$0xff]
    %v4240 = vld [vmem:[%s4223 + $0x80] sm:$0xff]
    %v4241 = vld [vmem:[%s4223 + $0x88] sm:$0xff]
    %v4242 = vld [vmem:[%s4223 + $0x90] sm:$0xff]
    %v4243 = vld [vmem:[%s4223 + $0x98] sm:$0xff]
    %v4244 = vld [vmem:[%s4223 + $0xa0] sm:$0xff]
    %v4245 = vld [vmem:[%s4223 + $0xa8] sm:$0xff]
    %v4246 = vld [vmem:[%s4223 + $0xb0] sm:$0xff]
    %v4247 = vld [vmem:[%s4223 + $0xb8] sm:$0xff]
    %v4248 = vld [vmem:[%s4223 + $0xc0] sm:$0xff]
    %v4249 = vld [vmem:[%s4223 + $0xc8] sm:$0xff]
    %v4250 = vld [vmem:[%s4223 + $0xd0] sm:$0xff]
    %v4251 = vld [vmem:[%s4223 + $0xd8] sm:$0xff]
    %v4252 = vld [vmem:[%s4223 + $0xe0] sm:$0xff]
    %v4253 = vld [vmem:[%s4223 + $0xe8] sm:$0xff]
    %v4254 = vld [vmem:[%s4223 + $0xf0] sm:$0xff]
    %v4255 = vld [vmem:[%s4223 + $0xf8] sm:$0xff]
    %s4256 = scalar_lea.vmem [#allocation10], 2
    %v4257 = vld [vmem:[%s4256] sm:$0x3]
    %v4259 = vlaneseq
    %v4260 = vshrl.u32 %v4259, 7
    %v4261 = vsub.s32 0, %v4260
    %v4262 = vrot.slane %v4257, %v4261
    %v4263 = vlaneseq
    %v4264 = vshrl.u32 %v4263, 7
    %v4265 = vsub.s32 1, %v4264
    %v4266 = vrot.slane %v4257, %v4265
    %v4301 = vunpack.c.l.b16 %v4224
    %v4302 = vunpack.c.h.b16 %v4224
    %v4303 = vunpack.c.l.b16 %v4225
    %v4304 = vunpack.c.h.b16 %v4225
    %v4305 = vunpack.c.l.b16 %v4226
    %v4306 = vunpack.c.h.b16 %v4226
    %v4307 = vunpack.c.l.b16 %v4227
    %v4308 = vunpack.c.h.b16 %v4227
    %v4309 = vunpack.c.l.b16 %v4228
    %v4310 = vunpack.c.h.b16 %v4228
    %v4311 = vunpack.c.l.b16 %v4229
    %v4312 = vunpack.c.h.b16 %v4229
    %v4313 = vunpack.c.l.b16 %v4230
    %v4314 = vunpack.c.h.b16 %v4230
    %v4315 = vunpack.c.l.b16 %v4231
    %v4316 = vunpack.c.h.b16 %v4231
    %v4317 = vunpack.c.l.b16 %v4232
    %v4318 = vunpack.c.h.b16 %v4232
    %v4319 = vunpack.c.l.b16 %v4233
    %v4320 = vunpack.c.h.b16 %v4233
    %v4321 = vunpack.c.l.b16 %v4234
    %v4322 = vunpack.c.h.b16 %v4234
    %v4323 = vunpack.c.l.b16 %v4235
    %v4324 = vunpack.c.h.b16 %v4235
    %v4325 = vunpack.c.l.b16 %v4236
    %v4326 = vunpack.c.h.b16 %v4236
    %v4327 = vunpack.c.l.b16 %v4237
    %v4328 = vunpack.c.h.b16 %v4237
    %v4329 = vunpack.c.l.b16 %v4238
    %v4330 = vunpack.c.h.b16 %v4238
    %v4331 = vunpack.c.l.b16 %v4239
    %v4332 = vunpack.c.h.b16 %v4239
    %v4333 = vunpack.c.l.b16 %v4240
    %v4334 = vunpack.c.h.b16 %v4240
    %v4335 = vunpack.c.l.b16 %v4241
    %v4336 = vunpack.c.h.b16 %v4241
    %v4337 = vunpack.c.l.b16 %v4242
    %v4338 = vunpack.c.h.b16 %v4242
    %v4339 = vunpack.c.l.b16 %v4243
    %v4340 = vunpack.c.h.b16 %v4243
    %v4341 = vunpack.c.l.b16 %v4244
    %v4342 = vunpack.c.h.b16 %v4244
    %v4343 = vunpack.c.l.b16 %v4245
    %v4344 = vunpack.c.h.b16 %v4245
    %v4345 = vunpack.c.l.b16 %v4246
    %v4346 = vunpack.c.h.b16 %v4246
    %v4347 = vunpack.c.l.b16 %v4247
    %v4348 = vunpack.c.h.b16 %v4247
    %v4349 = vunpack.c.l.b16 %v4248
    %v4350 = vunpack.c.h.b16 %v4248
    %v4351 = vunpack.c.l.b16 %v4249
    %v4352 = vunpack.c.h.b16 %v4249
    %v4353 = vunpack.c.l.b16 %v4250
    %v4354 = vunpack.c.h.b16 %v4250
    %v4355 = vunpack.c.l.b16 %v4251
    %v4356 = vunpack.c.h.b16 %v4251
    %v4357 = vunpack.c.l.b16 %v4252
    %v4358 = vunpack.c.h.b16 %v4252
    %v4359 = vunpack.c.l.b16 %v4253
    %v4360 = vunpack.c.h.b16 %v4253
    %v4361 = vunpack.c.l.b16 %v4254
    %v4362 = vunpack.c.h.b16 %v4254
    %v4363 = vunpack.c.l.b16 %v4255
    %v4364 = vunpack.c.h.b16 %v4255
    %v4365 = vpack.c.b16 %v4303, %v4301
    %v4366 = vpack.c.b16 %v4304, %v4302
    %v4367 = vpack.c.b16 %v4307, %v4305
    %v4368 = vpack.c.b16 %v4308, %v4306
    %v4369 = vpack.c.b16 %v4311, %v4309
    %v4370 = vpack.c.b16 %v4312, %v4310
    %v4371 = vpack.c.b16 %v4315, %v4313
    %v4372 = vpack.c.b16 %v4316, %v4314
    %v4373 = vpack.c.b16 %v4319, %v4317
    %v4374 = vpack.c.b16 %v4320, %v4318
    %v4375 = vpack.c.b16 %v4323, %v4321
    %v4376 = vpack.c.b16 %v4324, %v4322
    %v4377 = vpack.c.b16 %v4327, %v4325
    %v4378 = vpack.c.b16 %v4328, %v4326
    %v4379 = vpack.c.b16 %v4331, %v4329
    %v4380 = vpack.c.b16 %v4332, %v4330
    %v4381 = vpack.c.b16 %v4335, %v4333
    %v4382 = vpack.c.b16 %v4336, %v4334
    %v4383 = vpack.c.b16 %v4339, %v4337
    %v4384 = vpack.c.b16 %v4340, %v4338
    %v4385 = vpack.c.b16 %v4343, %v4341
    %v4386 = vpack.c.b16 %v4344, %v4342
    %v4387 = vpack.c.b16 %v4347, %v4345
    %v4388 = vpack.c.b16 %v4348, %v4346
    %v4389 = vpack.c.b16 %v4351, %v4349
    %v4390 = vpack.c.b16 %v4352, %v4350
    %v4391 = vpack.c.b16 %v4355, %v4353
    %v4392 = vpack.c.b16 %v4356, %v4354
    %v4393 = vpack.c.b16 %v4359, %v4357
    %v4394 = vpack.c.b16 %v4360, %v4358
    %v4395 = vpack.c.b16 %v4363, %v4361
    %v4396 = vpack.c.b16 %v4364, %v4362
    %4429 = vmatprep.subr.bf16.mxu0 %v4366
    %4430 = vmatpush1.bf16.msra.mxu0 %v4365
    %4431 = vmatprep.subr.bf16.mxu0 %v4368
    %4432 = vmatpush1.bf16.msra.mxu0 %v4367
    %4433 = vmatprep.subr.bf16.mxu0 %v4370
    %4434 = vmatpush1.bf16.msra.mxu0 %v4369
    %4435 = vmatprep.subr.bf16.mxu0 %v4372
    %4436 = vmatpush1.bf16.msra.mxu0 %v4371
    %4437 = vmatprep.subr.bf16.mxu0 %v4374
    %4438 = vmatpush1.bf16.msra.mxu0 %v4373
    %4439 = vmatprep.subr.bf16.mxu0 %v4376
    %4440 = vmatpush1.bf16.msra.mxu0 %v4375
    %4441 = vmatprep.subr.bf16.mxu0 %v4378
    %4442 = vmatpush1.bf16.msra.mxu0 %v4377
    %4443 = vmatprep.subr.bf16.mxu0 %v4380
    %4444 = vmatpush1.bf16.msra.mxu0 %v4379
    %4445 = vmatprep.subr.bf16.mxu0 %v4382
    %4446 = vmatpush1.bf16.msra.mxu0 %v4381
    %4447 = vmatprep.subr.bf16.mxu0 %v4384
    %4448 = vmatpush1.bf16.msra.mxu0 %v4383
    %4449 = vmatprep.subr.bf16.mxu0 %v4386
    %4450 = vmatpush1.bf16.msra.mxu0 %v4385
    %4451 = vmatprep.subr.bf16.mxu0 %v4388
    %4452 = vmatpush1.bf16.msra.mxu0 %v4387
    %4453 = vmatprep.subr.bf16.mxu0 %v4390
    %4454 = vmatpush1.bf16.msra.mxu0 %v4389
    %4455 = vmatprep.subr.bf16.mxu0 %v4392
    %4456 = vmatpush1.bf16.msra.mxu0 %v4391
    %4457 = vmatprep.subr.bf16.mxu0 %v4394
    %4458 = vmatpush1.bf16.msra.mxu0 %v4393
    %4459 = vmatprep.subr.bf16.mxu0 %v4396
    %4460 = vmatpush1.bf16.msra.mxu0 %v4395
    %4461 = vmatprep.mubr.bf16.mxu0 %v4222
    %4462 = vmatmul.mubr.bf16.gmra.mrb[0].mxu0 %v4221
    %v4463 = vpop.f32.mrb[0].mxu0
    %v4464 = vadd.f32 %v4262, %v4463
    %v4465 = vpop.f32.mrb[0].mxu0
    %v4466 = vadd.f32 %v4266, %v4465
    %v4467 = vpop.f32.mrb[0].mxu0
    %v4468 = vadd.f32 %v4262, %v4467
    %v4469 = vpop.f32.mrb[0].mxu0
    %v4470 = vadd.f32 %v4266, %v4469
    %4471 = vdwg.mxu0
    %v4472 = vadd.f32 %v3068, %v4464
    %v4473 = vadd.f32 %v3069, %v4466
    %v4474 = vadd.f32 %v3070, %v4468
    %v4475 = vadd.f32 %v3071, %v4470
    %s4476 = scalar_lea.vmem [#allocation17], 2
    %v4477 = vld [vmem:[%s4476] sm:$0x3]
    %s4478 = scalar_lea.vmem [#allocation19], 2
    %v4479 = vld [vmem:[%s4478] sm:$0x3]
    %v4480 = vadd.f32 %v4472, %v4473
    %4481 = vadd.xlane.f32.xlu0 %v4480
    %v4482 = vpop.xlane.xlu0 %4481
    %v4483 = vadd.f32 %v4474, %v4475
    %4484 = vadd.xlane.f32.xlu0 %v4483
    %v4485 = vpop.xlane.xlu0 %4484
    %v4486 = vmul.f32 %v4482, %v1643
    %v4487 = vmul.f32 %v4485, %v1643
    %v4488 = vsub.f32 %v4472, %v4486
    %v4489 = vsub.f32 %v4473, %v4486
    %v4490 = vsub.f32 %v4474, %v4487
    %v4491 = vsub.f32 %v4475, %v4487
    %v4492 = vmul.f32 %v4488, %v4488
    %v4493 = vmul.f32 %v4489, %v4489
    %v4494 = vmul.f32 %v4490, %v4490
    %v4495 = vmul.f32 %v4491, %v4491
    %v4496 = vadd.f32 %v4492, %v4493
    %4497 = vadd.xlane.f32.xlu0 %v4496
    %v4498 = vpop.xlane.xlu0 %4497
    %v4499 = vadd.f32 %v4494, %v4495
    %4500 = vadd.xlane.f32.xlu0 %v4499
    %v4501 = vpop.xlane.xlu0 %4500
    %v4502 = vmul.f32 %v4498, %v1643
    %v4503 = vmul.f32 %v4501, %v1643
    %v4504 = vadd.f32 %v4502, 1e-05
    %v4505 = vadd.f32 %v4503, 1e-05
    %v4506 = vrsqrt.pop %v4504
    %v4507 = vrsqrt.pop %v4505
    %v4508 = vmul.f32 %v4488, %v4506
    %v4509 = vmul.f32 %v4489, %v4506
    %v4510 = vmul.f32 %v4490, %v4507
    %v4511 = vmul.f32 %v4491, %v4507
    %v4513 = vlaneseq
    %v4514 = vshrl.u32 %v4513, 7
    %v4515 = vsub.s32 0, %v4514
    %v4516 = vrot.slane %v4477, %v4515
    %v4517 = vlaneseq
    %v4518 = vshrl.u32 %v4517, 7
    %v4519 = vsub.s32 1, %v4518
    %v4520 = vrot.slane %v4477, %v4519
    %v4523 = vmul.f32 %v4508, %v4516
    %v4524 = vmul.f32 %v4509, %v4520
    %v4525 = vmul.f32 %v4510, %v4516
    %v4526 = vmul.f32 %v4511, %v4520
    %v4528 = vlaneseq
    %v4529 = vshrl.u32 %v4528, 7
    %v4530 = vsub.s32 0, %v4529
    %v4531 = vrot.slane %v4479, %v4530
    %v4532 = vlaneseq
    %v4533 = vshrl.u32 %v4532, 7
    %v4534 = vsub.s32 1, %v4533
    %v4535 = vrot.slane %v4479, %v4534
    %v4538 = vadd.f32 %v4523, %v4531
    %v4539 = vadd.f32 %v4524, %v4535
    %v4540 = vadd.f32 %v4525, %v4531
    %v4541 = vadd.f32 %v4526, %v4535
    %v4542 = vpack.c.bf16 %v4540, %v4538
    %v4543 = vpack.c.bf16 %v4541, %v4539
    %s4544 = scalar_lea.vmem [#allocation11], 640
    %v4545 = vld [vmem:[%s4544] sm:$0xff]
    %v4546 = vld [vmem:[%s4544 + $0x8] sm:$0xff]
    %v4547 = vld [vmem:[%s4544 + $0x10] sm:$0xf]
    %v4548 = vld [vmem:[%s4544 + $0x14] sm:$0xff]
    %v4549 = vld [vmem:[%s4544 + $0x1c] sm:$0xff]
    %v4550 = vld [vmem:[%s4544 + $0x24] sm:$0xf]
    %v4551 = vld [vmem:[%s4544 + $0x28] sm:$0xff]
    %v4552 = vld [vmem:[%s4544 + $0x30] sm:$0xff]
    %v4553 = vld [vmem:[%s4544 + $0x38] sm:$0xf]
    %v4554 = vld [vmem:[%s4544 + $0x3c] sm:$0xff]
    %v4555 = vld [vmem:[%s4544 + $0x44] sm:$0xff]
    %v4556 = vld [vmem:[%s4544 + $0x4c] sm:$0xf]
    %v4557 = vld [vmem:[%s4544 + $0x50] sm:$0xff]
    %v4558 = vld [vmem:[%s4544 + $0x58] sm:$0xff]
    %v4559 = vld [vmem:[%s4544 + $0x60] sm:$0xf]
    %v4560 = vld [vmem:[%s4544 + $0x64] sm:$0xff]
    %v4561 = vld [vmem:[%s4544 + $0x6c] sm:$0xff]
    %v4562 = vld [vmem:[%s4544 + $0x74] sm:$0xf]
    %v4563 = vld [vmem:[%s4544 + $0x78] sm:$0xff]
    %v4564 = vld [vmem:[%s4544 + $0x80] sm:$0xff]
    %v4565 = vld [vmem:[%s4544 + $0x88] sm:$0xf]
    %v4566 = vld [vmem:[%s4544 + $0x8c] sm:$0xff]
    %v4567 = vld [vmem:[%s4544 + $0x94] sm:$0xff]
    %v4568 = vld [vmem:[%s4544 + $0x9c] sm:$0xf]
    %v4569 = vld [vmem:[%s4544 + $0xa0] sm:$0xff]
    %v4570 = vld [vmem:[%s4544 + $0xa8] sm:$0xff]
    %v4571 = vld [vmem:[%s4544 + $0xb0] sm:$0xf]
    %v4572 = vld [vmem:[%s4544 + $0xb4] sm:$0xff]
    %v4573 = vld [vmem:[%s4544 + $0xbc] sm:$0xff]
    %v4574 = vld [vmem:[%s4544 + $0xc4] sm:$0xf]
    %v4575 = vld [vmem:[%s4544 + $0xc8] sm:$0xff]
    %v4576 = vld [vmem:[%s4544 + $0xd0] sm:$0xff]
    %v4577 = vld [vmem:[%s4544 + $0xd8] sm:$0xf]
    %v4578 = vld [vmem:[%s4544 + $0xdc] sm:$0xff]
    %v4579 = vld [vmem:[%s4544 + $0xe4] sm:$0xff]
    %v4580 = vld [vmem:[%s4544 + $0xec] sm:$0xf]
    %v4581 = vld [vmem:[%s4544 + $0xf0] sm:$0xff]
    %v4582 = vld [vmem:[%s4544 + $0xf8] sm:$0xff]
    %v4583 = vld [vmem:[%s4544 + $0x100] sm:$0xf]
    %v4584 = vld [vmem:[%s4544 + $0x104] sm:$0xff]
    %v4585 = vld [vmem:[%s4544 + $0x10c] sm:$0xff]
    %v4586 = vld [vmem:[%s4544 + $0x114] sm:$0xf]
    %v4587 = vld [vmem:[%s4544 + $0x118] sm:$0xff]
    %v4588 = vld [vmem:[%s4544 + $0x120] sm:$0xff]
    %v4589 = vld [vmem:[%s4544 + $0x128] sm:$0xf]
    %v4590 = vld [vmem:[%s4544 + $0x12c] sm:$0xff]
    %v4591 = vld [vmem:[%s4544 + $0x134] sm:$0xff]
    %v4592 = vld [vmem:[%s4544 + $0x13c] sm:$0xf]
    %v4593 = vld [vmem:[%s4544 + $0x140] sm:$0xff]
    %v4594 = vld [vmem:[%s4544 + $0x148] sm:$0xff]
    %v4595 = vld [vmem:[%s4544 + $0x150] sm:$0xf]
    %v4596 = vld [vmem:[%s4544 + $0x154] sm:$0xff]
    %v4597 = vld [vmem:[%s4544 + $0x15c] sm:$0xff]
    %v4598 = vld [vmem:[%s4544 + $0x164] sm:$0xf]
    %v4599 = vld [vmem:[%s4544 + $0x168] sm:$0xff]
    %v4600 = vld [vmem:[%s4544 + $0x170] sm:$0xff]
    %v4601 = vld [vmem:[%s4544 + $0x178] sm:$0xf]
    %v4602 = vld [vmem:[%s4544 + $0x17c] sm:$0xff]
    %v4603 = vld [vmem:[%s4544 + $0x184] sm:$0xff]
    %v4604 = vld [vmem:[%s4544 + $0x18c] sm:$0xf]
    %v4605 = vld [vmem:[%s4544 + $0x190] sm:$0xff]
    %v4606 = vld [vmem:[%s4544 + $0x198] sm:$0xff]
    %v4607 = vld [vmem:[%s4544 + $0x1a0] sm:$0xf]
    %v4608 = vld [vmem:[%s4544 + $0x1a4] sm:$0xff]
    %v4609 = vld [vmem:[%s4544 + $0x1ac] sm:$0xff]
    %v4610 = vld [vmem:[%s4544 + $0x1b4] sm:$0xf]
    %v4611 = vld [vmem:[%s4544 + $0x1b8] sm:$0xff]
    %v4612 = vld [vmem:[%s4544 + $0x1c0] sm:$0xff]
    %v4613 = vld [vmem:[%s4544 + $0x1c8] sm:$0xf]
    %v4614 = vld [vmem:[%s4544 + $0x1cc] sm:$0xff]
    %v4615 = vld [vmem:[%s4544 + $0x1d4] sm:$0xff]
    %v4616 = vld [vmem:[%s4544 + $0x1dc] sm:$0xf]
    %v4617 = vld [vmem:[%s4544 + $0x1e0] sm:$0xff]
    %v4618 = vld [vmem:[%s4544 + $0x1e8] sm:$0xff]
    %v4619 = vld [vmem:[%s4544 + $0x1f0] sm:$0xf]
    %v4620 = vld [vmem:[%s4544 + $0x1f4] sm:$0xff]
    %v4621 = vld [vmem:[%s4544 + $0x1fc] sm:$0xff]
    %v4622 = vld [vmem:[%s4544 + $0x204] sm:$0xf]
    %v4623 = vld [vmem:[%s4544 + $0x208] sm:$0xff]
    %v4624 = vld [vmem:[%s4544 + $0x210] sm:$0xff]
    %v4625 = vld [vmem:[%s4544 + $0x218] sm:$0xf]
    %v4626 = vld [vmem:[%s4544 + $0x21c] sm:$0xff]
    %v4627 = vld [vmem:[%s4544 + $0x224] sm:$0xff]
    %v4628 = vld [vmem:[%s4544 + $0x22c] sm:$0xf]
    %v4629 = vld [vmem:[%s4544 + $0x230] sm:$0xff]
    %v4630 = vld [vmem:[%s4544 + $0x238] sm:$0xff]
    %v4631 = vld [vmem:[%s4544 + $0x240] sm:$0xf]
    %v4632 = vld [vmem:[%s4544 + $0x244] sm:$0xff]
    %v4633 = vld [vmem:[%s4544 + $0x24c] sm:$0xff]
    %v4634 = vld [vmem:[%s4544 + $0x254] sm:$0xf]
    %v4635 = vld [vmem:[%s4544 + $0x258] sm:$0xff]
    %v4636 = vld [vmem:[%s4544 + $0x260] sm:$0xff]
    %v4637 = vld [vmem:[%s4544 + $0x268] sm:$0xf]
    %v4638 = vld [vmem:[%s4544 + $0x26c] sm:$0xff]
    %v4639 = vld [vmem:[%s4544 + $0x274] sm:$0xff]
    %v4640 = vld [vmem:[%s4544 + $0x27c] sm:$0xf]
    %s4641 = scalar_lea.vmem [#allocation13], 5
    %v4642 = vld [vmem:[%s4641] sm:$0x1f]
    %v4644 = vlaneseq
    %v4645 = vshrl.u32 %v4644, 7
    %v4646 = vsub.s32 0, %v4645
    %v4647 = vrot.slane %v4642, %v4646
    %v4648 = vlaneseq
    %v4649 = vshrl.u32 %v4648, 7
    %v4650 = vsub.s32 1, %v4649
    %v4651 = vrot.slane %v4642, %v4650
    %v4652 = vlaneseq
    %v4653 = vshrl.u32 %v4652, 7
    %v4654 = vsub.s32 2, %v4653
    %v4655 = vrot.slane %v4642, %v4654
    %v4656 = vlaneseq
    %v4657 = vshrl.u32 %v4656, 7
    %v4658 = vsub.s32 3, %v4657
    %v4659 = vrot.slane %v4642, %v4658
    %v4660 = vlaneseq
    %v4661 = vshrl.u32 %v4660, 7
    %v4662 = vsub.s32 4, %v4661
    %v4663 = vrot.slane %v4642, %v4662
    %v4765 = vunpack.c.l.b16 %v4545
    %v4766 = vunpack.c.h.b16 %v4545
    %v4767 = vunpack.c.l.b16 %v4546
    %v4768 = vunpack.c.h.b16 %v4546
    %v4769 = vunpack.c.l.b16 %v4547
    %v4770 = vunpack.c.l.b16 %v4548
    %v4771 = vunpack.c.h.b16 %v4548
    %v4772 = vunpack.c.l.b16 %v4549
    %v4773 = vunpack.c.h.b16 %v4549
    %v4774 = vunpack.c.l.b16 %v4550
    %v4775 = vunpack.c.l.b16 %v4551
    %v4776 = vunpack.c.h.b16 %v4551
    %v4777 = vunpack.c.l.b16 %v4552
    %v4778 = vunpack.c.h.b16 %v4552
    %v4779 = vunpack.c.l.b16 %v4553
    %v4780 = vunpack.c.l.b16 %v4554
    %v4781 = vunpack.c.h.b16 %v4554
    %v4782 = vunpack.c.l.b16 %v4555
    %v4783 = vunpack.c.h.b16 %v4555
    %v4784 = vunpack.c.l.b16 %v4556
    %v4785 = vunpack.c.l.b16 %v4557
    %v4786 = vunpack.c.h.b16 %v4557
    %v4787 = vunpack.c.l.b16 %v4558
    %v4788 = vunpack.c.h.b16 %v4558
    %v4789 = vunpack.c.l.b16 %v4559
    %v4790 = vunpack.c.l.b16 %v4560
    %v4791 = vunpack.c.h.b16 %v4560
    %v4792 = vunpack.c.l.b16 %v4561
    %v4793 = vunpack.c.h.b16 %v4561
    %v4794 = vunpack.c.l.b16 %v4562
    %v4795 = vunpack.c.l.b16 %v4563
    %v4796 = vunpack.c.h.b16 %v4563
    %v4797 = vunpack.c.l.b16 %v4564
    %v4798 = vunpack.c.h.b16 %v4564
    %v4799 = vunpack.c.l.b16 %v4565
    %v4800 = vunpack.c.l.b16 %v4566
    %v4801 = vunpack.c.h.b16 %v4566
    %v4802 = vunpack.c.l.b16 %v4567
    %v4803 = vunpack.c.h.b16 %v4567
    %v4804 = vunpack.c.l.b16 %v4568
    %v4805 = vunpack.c.l.b16 %v4569
    %v4806 = vunpack.c.h.b16 %v4569
    %v4807 = vunpack.c.l.b16 %v4570
    %v4808 = vunpack.c.h.b16 %v4570
    %v4809 = vunpack.c.l.b16 %v4571
    %v4810 = vunpack.c.l.b16 %v4572
    %v4811 = vunpack.c.h.b16 %v4572
    %v4812 = vunpack.c.l.b16 %v4573
    %v4813 = vunpack.c.h.b16 %v4573
    %v4814 = vunpack.c.l.b16 %v4574
    %v4815 = vunpack.c.l.b16 %v4575
    %v4816 = vunpack.c.h.b16 %v4575
    %v4817 = vunpack.c.l.b16 %v4576
    %v4818 = vunpack.c.h.b16 %v4576
    %v4819 = vunpack.c.l.b16 %v4577
    %v4820 = vunpack.c.l.b16 %v4578
    %v4821 = vunpack.c.h.b16 %v4578
    %v4822 = vunpack.c.l.b16 %v4579
    %v4823 = vunpack.c.h.b16 %v4579
    %v4824 = vunpack.c.l.b16 %v4580
    %v4825 = vunpack.c.l.b16 %v4581
    %v4826 = vunpack.c.h.b16 %v4581
    %v4827 = vunpack.c.l.b16 %v4582
    %v4828 = vunpack.c.h.b16 %v4582
    %v4829 = vunpack.c.l.b16 %v4583
    %v4830 = vunpack.c.l.b16 %v4584
    %v4831 = vunpack.c.h.b16 %v4584
    %v4832 = vunpack.c.l.b16 %v4585
    %v4833 = vunpack.c.h.b16 %v4585
    %v4834 = vunpack.c.l.b16 %v4586
    %v4835 = vunpack.c.l.b16 %v4587
    %v4836 = vunpack.c.h.b16 %v4587
    %v4837 = vunpack.c.l.b16 %v4588
    %v4838 = vunpack.c.h.b16 %v4588
    %v4839 = vunpack.c.l.b16 %v4589
    %v4840 = vunpack.c.l.b16 %v4590
    %v4841 = vunpack.c.h.b16 %v4590
    %v4842 = vunpack.c.l.b16 %v4591
    %v4843 = vunpack.c.h.b16 %v4591
    %v4844 = vunpack.c.l.b16 %v4592
    %v4845 = vunpack.c.l.b16 %v4593
    %v4846 = vunpack.c.h.b16 %v4593
    %v4847 = vunpack.c.l.b16 %v4594
    %v4848 = vunpack.c.h.b16 %v4594
    %v4849 = vunpack.c.l.b16 %v4595
    %v4850 = vunpack.c.l.b16 %v4596
    %v4851 = vunpack.c.h.b16 %v4596
    %v4852 = vunpack.c.l.b16 %v4597
    %v4853 = vunpack.c.h.b16 %v4597
    %v4854 = vunpack.c.l.b16 %v4598
    %v4855 = vunpack.c.l.b16 %v4599
    %v4856 = vunpack.c.h.b16 %v4599
    %v4857 = vunpack.c.l.b16 %v4600
    %v4858 = vunpack.c.h.b16 %v4600
    %v4859 = vunpack.c.l.b16 %v4601
    %v4860 = vunpack.c.l.b16 %v4602
    %v4861 = vunpack.c.h.b16 %v4602
    %v4862 = vunpack.c.l.b16 %v4603
    %v4863 = vunpack.c.h.b16 %v4603
    %v4864 = vunpack.c.l.b16 %v4604
    %v4865 = vunpack.c.l.b16 %v4605
    %v4866 = vunpack.c.h.b16 %v4605
    %v4867 = vunpack.c.l.b16 %v4606
    %v4868 = vunpack.c.h.b16 %v4606
    %v4869 = vunpack.c.l.b16 %v4607
    %v4870 = vunpack.c.l.b16 %v4608
    %v4871 = vunpack.c.h.b16 %v4608
    %v4872 = vunpack.c.l.b16 %v4609
    %v4873 = vunpack.c.h.b16 %v4609
    %v4874 = vunpack.c.l.b16 %v4610
    %v4875 = vunpack.c.l.b16 %v4611
    %v4876 = vunpack.c.h.b16 %v4611
    %v4877 = vunpack.c.l.b16 %v4612
    %v4878 = vunpack.c.h.b16 %v4612
    %v4879 = vunpack.c.l.b16 %v4613
    %v4880 = vunpack.c.l.b16 %v4614
    %v4881 = vunpack.c.h.b16 %v4614
    %v4882 = vunpack.c.l.b16 %v4615
    %v4883 = vunpack.c.h.b16 %v4615
    %v4884 = vunpack.c.l.b16 %v4616
    %v4885 = vunpack.c.l.b16 %v4617
    %v4886 = vunpack.c.h.b16 %v4617
    %v4887 = vunpack.c.l.b16 %v4618
    %v4888 = vunpack.c.h.b16 %v4618
    %v4889 = vunpack.c.l.b16 %v4619
    %v4890 = vunpack.c.l.b16 %v4620
    %v4891 = vunpack.c.h.b16 %v4620
    %v4892 = vunpack.c.l.b16 %v4621
    %v4893 = vunpack.c.h.b16 %v4621
    %v4894 = vunpack.c.l.b16 %v4622
    %v4895 = vunpack.c.l.b16 %v4623
    %v4896 = vunpack.c.h.b16 %v4623
    %v4897 = vunpack.c.l.b16 %v4624
    %v4898 = vunpack.c.h.b16 %v4624
    %v4899 = vunpack.c.l.b16 %v4625
    %v4900 = vunpack.c.l.b16 %v4626
    %v4901 = vunpack.c.h.b16 %v4626
    %v4902 = vunpack.c.l.b16 %v4627
    %v4903 = vunpack.c.h.b16 %v4627
    %v4904 = vunpack.c.l.b16 %v4628
    %v4905 = vunpack.c.l.b16 %v4629
    %v4906 = vunpack.c.h.b16 %v4629
    %v4907 = vunpack.c.l.b16 %v4630
    %v4908 = vunpack.c.h.b16 %v4630
    %v4909 = vunpack.c.l.b16 %v4631
    %v4910 = vunpack.c.l.b16 %v4632
    %v4911 = vunpack.c.h.b16 %v4632
    %v4912 = vunpack.c.l.b16 %v4633
    %v4913 = vunpack.c.h.b16 %v4633
    %v4914 = vunpack.c.l.b16 %v4634
    %v4915 = vunpack.c.l.b16 %v4635
    %v4916 = vunpack.c.h.b16 %v4635
    %v4917 = vunpack.c.l.b16 %v4636
    %v4918 = vunpack.c.h.b16 %v4636
    %v4919 = vunpack.c.l.b16 %v4637
    %v4920 = vunpack.c.l.b16 %v4638
    %v4921 = vunpack.c.h.b16 %v4638
    %v4922 = vunpack.c.l.b16 %v4639
    %v4923 = vunpack.c.h.b16 %v4639
    %v4924 = vunpack.c.l.b16 %v4640
    %v4925 = vpack.c.b16 %v4770, %v4765
    %v4926 = vpack.c.b16 %v4771, %v4766
    %v4927 = vpack.c.b16 %v4772, %v4767
    %v4928 = vpack.c.b16 %v4773, %v4768
    %v4929 = vpack.c.b16 %v4774, %v4769
    %v4930 = vpack.c.b16 %v4780, %v4775
    %v4931 = vpack.c.b16 %v4781, %v4776
    %v4932 = vpack.c.b16 %v4782, %v4777
    %v4933 = vpack.c.b16 %v4783, %v4778
    %v4934 = vpack.c.b16 %v4784, %v4779
    %v4935 = vpack.c.b16 %v4790, %v4785
    %v4936 = vpack.c.b16 %v4791, %v4786
    %v4937 = vpack.c.b16 %v4792, %v4787
    %v4938 = vpack.c.b16 %v4793, %v4788
    %v4939 = vpack.c.b16 %v4794, %v4789
    %v4940 = vpack.c.b16 %v4800, %v4795
    %v4941 = vpack.c.b16 %v4801, %v4796
    %v4942 = vpack.c.b16 %v4802, %v4797
    %v4943 = vpack.c.b16 %v4803, %v4798
    %v4944 = vpack.c.b16 %v4804, %v4799
    %v4945 = vpack.c.b16 %v4810, %v4805
    %v4946 = vpack.c.b16 %v4811, %v4806
    %v4947 = vpack.c.b16 %v4812, %v4807
    %v4948 = vpack.c.b16 %v4813, %v4808
    %v4949 = vpack.c.b16 %v4814, %v4809
    %v4950 = vpack.c.b16 %v4820, %v4815
    %v4951 = vpack.c.b16 %v4821, %v4816
    %v4952 = vpack.c.b16 %v4822, %v4817
    %v4953 = vpack.c.b16 %v4823, %v4818
    %v4954 = vpack.c.b16 %v4824, %v4819
    %v4955 = vpack.c.b16 %v4830, %v4825
    %v4956 = vpack.c.b16 %v4831, %v4826
    %v4957 = vpack.c.b16 %v4832, %v4827
    %v4958 = vpack.c.b16 %v4833, %v4828
    %v4959 = vpack.c.b16 %v4834, %v4829
    %v4960 = vpack.c.b16 %v4840, %v4835
    %v4961 = vpack.c.b16 %v4841, %v4836
    %v4962 = vpack.c.b16 %v4842, %v4837
    %v4963 = vpack.c.b16 %v4843, %v4838
    %v4964 = vpack.c.b16 %v4844, %v4839
    %v4965 = vpack.c.b16 %v4850, %v4845
    %v4966 = vpack.c.b16 %v4851, %v4846
    %v4967 = vpack.c.b16 %v4852, %v4847
    %v4968 = vpack.c.b16 %v4853, %v4848
    %v4969 = vpack.c.b16 %v4854, %v4849
    %v4970 = vpack.c.b16 %v4860, %v4855
    %v4971 = vpack.c.b16 %v4861, %v4856
    %v4972 = vpack.c.b16 %v4862, %v4857
    %v4973 = vpack.c.b16 %v4863, %v4858
    %v4974 = vpack.c.b16 %v4864, %v4859
    %v4975 = vpack.c.b16 %v4870, %v4865
    %v4976 = vpack.c.b16 %v4871, %v4866
    %v4977 = vpack.c.b16 %v4872, %v4867
    %v4978 = vpack.c.b16 %v4873, %v4868
    %v4979 = vpack.c.b16 %v4874, %v4869
    %v4980 = vpack.c.b16 %v4880, %v4875
    %v4981 = vpack.c.b16 %v4881, %v4876
    %v4982 = vpack.c.b16 %v4882, %v4877
    %v4983 = vpack.c.b16 %v4883, %v4878
    %v4984 = vpack.c.b16 %v4884, %v4879
    %v4985 = vpack.c.b16 %v4890, %v4885
    %v4986 = vpack.c.b16 %v4891, %v4886
    %v4987 = vpack.c.b16 %v4892, %v4887
    %v4988 = vpack.c.b16 %v4893, %v4888
    %v4989 = vpack.c.b16 %v4894, %v4889
    %v4990 = vpack.c.b16 %v4900, %v4895
    %v4991 = vpack.c.b16 %v4901, %v4896
    %v4992 = vpack.c.b16 %v4902, %v4897
    %v4993 = vpack.c.b16 %v4903, %v4898
    %v4994 = vpack.c.b16 %v4904, %v4899
    %v4995 = vpack.c.b16 %v4910, %v4905
    %v4996 = vpack.c.b16 %v4911, %v4906
    %v4997 = vpack.c.b16 %v4912, %v4907
    %v4998 = vpack.c.b16 %v4913, %v4908
    %v4999 = vpack.c.b16 %v4914, %v4909
    %v5000 = vpack.c.b16 %v4920, %v4915
    %v5001 = vpack.c.b16 %v4921, %v4916
    %v5002 = vpack.c.b16 %v4922, %v4917
    %v5003 = vpack.c.b16 %v4923, %v4918
    %v5004 = vpack.c.b16 %v4924, %v4919
    %5085 = vmatprep.subr.bf16.mxu0 %v4926
    %5086 = vmatpush1.bf16.msra.mxu0 %v4925
    %5087 = vmatprep.subr.bf16.mxu0 %v4931
    %5088 = vmatpush1.bf16.msra.mxu0 %v4930
    %5089 = vmatprep.subr.bf16.mxu0 %v4936
    %5090 = vmatpush1.bf16.msra.mxu0 %v4935
    %5091 = vmatprep.subr.bf16.mxu0 %v4941
    %5092 = vmatpush1.bf16.msra.mxu0 %v4940
    %5093 = vmatprep.subr.bf16.mxu0 %v4946
    %5094 = vmatpush1.bf16.msra.mxu0 %v4945
    %5095 = vmatprep.subr.bf16.mxu0 %v4951
    %5096 = vmatpush1.bf16.msra.mxu0 %v4950
    %5097 = vmatprep.subr.bf16.mxu0 %v4956
    %5098 = vmatpush1.bf16.msra.mxu0 %v4955
    %5099 = vmatprep.subr.bf16.mxu0 %v4961
    %5100 = vmatpush1.bf16.msra.mxu0 %v4960
    %5101 = vmatprep.subr.bf16.mxu0 %v4966
    %5102 = vmatpush1.bf16.msra.mxu0 %v4965
    %5103 = vmatprep.subr.bf16.mxu0 %v4971
    %5104 = vmatpush1.bf16.msra.mxu0 %v4970
    %5105 = vmatprep.subr.bf16.mxu0 %v4976
    %5106 = vmatpush1.bf16.msra.mxu0 %v4975
    %5107 = vmatprep.subr.bf16.mxu0 %v4981
    %5108 = vmatpush1.bf16.msra.mxu0 %v4980
    %5109 = vmatprep.subr.bf16.mxu0 %v4986
    %5110 = vmatpush1.bf16.msra.mxu0 %v4985
    %5111 = vmatprep.subr.bf16.mxu0 %v4991
    %5112 = vmatpush1.bf16.msra.mxu0 %v4990
    %5113 = vmatprep.subr.bf16.mxu0 %v4996
    %5114 = vmatpush1.bf16.msra.mxu0 %v4995
    %5115 = vmatprep.subr.bf16.mxu0 %v5001
    %5116 = vmatpush1.bf16.msra.mxu0 %v5000
    %5117 = vmatprep.mubr.bf16.mxu0 %v4543
    %5118 = vmatmul.mubr.bf16.gmra.mrb[0].mxu0 %v4542
    %v5119 = vpop.f32.mrb[0].mxu0
    %v5120 = vadd.f32 %v4647, %v5119
    %v5121 = vpop.f32.mrb[0].mxu0
    %v5122 = vadd.f32 %v4651, %v5121
    %v5123 = vpop.f32.mrb[0].mxu0
    %v5124 = vadd.f32 %v4647, %v5123
    %v5125 = vpop.f32.mrb[0].mxu0
    %v5126 = vadd.f32 %v4651, %v5125
    %5127 = vdwg.mxu0
    %5128 = vmatprep.subr.bf16.mxu0 %v4928
    %5129 = vmatpush1.bf16.msra.mxu0 %v4927
    %5130 = vmatprep.subr.bf16.mxu0 %v4933
    %5131 = vmatpush1.bf16.msra.mxu0 %v4932
    %5132 = vmatprep.subr.bf16.mxu0 %v4938
    %5133 = vmatpush1.bf16.msra.mxu0 %v4937
    %5134 = vmatprep.subr.bf16.mxu0 %v4943
    %5135 = vmatpush1.bf16.msra.mxu0 %v4942
    %5136 = vmatprep.subr.bf16.mxu0 %v4948
    %5137 = vmatpush1.bf16.msra.mxu0 %v4947
    %5138 = vmatprep.subr.bf16.mxu0 %v4953
    %5139 = vmatpush1.bf16.msra.mxu0 %v4952
    %5140 = vmatprep.subr.bf16.mxu0 %v4958
    %5141 = vmatpush1.bf16.msra.mxu0 %v4957
    %5142 = vmatprep.subr.bf16.mxu0 %v4963
    %5143 = vmatpush1.bf16.msra.mxu0 %v4962
    %5144 = vmatprep.subr.bf16.mxu0 %v4968
    %5145 = vmatpush1.bf16.msra.mxu0 %v4967
    %5146 = vmatprep.subr.bf16.mxu0 %v4973
    %5147 = vmatpush1.bf16.msra.mxu0 %v4972
    %5148 = vmatprep.subr.bf16.mxu0 %v4978
    %5149 = vmatpush1.bf16.msra.mxu0 %v4977
    %5150 = vmatprep.subr.bf16.mxu0 %v4983
    %5151 = vmatpush1.bf16.msra.mxu0 %v4982
    %5152 = vmatprep.subr.bf16.mxu0 %v4988
    %5153 = vmatpush1.bf16.msra.mxu0 %v4987
    %5154 = vmatprep.subr.bf16.mxu0 %v4993
    %5155 = vmatpush1.bf16.msra.mxu0 %v4992
    %5156 = vmatprep.subr.bf16.mxu0 %v4998
    %5157 = vmatpush1.bf16.msra.mxu0 %v4997
    %5158 = vmatprep.subr.bf16.mxu0 %v5003
    %5159 = vmatpush1.bf16.msra.mxu0 %v5002
    %5160 = vmatprep.mubr.bf16.mxu0 %v4543
    %5161 = vmatmul.mubr.bf16.gmra.mrb[0].mxu0 %v4542
    %v5162 = vpop.f32.mrb[0].mxu0
    %v5163 = vadd.f32 %v4655, %v5162
    %v5164 = vpop.f32.mrb[0].mxu0
    %v5165 = vadd.f32 %v4659, %v5164
    %v5166 = vpop.f32.mrb[0].mxu0
    %v5167 = vadd.f32 %v4655, %v5166
    %v5168 = vpop.f32.mrb[0].mxu0
    %v5169 = vadd.f32 %v4659, %v5168
    %5170 = vdwg.mxu0
    %5171 = vmatprep.subr.bf16.mxu0 0
    %5172 = vmatpush1.bf16.msra.mxu0 %v4929
    %5173 = vmatprep.subr.bf16.mxu0 0
    %5174 = vmatpush1.bf16.msra.mxu0 %v4934
    %5175 = vmatprep.subr.bf16.mxu0 0
    %5176 = vmatpush1.bf16.msra.mxu0 %v4939
    %5177 = vmatprep.subr.bf16.mxu0 0
    %5178 = vmatpush1.bf16.msra.mxu0 %v4944
    %5179 = vmatprep.subr.bf16.mxu0 0
    %5180 = vmatpush1.bf16.msra.mxu0 %v4949
    %5181 = vmatprep.subr.bf16.mxu0 0
    %5182 = vmatpush1.bf16.msra.mxu0 %v4954
    %5183 = vmatprep.subr.bf16.mxu0 0
    %5184 = vmatpush1.bf16.msra.mxu0 %v4959
    %5185 = vmatprep.subr.bf16.mxu0 0
    %5186 = vmatpush1.bf16.msra.mxu0 %v4964
    %5187 = vmatprep.subr.bf16.mxu0 0
    %5188 = vmatpush1.bf16.msra.mxu0 %v4969
    %5189 = vmatprep.subr.bf16.mxu0 0
    %5190 = vmatpush1.bf16.msra.mxu0 %v4974
    %5191 = vmatprep.subr.bf16.mxu0 0
    %5192 = vmatpush1.bf16.msra.mxu0 %v4979
    %5193 = vmatprep.subr.bf16.mxu0 0
    %5194 = vmatpush1.bf16.msra.mxu0 %v4984
    %5195 = vmatprep.subr.bf16.mxu0 0
    %5196 = vmatpush1.bf16.msra.mxu0 %v4989
    %5197 = vmatprep.subr.bf16.mxu0 0
    %5198 = vmatpush1.bf16.msra.mxu0 %v4994
    %5199 = vmatprep.subr.bf16.mxu0 0
    %5200 = vmatpush1.bf16.msra.mxu0 %v4999
    %5201 = vmatprep.subr.bf16.mxu0 0
    %5202 = vmatpush1.bf16.msra.mxu0 %v5004
    %5203 = vmatprep.mubr.bf16.mxu0 %v4543
    %5204 = vmatmul.mubr.bf16.gmra.mrb[0].mxu0 %v4542
    %v5205 = vpop.f32.mrb[0].mxu0
    %v5206 = vadd.f32 %v4663, %v5205
    %v5207 = vpop.f32.mrb[0].mxu0
    %v5208 = vpop.f32.mrb[0].mxu0
    %v5209 = vadd.f32 %v4663, %v5208
    %v5210 = vpop.f32.mrb[0].mxu0
    %5211 = vdwg.mxu0
    %v5212 = vmax.f32 %v5120, 0.0
    %v5213 = vmax.f32 %v5122, 0.0
    %v5214 = vmax.f32 %v5163, 0.0
    %v5215 = vmax.f32 %v5165, 0.0
    %v5216 = vmax.f32 %v5206, 0.0
    %v5217 = vmax.f32 %v5124, 0.0
    %v5218 = vmax.f32 %v5126, 0.0
    %v5219 = vmax.f32 %v5167, 0.0
    %v5220 = vmax.f32 %v5169, 0.0
    %v5221 = vmax.f32 %v5209, 0.0
    %v5222 = vpack.c.bf16 %v5217, %v5212
    %v5223 = vpack.c.bf16 %v5218, %v5213
    %v5224 = vpack.c.bf16 %v5219, %v5214
    %v5225 = vpack.c.bf16 %v5220, %v5215
    %v5226 = vpack.c.bf16 %v5221, %v5216
    %s5227 = scalar_lea.vmem [#allocation14], 640
    %v5228 = vld [vmem:[%s5227] sm:$0xff]
    %v5229 = vld [vmem:[%s5227 + $0x8] sm:$0xff]
    %v5230 = vld [vmem:[%s5227 + $0x10] sm:$0xff]
    %v5231 = vld [vmem:[%s5227 + $0x18] sm:$0xff]
    %v5232 = vld [vmem:[%s5227 + $0x20] sm:$0xff]
    %v5233 = vld [vmem:[%s5227 + $0x28] sm:$0xff]
    %v5234 = vld [vmem:[%s5227 + $0x30] sm:$0xff]
    %v5235 = vld [vmem:[%s5227 + $0x38] sm:$0xff]
    %v5236 = vld [vmem:[%s5227 + $0x40] sm:$0xff]
    %v5237 = vld [vmem:[%s5227 + $0x48] sm:$0xff]
    %v5238 = vld [vmem:[%s5227 + $0x50] sm:$0xff]
    %v5239 = vld [vmem:[%s5227 + $0x58] sm:$0xff]
    %v5240 = vld [vmem:[%s5227 + $0x60] sm:$0xff]
    %v5241 = vld [vmem:[%s5227 + $0x68] sm:$0xff]
    %v5242 = vld [vmem:[%s5227 + $0x70] sm:$0xff]
    %v5243 = vld [vmem:[%s5227 + $0x78] sm:$0xff]
    %v5244 = vld [vmem:[%s5227 + $0x80] sm:$0xff]
    %v5245 = vld [vmem:[%s5227 + $0x88] sm:$0xff]
    %v5246 = vld [vmem:[%s5227 + $0x90] sm:$0xff]
    %v5247 = vld [vmem:[%s5227 + $0x98] sm:$0xff]
    %v5248 = vld [vmem:[%s5227 + $0xa0] sm:$0xff]
    %v5249 = vld [vmem:[%s5227 + $0xa8] sm:$0xff]
    %v5250 = vld [vmem:[%s5227 + $0xb0] sm:$0xff]
    %v5251 = vld [vmem:[%s5227 + $0xb8] sm:$0xff]
    %v5252 = vld [vmem:[%s5227 + $0xc0] sm:$0xff]
    %v5253 = vld [vmem:[%s5227 + $0xc8] sm:$0xff]
    %v5254 = vld [vmem:[%s5227 + $0xd0] sm:$0xff]
    %v5255 = vld [vmem:[%s5227 + $0xd8] sm:$0xff]
    %v5256 = vld [vmem:[%s5227 + $0xe0] sm:$0xff]
    %v5257 = vld [vmem:[%s5227 + $0xe8] sm:$0xff]
    %v5258 = vld [vmem:[%s5227 + $0xf0] sm:$0xff]
    %v5259 = vld [vmem:[%s5227 + $0xf8] sm:$0xff]
    %v5260 = vld [vmem:[%s5227 + $0x100] sm:$0xff]
    %v5261 = vld [vmem:[%s5227 + $0x108] sm:$0xff]
    %v5262 = vld [vmem:[%s5227 + $0x110] sm:$0xff]
    %v5263 = vld [vmem:[%s5227 + $0x118] sm:$0xff]
    %v5264 = vld [vmem:[%s5227 + $0x120] sm:$0xff]
    %v5265 = vld [vmem:[%s5227 + $0x128] sm:$0xff]
    %v5266 = vld [vmem:[%s5227 + $0x130] sm:$0xff]
    %v5267 = vld [vmem:[%s5227 + $0x138] sm:$0xff]
    %v5268 = vld [vmem:[%s5227 + $0x140] sm:$0xff]
    %v5269 = vld [vmem:[%s5227 + $0x148] sm:$0xff]
    %v5270 = vld [vmem:[%s5227 + $0x150] sm:$0xff]
    %v5271 = vld [vmem:[%s5227 + $0x158] sm:$0xff]
    %v5272 = vld [vmem:[%s5227 + $0x160] sm:$0xff]
    %v5273 = vld [vmem:[%s5227 + $0x168] sm:$0xff]
    %v5274 = vld [vmem:[%s5227 + $0x170] sm:$0xff]
    %v5275 = vld [vmem:[%s5227 + $0x178] sm:$0xff]
    %v5276 = vld [vmem:[%s5227 + $0x180] sm:$0xff]
    %v5277 = vld [vmem:[%s5227 + $0x188] sm:$0xff]
    %v5278 = vld [vmem:[%s5227 + $0x190] sm:$0xff]
    %v5279 = vld [vmem:[%s5227 + $0x198] sm:$0xff]
    %v5280 = vld [vmem:[%s5227 + $0x1a0] sm:$0xff]
    %v5281 = vld [vmem:[%s5227 + $0x1a8] sm:$0xff]
    %v5282 = vld [vmem:[%s5227 + $0x1b0] sm:$0xff]
    %v5283 = vld [vmem:[%s5227 + $0x1b8] sm:$0xff]
    %v5284 = vld [vmem:[%s5227 + $0x1c0] sm:$0xff]
    %v5285 = vld [vmem:[%s5227 + $0x1c8] sm:$0xff]
    %v5286 = vld [vmem:[%s5227 + $0x1d0] sm:$0xff]
    %v5287 = vld [vmem:[%s5227 + $0x1d8] sm:$0xff]
    %v5288 = vld [vmem:[%s5227 + $0x1e0] sm:$0xff]
    %v5289 = vld [vmem:[%s5227 + $0x1e8] sm:$0xff]
    %v5290 = vld [vmem:[%s5227 + $0x1f0] sm:$0xff]
    %v5291 = vld [vmem:[%s5227 + $0x1f8] sm:$0xff]
    %v5292 = vld [vmem:[%s5227 + $0x200] sm:$0xff]
    %v5293 = vld [vmem:[%s5227 + $0x208] sm:$0xff]
    %v5294 = vld [vmem:[%s5227 + $0x210] sm:$0xff]
    %v5295 = vld [vmem:[%s5227 + $0x218] sm:$0xff]
    %v5296 = vld [vmem:[%s5227 + $0x220] sm:$0xff]
    %v5297 = vld [vmem:[%s5227 + $0x228] sm:$0xff]
    %v5298 = vld [vmem:[%s5227 + $0x230] sm:$0xff]
    %v5299 = vld [vmem:[%s5227 + $0x238] sm:$0xff]
    %v5300 = vld [vmem:[%s5227 + $0x240] sm:$0xff]
    %v5301 = vld [vmem:[%s5227 + $0x248] sm:$0xff]
    %v5302 = vld [vmem:[%s5227 + $0x250] sm:$0xff]
    %v5303 = vld [vmem:[%s5227 + $0x258] sm:$0xff]
    %v5304 = vld [vmem:[%s5227 + $0x260] sm:$0xff]
    %v5305 = vld [vmem:[%s5227 + $0x268] sm:$0xff]
    %v5306 = vld [vmem:[%s5227 + $0x270] sm:$0xff]
    %v5307 = vld [vmem:[%s5227 + $0x278] sm:$0xff]
    %s5308 = scalar_lea.vmem [#allocation16], 2
    %v5309 = vld [vmem:[%s5308] sm:$0x3]
    %v5311 = vlaneseq
    %v5312 = vshrl.u32 %v5311, 7
    %v5313 = vsub.s32 0, %v5312
    %v5314 = vrot.slane %v5309, %v5313
    %v5315 = vlaneseq
    %v5316 = vshrl.u32 %v5315, 7
    %v5317 = vsub.s32 1, %v5316
    %v5318 = vrot.slane %v5309, %v5317
    %v5401 = vunpack.c.l.b16 %v5228
    %v5402 = vunpack.c.h.b16 %v5228
    %v5403 = vunpack.c.l.b16 %v5229
    %v5404 = vunpack.c.h.b16 %v5229
    %v5405 = vunpack.c.l.b16 %v5230
    %v5406 = vunpack.c.h.b16 %v5230
    %v5407 = vunpack.c.l.b16 %v5231
    %v5408 = vunpack.c.h.b16 %v5231
    %v5409 = vunpack.c.l.b16 %v5232
    %v5410 = vunpack.c.h.b16 %v5232
    %v5411 = vunpack.c.l.b16 %v5233
    %v5412 = vunpack.c.h.b16 %v5233
    %v5413 = vunpack.c.l.b16 %v5234
    %v5414 = vunpack.c.h.b16 %v5234
    %v5415 = vunpack.c.l.b16 %v5235
    %v5416 = vunpack.c.h.b16 %v5235
    %v5417 = vunpack.c.l.b16 %v5236
    %v5418 = vunpack.c.h.b16 %v5236
    %v5419 = vunpack.c.l.b16 %v5237
    %v5420 = vunpack.c.h.b16 %v5237
    %v5421 = vunpack.c.l.b16 %v5238
    %v5422 = vunpack.c.h.b16 %v5238
    %v5423 = vunpack.c.l.b16 %v5239
    %v5424 = vunpack.c.h.b16 %v5239
    %v5425 = vunpack.c.l.b16 %v5240
    %v5426 = vunpack.c.h.b16 %v5240
    %v5427 = vunpack.c.l.b16 %v5241
    %v5428 = vunpack.c.h.b16 %v5241
    %v5429 = vunpack.c.l.b16 %v5242
    %v5430 = vunpack.c.h.b16 %v5242
    %v5431 = vunpack.c.l.b16 %v5243
    %v5432 = vunpack.c.h.b16 %v5243
    %v5433 = vunpack.c.l.b16 %v5244
    %v5434 = vunpack.c.h.b16 %v5244
    %v5435 = vunpack.c.l.b16 %v5245
    %v5436 = vunpack.c.h.b16 %v5245
    %v5437 = vunpack.c.l.b16 %v5246
    %v5438 = vunpack.c.h.b16 %v5246
    %v5439 = vunpack.c.l.b16 %v5247
    %v5440 = vunpack.c.h.b16 %v5247
    %v5441 = vunpack.c.l.b16 %v5248
    %v5442 = vunpack.c.h.b16 %v5248
    %v5443 = vunpack.c.l.b16 %v5249
    %v5444 = vunpack.c.h.b16 %v5249
    %v5445 = vunpack.c.l.b16 %v5250
    %v5446 = vunpack.c.h.b16 %v5250
    %v5447 = vunpack.c.l.b16 %v5251
    %v5448 = vunpack.c.h.b16 %v5251
    %v5449 = vunpack.c.l.b16 %v5252
    %v5450 = vunpack.c.h.b16 %v5252
    %v5451 = vunpack.c.l.b16 %v5253
    %v5452 = vunpack.c.h.b16 %v5253
    %v5453 = vunpack.c.l.b16 %v5254
    %v5454 = vunpack.c.h.b16 %v5254
    %v5455 = vunpack.c.l.b16 %v5255
    %v5456 = vunpack.c.h.b16 %v5255
    %v5457 = vunpack.c.l.b16 %v5256
    %v5458 = vunpack.c.h.b16 %v5256
    %v5459 = vunpack.c.l.b16 %v5257
    %v5460 = vunpack.c.h.b16 %v5257
    %v5461 = vunpack.c.l.b16 %v5258
    %v5462 = vunpack.c.h.b16 %v5258
    %v5463 = vunpack.c.l.b16 %v5259
    %v5464 = vunpack.c.h.b16 %v5259
    %v5465 = vunpack.c.l.b16 %v5260
    %v5466 = vunpack.c.h.b16 %v5260
    %v5467 = vunpack.c.l.b16 %v5261
    %v5468 = vunpack.c.h.b16 %v5261
    %v5469 = vunpack.c.l.b16 %v5262
    %v5470 = vunpack.c.h.b16 %v5262
    %v5471 = vunpack.c.l.b16 %v5263
    %v5472 = vunpack.c.h.b16 %v5263
    %v5473 = vunpack.c.l.b16 %v5264
    %v5474 = vunpack.c.h.b16 %v5264
    %v5475 = vunpack.c.l.b16 %v5265
    %v5476 = vunpack.c.h.b16 %v5265
    %v5477 = vunpack.c.l.b16 %v5266
    %v5478 = vunpack.c.h.b16 %v5266
    %v5479 = vunpack.c.l.b16 %v5267
    %v5480 = vunpack.c.h.b16 %v5267
    %v5481 = vunpack.c.l.b16 %v5268
    %v5482 = vunpack.c.h.b16 %v5268
    %v5483 = vunpack.c.l.b16 %v5269
    %v5484 = vunpack.c.h.b16 %v5269
    %v5485 = vunpack.c.l.b16 %v5270
    %v5486 = vunpack.c.h.b16 %v5270
    %v5487 = vunpack.c.l.b16 %v5271
    %v5488 = vunpack.c.h.b16 %v5271
    %v5489 = vunpack.c.l.b16 %v5272
    %v5490 = vunpack.c.h.b16 %v5272
    %v5491 = vunpack.c.l.b16 %v5273
    %v5492 = vunpack.c.h.b16 %v5273
    %v5493 = vunpack.c.l.b16 %v5274
    %v5494 = vunpack.c.h.b16 %v5274
    %v5495 = vunpack.c.l.b16 %v5275
    %v5496 = vunpack.c.h.b16 %v5275
    %v5497 = vunpack.c.l.b16 %v5276
    %v5498 = vunpack.c.h.b16 %v5276
    %v5499 = vunpack.c.l.b16 %v5277
    %v5500 = vunpack.c.h.b16 %v5277
    %v5501 = vunpack.c.l.b16 %v5278
    %v5502 = vunpack.c.h.b16 %v5278
    %v5503 = vunpack.c.l.b16 %v5279
    %v5504 = vunpack.c.h.b16 %v5279
    %v5505 = vunpack.c.l.b16 %v5280
    %v5506 = vunpack.c.h.b16 %v5280
    %v5507 = vunpack.c.l.b16 %v5281
    %v5508 = vunpack.c.h.b16 %v5281
    %v5509 = vunpack.c.l.b16 %v5282
    %v5510 = vunpack.c.h.b16 %v5282
    %v5511 = vunpack.c.l.b16 %v5283
    %v5512 = vunpack.c.h.b16 %v5283
    %v5513 = vunpack.c.l.b16 %v5284
    %v5514 = vunpack.c.h.b16 %v5284
    %v5515 = vunpack.c.l.b16 %v5285
    %v5516 = vunpack.c.h.b16 %v5285
    %v5517 = vunpack.c.l.b16 %v5286
    %v5518 = vunpack.c.h.b16 %v5286
    %v5519 = vunpack.c.l.b16 %v5287
    %v5520 = vunpack.c.h.b16 %v5287
    %v5521 = vunpack.c.l.b16 %v5288
    %v5522 = vunpack.c.h.b16 %v5288
    %v5523 = vunpack.c.l.b16 %v5289
    %v5524 = vunpack.c.h.b16 %v5289
    %v5525 = vunpack.c.l.b16 %v5290
    %v5526 = vunpack.c.h.b16 %v5290
    %v5527 = vunpack.c.l.b16 %v5291
    %v5528 = vunpack.c.h.b16 %v5291
    %v5529 = vunpack.c.l.b16 %v5292
    %v5530 = vunpack.c.h.b16 %v5292
    %v5531 = vunpack.c.l.b16 %v5293
    %v5532 = vunpack.c.h.b16 %v5293
    %v5533 = vunpack.c.l.b16 %v5294
    %v5534 = vunpack.c.h.b16 %v5294
    %v5535 = vunpack.c.l.b16 %v5295
    %v5536 = vunpack.c.h.b16 %v5295
    %v5537 = vunpack.c.l.b16 %v5296
    %v5538 = vunpack.c.h.b16 %v5296
    %v5539 = vunpack.c.l.b16 %v5297
    %v5540 = vunpack.c.h.b16 %v5297
    %v5541 = vunpack.c.l.b16 %v5298
    %v5542 = vunpack.c.h.b16 %v5298
    %v5543 = vunpack.c.l.b16 %v5299
    %v5544 = vunpack.c.h.b16 %v5299
    %v5545 = vunpack.c.l.b16 %v5300
    %v5546 = vunpack.c.h.b16 %v5300
    %v5547 = vunpack.c.l.b16 %v5301
    %v5548 = vunpack.c.h.b16 %v5301
    %v5549 = vunpack.c.l.b16 %v5302
    %v5550 = vunpack.c.h.b16 %v5302
    %v5551 = vunpack.c.l.b16 %v5303
    %v5552 = vunpack.c.h.b16 %v5303
    %v5553 = vunpack.c.l.b16 %v5304
    %v5554 = vunpack.c.h.b16 %v5304
    %v5555 = vunpack.c.l.b16 %v5305
    %v5556 = vunpack.c.h.b16 %v5305
    %v5557 = vunpack.c.l.b16 %v5306
    %v5558 = vunpack.c.h.b16 %v5306
    %v5559 = vunpack.c.l.b16 %v5307
    %v5560 = vunpack.c.h.b16 %v5307
    %v5561 = vpack.c.b16 %v5403, %v5401
    %v5562 = vpack.c.b16 %v5404, %v5402
    %v5563 = vpack.c.b16 %v5407, %v5405
    %v5564 = vpack.c.b16 %v5408, %v5406
    %v5565 = vpack.c.b16 %v5411, %v5409
    %v5566 = vpack.c.b16 %v5412, %v5410
    %v5567 = vpack.c.b16 %v5415, %v5413
    %v5568 = vpack.c.b16 %v5416, %v5414
    %v5569 = vpack.c.b16 %v5419, %v5417
    %v5570 = vpack.c.b16 %v5420, %v5418
    %v5571 = vpack.c.b16 %v5423, %v5421
    %v5572 = vpack.c.b16 %v5424, %v5422
    %v5573 = vpack.c.b16 %v5427, %v5425
    %v5574 = vpack.c.b16 %v5428, %v5426
    %v5575 = vpack.c.b16 %v5431, %v5429
    %v5576 = vpack.c.b16 %v5432, %v5430
    %v5577 = vpack.c.b16 %v5435, %v5433
    %v5578 = vpack.c.b16 %v5436, %v5434
    %v5579 = vpack.c.b16 %v5439, %v5437
    %v5580 = vpack.c.b16 %v5440, %v5438
    %v5581 = vpack.c.b16 %v5443, %v5441
    %v5582 = vpack.c.b16 %v5444, %v5442
    %v5583 = vpack.c.b16 %v5447, %v5445
    %v5584 = vpack.c.b16 %v5448, %v5446
    %v5585 = vpack.c.b16 %v5451, %v5449
    %v5586 = vpack.c.b16 %v5452, %v5450
    %v5587 = vpack.c.b16 %v5455, %v5453
    %v5588 = vpack.c.b16 %v5456, %v5454
    %v5589 = vpack.c.b16 %v5459, %v5457
    %v5590 = vpack.c.b16 %v5460, %v5458
    %v5591 = vpack.c.b16 %v5463, %v5461
    %v5592 = vpack.c.b16 %v5464, %v5462
    %v5593 = vpack.c.b16 %v5467, %v5465
    %v5594 = vpack.c.b16 %v5468, %v5466
    %v5595 = vpack.c.b16 %v5471, %v5469
    %v5596 = vpack.c.b16 %v5472, %v5470
    %v5597 = vpack.c.b16 %v5475, %v5473
    %v5598 = vpack.c.b16 %v5476, %v5474
    %v5599 = vpack.c.b16 %v5479, %v5477
    %v5600 = vpack.c.b16 %v5480, %v5478
    %v5601 = vpack.c.b16 %v5483, %v5481
    %v5602 = vpack.c.b16 %v5484, %v5482
    %v5603 = vpack.c.b16 %v5487, %v5485
    %v5604 = vpack.c.b16 %v5488, %v5486
    %v5605 = vpack.c.b16 %v5491, %v5489
    %v5606 = vpack.c.b16 %v5492, %v5490
    %v5607 = vpack.c.b16 %v5495, %v5493
    %v5608 = vpack.c.b16 %v5496, %v5494
    %v5609 = vpack.c.b16 %v5499, %v5497
    %v5610 = vpack.c.b16 %v5500, %v5498
    %v5611 = vpack.c.b16 %v5503, %v5501
    %v5612 = vpack.c.b16 %v5504, %v5502
    %v5613 = vpack.c.b16 %v5507, %v5505
    %v5614 = vpack.c.b16 %v5508, %v5506
    %v5615 = vpack.c.b16 %v5511, %v5509
    %v5616 = vpack.c.b16 %v5512, %v5510
    %v5617 = vpack.c.b16 %v5515, %v5513
    %v5618 = vpack.c.b16 %v5516, %v5514
    %v5619 = vpack.c.b16 %v5519, %v5517
    %v5620 = vpack.c.b16 %v5520, %v5518
    %v5621 = vpack.c.b16 %v5523, %v5521
    %v5622 = vpack.c.b16 %v5524, %v5522
    %v5623 = vpack.c.b16 %v5527, %v5525
    %v5624 = vpack.c.b16 %v5528, %v5526
    %v5625 = vpack.c.b16 %v5531, %v5529
    %v5626 = vpack.c.b16 %v5532, %v5530
    %v5627 = vpack.c.b16 %v5535, %v5533
    %v5628 = vpack.c.b16 %v5536, %v5534
    %v5629 = vpack.c.b16 %v5539, %v5537
    %v5630 = vpack.c.b16 %v5540, %v5538
    %v5631 = vpack.c.b16 %v5543, %v5541
    %v5632 = vpack.c.b16 %v5544, %v5542
    %v5633 = vpack.c.b16 %v5547, %v5545
    %v5634 = vpack.c.b16 %v5548, %v5546
    %v5635 = vpack.c.b16 %v5551, %v5549
    %v5636 = vpack.c.b16 %v5552, %v5550
    %v5637 = vpack.c.b16 %v5555, %v5553
    %v5638 = vpack.c.b16 %v5556, %v5554
    %v5639 = vpack.c.b16 %v5559, %v5557
    %v5640 = vpack.c.b16 %v5560, %v5558
    %5721 = vmatprep.subr.bf16.mxu0 %v5562
    %5722 = vmatpush1.bf16.msra.mxu0 %v5561
    %5723 = vmatprep.subr.bf16.mxu0 %v5564
    %5724 = vmatpush1.bf16.msra.mxu0 %v5563
    %5725 = vmatprep.subr.bf16.mxu0 %v5566
    %5726 = vmatpush1.bf16.msra.mxu0 %v5565
    %5727 = vmatprep.subr.bf16.mxu0 %v5568
    %5728 = vmatpush1.bf16.msra.mxu0 %v5567
    %5729 = vmatprep.subr.bf16.mxu0 %v5570
    %5730 = vmatpush1.bf16.msra.mxu0 %v5569
    %5731 = vmatprep.subr.bf16.mxu0 %v5572
    %5732 = vmatpush1.bf16.msra.mxu0 %v5571
    %5733 = vmatprep.subr.bf16.mxu0 %v5574
    %5734 = vmatpush1.bf16.msra.mxu0 %v5573
    %5735 = vmatprep.subr.bf16.mxu0 %v5576
    %5736 = vmatpush1.bf16.msra.mxu0 %v5575
    %5737 = vmatprep.subr.bf16.mxu0 %v5578
    %5738 = vmatpush1.bf16.msra.mxu0 %v5577
    %5739 = vmatprep.subr.bf16.mxu0 %v5580
    %5740 = vmatpush1.bf16.msra.mxu0 %v5579
    %5741 = vmatprep.subr.bf16.mxu0 %v5582
    %5742 = vmatpush1.bf16.msra.mxu0 %v5581
    %5743 = vmatprep.subr.bf16.mxu0 %v5584
    %5744 = vmatpush1.bf16.msra.mxu0 %v5583
    %5745 = vmatprep.subr.bf16.mxu0 %v5586
    %5746 = vmatpush1.bf16.msra.mxu0 %v5585
    %5747 = vmatprep.subr.bf16.mxu0 %v5588
    %5748 = vmatpush1.bf16.msra.mxu0 %v5587
    %5749 = vmatprep.subr.bf16.mxu0 %v5590
    %5750 = vmatpush1.bf16.msra.mxu0 %v5589
    %5751 = vmatprep.subr.bf16.mxu0 %v5592
    %5752 = vmatpush1.bf16.msra.mxu0 %v5591
    %5753 = vmatprep.mubr.bf16.mxu0 %v5223
    %5754 = vmatmul.mubr.bf16.gmra.mrb[0].mxu0 %v5222
    %v5755 = vpop.f32.mrb[0].mxu0
    %v5756 = vadd.f32 %v5314, %v5755
    %v5757 = vpop.f32.mrb[0].mxu0
    %v5758 = vadd.f32 %v5318, %v5757
    %v5759 = vpop.f32.mrb[0].mxu0
    %v5760 = vadd.f32 %v5314, %v5759
    %v5761 = vpop.f32.mrb[0].mxu0
    %v5762 = vadd.f32 %v5318, %v5761
    %5763 = vdwg.mxu0
    %5764 = vmatprep.subr.bf16.mxu0 %v5594
    %5765 = vmatpush1.bf16.msra.mxu0 %v5593
    %5766 = vmatprep.subr.bf16.mxu0 %v5596
    %5767 = vmatpush1.bf16.msra.mxu0 %v5595
    %5768 = vmatprep.subr.bf16.mxu0 %v5598
    %5769 = vmatpush1.bf16.msra.mxu0 %v5597
    %5770 = vmatprep.subr.bf16.mxu0 %v5600
    %5771 = vmatpush1.bf16.msra.mxu0 %v5599
    %5772 = vmatprep.subr.bf16.mxu0 %v5602
    %5773 = vmatpush1.bf16.msra.mxu0 %v5601
    %5774 = vmatprep.subr.bf16.mxu0 %v5604
    %5775 = vmatpush1.bf16.msra.mxu0 %v5603
    %5776 = vmatprep.subr.bf16.mxu0 %v5606
    %5777 = vmatpush1.bf16.msra.mxu0 %v5605
    %5778 = vmatprep.subr.bf16.mxu0 %v5608
    %5779 = vmatpush1.bf16.msra.mxu0 %v5607
    %5780 = vmatprep.subr.bf16.mxu0 %v5610
    %5781 = vmatpush1.bf16.msra.mxu0 %v5609
    %5782 = vmatprep.subr.bf16.mxu0 %v5612
    %5783 = vmatpush1.bf16.msra.mxu0 %v5611
    %5784 = vmatprep.subr.bf16.mxu0 %v5614
    %5785 = vmatpush1.bf16.msra.mxu0 %v5613
    %5786 = vmatprep.subr.bf16.mxu0 %v5616
    %5787 = vmatpush1.bf16.msra.mxu0 %v5615
    %5788 = vmatprep.subr.bf16.mxu0 %v5618
    %5789 = vmatpush1.bf16.msra.mxu0 %v5617
    %5790 = vmatprep.subr.bf16.mxu0 %v5620
    %5791 = vmatpush1.bf16.msra.mxu0 %v5619
    %5792 = vmatprep.subr.bf16.mxu0 %v5622
    %5793 = vmatpush1.bf16.msra.mxu0 %v5621
    %5794 = vmatprep.subr.bf16.mxu0 %v5624
    %5795 = vmatpush1.bf16.msra.mxu0 %v5623
    %5796 = vmatprep.mubr.bf16.mxu0 %v5225
    %5797 = vmatmul.mubr.bf16.gmra.mrb[0].mxu0 %v5224
    %v5798 = vpop.f32.mrb[0].mxu0
    %v5799 = vadd.f32 %v5756, %v5798
    %v5800 = vpop.f32.mrb[0].mxu0
    %v5801 = vadd.f32 %v5758, %v5800
    %v5802 = vpop.f32.mrb[0].mxu0
    %v5803 = vadd.f32 %v5760, %v5802
    %v5804 = vpop.f32.mrb[0].mxu0
    %v5805 = vadd.f32 %v5762, %v5804
    %5806 = vdwg.mxu0
    %5807 = vmatprep.subr.bf16.mxu0 %v5626
    %5808 = vmatpush1.bf16.msra.mxu0 %v5625
    %5809 = vmatprep.subr.bf16.mxu0 %v5628
    %5810 = vmatpush1.bf16.msra.mxu0 %v5627
    %5811 = vmatprep.subr.bf16.mxu0 %v5630
    %5812 = vmatpush1.bf16.msra.mxu0 %v5629
    %5813 = vmatprep.subr.bf16.mxu0 %v5632
    %5814 = vmatpush1.bf16.msra.mxu0 %v5631
    %5815 = vmatprep.subr.bf16.mxu0 %v5634
    %5816 = vmatpush1.bf16.msra.mxu0 %v5633
    %5817 = vmatprep.subr.bf16.mxu0 %v5636
    %5818 = vmatpush1.bf16.msra.mxu0 %v5635
    %5819 = vmatprep.subr.bf16.mxu0 %v5638
    %5820 = vmatpush1.bf16.msra.mxu0 %v5637
    %5821 = vmatprep.subr.bf16.mxu0 %v5640
    %5822 = vmatpush1.bf16.msra.mxu0 %v5639
    %5823 = vmatprep.subr.bf16.mxu0 0
    %5824 = vmatpush1.bf16.msra.mxu0 0
    %5825 = vmatprep.subr.bf16.mxu0 0
    %5826 = vmatpush1.bf16.msra.mxu0 0
    %5827 = vmatprep.subr.bf16.mxu0 0
    %5828 = vmatpush1.bf16.msra.mxu0 0
    %5829 = vmatprep.subr.bf16.mxu0 0
    %5830 = vmatpush1.bf16.msra.mxu0 0
    %5831 = vmatprep.subr.bf16.mxu0 0
    %5832 = vmatpush1.bf16.msra.mxu0 0
    %5833 = vmatprep.subr.bf16.mxu0 0
    %5834 = vmatpush1.bf16.msra.mxu0 0
    %5835 = vmatprep.subr.bf16.mxu0 0
    %5836 = vmatpush1.bf16.msra.mxu0 0
    %5837 = vmatprep.subr.bf16.mxu0 0
    %5838 = vmatpush1.bf16.msra.mxu0 0
    %5839 = vmatprep.mubr.bf16.mxu0 0
    %5840 = vmatmul.mubr.bf16.gmra.mrb[0].mxu0 %v5226
    %v5841 = vpop.f32.mrb[0].mxu0
    %v5842 = vadd.f32 %v5799, %v5841
    %v5843 = vpop.f32.mrb[0].mxu0
    %v5844 = vadd.f32 %v5801, %v5843
    %v5845 = vpop.f32.mrb[0].mxu0
    %v5846 = vadd.f32 %v5803, %v5845
    %v5847 = vpop.f32.mrb[0].mxu0
    %v5848 = vadd.f32 %v5805, %v5847
    %5849 = vdwg.mxu0
    %v5850 = vadd.f32 %v4538, %v5842
    %v5851 = vadd.f32 %v4539, %v5844
    %v5852 = vadd.f32 %v4540, %v5846
    %v5853 = vadd.f32 %v4541, %v5848
    %s5854 = scalar_lea.vmem [#allocation20], 2
    %v5855 = vld [vmem:[%s5854] sm:$0x3]
    %s5856 = scalar_lea.vmem [#allocation22], 2
    %v5857 = vld [vmem:[%s5856] sm:$0x3]
    %v5858 = vadd.f32 %v5850, %v5851
    %5859 = vadd.xlane.f32.xlu0 %v5858
    %v5860 = vpop.xlane.xlu0 %5859
    %v5861 = vadd.f32 %v5852, %v5853
    %5862 = vadd.xlane.f32.xlu0 %v5861
    %v5863 = vpop.xlane.xlu0 %5862
    %v5864 = vmul.f32 %v5860, %v1643
    %v5865 = vmul.f32 %v5863, %v1643
    %v5866 = vsub.f32 %v5850, %v5864
    %v5867 = vsub.f32 %v5851, %v5864
    %v5868 = vsub.f32 %v5852, %v5865
    %v5869 = vsub.f32 %v5853, %v5865
    %v5870 = vmul.f32 %v5866, %v5866
    %v5871 = vmul.f32 %v5867, %v5867
    %v5872 = vmul.f32 %v5868, %v5868
    %v5873 = vmul.f32 %v5869, %v5869
    %v5874 = vadd.f32 %v5870, %v5871
    %5875 = vadd.xlane.f32.xlu0 %v5874
    %v5876 = vpop.xlane.xlu0 %5875
    %v5877 = vadd.f32 %v5872, %v5873
    %5878 = vadd.xlane.f32.xlu0 %v5877
    %v5879 = vpop.xlane.xlu0 %5878
    %v5880 = vmul.f32 %v5876, %v1643
    %v5881 = vmul.f32 %v5879, %v1643
    %v5882 = vadd.f32 %v5880, 1e-05
    %v5883 = vadd.f32 %v5881, 1e-05
    %v5884 = vrsqrt.pop %v5882
    %v5885 = vrsqrt.pop %v5883
    %v5886 = vmul.f32 %v5866, %v5884
    %v5887 = vmul.f32 %v5867, %v5884
    %v5888 = vmul.f32 %v5868, %v5885
    %v5889 = vmul.f32 %v5869, %v5885
    %v5891 = vlaneseq
    %v5892 = vshrl.u32 %v5891, 7
    %v5893 = vsub.s32 0, %v5892
    %v5894 = vrot.slane %v5855, %v5893
    %v5895 = vlaneseq
    %v5896 = vshrl.u32 %v5895, 7
    %v5897 = vsub.s32 1, %v5896
    %v5898 = vrot.slane %v5855, %v5897
    %v5901 = vmul.f32 %v5886, %v5894
    %v5902 = vmul.f32 %v5887, %v5898
    %v5903 = vmul.f32 %v5888, %v5894
    %v5904 = vmul.f32 %v5889, %v5898
    %v5906 = vlaneseq
    %v5907 = vshrl.u32 %v5906, 7
    %v5908 = vsub.s32 0, %v5907
    %v5909 = vrot.slane %v5857, %v5908
    %v5910 = vlaneseq
    %v5911 = vshrl.u32 %v5910, 7
    %v5912 = vsub.s32 1, %v5911
    %v5913 = vrot.slane %v5857, %v5912
    %v5916 = vadd.f32 %v5901, %v5909
    %v5917 = vadd.f32 %v5902, %v5913
    %v5918 = vadd.f32 %v5903, %v5909
    %v5919 = vadd.f32 %v5904, %v5913
    %v5920 = vpack.c.bf16 %v5918, %v5916
    %v5921 = vpack.c.bf16 %v5919, %v5917
    %s5922 = scalar_lea.vmem [#allocation5], 1536
    %v5923 = vld [vmem:[%s5922] sm:$0xff]
    %v5924 = vld [vmem:[%s5922 + $0x8] sm:$0xff]
    %v5925 = vld [vmem:[%s5922 + $0x10] sm:$0xff]
    %v5926 = vld [vmem:[%s5922 + $0x18] sm:$0xff]
    %v5927 = vld [vmem:[%s5922 + $0x20] sm:$0xff]
    %v5928 = vld [vmem:[%s5922 + $0x28] sm:$0xff]
    %v5929 = vld [vmem:[%s5922 + $0x30] sm:$0xff]
    %v5930 = vld [vmem:[%s5922 + $0x38] sm:$0xff]
    %v5931 = vld [vmem:[%s5922 + $0x40] sm:$0xff]
    %v5932 = vld [vmem:[%s5922 + $0x48] sm:$0xff]
    %v5933 = vld [vmem:[%s5922 + $0x50] sm:$0xff]
    %v5934 = vld [vmem:[%s5922 + $0x58] sm:$0xff]
    %v5935 = vld [vmem:[%s5922 + $0x60] sm:$0xff]
    %v5936 = vld [vmem:[%s5922 + $0x68] sm:$0xff]
    %v5937 = vld [vmem:[%s5922 + $0x70] sm:$0xff]
    %v5938 = vld [vmem:[%s5922 + $0x78] sm:$0xff]
    %v5939 = vld [vmem:[%s5922 + $0x80] sm:$0xff]
    %v5940 = vld [vmem:[%s5922 + $0x88] sm:$0xff]
    %v5941 = vld [vmem:[%s5922 + $0x90] sm:$0xff]
    %v5942 = vld [vmem:[%s5922 + $0x98] sm:$0xff]
    %v5943 = vld [vmem:[%s5922 + $0xa0] sm:$0xff]
    %v5944 = vld [vmem:[%s5922 + $0xa8] sm:$0xff]
    %v5945 = vld [vmem:[%s5922 + $0xb0] sm:$0xff]
    %v5946 = vld [vmem:[%s5922 + $0xb8] sm:$0xff]
    %v5947 = vld [vmem:[%s5922 + $0xc0] sm:$0xff]
    %v5948 = vld [vmem:[%s5922 + $0xc8] sm:$0xff]
    %v5949 = vld [vmem:[%s5922 + $0xd0] sm:$0xff]
    %v5950 = vld [vmem:[%s5922 + $0xd8] sm:$0xff]
    %v5951 = vld [vmem:[%s5922 + $0xe0] sm:$0xff]
    %v5952 = vld [vmem:[%s5922 + $0xe8] sm:$0xff]
    %v5953 = vld [vmem:[%s5922 + $0xf0] sm:$0xff]
    %v5954 = vld [vmem:[%s5922 + $0xf8] sm:$0xff]
    %v5955 = vld [vmem:[%s5922 + $0x100] sm:$0xff]
    %v5956 = vld [vmem:[%s5922 + $0x108] sm:$0xff]
    %v5957 = vld [vmem:[%s5922 + $0x110] sm:$0xff]
    %v5958 = vld [vmem:[%s5922 + $0x118] sm:$0xff]
    %v5959 = vld [vmem:[%s5922 + $0x120] sm:$0xff]
    %v5960 = vld [vmem:[%s5922 + $0x128] sm:$0xff]
    %v5961 = vld [vmem:[%s5922 + $0x130] sm:$0xff]
    %v5962 = vld [vmem:[%s5922 + $0x138] sm:$0xff]
    %v5963 = vld [vmem:[%s5922 + $0x140] sm:$0xff]
    %v5964 = vld [vmem:[%s5922 + $0x148] sm:$0xff]
    %v5965 = vld [vmem:[%s5922 + $0x150] sm:$0xff]
    %v5966 = vld [vmem:[%s5922 + $0x158] sm:$0xff]
    %v5967 = vld [vmem:[%s5922 + $0x160] sm:$0xff]
    %v5968 = vld [vmem:[%s5922 + $0x168] sm:$0xff]
    %v5969 = vld [vmem:[%s5922 + $0x170] sm:$0xff]
    %v5970 = vld [vmem:[%s5922 + $0x178] sm:$0xff]
    %v5971 = vld [vmem:[%s5922 + $0x180] sm:$0xff]
    %v5972 = vld [vmem:[%s5922 + $0x188] sm:$0xff]
    %v5973 = vld [vmem:[%s5922 + $0x190] sm:$0xff]
    %v5974 = vld [vmem:[%s5922 + $0x198] sm:$0xff]
    %v5975 = vld [vmem:[%s5922 + $0x1a0] sm:$0xff]
    %v5976 = vld [vmem:[%s5922 + $0x1a8] sm:$0xff]
    %v5977 = vld [vmem:[%s5922 + $0x1b0] sm:$0xff]
    %v5978 = vld [vmem:[%s5922 + $0x1b8] sm:$0xff]
    %v5979 = vld [vmem:[%s5922 + $0x1c0] sm:$0xff]
    %v5980 = vld [vmem:[%s5922 + $0x1c8] sm:$0xff]
    %v5981 = vld [vmem:[%s5922 + $0x1d0] sm:$0xff]
    %v5982 = vld [vmem:[%s5922 + $0x1d8] sm:$0xff]
    %v5983 = vld [vmem:[%s5922 + $0x1e0] sm:$0xff]
    %v5984 = vld [vmem:[%s5922 + $0x1e8] sm:$0xff]
    %v5985 = vld [vmem:[%s5922 + $0x1f0] sm:$0xff]
    %v5986 = vld [vmem:[%s5922 + $0x1f8] sm:$0xff]
    %v5987 = vld [vmem:[%s5922 + $0x200] sm:$0xff]
    %v5988 = vld [vmem:[%s5922 + $0x208] sm:$0xff]
    %v5989 = vld [vmem:[%s5922 + $0x210] sm:$0xff]
    %v5990 = vld [vmem:[%s5922 + $0x218] sm:$0xff]
    %v5991 = vld [vmem:[%s5922 + $0x220] sm:$0xff]
    %v5992 = vld [vmem:[%s5922 + $0x228] sm:$0xff]
    %v5993 = vld [vmem:[%s5922 + $0x230] sm:$0xff]
    %v5994 = vld [vmem:[%s5922 + $0x238] sm:$0xff]
    %v5995 = vld [vmem:[%s5922 + $0x240] sm:$0xff]
    %v5996 = vld [vmem:[%s5922 + $0x248] sm:$0xff]
    %v5997 = vld [vmem:[%s5922 + $0x250] sm:$0xff]
    %v5998 = vld [vmem:[%s5922 + $0x258] sm:$0xff]
    %v5999 = vld [vmem:[%s5922 + $0x260] sm:$0xff]
    %v6000 = vld [vmem:[%s5922 + $0x268] sm:$0xff]
    %v6001 = vld [vmem:[%s5922 + $0x270] sm:$0xff]
    %v6002 = vld [vmem:[%s5922 + $0x278] sm:$0xff]
    %v6003 = vld [vmem:[%s5922 + $0x280] sm:$0xff]
    %v6004 = vld [vmem:[%s5922 + $0x288] sm:$0xff]
    %v6005 = vld [vmem:[%s5922 + $0x290] sm:$0xff]
    %v6006 = vld [vmem:[%s5922 + $0x298] sm:$0xff]
    %v6007 = vld [vmem:[%s5922 + $0x2a0] sm:$0xff]
    %v6008 = vld [vmem:[%s5922 + $0x2a8] sm:$0xff]
    %v6009 = vld [vmem:[%s5922 + $0x2b0] sm:$0xff]
    %v6010 = vld [vmem:[%s5922 + $0x2b8] sm:$0xff]
    %v6011 = vld [vmem:[%s5922 + $0x2c0] sm:$0xff]
    %v6012 = vld [vmem:[%s5922 + $0x2c8] sm:$0xff]
    %v6013 = vld [vmem:[%s5922 + $0x2d0] sm:$0xff]
    %v6014 = vld [vmem:[%s5922 + $0x2d8] sm:$0xff]
    %v6015 = vld [vmem:[%s5922 + $0x2e0] sm:$0xff]
    %v6016 = vld [vmem:[%s5922 + $0x2e8] sm:$0xff]
    %v6017 = vld [vmem:[%s5922 + $0x2f0] sm:$0xff]
    %v6018 = vld [vmem:[%s5922 + $0x2f8] sm:$0xff]
    %s6019 = scalar_lea.vmem [#allocation7], 12
    %v6020 = vld [vmem:[%s6019] sm:$0x3f]
    %v6022 = vlaneseq
    %v6023 = vshrl.u32 %v6022, 7
    %v6024 = vsub.s32 0, %v6023
    %v6025 = vrot.slane %v6020, %v6024
    %v6026 = vlaneseq
    %v6027 = vshrl.u32 %v6026, 7
    %v6028 = vsub.s32 1, %v6027
    %v6029 = vrot.slane %v6020, %v6028
    %v6030 = vlaneseq
    %v6031 = vshrl.u32 %v6030, 7
    %v6032 = vsub.s32 2, %v6031
    %v6033 = vrot.slane %v6020, %v6032
    %v6034 = vlaneseq
    %v6035 = vshrl.u32 %v6034, 7
    %v6036 = vsub.s32 3, %v6035
    %v6037 = vrot.slane %v6020, %v6036
    %v6038 = vlaneseq
    %v6039 = vshrl.u32 %v6038, 7
    %v6040 = vsub.s32 4, %v6039
    %v6041 = vrot.slane %v6020, %v6040
    %v6042 = vlaneseq
    %v6043 = vshrl.u32 %v6042, 7
    %v6044 = vsub.s32 5, %v6043
    %v6045 = vrot.slane %v6020, %v6044
    %v6148 = vunpack.c.l.b16 %v5923
    %v6149 = vunpack.c.h.b16 %v5923
    %v6150 = vunpack.c.l.b16 %v5924
    %v6151 = vunpack.c.h.b16 %v5924
    %v6152 = vunpack.c.l.b16 %v5925
    %v6153 = vunpack.c.h.b16 %v5925
    %v6154 = vunpack.c.l.b16 %v5926
    %v6155 = vunpack.c.h.b16 %v5926
    %v6156 = vunpack.c.l.b16 %v5927
    %v6157 = vunpack.c.h.b16 %v5927
    %v6158 = vunpack.c.l.b16 %v5928
    %v6159 = vunpack.c.h.b16 %v5928
    %v6160 = vunpack.c.l.b16 %v5929
    %v6161 = vunpack.c.h.b16 %v5929
    %v6162 = vunpack.c.l.b16 %v5930
    %v6163 = vunpack.c.h.b16 %v5930
    %v6164 = vunpack.c.l.b16 %v5931
    %v6165 = vunpack.c.h.b16 %v5931
    %v6166 = vunpack.c.l.b16 %v5932
    %v6167 = vunpack.c.h.b16 %v5932
    %v6168 = vunpack.c.l.b16 %v5933
    %v6169 = vunpack.c.h.b16 %v5933
    %v6170 = vunpack.c.l.b16 %v5934
    %v6171 = vunpack.c.h.b16 %v5934
    %v6172 = vunpack.c.l.b16 %v5935
    %v6173 = vunpack.c.h.b16 %v5935
    %v6174 = vunpack.c.l.b16 %v5936
    %v6175 = vunpack.c.h.b16 %v5936
    %v6176 = vunpack.c.l.b16 %v5937
    %v6177 = vunpack.c.h.b16 %v5937
    %v6178 = vunpack.c.l.b16 %v5938
    %v6179 = vunpack.c.h.b16 %v5938
    %v6180 = vunpack.c.l.b16 %v5939
    %v6181 = vunpack.c.h.b16 %v5939
    %v6182 = vunpack.c.l.b16 %v5940
    %v6183 = vunpack.c.h.b16 %v5940
    %v6184 = vunpack.c.l.b16 %v5941
    %v6185 = vunpack.c.h.b16 %v5941
    %v6186 = vunpack.c.l.b16 %v5942
    %v6187 = vunpack.c.h.b16 %v5942
    %v6188 = vunpack.c.l.b16 %v5943
    %v6189 = vunpack.c.h.b16 %v5943
    %v6190 = vunpack.c.l.b16 %v5944
    %v6191 = vunpack.c.h.b16 %v5944
    %v6192 = vunpack.c.l.b16 %v5945
    %v6193 = vunpack.c.h.b16 %v5945
    %v6194 = vunpack.c.l.b16 %v5946
    %v6195 = vunpack.c.h.b16 %v5946
    %v6196 = vunpack.c.l.b16 %v5947
    %v6197 = vunpack.c.h.b16 %v5947
    %v6198 = vunpack.c.l.b16 %v5948
    %v6199 = vunpack.c.h.b16 %v5948
    %v6200 = vunpack.c.l.b16 %v5949
    %v6201 = vunpack.c.h.b16 %v5949
    %v6202 = vunpack.c.l.b16 %v5950
    %v6203 = vunpack.c.h.b16 %v5950
    %v6204 = vunpack.c.l.b16 %v5951
    %v6205 = vunpack.c.h.b16 %v5951
    %v6206 = vunpack.c.l.b16 %v5952
    %v6207 = vunpack.c.h.b16 %v5952
    %v6208 = vunpack.c.l.b16 %v5953
    %v6209 = vunpack.c.h.b16 %v5953
    %v6210 = vunpack.c.l.b16 %v5954
    %v6211 = vunpack.c.h.b16 %v5954
    %v6212 = vunpack.c.l.b16 %v5955
    %v6213 = vunpack.c.h.b16 %v5955
    %v6214 = vunpack.c.l.b16 %v5956
    %v6215 = vunpack.c.h.b16 %v5956
    %v6216 = vunpack.c.l.b16 %v5957
    %v6217 = vunpack.c.h.b16 %v5957
    %v6218 = vunpack.c.l.b16 %v5958
    %v6219 = vunpack.c.h.b16 %v5958
    %v6220 = vunpack.c.l.b16 %v5959
    %v6221 = vunpack.c.h.b16 %v5959
    %v6222 = vunpack.c.l.b16 %v5960
    %v6223 = vunpack.c.h.b16 %v5960
    %v6224 = vunpack.c.l.b16 %v5961
    %v6225 = vunpack.c.h.b16 %v5961
    %v6226 = vunpack.c.l.b16 %v5962
    %v6227 = vunpack.c.h.b16 %v5962
    %v6228 = vunpack.c.l.b16 %v5963
    %v6229 = vunpack.c.h.b16 %v5963
    %v6230 = vunpack.c.l.b16 %v5964
    %v6231 = vunpack.c.h.b16 %v5964
    %v6232 = vunpack.c.l.b16 %v5965
    %v6233 = vunpack.c.h.b16 %v5965
    %v6234 = vunpack.c.l.b16 %v5966
    %v6235 = vunpack.c.h.b16 %v5966
    %v6236 = vunpack.c.l.b16 %v5967
    %v6237 = vunpack.c.h.b16 %v5967
    %v6238 = vunpack.c.l.b16 %v5968
    %v6239 = vunpack.c.h.b16 %v5968
    %v6240 = vunpack.c.l.b16 %v5969
    %v6241 = vunpack.c.h.b16 %v5969
    %v6242 = vunpack.c.l.b16 %v5970
    %v6243 = vunpack.c.h.b16 %v5970
    %v6244 = vunpack.c.l.b16 %v5971
    %v6245 = vunpack.c.h.b16 %v5971
    %v6246 = vunpack.c.l.b16 %v5972
    %v6247 = vunpack.c.h.b16 %v5972
    %v6248 = vunpack.c.l.b16 %v5973
    %v6249 = vunpack.c.h.b16 %v5973
    %v6250 = vunpack.c.l.b16 %v5974
    %v6251 = vunpack.c.h.b16 %v5974
    %v6252 = vunpack.c.l.b16 %v5975
    %v6253 = vunpack.c.h.b16 %v5975
    %v6254 = vunpack.c.l.b16 %v5976
    %v6255 = vunpack.c.h.b16 %v5976
    %v6256 = vunpack.c.l.b16 %v5977
    %v6257 = vunpack.c.h.b16 %v5977
    %v6258 = vunpack.c.l.b16 %v5978
    %v6259 = vunpack.c.h.b16 %v5978
    %v6260 = vunpack.c.l.b16 %v5979
    %v6261 = vunpack.c.h.b16 %v5979
    %v6262 = vunpack.c.l.b16 %v5980
    %v6263 = vunpack.c.h.b16 %v5980
    %v6264 = vunpack.c.l.b16 %v5981
    %v6265 = vunpack.c.h.b16 %v5981
    %v6266 = vunpack.c.l.b16 %v5982
    %v6267 = vunpack.c.h.b16 %v5982
    %v6268 = vunpack.c.l.b16 %v5983
    %v6269 = vunpack.c.h.b16 %v5983
    %v6270 = vunpack.c.l.b16 %v5984
    %v6271 = vunpack.c.h.b16 %v5984
    %v6272 = vunpack.c.l.b16 %v5985
    %v6273 = vunpack.c.h.b16 %v5985
    %v6274 = vunpack.c.l.b16 %v5986
    %v6275 = vunpack.c.h.b16 %v5986
    %v6276 = vunpack.c.l.b16 %v5987
    %v6277 = vunpack.c.h.b16 %v5987
    %v6278 = vunpack.c.l.b16 %v5988
    %v6279 = vunpack.c.h.b16 %v5988
    %v6280 = vunpack.c.l.b16 %v5989
    %v6281 = vunpack.c.h.b16 %v5989
    %v6282 = vunpack.c.l.b16 %v5990
    %v6283 = vunpack.c.h.b16 %v5990
    %v6284 = vunpack.c.l.b16 %v5991
    %v6285 = vunpack.c.h.b16 %v5991
    %v6286 = vunpack.c.l.b16 %v5992
    %v6287 = vunpack.c.h.b16 %v5992
    %v6288 = vunpack.c.l.b16 %v5993
    %v6289 = vunpack.c.h.b16 %v5993
    %v6290 = vunpack.c.l.b16 %v5994
    %v6291 = vunpack.c.h.b16 %v5994
    %v6292 = vunpack.c.l.b16 %v5995
    %v6293 = vunpack.c.h.b16 %v5995
    %v6294 = vunpack.c.l.b16 %v5996
    %v6295 = vunpack.c.h.b16 %v5996
    %v6296 = vunpack.c.l.b16 %v5997
    %v6297 = vunpack.c.h.b16 %v5997
    %v6298 = vunpack.c.l.b16 %v5998
    %v6299 = vunpack.c.h.b16 %v5998
    %v6300 = vunpack.c.l.b16 %v5999
    %v6301 = vunpack.c.h.b16 %v5999
    %v6302 = vunpack.c.l.b16 %v6000
    %v6303 = vunpack.c.h.b16 %v6000
    %v6304 = vunpack.c.l.b16 %v6001
    %v6305 = vunpack.c.h.b16 %v6001
    %v6306 = vunpack.c.l.b16 %v6002
    %v6307 = vunpack.c.h.b16 %v6002
    %v6308 = vunpack.c.l.b16 %v6003
    %v6309 = vunpack.c.h.b16 %v6003
    %v6310 = vunpack.c.l.b16 %v6004
    %v6311 = vunpack.c.h.b16 %v6004
    %v6312 = vunpack.c.l.b16 %v6005
    %v6313 = vunpack.c.h.b16 %v6005
    %v6314 = vunpack.c.l.b16 %v6006
    %v6315 = vunpack.c.h.b16 %v6006
    %v6316 = vunpack.c.l.b16 %v6007
    %v6317 = vunpack.c.h.b16 %v6007
    %v6318 = vunpack.c.l.b16 %v6008
    %v6319 = vunpack.c.h.b16 %v6008
    %v6320 = vunpack.c.l.b16 %v6009
    %v6321 = vunpack.c.h.b16 %v6009
    %v6322 = vunpack.c.l.b16 %v6010
    %v6323 = vunpack.c.h.b16 %v6010
    %v6324 = vunpack.c.l.b16 %v6011
    %v6325 = vunpack.c.h.b16 %v6011
    %v6326 = vunpack.c.l.b16 %v6012
    %v6327 = vunpack.c.h.b16 %v6012
    %v6328 = vunpack.c.l.b16 %v6013
    %v6329 = vunpack.c.h.b16 %v6013
    %v6330 = vunpack.c.l.b16 %v6014
    %v6331 = vunpack.c.h.b16 %v6014
    %v6332 = vunpack.c.l.b16 %v6015
    %v6333 = vunpack.c.h.b16 %v6015
    %v6334 = vunpack.c.l.b16 %v6016
    %v6335 = vunpack.c.h.b16 %v6016
    %v6336 = vunpack.c.l.b16 %v6017
    %v6337 = vunpack.c.h.b16 %v6017
    %v6338 = vunpack.c.l.b16 %v6018
    %v6339 = vunpack.c.h.b16 %v6018
    %v6340 = vpack.c.b16 %v6154, %v6148
    %v6341 = vpack.c.b16 %v6155, %v6149
    %v6342 = vpack.c.b16 %v6156, %v6150
    %v6343 = vpack.c.b16 %v6157, %v6151
    %v6344 = vpack.c.b16 %v6158, %v6152
    %v6345 = vpack.c.b16 %v6159, %v6153
    %v6346 = vpack.c.b16 %v6166, %v6160
    %v6347 = vpack.c.b16 %v6167, %v6161
    %v6348 = vpack.c.b16 %v6168, %v6162
    %v6349 = vpack.c.b16 %v6169, %v6163
    %v6350 = vpack.c.b16 %v6170, %v6164
    %v6351 = vpack.c.b16 %v6171, %v6165
    %v6352 = vpack.c.b16 %v6178, %v6172
    %v6353 = vpack.c.b16 %v6179, %v6173
    %v6354 = vpack.c.b16 %v6180, %v6174
    %v6355 = vpack.c.b16 %v6181, %v6175
    %v6356 = vpack.c.b16 %v6182, %v6176
    %v6357 = vpack.c.b16 %v6183, %v6177
    %v6358 = vpack.c.b16 %v6190, %v6184
    %v6359 = vpack.c.b16 %v6191, %v6185
    %v6360 = vpack.c.b16 %v6192, %v6186
    %v6361 = vpack.c.b16 %v6193, %v6187
    %v6362 = vpack.c.b16 %v6194, %v6188
    %v6363 = vpack.c.b16 %v6195, %v6189
    %v6364 = vpack.c.b16 %v6202, %v6196
    %v6365 = vpack.c.b16 %v6203, %v6197
    %v6366 = vpack.c.b16 %v6204, %v6198
    %v6367 = vpack.c.b16 %v6205, %v6199
    %v6368 = vpack.c.b16 %v6206, %v6200
    %v6369 = vpack.c.b16 %v6207, %v6201
    %v6370 = vpack.c.b16 %v6214, %v6208
    %v6371 = vpack.c.b16 %v6215, %v6209
    %v6372 = vpack.c.b16 %v6216, %v6210
    %v6373 = vpack.c.b16 %v6217, %v6211
    %v6374 = vpack.c.b16 %v6218, %v6212
    %v6375 = vpack.c.b16 %v6219, %v6213
    %v6376 = vpack.c.b16 %v6226, %v6220
    %v6377 = vpack.c.b16 %v6227, %v6221
    %v6378 = vpack.c.b16 %v6228, %v6222
    %v6379 = vpack.c.b16 %v6229, %v6223
    %v6380 = vpack.c.b16 %v6230, %v6224
    %v6381 = vpack.c.b16 %v6231, %v6225
    %v6382 = vpack.c.b16 %v6238, %v6232
    %v6383 = vpack.c.b16 %v6239, %v6233
    %v6384 = vpack.c.b16 %v6240, %v6234
    %v6385 = vpack.c.b16 %v6241, %v6235
    %v6386 = vpack.c.b16 %v6242, %v6236
    %v6387 = vpack.c.b16 %v6243, %v6237
    %v6388 = vpack.c.b16 %v6250, %v6244
    %v6389 = vpack.c.b16 %v6251, %v6245
    %v6390 = vpack.c.b16 %v6252, %v6246
    %v6391 = vpack.c.b16 %v6253, %v6247
    %v6392 = vpack.c.b16 %v6254, %v6248
    %v6393 = vpack.c.b16 %v6255, %v6249
    %v6394 = vpack.c.b16 %v6262, %v6256
    %v6395 = vpack.c.b16 %v6263, %v6257
    %v6396 = vpack.c.b16 %v6264, %v6258
    %v6397 = vpack.c.b16 %v6265, %v6259
    %v6398 = vpack.c.b16 %v6266, %v6260
    %v6399 = vpack.c.b16 %v6267, %v6261
    %v6400 = vpack.c.b16 %v6274, %v6268
    %v6401 = vpack.c.b16 %v6275, %v6269
    %v6402 = vpack.c.b16 %v6276, %v6270
    %v6403 = vpack.c.b16 %v6277, %v6271
    %v6404 = vpack.c.b16 %v6278, %v6272
    %v6405 = vpack.c.b16 %v6279, %v6273
    %v6406 = vpack.c.b16 %v6286, %v6280
    %v6407 = vpack.c.b16 %v6287, %v6281
    %v6408 = vpack.c.b16 %v6288, %v6282
    %v6409 = vpack.c.b16 %v6289, %v6283
    %v6410 = vpack.c.b16 %v6290, %v6284
    %v6411 = vpack.c.b16 %v6291, %v6285
    %v6412 = vpack.c.b16 %v6298, %v6292
    %v6413 = vpack.c.b16 %v6299, %v6293
    %v6414 = vpack.c.b16 %v6300, %v6294
    %v6415 = vpack.c.b16 %v6301, %v6295
    %v6416 = vpack.c.b16 %v6302, %v6296
    %v6417 = vpack.c.b16 %v6303, %v6297
    %v6418 = vpack.c.b16 %v6310, %v6304
    %v6419 = vpack.c.b16 %v6311, %v6305
    %v6420 = vpack.c.b16 %v6312, %v6306
    %v6421 = vpack.c.b16 %v6313, %v6307
    %v6422 = vpack.c.b16 %v6314, %v6308
    %v6423 = vpack.c.b16 %v6315, %v6309
    %v6424 = vpack.c.b16 %v6322, %v6316
    %v6425 = vpack.c.b16 %v6323, %v6317
    %v6426 = vpack.c.b16 %v6324, %v6318
    %v6427 = vpack.c.b16 %v6325, %v6319
    %v6428 = vpack.c.b16 %v6326, %v6320
    %v6429 = vpack.c.b16 %v6327, %v6321
    %v6430 = vpack.c.b16 %v6334, %v6328
    %v6431 = vpack.c.b16 %v6335, %v6329
    %v6432 = vpack.c.b16 %v6336, %v6330
    %v6433 = vpack.c.b16 %v6337, %v6331
    %v6434 = vpack.c.b16 %v6338, %v6332
    %v6435 = vpack.c.b16 %v6339, %v6333
    %6532 = vmatprep.subr.bf16.mxu0 %v6341
    %6533 = vmatpush1.bf16.msra.mxu0 %v6340
    %6534 = vmatprep.subr.bf16.mxu0 %v6347
    %6535 = vmatpush1.bf16.msra.mxu0 %v6346
    %6536 = vmatprep.subr.bf16.mxu0 %v6353
    %6537 = vmatpush1.bf16.msra.mxu0 %v6352
    %6538 = vmatprep.subr.bf16.mxu0 %v6359
    %6539 = vmatpush1.bf16.msra.mxu0 %v6358
    %6540 = vmatprep.subr.bf16.mxu0 %v6365
    %6541 = vmatpush1.bf16.msra.mxu0 %v6364
    %6542 = vmatprep.subr.bf16.mxu0 %v6371
    %6543 = vmatpush1.bf16.msra.mxu0 %v6370
    %6544 = vmatprep.subr.bf16.mxu0 %v6377
    %6545 = vmatpush1.bf16.msra.mxu0 %v6376
    %6546 = vmatprep.subr.bf16.mxu0 %v6383
    %6547 = vmatpush1.bf16.msra.mxu0 %v6382
    %6548 = vmatprep.subr.bf16.mxu0 %v6389
    %6549 = vmatpush1.bf16.msra.mxu0 %v6388
    %6550 = vmatprep.subr.bf16.mxu0 %v6395
    %6551 = vmatpush1.bf16.msra.mxu0 %v6394
    %6552 = vmatprep.subr.bf16.mxu0 %v6401
    %6553 = vmatpush1.bf16.msra.mxu0 %v6400
    %6554 = vmatprep.subr.bf16.mxu0 %v6407
    %6555 = vmatpush1.bf16.msra.mxu0 %v6406
    %6556 = vmatprep.subr.bf16.mxu0 %v6413
    %6557 = vmatpush1.bf16.msra.mxu0 %v6412
    %6558 = vmatprep.subr.bf16.mxu0 %v6419
    %6559 = vmatpush1.bf16.msra.mxu0 %v6418
    %6560 = vmatprep.subr.bf16.mxu0 %v6425
    %6561 = vmatpush1.bf16.msra.mxu0 %v6424
    %6562 = vmatprep.subr.bf16.mxu0 %v6431
    %6563 = vmatpush1.bf16.msra.mxu0 %v6430
    %6564 = vmatprep.mubr.bf16.mxu0 %v5921
    %6565 = vmatmul.mubr.bf16.gmra.mrb[0].mxu0 %v5920
    %v6566 = vpop.f32.mrb[0].mxu0
    %v6567 = vadd.f32 %v6025, %v6566
    %v6568 = vpop.f32.mrb[0].mxu0
    %v6569 = vadd.f32 %v6029, %v6568
    %v6570 = vpop.f32.mrb[0].mxu0
    %v6571 = vadd.f32 %v6025, %v6570
    %v6572 = vpop.f32.mrb[0].mxu0
    %v6573 = vadd.f32 %v6029, %v6572
    %6574 = vdwg.mxu0
    %6575 = vmatprep.subr.bf16.mxu0 %v6343
    %6576 = vmatpush1.bf16.msra.mxu0 %v6342
    %6577 = vmatprep.subr.bf16.mxu0 %v6349
    %6578 = vmatpush1.bf16.msra.mxu0 %v6348
    %6579 = vmatprep.subr.bf16.mxu0 %v6355
    %6580 = vmatpush1.bf16.msra.mxu0 %v6354
    %6581 = vmatprep.subr.bf16.mxu0 %v6361
    %6582 = vmatpush1.bf16.msra.mxu0 %v6360
    %6583 = vmatprep.subr.bf16.mxu0 %v6367
    %6584 = vmatpush1.bf16.msra.mxu0 %v6366
    %6585 = vmatprep.subr.bf16.mxu0 %v6373
    %6586 = vmatpush1.bf16.msra.mxu0 %v6372
    %6587 = vmatprep.subr.bf16.mxu0 %v6379
    %6588 = vmatpush1.bf16.msra.mxu0 %v6378
    %6589 = vmatprep.subr.bf16.mxu0 %v6385
    %6590 = vmatpush1.bf16.msra.mxu0 %v6384
    %6591 = vmatprep.subr.bf16.mxu0 %v6391
    %6592 = vmatpush1.bf16.msra.mxu0 %v6390
    %6593 = vmatprep.subr.bf16.mxu0 %v6397
    %6594 = vmatpush1.bf16.msra.mxu0 %v6396
    %6595 = vmatprep.subr.bf16.mxu0 %v6403
    %6596 = vmatpush1.bf16.msra.mxu0 %v6402
    %6597 = vmatprep.subr.bf16.mxu0 %v6409
    %6598 = vmatpush1.bf16.msra.mxu0 %v6408
    %6599 = vmatprep.subr.bf16.mxu0 %v6415
    %6600 = vmatpush1.bf16.msra.mxu0 %v6414
    %6601 = vmatprep.subr.bf16.mxu0 %v6421
    %6602 = vmatpush1.bf16.msra.mxu0 %v6420
    %6603 = vmatprep.subr.bf16.mxu0 %v6427
    %6604 = vmatpush1.bf16.msra.mxu0 %v6426
    %6605 = vmatprep.subr.bf16.mxu0 %v6433
    %6606 = vmatpush1.bf16.msra.mxu0 %v6432
    %6607 = vmatprep.mubr.bf16.mxu0 %v5921
    %6608 = vmatmul.mubr.bf16.gmra.mrb[0].mxu0 %v5920
    %v6609 = vpop.f32.mrb[0].mxu0
    %v6610 = vadd.f32 %v6033, %v6609
    %v6611 = vpop.f32.mrb[0].mxu0
    %v6612 = vadd.f32 %v6037, %v6611
    %v6613 = vpop.f32.mrb[0].mxu0
    %v6614 = vadd.f32 %v6033, %v6613
    %v6615 = vpop.f32.mrb[0].mxu0
    %v6616 = vadd.f32 %v6037, %v6615
    %6617 = vdwg.mxu0
    %6618 = vmatprep.subr.bf16.mxu0 %v6345
    %6619 = vmatpush1.bf16.msra.mxu0 %v6344
    %6620 = vmatprep.subr.bf16.mxu0 %v6351
    %6621 = vmatpush1.bf16.msra.mxu0 %v6350
    %6622 = vmatprep.subr.bf16.mxu0 %v6357
    %6623 = vmatpush1.bf16.msra.mxu0 %v6356
    %6624 = vmatprep.subr.bf16.mxu0 %v6363
    %6625 = vmatpush1.bf16.msra.mxu0 %v6362
    %6626 = vmatprep.subr.bf16.mxu0 %v6369
    %6627 = vmatpush1.bf16.msra.mxu0 %v6368
    %6628 = vmatprep.subr.bf16.mxu0 %v6375
    %6629 = vmatpush1.bf16.msra.mxu0 %v6374
    %6630 = vmatprep.subr.bf16.mxu0 %v6381
    %6631 = vmatpush1.bf16.msra.mxu0 %v6380
    %6632 = vmatprep.subr.bf16.mxu0 %v6387
    %6633 = vmatpush1.bf16.msra.mxu0 %v6386
    %6634 = vmatprep.subr.bf16.mxu0 %v6393
    %6635 = vmatpush1.bf16.msra.mxu0 %v6392
    %6636 = vmatprep.subr.bf16.mxu0 %v6399
    %6637 = vmatpush1.bf16.msra.mxu0 %v6398
    %6638 = vmatprep.subr.bf16.mxu0 %v6405
    %6639 = vmatpush1.bf16.msra.mxu0 %v6404
    %6640 = vmatprep.subr.bf16.mxu0 %v6411
    %6641 = vmatpush1.bf16.msra.mxu0 %v6410
    %6642 = vmatprep.subr.bf16.mxu0 %v6417
    %6643 = vmatpush1.bf16.msra.mxu0 %v6416
    %6644 = vmatprep.subr.bf16.mxu0 %v6423
    %6645 = vmatpush1.bf16.msra.mxu0 %v6422
    %6646 = vmatprep.subr.bf16.mxu0 %v6429
    %6647 = vmatpush1.bf16.msra.mxu0 %v6428
    %6648 = vmatprep.subr.bf16.mxu0 %v6435
    %6649 = vmatpush1.bf16.msra.mxu0 %v6434
    %6650 = vmatprep.mubr.bf16.mxu0 %v5921
    %6651 = vmatmul.mubr.bf16.gmra.mrb[0].mxu0 %v5920
    %v6652 = vpop.f32.mrb[0].mxu0
    %v6653 = vadd.f32 %v6041, %v6652
    %v6654 = vpop.f32.mrb[0].mxu0
    %v6655 = vadd.f32 %v6045, %v6654
    %v6656 = vpop.f32.mrb[0].mxu0
    %v6657 = vadd.f32 %v6041, %v6656
    %v6658 = vpop.f32.mrb[0].mxu0
    %v6659 = vadd.f32 %v6045, %v6658
    %6660 = vdwg.mxu0
    %v6661 = vpack.c.bf16 %v6567, %v6567
    %v6662 = vpack.c.bf16 %v6571, %v6571
    %v6663 = vpack.c.bf16 %v6610, %v6610
    %v6664 = vpack.c.bf16 %v6614, %v6614
    %6665 = vmatprep.subr.bf16.mxu0 0
    %6666 = vmatpush1.bf16.xpose.msra.mxu0 %v6663
    %6667 = vmatprep.subr.bf16.mxu0 0
    %6668 = vmatpush1.bf16.xpose.msra.mxu0 0
    %6669 = vmatprep.subr.bf16.mxu0 0
    %6670 = vmatpush1.bf16.xpose.msra.mxu0 0
    %6671 = vmatprep.subr.bf16.mxu0 0
    %6672 = vmatpush1.bf16.xpose.msra.mxu0 0
    %6673 = vmatprep.subr.bf16.mxu0 0
    %6674 = vmatpush1.bf16.xpose.msra.mxu0 0
    %6675 = vmatprep.subr.bf16.mxu0 0
    %6676 = vmatpush1.bf16.xpose.msra.mxu0 0
    %6677 = vmatprep.subr.bf16.mxu0 0
    %6678 = vmatpush1.bf16.xpose.msra.mxu0 0
    %6679 = vmatprep.subr.bf16.mxu0 0
    %6680 = vmatpush1.bf16.xpose.msra.mxu0 0
    %6681 = vmatprep.subr.bf16.mxu0 0
    %6682 = vmatpush1.bf16.xpose.msra.mxu0 0
    %6683 = vmatprep.subr.bf16.mxu0 0
    %6684 = vmatpush1.bf16.xpose.msra.mxu0 0
    %6685 = vmatprep.subr.bf16.mxu0 0
    %6686 = vmatpush1.bf16.xpose.msra.mxu0 0
    %6687 = vmatprep.subr.bf16.mxu0 0
    %6688 = vmatpush1.bf16.xpose.msra.mxu0 0
    %6689 = vmatprep.subr.bf16.mxu0 0
    %6690 = vmatpush1.bf16.xpose.msra.mxu0 0
    %6691 = vmatprep.subr.bf16.mxu0 0
    %6692 = vmatpush1.bf16.xpose.msra.mxu0 0
    %6693 = vmatprep.subr.bf16.mxu0 0
    %6694 = vmatpush1.bf16.xpose.msra.mxu0 0
    %6695 = vmatprep.subr.bf16.mxu0 0
    %6696 = vmatpush1.bf16.xpose.msra.mxu0 0
    %6697 = vmatprep.mubr.bf16.mxu0 0
    %6698 = vmatmul.mubr.bf16.gmra.mrb[0].mxu0 %v6661
    %v6699 = vpop.f32.mrb[0].mxu0
    %v6700 = vadd.f32 0.0, %v6699
    %v6701 = vpop.f32.mrb[0].mxu0
    %v6702 = vpop.f32.mrb[0].mxu0
    %v6703 = vpop.f32.mrb[0].mxu0
    %6704 = vdwg.mxu0
    %6705 = vmatprep.subr.bf16.mxu0 0
    %6706 = vmatpush1.bf16.xpose.msra.mxu0 %v6664
    %6707 = vmatprep.subr.bf16.mxu0 0
    %6708 = vmatpush1.bf16.xpose.msra.mxu0 0
    %6709 = vmatprep.subr.bf16.mxu0 0
    %6710 = vmatpush1.bf16.xpose.msra.mxu0 0
    %6711 = vmatprep.subr.bf16.mxu0 0
    %6712 = vmatpush1.bf16.xpose.msra.mxu0 0
    %6713 = vmatprep.subr.bf16.mxu0 0
    %6714 = vmatpush1.bf16.xpose.msra.mxu0 0
    %6715 = vmatprep.subr.bf16.mxu0 0
    %6716 = vmatpush1.bf16.xpose.msra.mxu0 0
    %6717 = vmatprep.subr.bf16.mxu0 0
    %6718 = vmatpush1.bf16.xpose.msra.mxu0 0
    %6719 = vmatprep.subr.bf16.mxu0 0
    %6720 = vmatpush1.bf16.xpose.msra.mxu0 0
    %6721 = vmatprep.subr.bf16.mxu0 0
    %6722 = vmatpush1.bf16.xpose.msra.mxu0 0
    %6723 = vmatprep.subr.bf16.mxu0 0
    %6724 = vmatpush1.bf16.xpose.msra.mxu0 0
    %6725 = vmatprep.subr.bf16.mxu0 0
    %6726 = vmatpush1.bf16.xpose.msra.mxu0 0
    %6727 = vmatprep.subr.bf16.mxu0 0
    %6728 = vmatpush1.bf16.xpose.msra.mxu0 0
    %6729 = vmatprep.subr.bf16.mxu0 0
    %6730 = vmatpush1.bf16.xpose.msra.mxu0 0
    %6731 = vmatprep.subr.bf16.mxu0 0
    %6732 = vmatpush1.bf16.xpose.msra.mxu0 0
    %6733 = vmatprep.subr.bf16.mxu0 0
    %6734 = vmatpush1.bf16.xpose.msra.mxu0 0
    %6735 = vmatprep.subr.bf16.mxu0 0
    %6736 = vmatpush1.bf16.xpose.msra.mxu0 0
    %6737 = vmatprep.mubr.bf16.mxu0 0
    %6738 = vmatmul.mubr.bf16.gmra.mrb[0].mxu0 %v6662
    %v6739 = vpop.f32.mrb[0].mxu0
    %v6740 = vadd.f32 0.0, %v6739
    %v6741 = vpop.f32.mrb[0].mxu0
    %v6742 = vpop.f32.mrb[0].mxu0
    %v6743 = vpop.f32.mrb[0].mxu0
    %6744 = vdwg.mxu0
    %v6745 = vmul.f32 %v6700, 0.088388346
    %v6746 = vmul.f32 %v6740, 0.088388346
    %v6747 = vsel %vm1058, %v6745, -inf
    %6748 = vmax.xlane.f32.xlu0 %v6747
    %v6749 = vpop.xlane.xlu0 %6748
    %v6750 = vsel %vm1058, %v6746, -inf
    %6751 = vmax.xlane.f32.xlu0 %v6750
    %v6752 = vpop.xlane.xlu0 %6751
    %v6753 = vsub.f32 %v6745, %v6749
    %v6754 = vsub.f32 %v6746, %v6752
    %v6755 = vmul.f32 %v6753, 1.442695
    %v6756 = vpow.pop %v6755
    %v6757 = vmul.f32 %v6754, 1.442695
    %v6758 = vpow.pop %v6757
    %v6759 = vsel %vm1058, %v6756, 0.0
    %6760 = vadd.xlane.f32.xlu0 %v6759
    %v6761 = vpop.xlane.xlu0 %6760
    %v6762 = vsel %vm1058, %v6758, 0.0
    %6763 = vadd.xlane.f32.xlu0 %v6762
    %v6764 = vpop.xlane.xlu0 %6763
    %v6765 = vrcp.pop %v6761
    %v6766 = vrcp.pop %v6764
    %v6767 = vmul.f32 %v6756, %v6765
    %v6768 = vmul.f32 %v6758, %v6766
    %v6769 = vpack.c.bf16 %v6767, %v6767
    %v6770 = vpack.c.bf16 %v6768, %v6768
    %v6771 = vpack.c.bf16 %v6653, %v6653
    %v6772 = vpack.c.bf16 %v6657, %v6657
    %v6774 = vsel %vm1058, %v6769, 0
    %v6777 = vsel %vm1088, %v6771, 0
    %6779 = vmatprep.subr.bf16.mxu0 0
    %6780 = vmatpush1.bf16.msra.mxu0 %v6777
    %6781 = vmatprep.subr.bf16.mxu0 0
    %6782 = vmatpush1.bf16.msra.mxu0 0
    %6783 = vmatprep.subr.bf16.mxu0 0
    %6784 = vmatpush1.bf16.msra.mxu0 0
    %6785 = vmatprep.subr.bf16.mxu0 0
    %6786 = vmatpush1.bf16.msra.mxu0 0
    %6787 = vmatprep.subr.bf16.mxu0 0
    %6788 = vmatpush1.bf16.msra.mxu0 0
    %6789 = vmatprep.subr.bf16.mxu0 0
    %6790 = vmatpush1.bf16.msra.mxu0 0
    %6791 = vmatprep.subr.bf16.mxu0 0
    %6792 = vmatpush1.bf16.msra.mxu0 0
    %6793 = vmatprep.subr.bf16.mxu0 0
    %6794 = vmatpush1.bf16.msra.mxu0 0
    %6795 = vmatprep.subr.bf16.mxu0 0
    %6796 = vmatpush1.bf16.msra.mxu0 0
    %6797 = vmatprep.subr.bf16.mxu0 0
    %6798 = vmatpush1.bf16.msra.mxu0 0
    %6799 = vmatprep.subr.bf16.mxu0 0
    %6800 = vmatpush1.bf16.msra.mxu0 0
    %6801 = vmatprep.subr.bf16.mxu0 0
    %6802 = vmatpush1.bf16.msra.mxu0 0
    %6803 = vmatprep.subr.bf16.mxu0 0
    %6804 = vmatpush1.bf16.msra.mxu0 0
    %6805 = vmatprep.subr.bf16.mxu0 0
    %6806 = vmatpush1.bf16.msra.mxu0 0
    %6807 = vmatprep.subr.bf16.mxu0 0
    %6808 = vmatpush1.bf16.msra.mxu0 0
    %6809 = vmatprep.subr.bf16.mxu0 0
    %6810 = vmatpush1.bf16.msra.mxu0 0
    %6811 = vmatprep.mubr.bf16.mxu0 0
    %6812 = vmatmul.mubr.bf16.gmra.mrb[0].mxu0 %v6774
    %v6813 = vpop.f32.mrb[0].mxu0
    %v6814 = vadd.f32 0.0, %v6813
    %v6815 = vpop.f32.mrb[0].mxu0
    %v6816 = vpop.f32.mrb[0].mxu0
    %v6817 = vpop.f32.mrb[0].mxu0
    %6818 = vdwg.mxu0
    %v6820 = vsel %vm1058, %v6770, 0
    %v6823 = vsel %vm1088, %v6772, 0
    %6825 = vmatprep.subr.bf16.mxu0 0
    %6826 = vmatpush1.bf16.msra.mxu0 %v6823
    %6827 = vmatprep.subr.bf16.mxu0 0
    %6828 = vmatpush1.bf16.msra.mxu0 0
    %6829 = vmatprep.subr.bf16.mxu0 0
    %6830 = vmatpush1.bf16.msra.mxu0 0
    %6831 = vmatprep.subr.bf16.mxu0 0
    %6832 = vmatpush1.bf16.msra.mxu0 0
    %6833 = vmatprep.subr.bf16.mxu0 0
    %6834 = vmatpush1.bf16.msra.mxu0 0
    %6835 = vmatprep.subr.bf16.mxu0 0
    %6836 = vmatpush1.bf16.msra.mxu0 0
    %6837 = vmatprep.subr.bf16.mxu0 0
    %6838 = vmatpush1.bf16.msra.mxu0 0
    %6839 = vmatprep.subr.bf16.mxu0 0
    %6840 = vmatpush1.bf16.msra.mxu0 0
    %6841 = vmatprep.subr.bf16.mxu0 0
    %6842 = vmatpush1.bf16.msra.mxu0 0
    %6843 = vmatprep.subr.bf16.mxu0 0
    %6844 = vmatpush1.bf16.msra.mxu0 0
    %6845 = vmatprep.subr.bf16.mxu0 0
    %6846 = vmatpush1.bf16.msra.mxu0 0
    %6847 = vmatprep.subr.bf16.mxu0 0
    %6848 = vmatpush1.bf16.msra.mxu0 0
    %6849 = vmatprep.subr.bf16.mxu0 0
    %6850 = vmatpush1.bf16.msra.mxu0 0
    %6851 = vmatprep.subr.bf16.mxu0 0
    %6852 = vmatpush1.bf16.msra.mxu0 0
    %6853 = vmatprep.subr.bf16.mxu0 0
    %6854 = vmatpush1.bf16.msra.mxu0 0
    %6855 = vmatprep.subr.bf16.mxu0 0
    %6856 = vmatpush1.bf16.msra.mxu0 0
    %6857 = vmatprep.mubr.bf16.mxu0 0
    %6858 = vmatmul.mubr.bf16.gmra.mrb[0].mxu0 %v6820
    %v6859 = vpop.f32.mrb[0].mxu0
    %v6860 = vadd.f32 0.0, %v6859
    %v6861 = vpop.f32.mrb[0].mxu0
    %v6862 = vpop.f32.mrb[0].mxu0
    %v6863 = vpop.f32.mrb[0].mxu0
    %6864 = vdwg.mxu0
    %v6865 = vpack.c.bf16 %v6569, %v6569
    %v6866 = vpack.c.bf16 %v6573, %v6573
    %v6867 = vpack.c.bf16 %v6612, %v6612
    %v6868 = vpack.c.bf16 %v6616, %v6616
    %6869 = vmatprep.subr.bf16.mxu0 0
    %6870 = vmatpush1.bf16.xpose.msra.mxu0 %v6867
    %6871 = vmatprep.subr.bf16.mxu0 0
    %6872 = vmatpush1.bf16.xpose.msra.mxu0 0
    %6873 = vmatprep.subr.bf16.mxu0 0
    %6874 = vmatpush1.bf16.xpose.msra.mxu0 0
    %6875 = vmatprep.subr.bf16.mxu0 0
    %6876 = vmatpush1.bf16.xpose.msra.mxu0 0
    %6877 = vmatprep.subr.bf16.mxu0 0
    %6878 = vmatpush1.bf16.xpose.msra.mxu0 0
    %6879 = vmatprep.subr.bf16.mxu0 0
    %6880 = vmatpush1.bf16.xpose.msra.mxu0 0
    %6881 = vmatprep.subr.bf16.mxu0 0
    %6882 = vmatpush1.bf16.xpose.msra.mxu0 0
    %6883 = vmatprep.subr.bf16.mxu0 0
    %6884 = vmatpush1.bf16.xpose.msra.mxu0 0
    %6885 = vmatprep.subr.bf16.mxu0 0
    %6886 = vmatpush1.bf16.xpose.msra.mxu0 0
    %6887 = vmatprep.subr.bf16.mxu0 0
    %6888 = vmatpush1.bf16.xpose.msra.mxu0 0
    %6889 = vmatprep.subr.bf16.mxu0 0
    %6890 = vmatpush1.bf16.xpose.msra.mxu0 0
    %6891 = vmatprep.subr.bf16.mxu0 0
    %6892 = vmatpush1.bf16.xpose.msra.mxu0 0
    %6893 = vmatprep.subr.bf16.mxu0 0
    %6894 = vmatpush1.bf16.xpose.msra.mxu0 0
    %6895 = vmatprep.subr.bf16.mxu0 0
    %6896 = vmatpush1.bf16.xpose.msra.mxu0 0
    %6897 = vmatprep.subr.bf16.mxu0 0
    %6898 = vmatpush1.bf16.xpose.msra.mxu0 0
    %6899 = vmatprep.subr.bf16.mxu0 0
    %6900 = vmatpush1.bf16.xpose.msra.mxu0 0
    %6901 = vmatprep.mubr.bf16.mxu0 0
    %6902 = vmatmul.mubr.bf16.gmra.mrb[0].mxu0 %v6865
    %v6903 = vpop.f32.mrb[0].mxu0
    %v6904 = vadd.f32 0.0, %v6903
    %v6905 = vpop.f32.mrb[0].mxu0
    %v6906 = vpop.f32.mrb[0].mxu0
    %v6907 = vpop.f32.mrb[0].mxu0
    %6908 = vdwg.mxu0
    %6909 = vmatprep.subr.bf16.mxu0 0
    %6910 = vmatpush1.bf16.xpose.msra.mxu0 %v6868
    %6911 = vmatprep.subr.bf16.mxu0 0
    %6912 = vmatpush1.bf16.xpose.msra.mxu0 0
    %6913 = vmatprep.subr.bf16.mxu0 0
    %6914 = vmatpush1.bf16.xpose.msra.mxu0 0
    %6915 = vmatprep.subr.bf16.mxu0 0
    %6916 = vmatpush1.bf16.xpose.msra.mxu0 0
    %6917 = vmatprep.subr.bf16.mxu0 0
    %6918 = vmatpush1.bf16.xpose.msra.mxu0 0
    %6919 = vmatprep.subr.bf16.mxu0 0
    %6920 = vmatpush1.bf16.xpose.msra.mxu0 0
    %6921 = vmatprep.subr.bf16.mxu0 0
    %6922 = vmatpush1.bf16.xpose.msra.mxu0 0
    %6923 = vmatprep.subr.bf16.mxu0 0
    %6924 = vmatpush1.bf16.xpose.msra.mxu0 0
    %6925 = vmatprep.subr.bf16.mxu0 0
    %6926 = vmatpush1.bf16.xpose.msra.mxu0 0
    %6927 = vmatprep.subr.bf16.mxu0 0
    %6928 = vmatpush1.bf16.xpose.msra.mxu0 0
    %6929 = vmatprep.subr.bf16.mxu0 0
    %6930 = vmatpush1.bf16.xpose.msra.mxu0 0
    %6931 = vmatprep.subr.bf16.mxu0 0
    %6932 = vmatpush1.bf16.xpose.msra.mxu0 0
    %6933 = vmatprep.subr.bf16.mxu0 0
    %6934 = vmatpush1.bf16.xpose.msra.mxu0 0
    %6935 = vmatprep.subr.bf16.mxu0 0
    %6936 = vmatpush1.bf16.xpose.msra.mxu0 0
    %6937 = vmatprep.subr.bf16.mxu0 0
    %6938 = vmatpush1.bf16.xpose.msra.mxu0 0
    %6939 = vmatprep.subr.bf16.mxu0 0
    %6940 = vmatpush1.bf16.xpose.msra.mxu0 0
    %6941 = vmatprep.mubr.bf16.mxu0 0
    %6942 = vmatmul.mubr.bf16.gmra.mrb[0].mxu0 %v6866
    %v6943 = vpop.f32.mrb[0].mxu0
    %v6944 = vadd.f32 0.0, %v6943
    %v6945 = vpop.f32.mrb[0].mxu0
    %v6946 = vpop.f32.mrb[0].mxu0
    %v6947 = vpop.f32.mrb[0].mxu0
    %6948 = vdwg.mxu0
    %v6949 = vmul.f32 %v6904, 0.088388346
    %v6950 = vmul.f32 %v6944, 0.088388346
    %v6951 = vsel %vm1058, %v6949, -inf
    %6952 = vmax.xlane.f32.xlu0 %v6951
    %v6953 = vpop.xlane.xlu0 %6952
    %v6954 = vsel %vm1058, %v6950, -inf
    %6955 = vmax.xlane.f32.xlu0 %v6954
    %v6956 = vpop.xlane.xlu0 %6955
    %v6957 = vsub.f32 %v6949, %v6953
    %v6958 = vsub.f32 %v6950, %v6956
    %v6959 = vmul.f32 %v6957, 1.442695
    %v6960 = vpow.pop %v6959
    %v6961 = vmul.f32 %v6958, 1.442695
    %v6962 = vpow.pop %v6961
    %v6963 = vsel %vm1058, %v6960, 0.0
    %6964 = vadd.xlane.f32.xlu0 %v6963
    %v6965 = vpop.xlane.xlu0 %6964
    %v6966 = vsel %vm1058, %v6962, 0.0
    %6967 = vadd.xlane.f32.xlu0 %v6966
    %v6968 = vpop.xlane.xlu0 %6967
    %v6969 = vrcp.pop %v6965
    %v6970 = vrcp.pop %v6968
    %v6971 = vmul.f32 %v6960, %v6969
    %v6972 = vmul.f32 %v6962, %v6970
    %v6973 = vpack.c.bf16 %v6971, %v6971
    %v6974 = vpack.c.bf16 %v6972, %v6972
    %v6975 = vpack.c.bf16 %v6655, %v6655
    %v6976 = vpack.c.bf16 %v6659, %v6659
    %v6978 = vsel %vm1058, %v6973, 0
    %v6981 = vsel %vm1088, %v6975, 0
    %6983 = vmatprep.subr.bf16.mxu0 0
    %6984 = vmatpush1.bf16.msra.mxu0 %v6981
    %6985 = vmatprep.subr.bf16.mxu0 0
    %6986 = vmatpush1.bf16.msra.mxu0 0
    %6987 = vmatprep.subr.bf16.mxu0 0
    %6988 = vmatpush1.bf16.msra.mxu0 0
    %6989 = vmatprep.subr.bf16.mxu0 0
    %6990 = vmatpush1.bf16.msra.mxu0 0
    %6991 = vmatprep.subr.bf16.mxu0 0
    %6992 = vmatpush1.bf16.msra.mxu0 0
    %6993 = vmatprep.subr.bf16.mxu0 0
    %6994 = vmatpush1.bf16.msra.mxu0 0
    %6995 = vmatprep.subr.bf16.mxu0 0
    %6996 = vmatpush1.bf16.msra.mxu0 0
    %6997 = vmatprep.subr.bf16.mxu0 0
    %6998 = vmatpush1.bf16.msra.mxu0 0
    %6999 = vmatprep.subr.bf16.mxu0 0
    %7000 = vmatpush1.bf16.msra.mxu0 0
    %7001 = vmatprep.subr.bf16.mxu0 0
    %7002 = vmatpush1.bf16.msra.mxu0 0
    %7003 = vmatprep.subr.bf16.mxu0 0
    %7004 = vmatpush1.bf16.msra.mxu0 0
    %7005 = vmatprep.subr.bf16.mxu0 0
    %7006 = vmatpush1.bf16.msra.mxu0 0
    %7007 = vmatprep.subr.bf16.mxu0 0
    %7008 = vmatpush1.bf16.msra.mxu0 0
    %7009 = vmatprep.subr.bf16.mxu0 0
    %7010 = vmatpush1.bf16.msra.mxu0 0
    %7011 = vmatprep.subr.bf16.mxu0 0
    %7012 = vmatpush1.bf16.msra.mxu0 0
    %7013 = vmatprep.subr.bf16.mxu0 0
    %7014 = vmatpush1.bf16.msra.mxu0 0
    %7015 = vmatprep.mubr.bf16.mxu0 0
    %7016 = vmatmul.mubr.bf16.gmra.mrb[0].mxu0 %v6978
    %v7017 = vpop.f32.mrb[0].mxu0
    %v7018 = vadd.f32 0.0, %v7017
    %v7019 = vpop.f32.mrb[0].mxu0
    %v7020 = vpop.f32.mrb[0].mxu0
    %v7021 = vpop.f32.mrb[0].mxu0
    %7022 = vdwg.mxu0
    %v7024 = vsel %vm1058, %v6974, 0
    %v7027 = vsel %vm1088, %v6976, 0
    %7029 = vmatprep.subr.bf16.mxu0 0
    %7030 = vmatpush1.bf16.msra.mxu0 %v7027
    %7031 = vmatprep.subr.bf16.mxu0 0
    %7032 = vmatpush1.bf16.msra.mxu0 0
    %7033 = vmatprep.subr.bf16.mxu0 0
    %7034 = vmatpush1.bf16.msra.mxu0 0
    %7035 = vmatprep.subr.bf16.mxu0 0
    %7036 = vmatpush1.bf16.msra.mxu0 0
    %7037 = vmatprep.subr.bf16.mxu0 0
    %7038 = vmatpush1.bf16.msra.mxu0 0
    %7039 = vmatprep.subr.bf16.mxu0 0
    %7040 = vmatpush1.bf16.msra.mxu0 0
    %7041 = vmatprep.subr.bf16.mxu0 0
    %7042 = vmatpush1.bf16.msra.mxu0 0
    %7043 = vmatprep.subr.bf16.mxu0 0
    %7044 = vmatpush1.bf16.msra.mxu0 0
    %7045 = vmatprep.subr.bf16.mxu0 0
    %7046 = vmatpush1.bf16.msra.mxu0 0
    %7047 = vmatprep.subr.bf16.mxu0 0
    %7048 = vmatpush1.bf16.msra.mxu0 0
    %7049 = vmatprep.subr.bf16.mxu0 0
    %7050 = vmatpush1.bf16.msra.mxu0 0
    %7051 = vmatprep.subr.bf16.mxu0 0
    %7052 = vmatpush1.bf16.msra.mxu0 0
    %7053 = vmatprep.subr.bf16.mxu0 0
    %7054 = vmatpush1.bf16.msra.mxu0 0
    %7055 = vmatprep.subr.bf16.mxu0 0
    %7056 = vmatpush1.bf16.msra.mxu0 0
    %7057 = vmatprep.subr.bf16.mxu0 0
    %7058 = vmatpush1.bf16.msra.mxu0 0
    %7059 = vmatprep.subr.bf16.mxu0 0
    %7060 = vmatpush1.bf16.msra.mxu0 0
    %7061 = vmatprep.mubr.bf16.mxu0 0
    %7062 = vmatmul.mubr.bf16.gmra.mrb[0].mxu0 %v7024
    %v7063 = vpop.f32.mrb[0].mxu0
    %v7064 = vadd.f32 0.0, %v7063
    %v7065 = vpop.f32.mrb[0].mxu0
    %v7066 = vpop.f32.mrb[0].mxu0
    %v7067 = vpop.f32.mrb[0].mxu0
    %7068 = vdwg.mxu0
    %v7069 = vpack.c.bf16 %v6860, %v6814
    %v7070 = vpack.c.bf16 %v7064, %v7018
    %s7071 = scalar_lea.vmem [#allocation8], 512
    %v7072 = vld [vmem:[%s7071] sm:$0xff]
    %v7073 = vld [vmem:[%s7071 + $0x8] sm:$0xff]
    %v7074 = vld [vmem:[%s7071 + $0x10] sm:$0xff]
    %v7075 = vld [vmem:[%s7071 + $0x18] sm:$0xff]
    %v7076 = vld [vmem:[%s7071 + $0x20] sm:$0xff]
    %v7077 = vld [vmem:[%s7071 + $0x28] sm:$0xff]
    %v7078 = vld [vmem:[%s7071 + $0x30] sm:$0xff]
    %v7079 = vld [vmem:[%s7071 + $0x38] sm:$0xff]
    %v7080 = vld [vmem:[%s7071 + $0x40] sm:$0xff]
    %v7081 = vld [vmem:[%s7071 + $0x48] sm:$0xff]
    %v7082 = vld [vmem:[%s7071 + $0x50] sm:$0xff]
    %v7083 = vld [vmem:[%s7071 + $0x58] sm:$0xff]
    %v7084 = vld [vmem:[%s7071 + $0x60] sm:$0xff]
    %v7085 = vld [vmem:[%s7071 + $0x68] sm:$0xff]
    %v7086 = vld [vmem:[%s7071 + $0x70] sm:$0xff]
    %v7087 = vld [vmem:[%s7071 + $0x78] sm:$0xff]
    %v7088 = vld [vmem:[%s7071 + $0x80] sm:$0xff]
    %v7089 = vld [vmem:[%s7071 + $0x88] sm:$0xff]
    %v7090 = vld [vmem:[%s7071 + $0x90] sm:$0xff]
    %v7091 = vld [vmem:[%s7071 + $0x98] sm:$0xff]
    %v7092 = vld [vmem:[%s7071 + $0xa0] sm:$0xff]
    %v7093 = vld [vmem:[%s7071 + $0xa8] sm:$0xff]
    %v7094 = vld [vmem:[%s7071 + $0xb0] sm:$0xff]
    %v7095 = vld [vmem:[%s7071 + $0xb8] sm:$0xff]
    %v7096 = vld [vmem:[%s7071 + $0xc0] sm:$0xff]
    %v7097 = vld [vmem:[%s7071 + $0xc8] sm:$0xff]
    %v7098 = vld [vmem:[%s7071 + $0xd0] sm:$0xff]
    %v7099 = vld [vmem:[%s7071 + $0xd8] sm:$0xff]
    %v7100 = vld [vmem:[%s7071 + $0xe0] sm:$0xff]
    %v7101 = vld [vmem:[%s7071 + $0xe8] sm:$0xff]
    %v7102 = vld [vmem:[%s7071 + $0xf0] sm:$0xff]
    %v7103 = vld [vmem:[%s7071 + $0xf8] sm:$0xff]
    %s7104 = scalar_lea.vmem [#allocation10], 4
    %v7105 = vld [vmem:[%s7104] sm:$0x3]
    %v7107 = vlaneseq
    %v7108 = vshrl.u32 %v7107, 7
    %v7109 = vsub.s32 0, %v7108
    %v7110 = vrot.slane %v7105, %v7109
    %v7111 = vlaneseq
    %v7112 = vshrl.u32 %v7111, 7
    %v7113 = vsub.s32 1, %v7112
    %v7114 = vrot.slane %v7105, %v7113
    %v7149 = vunpack.c.l.b16 %v7072
    %v7150 = vunpack.c.h.b16 %v7072
    %v7151 = vunpack.c.l.b16 %v7073
    %v7152 = vunpack.c.h.b16 %v7073
    %v7153 = vunpack.c.l.b16 %v7074
    %v7154 = vunpack.c.h.b16 %v7074
    %v7155 = vunpack.c.l.b16 %v7075
    %v7156 = vunpack.c.h.b16 %v7075
    %v7157 = vunpack.c.l.b16 %v7076
    %v7158 = vunpack.c.h.b16 %v7076
    %v7159 = vunpack.c.l.b16 %v7077
    %v7160 = vunpack.c.h.b16 %v7077
    %v7161 = vunpack.c.l.b16 %v7078
    %v7162 = vunpack.c.h.b16 %v7078
    %v7163 = vunpack.c.l.b16 %v7079
    %v7164 = vunpack.c.h.b16 %v7079
    %v7165 = vunpack.c.l.b16 %v7080
    %v7166 = vunpack.c.h.b16 %v7080
    %v7167 = vunpack.c.l.b16 %v7081
    %v7168 = vunpack.c.h.b16 %v7081
    %v7169 = vunpack.c.l.b16 %v7082
    %v7170 = vunpack.c.h.b16 %v7082
    %v7171 = vunpack.c.l.b16 %v7083
    %v7172 = vunpack.c.h.b16 %v7083
    %v7173 = vunpack.c.l.b16 %v7084
    %v7174 = vunpack.c.h.b16 %v7084
    %v7175 = vunpack.c.l.b16 %v7085
    %v7176 = vunpack.c.h.b16 %v7085
    %v7177 = vunpack.c.l.b16 %v7086
    %v7178 = vunpack.c.h.b16 %v7086
    %v7179 = vunpack.c.l.b16 %v7087
    %v7180 = vunpack.c.h.b16 %v7087
    %v7181 = vunpack.c.l.b16 %v7088
    %v7182 = vunpack.c.h.b16 %v7088
    %v7183 = vunpack.c.l.b16 %v7089
    %v7184 = vunpack.c.h.b16 %v7089
    %v7185 = vunpack.c.l.b16 %v7090
    %v7186 = vunpack.c.h.b16 %v7090
    %v7187 = vunpack.c.l.b16 %v7091
    %v7188 = vunpack.c.h.b16 %v7091
    %v7189 = vunpack.c.l.b16 %v7092
    %v7190 = vunpack.c.h.b16 %v7092
    %v7191 = vunpack.c.l.b16 %v7093
    %v7192 = vunpack.c.h.b16 %v7093
    %v7193 = vunpack.c.l.b16 %v7094
    %v7194 = vunpack.c.h.b16 %v7094
    %v7195 = vunpack.c.l.b16 %v7095
    %v7196 = vunpack.c.h.b16 %v7095
    %v7197 = vunpack.c.l.b16 %v7096
    %v7198 = vunpack.c.h.b16 %v7096
    %v7199 = vunpack.c.l.b16 %v7097
    %v7200 = vunpack.c.h.b16 %v7097
    %v7201 = vunpack.c.l.b16 %v7098
    %v7202 = vunpack.c.h.b16 %v7098
    %v7203 = vunpack.c.l.b16 %v7099
    %v7204 = vunpack.c.h.b16 %v7099
    %v7205 = vunpack.c.l.b16 %v7100
    %v7206 = vunpack.c.h.b16 %v7100
    %v7207 = vunpack.c.l.b16 %v7101
    %v7208 = vunpack.c.h.b16 %v7101
    %v7209 = vunpack.c.l.b16 %v7102
    %v7210 = vunpack.c.h.b16 %v7102
    %v7211 = vunpack.c.l.b16 %v7103
    %v7212 = vunpack.c.h.b16 %v7103
    %v7213 = vpack.c.b16 %v7151, %v7149
    %v7214 = vpack.c.b16 %v7152, %v7150
    %v7215 = vpack.c.b16 %v7155, %v7153
    %v7216 = vpack.c.b16 %v7156, %v7154
    %v7217 = vpack.c.b16 %v7159, %v7157
    %v7218 = vpack.c.b16 %v7160, %v7158
    %v7219 = vpack.c.b16 %v7163, %v7161
    %v7220 = vpack.c.b16 %v7164, %v7162
    %v7221 = vpack.c.b16 %v7167, %v7165
    %v7222 = vpack.c.b16 %v7168, %v7166
    %v7223 = vpack.c.b16 %v7171, %v7169
    %v7224 = vpack.c.b16 %v7172, %v7170
    %v7225 = vpack.c.b16 %v7175, %v7173
    %v7226 = vpack.c.b16 %v7176, %v7174
    %v7227 = vpack.c.b16 %v7179, %v7177
    %v7228 = vpack.c.b16 %v7180, %v7178
    %v7229 = vpack.c.b16 %v7183, %v7181
    %v7230 = vpack.c.b16 %v7184, %v7182
    %v7231 = vpack.c.b16 %v7187, %v7185
    %v7232 = vpack.c.b16 %v7188, %v7186
    %v7233 = vpack.c.b16 %v7191, %v7189
    %v7234 = vpack.c.b16 %v7192, %v7190
    %v7235 = vpack.c.b16 %v7195, %v7193
    %v7236 = vpack.c.b16 %v7196, %v7194
    %v7237 = vpack.c.b16 %v7199, %v7197
    %v7238 = vpack.c.b16 %v7200, %v7198
    %v7239 = vpack.c.b16 %v7203, %v7201
    %v7240 = vpack.c.b16 %v7204, %v7202
    %v7241 = vpack.c.b16 %v7207, %v7205
    %v7242 = vpack.c.b16 %v7208, %v7206
    %v7243 = vpack.c.b16 %v7211, %v7209
    %v7244 = vpack.c.b16 %v7212, %v7210
    %7277 = vmatprep.subr.bf16.mxu0 %v7214
    %7278 = vmatpush1.bf16.msra.mxu0 %v7213
    %7279 = vmatprep.subr.bf16.mxu0 %v7216
    %7280 = vmatpush1.bf16.msra.mxu0 %v7215
    %7281 = vmatprep.subr.bf16.mxu0 %v7218
    %7282 = vmatpush1.bf16.msra.mxu0 %v7217
    %7283 = vmatprep.subr.bf16.mxu0 %v7220
    %7284 = vmatpush1.bf16.msra.mxu0 %v7219
    %7285 = vmatprep.subr.bf16.mxu0 %v7222
    %7286 = vmatpush1.bf16.msra.mxu0 %v7221
    %7287 = vmatprep.subr.bf16.mxu0 %v7224
    %7288 = vmatpush1.bf16.msra.mxu0 %v7223
    %7289 = vmatprep.subr.bf16.mxu0 %v7226
    %7290 = vmatpush1.bf16.msra.mxu0 %v7225
    %7291 = vmatprep.subr.bf16.mxu0 %v7228
    %7292 = vmatpush1.bf16.msra.mxu0 %v7227
    %7293 = vmatprep.subr.bf16.mxu0 %v7230
    %7294 = vmatpush1.bf16.msra.mxu0 %v7229
    %7295 = vmatprep.subr.bf16.mxu0 %v7232
    %7296 = vmatpush1.bf16.msra.mxu0 %v7231
    %7297 = vmatprep.subr.bf16.mxu0 %v7234
    %7298 = vmatpush1.bf16.msra.mxu0 %v7233
    %7299 = vmatprep.subr.bf16.mxu0 %v7236
    %7300 = vmatpush1.bf16.msra.mxu0 %v7235
    %7301 = vmatprep.subr.bf16.mxu0 %v7238
    %7302 = vmatpush1.bf16.msra.mxu0 %v7237
    %7303 = vmatprep.subr.bf16.mxu0 %v7240
    %7304 = vmatpush1.bf16.msra.mxu0 %v7239
    %7305 = vmatprep.subr.bf16.mxu0 %v7242
    %7306 = vmatpush1.bf16.msra.mxu0 %v7241
    %7307 = vmatprep.subr.bf16.mxu0 %v7244
    %7308 = vmatpush1.bf16.msra.mxu0 %v7243
    %7309 = vmatprep.mubr.bf16.mxu0 %v7070
    %7310 = vmatmul.mubr.bf16.gmra.mrb[0].mxu0 %v7069
    %v7311 = vpop.f32.mrb[0].mxu0
    %v7312 = vadd.f32 %v7110, %v7311
    %v7313 = vpop.f32.mrb[0].mxu0
    %v7314 = vadd.f32 %v7114, %v7313
    %v7315 = vpop.f32.mrb[0].mxu0
    %v7316 = vadd.f32 %v7110, %v7315
    %v7317 = vpop.f32.mrb[0].mxu0
    %v7318 = vadd.f32 %v7114, %v7317
    %7319 = vdwg.mxu0
    %v7320 = vadd.f32 %v5916, %v7312
    %v7321 = vadd.f32 %v5917, %v7314
    %v7322 = vadd.f32 %v5918, %v7316
    %v7323 = vadd.f32 %v5919, %v7318
    %s7324 = scalar_lea.vmem [#allocation17], 4
    %v7325 = vld [vmem:[%s7324] sm:$0x3]
    %s7326 = scalar_lea.vmem [#allocation19], 4
    %v7327 = vld [vmem:[%s7326] sm:$0x3]
    %v7328 = vadd.f32 %v7320, %v7321
    %7329 = vadd.xlane.f32.xlu0 %v7328
    %v7330 = vpop.xlane.xlu0 %7329
    %v7331 = vadd.f32 %v7322, %v7323
    %7332 = vadd.xlane.f32.xlu0 %v7331
    %v7333 = vpop.xlane.xlu0 %7332
    %v7334 = vmul.f32 %v7330, %v1643
    %v7335 = vmul.f32 %v7333, %v1643
    %v7336 = vsub.f32 %v7320, %v7334
    %v7337 = vsub.f32 %v7321, %v7334
    %v7338 = vsub.f32 %v7322, %v7335
    %v7339 = vsub.f32 %v7323, %v7335
    %v7340 = vmul.f32 %v7336, %v7336
    %v7341 = vmul.f32 %v7337, %v7337
    %v7342 = vmul.f32 %v7338, %v7338
    %v7343 = vmul.f32 %v7339, %v7339
    %v7344 = vadd.f32 %v7340, %v7341
    %7345 = vadd.xlane.f32.xlu0 %v7344
    %v7346 = vpop.xlane.xlu0 %7345
    %v7347 = vadd.f32 %v7342, %v7343
    %7348 = vadd.xlane.f32.xlu0 %v7347
    %v7349 = vpop.xlane.xlu0 %7348
    %v7350 = vmul.f32 %v7346, %v1643
    %v7351 = vmul.f32 %v7349, %v1643
    %v7352 = vadd.f32 %v7350, 1e-05
    %v7353 = vadd.f32 %v7351, 1e-05
    %v7354 = vrsqrt.pop %v7352
    %v7355 = vrsqrt.pop %v7353
    %v7356 = vmul.f32 %v7336, %v7354
    %v7357 = vmul.f32 %v7337, %v7354
    %v7358 = vmul.f32 %v7338, %v7355
    %v7359 = vmul.f32 %v7339, %v7355
    %v7361 = vlaneseq
    %v7362 = vshrl.u32 %v7361, 7
    %v7363 = vsub.s32 0, %v7362
    %v7364 = vrot.slane %v7325, %v7363
    %v7365 = vlaneseq
    %v7366 = vshrl.u32 %v7365, 7
    %v7367 = vsub.s32 1, %v7366
    %v7368 = vrot.slane %v7325, %v7367
    %v7371 = vmul.f32 %v7356, %v7364
    %v7372 = vmul.f32 %v7357, %v7368
    %v7373 = vmul.f32 %v7358, %v7364
    %v7374 = vmul.f32 %v7359, %v7368
    %v7376 = vlaneseq
    %v7377 = vshrl.u32 %v7376, 7
    %v7378 = vsub.s32 0, %v7377
    %v7379 = vrot.slane %v7327, %v7378
    %v7380 = vlaneseq
    %v7381 = vshrl.u32 %v7380, 7
    %v7382 = vsub.s32 1, %v7381
    %v7383 = vrot.slane %v7327, %v7382
    %v7386 = vadd.f32 %v7371, %v7379
    %v7387 = vadd.f32 %v7372, %v7383
    %v7388 = vadd.f32 %v7373, %v7379
    %v7389 = vadd.f32 %v7374, %v7383
    %v7390 = vpack.c.bf16 %v7388, %v7386
    %v7391 = vpack.c.bf16 %v7389, %v7387
    %s7392 = scalar_lea.vmem [#allocation11], 1280
    %v7393 = vld [vmem:[%s7392] sm:$0xff]
    %v7394 = vld [vmem:[%s7392 + $0x8] sm:$0xff]
    %v7395 = vld [vmem:[%s7392 + $0x10] sm:$0xf]
    %v7396 = vld [vmem:[%s7392 + $0x14] sm:$0xff]
    %v7397 = vld [vmem:[%s7392 + $0x1c] sm:$0xff]
    %v7398 = vld [vmem:[%s7392 + $0x24] sm:$0xf]
    %v7399 = vld [vmem:[%s7392 + $0x28] sm:$0xff]
    %v7400 = vld [vmem:[%s7392 + $0x30] sm:$0xff]
    %v7401 = vld [vmem:[%s7392 + $0x38] sm:$0xf]
    %v7402 = vld [vmem:[%s7392 + $0x3c] sm:$0xff]
    %v7403 = vld [vmem:[%s7392 + $0x44] sm:$0xff]
    %v7404 = vld [vmem:[%s7392 + $0x4c] sm:$0xf]
    %v7405 = vld [vmem:[%s7392 + $0x50] sm:$0xff]
    %v7406 = vld [vmem:[%s7392 + $0x58] sm:$0xff]
    %v7407 = vld [vmem:[%s7392 + $0x60] sm:$0xf]
    %v7408 = vld [vmem:[%s7392 + $0x64] sm:$0xff]
    %v7409 = vld [vmem:[%s7392 + $0x6c] sm:$0xff]
    %v7410 = vld [vmem:[%s7392 + $0x74] sm:$0xf]
    %v7411 = vld [vmem:[%s7392 + $0x78] sm:$0xff]
    %v7412 = vld [vmem:[%s7392 + $0x80] sm:$0xff]
    %v7413 = vld [vmem:[%s7392 + $0x88] sm:$0xf]
    %v7414 = vld [vmem:[%s7392 + $0x8c] sm:$0xff]
    %v7415 = vld [vmem:[%s7392 + $0x94] sm:$0xff]
    %v7416 = vld [vmem:[%s7392 + $0x9c] sm:$0xf]
    %v7417 = vld [vmem:[%s7392 + $0xa0] sm:$0xff]
    %v7418 = vld [vmem:[%s7392 + $0xa8] sm:$0xff]
    %v7419 = vld [vmem:[%s7392 + $0xb0] sm:$0xf]
    %v7420 = vld [vmem:[%s7392 + $0xb4] sm:$0xff]
    %v7421 = vld [vmem:[%s7392 + $0xbc] sm:$0xff]
    %v7422 = vld [vmem:[%s7392 + $0xc4] sm:$0xf]
    %v7423 = vld [vmem:[%s7392 + $0xc8] sm:$0xff]
    %v7424 = vld [vmem:[%s7392 + $0xd0] sm:$0xff]
    %v7425 = vld [vmem:[%s7392 + $0xd8] sm:$0xf]
    %v7426 = vld [vmem:[%s7392 + $0xdc] sm:$0xff]
    %v7427 = vld [vmem:[%s7392 + $0xe4] sm:$0xff]
    %v7428 = vld [vmem:[%s7392 + $0xec] sm:$0xf]
    %v7429 = vld [vmem:[%s7392 + $0xf0] sm:$0xff]
    %v7430 = vld [vmem:[%s7392 + $0xf8] sm:$0xff]
    %v7431 = vld [vmem:[%s7392 + $0x100] sm:$0xf]
    %v7432 = vld [vmem:[%s7392 + $0x104] sm:$0xff]
    %v7433 = vld [vmem:[%s7392 + $0x10c] sm:$0xff]
    %v7434 = vld [vmem:[%s7392 + $0x114] sm:$0xf]
    %v7435 = vld [vmem:[%s7392 + $0x118] sm:$0xff]
    %v7436 = vld [vmem:[%s7392 + $0x120] sm:$0xff]
    %v7437 = vld [vmem:[%s7392 + $0x128] sm:$0xf]
    %v7438 = vld [vmem:[%s7392 + $0x12c] sm:$0xff]
    %v7439 = vld [vmem:[%s7392 + $0x134] sm:$0xff]
    %v7440 = vld [vmem:[%s7392 + $0x13c] sm:$0xf]
    %v7441 = vld [vmem:[%s7392 + $0x140] sm:$0xff]
    %v7442 = vld [vmem:[%s7392 + $0x148] sm:$0xff]
    %v7443 = vld [vmem:[%s7392 + $0x150] sm:$0xf]
    %v7444 = vld [vmem:[%s7392 + $0x154] sm:$0xff]
    %v7445 = vld [vmem:[%s7392 + $0x15c] sm:$0xff]
    %v7446 = vld [vmem:[%s7392 + $0x164] sm:$0xf]
    %v7447 = vld [vmem:[%s7392 + $0x168] sm:$0xff]
    %v7448 = vld [vmem:[%s7392 + $0x170] sm:$0xff]
    %v7449 = vld [vmem:[%s7392 + $0x178] sm:$0xf]
    %v7450 = vld [vmem:[%s7392 + $0x17c] sm:$0xff]
    %v7451 = vld [vmem:[%s7392 + $0x184] sm:$0xff]
    %v7452 = vld [vmem:[%s7392 + $0x18c] sm:$0xf]
    %v7453 = vld [vmem:[%s7392 + $0x190] sm:$0xff]
    %v7454 = vld [vmem:[%s7392 + $0x198] sm:$0xff]
    %v7455 = vld [vmem:[%s7392 + $0x1a0] sm:$0xf]
    %v7456 = vld [vmem:[%s7392 + $0x1a4] sm:$0xff]
    %v7457 = vld [vmem:[%s7392 + $0x1ac] sm:$0xff]
    %v7458 = vld [vmem:[%s7392 + $0x1b4] sm:$0xf]
    %v7459 = vld [vmem:[%s7392 + $0x1b8] sm:$0xff]
    %v7460 = vld [vmem:[%s7392 + $0x1c0] sm:$0xff]
    %v7461 = vld [vmem:[%s7392 + $0x1c8] sm:$0xf]
    %v7462 = vld [vmem:[%s7392 + $0x1cc] sm:$0xff]
    %v7463 = vld [vmem:[%s7392 + $0x1d4] sm:$0xff]
    %v7464 = vld [vmem:[%s7392 + $0x1dc] sm:$0xf]
    %v7465 = vld [vmem:[%s7392 + $0x1e0] sm:$0xff]
    %v7466 = vld [vmem:[%s7392 + $0x1e8] sm:$0xff]
    %v7467 = vld [vmem:[%s7392 + $0x1f0] sm:$0xf]
    %v7468 = vld [vmem:[%s7392 + $0x1f4] sm:$0xff]
    %v7469 = vld [vmem:[%s7392 + $0x1fc] sm:$0xff]
    %v7470 = vld [vmem:[%s7392 + $0x204] sm:$0xf]
    %v7471 = vld [vmem:[%s7392 + $0x208] sm:$0xff]
    %v7472 = vld [vmem:[%s7392 + $0x210] sm:$0xff]
    %v7473 = vld [vmem:[%s7392 + $0x218] sm:$0xf]
    %v7474 = vld [vmem:[%s7392 + $0x21c] sm:$0xff]
    %v7475 = vld [vmem:[%s7392 + $0x224] sm:$0xff]
    %v7476 = vld [vmem:[%s7392 + $0x22c] sm:$0xf]
    %v7477 = vld [vmem:[%s7392 + $0x230] sm:$0xff]
    %v7478 = vld [vmem:[%s7392 + $0x238] sm:$0xff]
    %v7479 = vld [vmem:[%s7392 + $0x240] sm:$0xf]
    %v7480 = vld [vmem:[%s7392 + $0x244] sm:$0xff]
    %v7481 = vld [vmem:[%s7392 + $0x24c] sm:$0xff]
    %v7482 = vld [vmem:[%s7392 + $0x254] sm:$0xf]
    %v7483 = vld [vmem:[%s7392 + $0x258] sm:$0xff]
    %v7484 = vld [vmem:[%s7392 + $0x260] sm:$0xff]
    %v7485 = vld [vmem:[%s7392 + $0x268] sm:$0xf]
    %v7486 = vld [vmem:[%s7392 + $0x26c] sm:$0xff]
    %v7487 = vld [vmem:[%s7392 + $0x274] sm:$0xff]
    %v7488 = vld [vmem:[%s7392 + $0x27c] sm:$0xf]
    %s7489 = scalar_lea.vmem [#allocation13], 10
    %v7490 = vld [vmem:[%s7489] sm:$0x1f]
    %v7492 = vlaneseq
    %v7493 = vshrl.u32 %v7492, 7
    %v7494 = vsub.s32 0, %v7493
    %v7495 = vrot.slane %v7490, %v7494
    %v7496 = vlaneseq
    %v7497 = vshrl.u32 %v7496, 7
    %v7498 = vsub.s32 1, %v7497
    %v7499 = vrot.slane %v7490, %v7498
    %v7500 = vlaneseq
    %v7501 = vshrl.u32 %v7500, 7
    %v7502 = vsub.s32 2, %v7501
    %v7503 = vrot.slane %v7490, %v7502
    %v7504 = vlaneseq
    %v7505 = vshrl.u32 %v7504, 7
    %v7506 = vsub.s32 3, %v7505
    %v7507 = vrot.slane %v7490, %v7506
    %v7508 = vlaneseq
    %v7509 = vshrl.u32 %v7508, 7
    %v7510 = vsub.s32 4, %v7509
    %v7511 = vrot.slane %v7490, %v7510
    %v7613 = vunpack.c.l.b16 %v7393
    %v7614 = vunpack.c.h.b16 %v7393
    %v7615 = vunpack.c.l.b16 %v7394
    %v7616 = vunpack.c.h.b16 %v7394
    %v7617 = vunpack.c.l.b16 %v7395
    %v7618 = vunpack.c.l.b16 %v7396
    %v7619 = vunpack.c.h.b16 %v7396
    %v7620 = vunpack.c.l.b16 %v7397
    %v7621 = vunpack.c.h.b16 %v7397
    %v7622 = vunpack.c.l.b16 %v7398
    %v7623 = vunpack.c.l.b16 %v7399
    %v7624 = vunpack.c.h.b16 %v7399
    %v7625 = vunpack.c.l.b16 %v7400
    %v7626 = vunpack.c.h.b16 %v7400
    %v7627 = vunpack.c.l.b16 %v7401
    %v7628 = vunpack.c.l.b16 %v7402
    %v7629 = vunpack.c.h.b16 %v7402
    %v7630 = vunpack.c.l.b16 %v7403
    %v7631 = vunpack.c.h.b16 %v7403
    %v7632 = vunpack.c.l.b16 %v7404
    %v7633 = vunpack.c.l.b16 %v7405
    %v7634 = vunpack.c.h.b16 %v7405
    %v7635 = vunpack.c.l.b16 %v7406
    %v7636 = vunpack.c.h.b16 %v7406
    %v7637 = vunpack.c.l.b16 %v7407
    %v7638 = vunpack.c.l.b16 %v7408
    %v7639 = vunpack.c.h.b16 %v7408
    %v7640 = vunpack.c.l.b16 %v7409
    %v7641 = vunpack.c.h.b16 %v7409
    %v7642 = vunpack.c.l.b16 %v7410
    %v7643 = vunpack.c.l.b16 %v7411
    %v7644 = vunpack.c.h.b16 %v7411
    %v7645 = vunpack.c.l.b16 %v7412
    %v7646 = vunpack.c.h.b16 %v7412
    %v7647 = vunpack.c.l.b16 %v7413
    %v7648 = vunpack.c.l.b16 %v7414
    %v7649 = vunpack.c.h.b16 %v7414
    %v7650 = vunpack.c.l.b16 %v7415
    %v7651 = vunpack.c.h.b16 %v7415
    %v7652 = vunpack.c.l.b16 %v7416
    %v7653 = vunpack.c.l.b16 %v7417
    %v7654 = vunpack.c.h.b16 %v7417
    %v7655 = vunpack.c.l.b16 %v7418
    %v7656 = vunpack.c.h.b16 %v7418
    %v7657 = vunpack.c.l.b16 %v7419
    %v7658 = vunpack.c.l.b16 %v7420
    %v7659 = vunpack.c.h.b16 %v7420
    %v7660 = vunpack.c.l.b16 %v7421
    %v7661 = vunpack.c.h.b16 %v7421
    %v7662 = vunpack.c.l.b16 %v7422
    %v7663 = vunpack.c.l.b16 %v7423
    %v7664 = vunpack.c.h.b16 %v7423
    %v7665 = vunpack.c.l.b16 %v7424
    %v7666 = vunpack.c.h.b16 %v7424
    %v7667 = vunpack.c.l.b16 %v7425
    %v7668 = vunpack.c.l.b16 %v7426
    %v7669 = vunpack.c.h.b16 %v7426
    %v7670 = vunpack.c.l.b16 %v7427
    %v7671 = vunpack.c.h.b16 %v7427
    %v7672 = vunpack.c.l.b16 %v7428
    %v7673 = vunpack.c.l.b16 %v7429
    %v7674 = vunpack.c.h.b16 %v7429
    %v7675 = vunpack.c.l.b16 %v7430
    %v7676 = vunpack.c.h.b16 %v7430
    %v7677 = vunpack.c.l.b16 %v7431
    %v7678 = vunpack.c.l.b16 %v7432
    %v7679 = vunpack.c.h.b16 %v7432
    %v7680 = vunpack.c.l.b16 %v7433
    %v7681 = vunpack.c.h.b16 %v7433
    %v7682 = vunpack.c.l.b16 %v7434
    %v7683 = vunpack.c.l.b16 %v7435
    %v7684 = vunpack.c.h.b16 %v7435
    %v7685 = vunpack.c.l.b16 %v7436
    %v7686 = vunpack.c.h.b16 %v7436
    %v7687 = vunpack.c.l.b16 %v7437
    %v7688 = vunpack.c.l.b16 %v7438
    %v7689 = vunpack.c.h.b16 %v7438
    %v7690 = vunpack.c.l.b16 %v7439
    %v7691 = vunpack.c.h.b16 %v7439
    %v7692 = vunpack.c.l.b16 %v7440
    %v7693 = vunpack.c.l.b16 %v7441
    %v7694 = vunpack.c.h.b16 %v7441
    %v7695 = vunpack.c.l.b16 %v7442
    %v7696 = vunpack.c.h.b16 %v7442
    %v7697 = vunpack.c.l.b16 %v7443
    %v7698 = vunpack.c.l.b16 %v7444
    %v7699 = vunpack.c.h.b16 %v7444
    %v7700 = vunpack.c.l.b16 %v7445
    %v7701 = vunpack.c.h.b16 %v7445
    %v7702 = vunpack.c.l.b16 %v7446
    %v7703 = vunpack.c.l.b16 %v7447
    %v7704 = vunpack.c.h.b16 %v7447
    %v7705 = vunpack.c.l.b16 %v7448
    %v7706 = vunpack.c.h.b16 %v7448
    %v7707 = vunpack.c.l.b16 %v7449
    %v7708 = vunpack.c.l.b16 %v7450
    %v7709 = vunpack.c.h.b16 %v7450
    %v7710 = vunpack.c.l.b16 %v7451
    %v7711 = vunpack.c.h.b16 %v7451
    %v7712 = vunpack.c.l.b16 %v7452
    %v7713 = vunpack.c.l.b16 %v7453
    %v7714 = vunpack.c.h.b16 %v7453
    %v7715 = vunpack.c.l.b16 %v7454
    %v7716 = vunpack.c.h.b16 %v7454
    %v7717 = vunpack.c.l.b16 %v7455
    %v7718 = vunpack.c.l.b16 %v7456
    %v7719 = vunpack.c.h.b16 %v7456
    %v7720 = vunpack.c.l.b16 %v7457
    %v7721 = vunpack.c.h.b16 %v7457
    %v7722 = vunpack.c.l.b16 %v7458
    %v7723 = vunpack.c.l.b16 %v7459
    %v7724 = vunpack.c.h.b16 %v7459
    %v7725 = vunpack.c.l.b16 %v7460
    %v7726 = vunpack.c.h.b16 %v7460
    %v7727 = vunpack.c.l.b16 %v7461
    %v7728 = vunpack.c.l.b16 %v7462
    %v7729 = vunpack.c.h.b16 %v7462
    %v7730 = vunpack.c.l.b16 %v7463
    %v7731 = vunpack.c.h.b16 %v7463
    %v7732 = vunpack.c.l.b16 %v7464
    %v7733 = vunpack.c.l.b16 %v7465
    %v7734 = vunpack.c.h.b16 %v7465
    %v7735 = vunpack.c.l.b16 %v7466
    %v7736 = vunpack.c.h.b16 %v7466
    %v7737 = vunpack.c.l.b16 %v7467
    %v7738 = vunpack.c.l.b16 %v7468
    %v7739 = vunpack.c.h.b16 %v7468
    %v7740 = vunpack.c.l.b16 %v7469
    %v7741 = vunpack.c.h.b16 %v7469
    %v7742 = vunpack.c.l.b16 %v7470
    %v7743 = vunpack.c.l.b16 %v7471
    %v7744 = vunpack.c.h.b16 %v7471
    %v7745 = vunpack.c.l.b16 %v7472
    %v7746 = vunpack.c.h.b16 %v7472
    %v7747 = vunpack.c.l.b16 %v7473
    %v7748 = vunpack.c.l.b16 %v7474
    %v7749 = vunpack.c.h.b16 %v7474
    %v7750 = vunpack.c.l.b16 %v7475
    %v7751 = vunpack.c.h.b16 %v7475
    %v7752 = vunpack.c.l.b16 %v7476
    %v7753 = vunpack.c.l.b16 %v7477
    %v7754 = vunpack.c.h.b16 %v7477
    %v7755 = vunpack.c.l.b16 %v7478
    %v7756 = vunpack.c.h.b16 %v7478
    %v7757 = vunpack.c.l.b16 %v7479
    %v7758 = vunpack.c.l.b16 %v7480
    %v7759 = vunpack.c.h.b16 %v7480
    %v7760 = vunpack.c.l.b16 %v7481
    %v7761 = vunpack.c.h.b16 %v7481
    %v7762 = vunpack.c.l.b16 %v7482
    %v7763 = vunpack.c.l.b16 %v7483
    %v7764 = vunpack.c.h.b16 %v7483
    %v7765 = vunpack.c.l.b16 %v7484
    %v7766 = vunpack.c.h.b16 %v7484
    %v7767 = vunpack.c.l.b16 %v7485
    %v7768 = vunpack.c.l.b16 %v7486
    %v7769 = vunpack.c.h.b16 %v7486
    %v7770 = vunpack.c.l.b16 %v7487
    %v7771 = vunpack.c.h.b16 %v7487
    %v7772 = vunpack.c.l.b16 %v7488
    %v7773 = vpack.c.b16 %v7618, %v7613
    %v7774 = vpack.c.b16 %v7619, %v7614
    %v7775 = vpack.c.b16 %v7620, %v7615
    %v7776 = vpack.c.b16 %v7621, %v7616
    %v7777 = vpack.c.b16 %v7622, %v7617
    %v7778 = vpack.c.b16 %v7628, %v7623
    %v7779 = vpack.c.b16 %v7629, %v7624
    %v7780 = vpack.c.b16 %v7630, %v7625
    %v7781 = vpack.c.b16 %v7631, %v7626
    %v7782 = vpack.c.b16 %v7632, %v7627
    %v7783 = vpack.c.b16 %v7638, %v7633
    %v7784 = vpack.c.b16 %v7639, %v7634
    %v7785 = vpack.c.b16 %v7640, %v7635
    %v7786 = vpack.c.b16 %v7641, %v7636
    %v7787 = vpack.c.b16 %v7642, %v7637
    %v7788 = vpack.c.b16 %v7648, %v7643
    %v7789 = vpack.c.b16 %v7649, %v7644
    %v7790 = vpack.c.b16 %v7650, %v7645
    %v7791 = vpack.c.b16 %v7651, %v7646
    %v7792 = vpack.c.b16 %v7652, %v7647
    %v7793 = vpack.c.b16 %v7658, %v7653
    %v7794 = vpack.c.b16 %v7659, %v7654
    %v7795 = vpack.c.b16 %v7660, %v7655
    %v7796 = vpack.c.b16 %v7661, %v7656
    %v7797 = vpack.c.b16 %v7662, %v7657
    %v7798 = vpack.c.b16 %v7668, %v7663
    %v7799 = vpack.c.b16 %v7669, %v7664
    %v7800 = vpack.c.b16 %v7670, %v7665
    %v7801 = vpack.c.b16 %v7671, %v7666
    %v7802 = vpack.c.b16 %v7672, %v7667
    %v7803 = vpack.c.b16 %v7678, %v7673
    %v7804 = vpack.c.b16 %v7679, %v7674
    %v7805 = vpack.c.b16 %v7680, %v7675
    %v7806 = vpack.c.b16 %v7681, %v7676
    %v7807 = vpack.c.b16 %v7682, %v7677
    %v7808 = vpack.c.b16 %v7688, %v7683
    %v7809 = vpack.c.b16 %v7689, %v7684
    %v7810 = vpack.c.b16 %v7690, %v7685
    %v7811 = vpack.c.b16 %v7691, %v7686
    %v7812 = vpack.c.b16 %v7692, %v7687
    %v7813 = vpack.c.b16 %v7698, %v7693
    %v7814 = vpack.c.b16 %v7699, %v7694
    %v7815 = vpack.c.b16 %v7700, %v7695
    %v7816 = vpack.c.b16 %v7701, %v7696
    %v7817 = vpack.c.b16 %v7702, %v7697
    %v7818 = vpack.c.b16 %v7708, %v7703
    %v7819 = vpack.c.b16 %v7709, %v7704
    %v7820 = vpack.c.b16 %v7710, %v7705
    %v7821 = vpack.c.b16 %v7711, %v7706
    %v7822 = vpack.c.b16 %v7712, %v7707
    %v7823 = vpack.c.b16 %v7718, %v7713
    %v7824 = vpack.c.b16 %v7719, %v7714
    %v7825 = vpack.c.b16 %v7720, %v7715
    %v7826 = vpack.c.b16 %v7721, %v7716
    %v7827 = vpack.c.b16 %v7722, %v7717
    %v7828 = vpack.c.b16 %v7728, %v7723
    %v7829 = vpack.c.b16 %v7729, %v7724
    %v7830 = vpack.c.b16 %v7730, %v7725
    %v7831 = vpack.c.b16 %v7731, %v7726
    %v7832 = vpack.c.b16 %v7732, %v7727
    %v7833 = vpack.c.b16 %v7738, %v7733
    %v7834 = vpack.c.b16 %v7739, %v7734
    %v7835 = vpack.c.b16 %v7740, %v7735
    %v7836 = vpack.c.b16 %v7741, %v7736
    %v7837 = vpack.c.b16 %v7742, %v7737
    %v7838 = vpack.c.b16 %v7748, %v7743
    %v7839 = vpack.c.b16 %v7749, %v7744
    %v7840 = vpack.c.b16 %v7750, %v7745
    %v7841 = vpack.c.b16 %v7751, %v7746
    %v7842 = vpack.c.b16 %v7752, %v7747
    %v7843 = vpack.c.b16 %v7758, %v7753
    %v7844 = vpack.c.b16 %v7759, %v7754
    %v7845 = vpack.c.b16 %v7760, %v7755
    %v7846 = vpack.c.b16 %v7761, %v7756
    %v7847 = vpack.c.b16 %v7762, %v7757
    %v7848 = vpack.c.b16 %v7768, %v7763
    %v7849 = vpack.c.b16 %v7769, %v7764
    %v7850 = vpack.c.b16 %v7770, %v7765
    %v7851 = vpack.c.b16 %v7771, %v7766
    %v7852 = vpack.c.b16 %v7772, %v7767
    %7933 = vmatprep.subr.bf16.mxu0 %v7774
    %7934 = vmatpush1.bf16.msra.mxu0 %v7773
    %7935 = vmatprep.subr.bf16.mxu0 %v7779
    %7936 = vmatpush1.bf16.msra.mxu0 %v7778
    %7937 = vmatprep.subr.bf16.mxu0 %v7784
    %7938 = vmatpush1.bf16.msra.mxu0 %v7783
    %7939 = vmatprep.subr.bf16.mxu0 %v7789
    %7940 = vmatpush1.bf16.msra.mxu0 %v7788
    %7941 = vmatprep.subr.bf16.mxu0 %v7794
    %7942 = vmatpush1.bf16.msra.mxu0 %v7793
    %7943 = vmatprep.subr.bf16.mxu0 %v7799
    %7944 = vmatpush1.bf16.msra.mxu0 %v7798
    %7945 = vmatprep.subr.bf16.mxu0 %v7804
    %7946 = vmatpush1.bf16.msra.mxu0 %v7803
    %7947 = vmatprep.subr.bf16.mxu0 %v7809
    %7948 = vmatpush1.bf16.msra.mxu0 %v7808
    %7949 = vmatprep.subr.bf16.mxu0 %v7814
    %7950 = vmatpush1.bf16.msra.mxu0 %v7813
    %7951 = vmatprep.subr.bf16.mxu0 %v7819
    %7952 = vmatpush1.bf16.msra.mxu0 %v7818
    %7953 = vmatprep.subr.bf16.mxu0 %v7824
    %7954 = vmatpush1.bf16.msra.mxu0 %v7823
    %7955 = vmatprep.subr.bf16.mxu0 %v7829
    %7956 = vmatpush1.bf16.msra.mxu0 %v7828
    %7957 = vmatprep.subr.bf16.mxu0 %v7834
    %7958 = vmatpush1.bf16.msra.mxu0 %v7833
    %7959 = vmatprep.subr.bf16.mxu0 %v7839
    %7960 = vmatpush1.bf16.msra.mxu0 %v7838
    %7961 = vmatprep.subr.bf16.mxu0 %v7844
    %7962 = vmatpush1.bf16.msra.mxu0 %v7843
    %7963 = vmatprep.subr.bf16.mxu0 %v7849
    %7964 = vmatpush1.bf16.msra.mxu0 %v7848
    %7965 = vmatprep.mubr.bf16.mxu0 %v7391
    %7966 = vmatmul.mubr.bf16.gmra.mrb[0].mxu0 %v7390
    %v7967 = vpop.f32.mrb[0].mxu0
    %v7968 = vadd.f32 %v7495, %v7967
    %v7969 = vpop.f32.mrb[0].mxu0
    %v7970 = vadd.f32 %v7499, %v7969
    %v7971 = vpop.f32.mrb[0].mxu0
    %v7972 = vadd.f32 %v7495, %v7971
    %v7973 = vpop.f32.mrb[0].mxu0
    %v7974 = vadd.f32 %v7499, %v7973
    %7975 = vdwg.mxu0
    %7976 = vmatprep.subr.bf16.mxu0 %v7776
    %7977 = vmatpush1.bf16.msra.mxu0 %v7775
    %7978 = vmatprep.subr.bf16.mxu0 %v7781
    %7979 = vmatpush1.bf16.msra.mxu0 %v7780
    %7980 = vmatprep.subr.bf16.mxu0 %v7786
    %7981 = vmatpush1.bf16.msra.mxu0 %v7785
    %7982 = vmatprep.subr.bf16.mxu0 %v7791
    %7983 = vmatpush1.bf16.msra.mxu0 %v7790
    %7984 = vmatprep.subr.bf16.mxu0 %v7796
    %7985 = vmatpush1.bf16.msra.mxu0 %v7795
    %7986 = vmatprep.subr.bf16.mxu0 %v7801
    %7987 = vmatpush1.bf16.msra.mxu0 %v7800
    %7988 = vmatprep.subr.bf16.mxu0 %v7806
    %7989 = vmatpush1.bf16.msra.mxu0 %v7805
    %7990 = vmatprep.subr.bf16.mxu0 %v7811
    %7991 = vmatpush1.bf16.msra.mxu0 %v7810
    %7992 = vmatprep.subr.bf16.mxu0 %v7816
    %7993 = vmatpush1.bf16.msra.mxu0 %v7815
    %7994 = vmatprep.subr.bf16.mxu0 %v7821
    %7995 = vmatpush1.bf16.msra.mxu0 %v7820
    %7996 = vmatprep.subr.bf16.mxu0 %v7826
    %7997 = vmatpush1.bf16.msra.mxu0 %v7825
    %7998 = vmatprep.subr.bf16.mxu0 %v7831
    %7999 = vmatpush1.bf16.msra.mxu0 %v7830
    %8000 = vmatprep.subr.bf16.mxu0 %v7836
    %8001 = vmatpush1.bf16.msra.mxu0 %v7835
    %8002 = vmatprep.subr.bf16.mxu0 %v7841
    %8003 = vmatpush1.bf16.msra.mxu0 %v7840
    %8004 = vmatprep.subr.bf16.mxu0 %v7846
    %8005 = vmatpush1.bf16.msra.mxu0 %v7845
    %8006 = vmatprep.subr.bf16.mxu0 %v7851
    %8007 = vmatpush1.bf16.msra.mxu0 %v7850
    %8008 = vmatprep.mubr.bf16.mxu0 %v7391
    %8009 = vmatmul.mubr.bf16.gmra.mrb[0].mxu0 %v7390
    %v8010 = vpop.f32.mrb[0].mxu0
    %v8011 = vadd.f32 %v7503, %v8010
    %v8012 = vpop.f32.mrb[0].mxu0
    %v8013 = vadd.f32 %v7507, %v8012
    %v8014 = vpop.f32.mrb[0].mxu0
    %v8015 = vadd.f32 %v7503, %v8014
    %v8016 = vpop.f32.mrb[0].mxu0
    %v8017 = vadd.f32 %v7507, %v8016
    %8018 = vdwg.mxu0
    %8019 = vmatprep.subr.bf16.mxu0 0
    %8020 = vmatpush1.bf16.msra.mxu0 %v7777
    %8021 = vmatprep.subr.bf16.mxu0 0
    %8022 = vmatpush1.bf16.msra.mxu0 %v7782
    %8023 = vmatprep.subr.bf16.mxu0 0
    %8024 = vmatpush1.bf16.msra.mxu0 %v7787
    %8025 = vmatprep.subr.bf16.mxu0 0
    %8026 = vmatpush1.bf16.msra.mxu0 %v7792
    %8027 = vmatprep.subr.bf16.mxu0 0
    %8028 = vmatpush1.bf16.msra.mxu0 %v7797
    %8029 = vmatprep.subr.bf16.mxu0 0
    %8030 = vmatpush1.bf16.msra.mxu0 %v7802
    %8031 = vmatprep.subr.bf16.mxu0 0
    %8032 = vmatpush1.bf16.msra.mxu0 %v7807
    %8033 = vmatprep.subr.bf16.mxu0 0
    %8034 = vmatpush1.bf16.msra.mxu0 %v7812
    %8035 = vmatprep.subr.bf16.mxu0 0
    %8036 = vmatpush1.bf16.msra.mxu0 %v7817
    %8037 = vmatprep.subr.bf16.mxu0 0
    %8038 = vmatpush1.bf16.msra.mxu0 %v7822
    %8039 = vmatprep.subr.bf16.mxu0 0
    %8040 = vmatpush1.bf16.msra.mxu0 %v7827
    %8041 = vmatprep.subr.bf16.mxu0 0
    %8042 = vmatpush1.bf16.msra.mxu0 %v7832
    %8043 = vmatprep.subr.bf16.mxu0 0
    %8044 = vmatpush1.bf16.msra.mxu0 %v7837
    %8045 = vmatprep.subr.bf16.mxu0 0
    %8046 = vmatpush1.bf16.msra.mxu0 %v7842
    %8047 = vmatprep.subr.bf16.mxu0 0
    %8048 = vmatpush1.bf16.msra.mxu0 %v7847
    %8049 = vmatprep.subr.bf16.mxu0 0
    %8050 = vmatpush1.bf16.msra.mxu0 %v7852
    %8051 = vmatprep.mubr.bf16.mxu0 %v7391
    %8052 = vmatmul.mubr.bf16.gmra.mrb[0].mxu0 %v7390
    %v8053 = vpop.f32.mrb[0].mxu0
    %v8054 = vadd.f32 %v7511, %v8053
    %v8055 = vpop.f32.mrb[0].mxu0
    %v8056 = vpop.f32.mrb[0].mxu0
    %v8057 = vadd.f32 %v7511, %v8056
    %v8058 = vpop.f32.mrb[0].mxu0
    %8059 = vdwg.mxu0
    %v8060 = vmax.f32 %v7968, 0.0
    %v8061 = vmax.f32 %v7970, 0.0
    %v8062 = vmax.f32 %v8011, 0.0
    %v8063 = vmax.f32 %v8013, 0.0
    %v8064 = vmax.f32 %v8054, 0.0
    %v8065 = vmax.f32 %v7972, 0.0
    %v8066 = vmax.f32 %v7974, 0.0
    %v8067 = vmax.f32 %v8015, 0.0
    %v8068 = vmax.f32 %v8017, 0.0
    %v8069 = vmax.f32 %v8057, 0.0
    %v8070 = vpack.c.bf16 %v8065, %v8060
    %v8071 = vpack.c.bf16 %v8066, %v8061
    %v8072 = vpack.c.bf16 %v8067, %v8062
    %v8073 = vpack.c.bf16 %v8068, %v8063
    %v8074 = vpack.c.bf16 %v8069, %v8064
    %s8075 = scalar_lea.vmem [#allocation14], 1280
    %v8076 = vld [vmem:[%s8075] sm:$0xff]
    %v8077 = vld [vmem:[%s8075 + $0x8] sm:$0xff]
    %v8078 = vld [vmem:[%s8075 + $0x10] sm:$0xff]
    %v8079 = vld [vmem:[%s8075 + $0x18] sm:$0xff]
    %v8080 = vld [vmem:[%s8075 + $0x20] sm:$0xff]
    %v8081 = vld [vmem:[%s8075 + $0x28] sm:$0xff]
    %v8082 = vld [vmem:[%s8075 + $0x30] sm:$0xff]
    %v8083 = vld [vmem:[%s8075 + $0x38] sm:$0xff]
    %v8084 = vld [vmem:[%s8075 + $0x40] sm:$0xff]
    %v8085 = vld [vmem:[%s8075 + $0x48] sm:$0xff]
    %v8086 = vld [vmem:[%s8075 + $0x50] sm:$0xff]
    %v8087 = vld [vmem:[%s8075 + $0x58] sm:$0xff]
    %v8088 = vld [vmem:[%s8075 + $0x60] sm:$0xff]
    %v8089 = vld [vmem:[%s8075 + $0x68] sm:$0xff]
    %v8090 = vld [vmem:[%s8075 + $0x70] sm:$0xff]
    %v8091 = vld [vmem:[%s8075 + $0x78] sm:$0xff]
    %v8092 = vld [vmem:[%s8075 + $0x80] sm:$0xff]
    %v8093 = vld [vmem:[%s8075 + $0x88] sm:$0xff]
    %v8094 = vld [vmem:[%s8075 + $0x90] sm:$0xff]
    %v8095 = vld [vmem:[%s8075 + $0x98] sm:$0xff]
    %v8096 = vld [vmem:[%s8075 + $0xa0] sm:$0xff]
    %v8097 = vld [vmem:[%s8075 + $0xa8] sm:$0xff]
    %v8098 = vld [vmem:[%s8075 + $0xb0] sm:$0xff]
    %v8099 = vld [vmem:[%s8075 + $0xb8] sm:$0xff]
    %v8100 = vld [vmem:[%s8075 + $0xc0] sm:$0xff]
    %v8101 = vld [vmem:[%s8075 + $0xc8] sm:$0xff]
    %v8102 = vld [vmem:[%s8075 + $0xd0] sm:$0xff]
    %v8103 = vld [vmem:[%s8075 + $0xd8] sm:$0xff]
    %v8104 = vld [vmem:[%s8075 + $0xe0] sm:$0xff]
    %v8105 = vld [vmem:[%s8075 + $0xe8] sm:$0xff]
    %v8106 = vld [vmem:[%s8075 + $0xf0] sm:$0xff]
    %v8107 = vld [vmem:[%s8075 + $0xf8] sm:$0xff]
    %v8108 = vld [vmem:[%s8075 + $0x100] sm:$0xff]
    %v8109 = vld [vmem:[%s8075 + $0x108] sm:$0xff]
    %v8110 = vld [vmem:[%s8075 + $0x110] sm:$0xff]
    %v8111 = vld [vmem:[%s8075 + $0x118] sm:$0xff]
    %v8112 = vld [vmem:[%s8075 + $0x120] sm:$0xff]
    %v8113 = vld [vmem:[%s8075 + $0x128] sm:$0xff]
    %v8114 = vld [vmem:[%s8075 + $0x130] sm:$0xff]
    %v8115 = vld [vmem:[%s8075 + $0x138] sm:$0xff]
    %v8116 = vld [vmem:[%s8075 + $0x140] sm:$0xff]
    %v8117 = vld [vmem:[%s8075 + $0x148] sm:$0xff]
    %v8118 = vld [vmem:[%s8075 + $0x150] sm:$0xff]
    %v8119 = vld [vmem:[%s8075 + $0x158] sm:$0xff]
    %v8120 = vld [vmem:[%s8075 + $0x160] sm:$0xff]
    %v8121 = vld [vmem:[%s8075 + $0x168] sm:$0xff]
    %v8122 = vld [vmem:[%s8075 + $0x170] sm:$0xff]
    %v8123 = vld [vmem:[%s8075 + $0x178] sm:$0xff]
    %v8124 = vld [vmem:[%s8075 + $0x180] sm:$0xff]
    %v8125 = vld [vmem:[%s8075 + $0x188] sm:$0xff]
    %v8126 = vld [vmem:[%s8075 + $0x190] sm:$0xff]
    %v8127 = vld [vmem:[%s8075 + $0x198] sm:$0xff]
    %v8128 = vld [vmem:[%s8075 + $0x1a0] sm:$0xff]
    %v8129 = vld [vmem:[%s8075 + $0x1a8] sm:$0xff]
    %v8130 = vld [vmem:[%s8075 + $0x1b0] sm:$0xff]
    %v8131 = vld [vmem:[%s8075 + $0x1b8] sm:$0xff]
    %v8132 = vld [vmem:[%s8075 + $0x1c0] sm:$0xff]
    %v8133 = vld [vmem:[%s8075 + $0x1c8] sm:$0xff]
    %v8134 = vld [vmem:[%s8075 + $0x1d0] sm:$0xff]
    %v8135 = vld [vmem:[%s8075 + $0x1d8] sm:$0xff]
    %v8136 = vld [vmem:[%s8075 + $0x1e0] sm:$0xff]
    %v8137 = vld [vmem:[%s8075 + $0x1e8] sm:$0xff]
    %v8138 = vld [vmem:[%s8075 + $0x1f0] sm:$0xff]
    %v8139 = vld [vmem:[%s8075 + $0x1f8] sm:$0xff]
    %v8140 = vld [vmem:[%s8075 + $0x200] sm:$0xff]
    %v8141 = vld [vmem:[%s8075 + $0x208] sm:$0xff]
    %v8142 = vld [vmem:[%s8075 + $0x210] sm:$0xff]
    %v8143 = vld [vmem:[%s8075 + $0x218] sm:$0xff]
    %v8144 = vld [vmem:[%s8075 + $0x220] sm:$0xff]
    %v8145 = vld [vmem:[%s8075 + $0x228] sm:$0xff]
    %v8146 = vld [vmem:[%s8075 + $0x230] sm:$0xff]
    %v8147 = vld [vmem:[%s8075 + $0x238] sm:$0xff]
    %v8148 = vld [vmem:[%s8075 + $0x240] sm:$0xff]
    %v8149 = vld [vmem:[%s8075 + $0x248] sm:$0xff]
    %v8150 = vld [vmem:[%s8075 + $0x250] sm:$0xff]
    %v8151 = vld [vmem:[%s8075 + $0x258] sm:$0xff]
    %v8152 = vld [vmem:[%s8075 + $0x260] sm:$0xff]
    %v8153 = vld [vmem:[%s8075 + $0x268] sm:$0xff]
    %v8154 = vld [vmem:[%s8075 + $0x270] sm:$0xff]
    %v8155 = vld [vmem:[%s8075 + $0x278] sm:$0xff]
    %s8156 = scalar_lea.vmem [#allocation16], 4
    %v8157 = vld [vmem:[%s8156] sm:$0x3]
    %v8159 = vlaneseq
    %v8160 = vshrl.u32 %v8159, 7
    %v8161 = vsub.s32 0, %v8160
    %v8162 = vrot.slane %v8157, %v8161
    %v8163 = vlaneseq
    %v8164 = vshrl.u32 %v8163, 7
    %v8165 = vsub.s32 1, %v8164
    %v8166 = vrot.slane %v8157, %v8165
    %v8249 = vunpack.c.l.b16 %v8076
    %v8250 = vunpack.c.h.b16 %v8076
    %v8251 = vunpack.c.l.b16 %v8077
    %v8252 = vunpack.c.h.b16 %v8077
    %v8253 = vunpack.c.l.b16 %v8078
    %v8254 = vunpack.c.h.b16 %v8078
    %v8255 = vunpack.c.l.b16 %v8079
    %v8256 = vunpack.c.h.b16 %v8079
    %v8257 = vunpack.c.l.b16 %v8080
    %v8258 = vunpack.c.h.b16 %v8080
    %v8259 = vunpack.c.l.b16 %v8081
    %v8260 = vunpack.c.h.b16 %v8081
    %v8261 = vunpack.c.l.b16 %v8082
    %v8262 = vunpack.c.h.b16 %v8082
    %v8263 = vunpack.c.l.b16 %v8083
    %v8264 = vunpack.c.h.b16 %v8083
    %v8265 = vunpack.c.l.b16 %v8084
    %v8266 = vunpack.c.h.b16 %v8084
    %v8267 = vunpack.c.l.b16 %v8085
    %v8268 = vunpack.c.h.b16 %v8085
    %v8269 = vunpack.c.l.b16 %v8086
    %v8270 = vunpack.c.h.b16 %v8086
    %v8271 = vunpack.c.l.b16 %v8087
    %v8272 = vunpack.c.h.b16 %v8087
    %v8273 = vunpack.c.l.b16 %v8088
    %v8274 = vunpack.c.h.b16 %v8088
    %v8275 = vunpack.c.l.b16 %v8089
    %v8276 = vunpack.c.h.b16 %v8089
    %v8277 = vunpack.c.l.b16 %v8090
    %v8278 = vunpack.c.h.b16 %v8090
    %v8279 = vunpack.c.l.b16 %v8091
    %v8280 = vunpack.c.h.b16 %v8091
    %v8281 = vunpack.c.l.b16 %v8092
    %v8282 = vunpack.c.h.b16 %v8092
    %v8283 = vunpack.c.l.b16 %v8093
    %v8284 = vunpack.c.h.b16 %v8093
    %v8285 = vunpack.c.l.b16 %v8094
    %v8286 = vunpack.c.h.b16 %v8094
    %v8287 = vunpack.c.l.b16 %v8095
    %v8288 = vunpack.c.h.b16 %v8095
    %v8289 = vunpack.c.l.b16 %v8096
    %v8290 = vunpack.c.h.b16 %v8096
    %v8291 = vunpack.c.l.b16 %v8097
    %v8292 = vunpack.c.h.b16 %v8097
    %v8293 = vunpack.c.l.b16 %v8098
    %v8294 = vunpack.c.h.b16 %v8098
    %v8295 = vunpack.c.l.b16 %v8099
    %v8296 = vunpack.c.h.b16 %v8099
    %v8297 = vunpack.c.l.b16 %v8100
    %v8298 = vunpack.c.h.b16 %v8100
    %v8299 = vunpack.c.l.b16 %v8101
    %v8300 = vunpack.c.h.b16 %v8101
    %v8301 = vunpack.c.l.b16 %v8102
    %v8302 = vunpack.c.h.b16 %v8102
    %v8303 = vunpack.c.l.b16 %v8103
    %v8304 = vunpack.c.h.b16 %v8103
    %v8305 = vunpack.c.l.b16 %v8104
    %v8306 = vunpack.c.h.b16 %v8104
    %v8307 = vunpack.c.l.b16 %v8105
    %v8308 = vunpack.c.h.b16 %v8105
    %v8309 = vunpack.c.l.b16 %v8106
    %v8310 = vunpack.c.h.b16 %v8106
    %v8311 = vunpack.c.l.b16 %v8107
    %v8312 = vunpack.c.h.b16 %v8107
    %v8313 = vunpack.c.l.b16 %v8108
    %v8314 = vunpack.c.h.b16 %v8108
    %v8315 = vunpack.c.l.b16 %v8109
    %v8316 = vunpack.c.h.b16 %v8109
    %v8317 = vunpack.c.l.b16 %v8110
    %v8318 = vunpack.c.h.b16 %v8110
    %v8319 = vunpack.c.l.b16 %v8111
    %v8320 = vunpack.c.h.b16 %v8111
    %v8321 = vunpack.c.l.b16 %v8112
    %v8322 = vunpack.c.h.b16 %v8112
    %v8323 = vunpack.c.l.b16 %v8113
    %v8324 = vunpack.c.h.b16 %v8113
    %v8325 = vunpack.c.l.b16 %v8114
    %v8326 = vunpack.c.h.b16 %v8114
    %v8327 = vunpack.c.l.b16 %v8115
    %v8328 = vunpack.c.h.b16 %v8115
    %v8329 = vunpack.c.l.b16 %v8116
    %v8330 = vunpack.c.h.b16 %v8116
    %v8331 = vunpack.c.l.b16 %v8117
    %v8332 = vunpack.c.h.b16 %v8117
    %v8333 = vunpack.c.l.b16 %v8118
    %v8334 = vunpack.c.h.b16 %v8118
    %v8335 = vunpack.c.l.b16 %v8119
    %v8336 = vunpack.c.h.b16 %v8119
    %v8337 = vunpack.c.l.b16 %v8120
    %v8338 = vunpack.c.h.b16 %v8120
    %v8339 = vunpack.c.l.b16 %v8121
    %v8340 = vunpack.c.h.b16 %v8121
    %v8341 = vunpack.c.l.b16 %v8122
    %v8342 = vunpack.c.h.b16 %v8122
    %v8343 = vunpack.c.l.b16 %v8123
    %v8344 = vunpack.c.h.b16 %v8123
    %v8345 = vunpack.c.l.b16 %v8124
    %v8346 = vunpack.c.h.b16 %v8124
    %v8347 = vunpack.c.l.b16 %v8125
    %v8348 = vunpack.c.h.b16 %v8125
    %v8349 = vunpack.c.l.b16 %v8126
    %v8350 = vunpack.c.h.b16 %v8126
    %v8351 = vunpack.c.l.b16 %v8127
    %v8352 = vunpack.c.h.b16 %v8127
    %v8353 = vunpack.c.l.b16 %v8128
    %v8354 = vunpack.c.h.b16 %v8128
    %v8355 = vunpack.c.l.b16 %v8129
    %v8356 = vunpack.c.h.b16 %v8129
    %v8357 = vunpack.c.l.b16 %v8130
    %v8358 = vunpack.c.h.b16 %v8130
    %v8359 = vunpack.c.l.b16 %v8131
    %v8360 = vunpack.c.h.b16 %v8131
    %v8361 = vunpack.c.l.b16 %v8132
    %v8362 = vunpack.c.h.b16 %v8132
    %v8363 = vunpack.c.l.b16 %v8133
    %v8364 = vunpack.c.h.b16 %v8133
    %v8365 = vunpack.c.l.b16 %v8134
    %v8366 = vunpack.c.h.b16 %v8134
    %v8367 = vunpack.c.l.b16 %v8135
    %v8368 = vunpack.c.h.b16 %v8135
    %v8369 = vunpack.c.l.b16 %v8136
    %v8370 = vunpack.c.h.b16 %v8136
    %v8371 = vunpack.c.l.b16 %v8137
    %v8372 = vunpack.c.h.b16 %v8137
    %v8373 = vunpack.c.l.b16 %v8138
    %v8374 = vunpack.c.h.b16 %v8138
    %v8375 = vunpack.c.l.b16 %v8139
    %v8376 = vunpack.c.h.b16 %v8139
    %v8377 = vunpack.c.l.b16 %v8140
    %v8378 = vunpack.c.h.b16 %v8140
    %v8379 = vunpack.c.l.b16 %v8141
    %v8380 = vunpack.c.h.b16 %v8141
    %v8381 = vunpack.c.l.b16 %v8142
    %v8382 = vunpack.c.h.b16 %v8142
    %v8383 = vunpack.c.l.b16 %v8143
    %v8384 = vunpack.c.h.b16 %v8143
    %v8385 = vunpack.c.l.b16 %v8144
    %v8386 = vunpack.c.h.b16 %v8144
    %v8387 = vunpack.c.l.b16 %v8145
    %v8388 = vunpack.c.h.b16 %v8145
    %v8389 = vunpack.c.l.b16 %v8146
    %v8390 = vunpack.c.h.b16 %v8146
    %v8391 = vunpack.c.l.b16 %v8147
    %v8392 = vunpack.c.h.b16 %v8147
    %v8393 = vunpack.c.l.b16 %v8148
    %v8394 = vunpack.c.h.b16 %v8148
    %v8395 = vunpack.c.l.b16 %v8149
    %v8396 = vunpack.c.h.b16 %v8149
    %v8397 = vunpack.c.l.b16 %v8150
    %v8398 = vunpack.c.h.b16 %v8150
    %v8399 = vunpack.c.l.b16 %v8151
    %v8400 = vunpack.c.h.b16 %v8151
    %v8401 = vunpack.c.l.b16 %v8152
    %v8402 = vunpack.c.h.b16 %v8152
    %v8403 = vunpack.c.l.b16 %v8153
    %v8404 = vunpack.c.h.b16 %v8153
    %v8405 = vunpack.c.l.b16 %v8154
    %v8406 = vunpack.c.h.b16 %v8154
    %v8407 = vunpack.c.l.b16 %v8155
    %v8408 = vunpack.c.h.b16 %v8155
    %v8409 = vpack.c.b16 %v8251, %v8249
    %v8410 = vpack.c.b16 %v8252, %v8250
    %v8411 = vpack.c.b16 %v8255, %v8253
    %v8412 = vpack.c.b16 %v8256, %v8254
    %v8413 = vpack.c.b16 %v8259, %v8257
    %v8414 = vpack.c.b16 %v8260, %v8258
    %v8415 = vpack.c.b16 %v8263, %v8261
    %v8416 = vpack.c.b16 %v8264, %v8262
    %v8417 = vpack.c.b16 %v8267, %v8265
    %v8418 = vpack.c.b16 %v8268, %v8266
    %v8419 = vpack.c.b16 %v8271, %v8269
    %v8420 = vpack.c.b16 %v8272, %v8270
    %v8421 = vpack.c.b16 %v8275, %v8273
    %v8422 = vpack.c.b16 %v8276, %v8274
    %v8423 = vpack.c.b16 %v8279, %v8277
    %v8424 = vpack.c.b16 %v8280, %v8278
    %v8425 = vpack.c.b16 %v8283, %v8281
    %v8426 = vpack.c.b16 %v8284, %v8282
    %v8427 = vpack.c.b16 %v8287, %v8285
    %v8428 = vpack.c.b16 %v8288, %v8286
    %v8429 = vpack.c.b16 %v8291, %v8289
    %v8430 = vpack.c.b16 %v8292, %v8290
    %v8431 = vpack.c.b16 %v8295, %v8293
    %v8432 = vpack.c.b16 %v8296, %v8294
    %v8433 = vpack.c.b16 %v8299, %v8297
    %v8434 = vpack.c.b16 %v8300, %v8298
    %v8435 = vpack.c.b16 %v8303, %v8301
    %v8436 = vpack.c.b16 %v8304, %v8302
    %v8437 = vpack.c.b16 %v8307, %v8305
    %v8438 = vpack.c.b16 %v8308, %v8306
    %v8439 = vpack.c.b16 %v8311, %v8309
    %v8440 = vpack.c.b16 %v8312, %v8310
    %v8441 = vpack.c.b16 %v8315, %v8313
    %v8442 = vpack.c.b16 %v8316, %v8314
    %v8443 = vpack.c.b16 %v8319, %v8317
    %v8444 = vpack.c.b16 %v8320, %v8318
    %v8445 = vpack.c.b16 %v8323, %v8321
    %v8446 = vpack.c.b16 %v8324, %v8322
    %v8447 = vpack.c.b16 %v8327, %v8325
    %v8448 = vpack.c.b16 %v8328, %v8326
    %v8449 = vpack.c.b16 %v8331, %v8329
    %v8450 = vpack.c.b16 %v8332, %v8330
    %v8451 = vpack.c.b16 %v8335, %v8333
    %v8452 = vpack.c.b16 %v8336, %v8334
    %v8453 = vpack.c.b16 %v8339, %v8337
    %v8454 = vpack.c.b16 %v8340, %v8338
    %v8455 = vpack.c.b16 %v8343, %v8341
    %v8456 = vpack.c.b16 %v8344, %v8342
    %v8457 = vpack.c.b16 %v8347, %v8345
    %v8458 = vpack.c.b16 %v8348, %v8346
    %v8459 = vpack.c.b16 %v8351, %v8349
    %v8460 = vpack.c.b16 %v8352, %v8350
    %v8461 = vpack.c.b16 %v8355, %v8353
    %v8462 = vpack.c.b16 %v8356, %v8354
    %v8463 = vpack.c.b16 %v8359, %v8357
    %v8464 = vpack.c.b16 %v8360, %v8358
    %v8465 = vpack.c.b16 %v8363, %v8361
    %v8466 = vpack.c.b16 %v8364, %v8362
    %v8467 = vpack.c.b16 %v8367, %v8365
    %v8468 = vpack.c.b16 %v8368, %v8366
    %v8469 = vpack.c.b16 %v8371, %v8369
    %v8470 = vpack.c.b16 %v8372, %v8370
    %v8471 = vpack.c.b16 %v8375, %v8373
    %v8472 = vpack.c.b16 %v8376, %v8374
    %v8473 = vpack.c.b16 %v8379, %v8377
    %v8474 = vpack.c.b16 %v8380, %v8378
    %v8475 = vpack.c.b16 %v8383, %v8381
    %v8476 = vpack.c.b16 %v8384, %v8382
    %v8477 = vpack.c.b16 %v8387, %v8385
    %v8478 = vpack.c.b16 %v8388, %v8386
    %v8479 = vpack.c.b16 %v8391, %v8389
    %v8480 = vpack.c.b16 %v8392, %v8390
    %v8481 = vpack.c.b16 %v8395, %v8393
    %v8482 = vpack.c.b16 %v8396, %v8394
    %v8483 = vpack.c.b16 %v8399, %v8397
    %v8484 = vpack.c.b16 %v8400, %v8398
    %v8485 = vpack.c.b16 %v8403, %v8401
    %v8486 = vpack.c.b16 %v8404, %v8402
    %v8487 = vpack.c.b16 %v8407, %v8405
    %v8488 = vpack.c.b16 %v8408, %v8406
    %8569 = vmatprep.subr.bf16.mxu0 %v8410
    %8570 = vmatpush1.bf16.msra.mxu0 %v8409
    %8571 = vmatprep.subr.bf16.mxu0 %v8412
    %8572 = vmatpush1.bf16.msra.mxu0 %v8411
    %8573 = vmatprep.subr.bf16.mxu0 %v8414
    %8574 = vmatpush1.bf16.msra.mxu0 %v8413
    %8575 = vmatprep.subr.bf16.mxu0 %v8416
    %8576 = vmatpush1.bf16.msra.mxu0 %v8415
    %8577 = vmatprep.subr.bf16.mxu0 %v8418
    %8578 = vmatpush1.bf16.msra.mxu0 %v8417
    %8579 = vmatprep.subr.bf16.mxu0 %v8420
    %8580 = vmatpush1.bf16.msra.mxu0 %v8419
    %8581 = vmatprep.subr.bf16.mxu0 %v8422
    %8582 = vmatpush1.bf16.msra.mxu0 %v8421
    %8583 = vmatprep.subr.bf16.mxu0 %v8424
    %8584 = vmatpush1.bf16.msra.mxu0 %v8423
    %8585 = vmatprep.subr.bf16.mxu0 %v8426
    %8586 = vmatpush1.bf16.msra.mxu0 %v8425
    %8587 = vmatprep.subr.bf16.mxu0 %v8428
    %8588 = vmatpush1.bf16.msra.mxu0 %v8427
    %8589 = vmatprep.subr.bf16.mxu0 %v8430
    %8590 = vmatpush1.bf16.msra.mxu0 %v8429
    %8591 = vmatprep.subr.bf16.mxu0 %v8432
    %8592 = vmatpush1.bf16.msra.mxu0 %v8431
    %8593 = vmatprep.subr.bf16.mxu0 %v8434
    %8594 = vmatpush1.bf16.msra.mxu0 %v8433
    %8595 = vmatprep.subr.bf16.mxu0 %v8436
    %8596 = vmatpush1.bf16.msra.mxu0 %v8435
    %8597 = vmatprep.subr.bf16.mxu0 %v8438
    %8598 = vmatpush1.bf16.msra.mxu0 %v8437
    %8599 = vmatprep.subr.bf16.mxu0 %v8440
    %8600 = vmatpush1.bf16.msra.mxu0 %v8439
    %8601 = vmatprep.mubr.bf16.mxu0 %v8071
    %8602 = vmatmul.mubr.bf16.gmra.mrb[0].mxu0 %v8070
    %v8603 = vpop.f32.mrb[0].mxu0
    %v8604 = vadd.f32 %v8162, %v8603
    %v8605 = vpop.f32.mrb[0].mxu0
    %v8606 = vadd.f32 %v8166, %v8605
    %v8607 = vpop.f32.mrb[0].mxu0
    %v8608 = vadd.f32 %v8162, %v8607
    %v8609 = vpop.f32.mrb[0].mxu0
    %v8610 = vadd.f32 %v8166, %v8609
    %8611 = vdwg.mxu0
    %8612 = vmatprep.subr.bf16.mxu0 %v8442
    %8613 = vmatpush1.bf16.msra.mxu0 %v8441
    %8614 = vmatprep.subr.bf16.mxu0 %v8444
    %8615 = vmatpush1.bf16.msra.mxu0 %v8443
    %8616 = vmatprep.subr.bf16.mxu0 %v8446
    %8617 = vmatpush1.bf16.msra.mxu0 %v8445
    %8618 = vmatprep.subr.bf16.mxu0 %v8448
    %8619 = vmatpush1.bf16.msra.mxu0 %v8447
    %8620 = vmatprep.subr.bf16.mxu0 %v8450
    %8621 = vmatpush1.bf16.msra.mxu0 %v8449
    %8622 = vmatprep.subr.bf16.mxu0 %v8452
    %8623 = vmatpush1.bf16.msra.mxu0 %v8451
    %8624 = vmatprep.subr.bf16.mxu0 %v8454
    %8625 = vmatpush1.bf16.msra.mxu0 %v8453
    %8626 = vmatprep.subr.bf16.mxu0 %v8456
    %8627 = vmatpush1.bf16.msra.mxu0 %v8455
    %8628 = vmatprep.subr.bf16.mxu0 %v8458
    %8629 = vmatpush1.bf16.msra.mxu0 %v8457
    %8630 = vmatprep.subr.bf16.mxu0 %v8460
    %8631 = vmatpush1.bf16.msra.mxu0 %v8459
    %8632 = vmatprep.subr.bf16.mxu0 %v8462
    %8633 = vmatpush1.bf16.msra.mxu0 %v8461
    %8634 = vmatprep.subr.bf16.mxu0 %v8464
    %8635 = vmatpush1.bf16.msra.mxu0 %v8463
    %8636 = vmatprep.subr.bf16.mxu0 %v8466
    %8637 = vmatpush1.bf16.msra.mxu0 %v8465
    %8638 = vmatprep.subr.bf16.mxu0 %v8468
    %8639 = vmatpush1.bf16.msra.mxu0 %v8467
    %8640 = vmatprep.subr.bf16.mxu0 %v8470
    %8641 = vmatpush1.bf16.msra.mxu0 %v8469
    %8642 = vmatprep.subr.bf16.mxu0 %v8472
    %8643 = vmatpush1.bf16.msra.mxu0 %v8471
    %8644 = vmatprep.mubr.bf16.mxu0 %v8073
    %8645 = vmatmul.mubr.bf16.gmra.mrb[0].mxu0 %v8072
    %v8646 = vpop.f32.mrb[0].mxu0
    %v8647 = vadd.f32 %v8604, %v8646
    %v8648 = vpop.f32.mrb[0].mxu0
    %v8649 = vadd.f32 %v8606, %v8648
    %v8650 = vpop.f32.mrb[0].mxu0
    %v8651 = vadd.f32 %v8608, %v8650
    %v8652 = vpop.f32.mrb[0].mxu0
    %v8653 = vadd.f32 %v8610, %v8652
    %8654 = vdwg.mxu0
    %8655 = vmatprep.subr.bf16.mxu0 %v8474
    %8656 = vmatpush1.bf16.msra.mxu0 %v8473
    %8657 = vmatprep.subr.bf16.mxu0 %v8476
    %8658 = vmatpush1.bf16.msra.mxu0 %v8475
    %8659 = vmatprep.subr.bf16.mxu0 %v8478
    %8660 = vmatpush1.bf16.msra.mxu0 %v8477
    %8661 = vmatprep.subr.bf16.mxu0 %v8480
    %8662 = vmatpush1.bf16.msra.mxu0 %v8479
    %8663 = vmatprep.subr.bf16.mxu0 %v8482
    %8664 = vmatpush1.bf16.msra.mxu0 %v8481
    %8665 = vmatprep.subr.bf16.mxu0 %v8484
    %8666 = vmatpush1.bf16.msra.mxu0 %v8483
    %8667 = vmatprep.subr.bf16.mxu0 %v8486
    %8668 = vmatpush1.bf16.msra.mxu0 %v8485
    %8669 = vmatprep.subr.bf16.mxu0 %v8488
    %8670 = vmatpush1.bf16.msra.mxu0 %v8487
    %8671 = vmatprep.subr.bf16.mxu0 0
    %8672 = vmatpush1.bf16.msra.mxu0 0
    %8673 = vmatprep.subr.bf16.mxu0 0
    %8674 = vmatpush1.bf16.msra.mxu0 0
    %8675 = vmatprep.subr.bf16.mxu0 0
    %8676 = vmatpush1.bf16.msra.mxu0 0
    %8677 = vmatprep.subr.bf16.mxu0 0
    %8678 = vmatpush1.bf16.msra.mxu0 0
    %8679 = vmatprep.subr.bf16.mxu0 0
    %8680 = vmatpush1.bf16.msra.mxu0 0
    %8681 = vmatprep.subr.bf16.mxu0 0
    %8682 = vmatpush1.bf16.msra.mxu0 0
    %8683 = vmatprep.subr.bf16.mxu0 0
    %8684 = vmatpush1.bf16.msra.mxu0 0
    %8685 = vmatprep.subr.bf16.mxu0 0
    %8686 = vmatpush1.bf16.msra.mxu0 0
    %8687 = vmatprep.mubr.bf16.mxu0 0
    %8688 = vmatmul.mubr.bf16.gmra.mrb[0].mxu0 %v8074
    %v8689 = vpop.f32.mrb[0].mxu0
    %v8690 = vadd.f32 %v8647, %v8689
    %v8691 = vpop.f32.mrb[0].mxu0
    %v8692 = vadd.f32 %v8649, %v8691
    %v8693 = vpop.f32.mrb[0].mxu0
    %v8694 = vadd.f32 %v8651, %v8693
    %v8695 = vpop.f32.mrb[0].mxu0
    %v8696 = vadd.f32 %v8653, %v8695
    %8697 = vdwg.mxu0
    %v8698 = vadd.f32 %v7386, %v8690
    %v8699 = vadd.f32 %v7387, %v8692
    %v8700 = vadd.f32 %v7388, %v8694
    %v8701 = vadd.f32 %v7389, %v8696
    %s8702 = scalar_lea.vmem [#allocation20], 4
    %v8703 = vld [vmem:[%s8702] sm:$0x3]
    %s8704 = scalar_lea.vmem [#allocation22], 4
    %v8705 = vld [vmem:[%s8704] sm:$0x3]
    %v8706 = vadd.f32 %v8698, %v8699
    %8707 = vadd.xlane.f32.xlu0 %v8706
    %v8708 = vpop.xlane.xlu0 %8707
    %v8709 = vadd.f32 %v8700, %v8701
    %8710 = vadd.xlane.f32.xlu0 %v8709
    %v8711 = vpop.xlane.xlu0 %8710
    %v8712 = vmul.f32 %v8708, %v1643
    %v8713 = vmul.f32 %v8711, %v1643
    %v8714 = vsub.f32 %v8698, %v8712
    %v8715 = vsub.f32 %v8699, %v8712
    %v8716 = vsub.f32 %v8700, %v8713
    %v8717 = vsub.f32 %v8701, %v8713
    %v8718 = vmul.f32 %v8714, %v8714
    %v8719 = vmul.f32 %v8715, %v8715
    %v8720 = vmul.f32 %v8716, %v8716
    %v8721 = vmul.f32 %v8717, %v8717
    %v8722 = vadd.f32 %v8718, %v8719
    %8723 = vadd.xlane.f32.xlu0 %v8722
    %v8724 = vpop.xlane.xlu0 %8723
    %v8725 = vadd.f32 %v8720, %v8721
    %8726 = vadd.xlane.f32.xlu0 %v8725
    %v8727 = vpop.xlane.xlu0 %8726
    %v8728 = vmul.f32 %v8724, %v1643
    %v8729 = vmul.f32 %v8727, %v1643
    %v8730 = vadd.f32 %v8728, 1e-05
    %v8731 = vadd.f32 %v8729, 1e-05
    %v8732 = vrsqrt.pop %v8730
    %v8733 = vrsqrt.pop %v8731
    %v8734 = vmul.f32 %v8714, %v8732
    %v8735 = vmul.f32 %v8715, %v8732
    %v8736 = vmul.f32 %v8716, %v8733
    %v8737 = vmul.f32 %v8717, %v8733
    %v8739 = vlaneseq
    %v8740 = vshrl.u32 %v8739, 7
    %v8741 = vsub.s32 0, %v8740
    %v8742 = vrot.slane %v8703, %v8741
    %v8743 = vlaneseq
    %v8744 = vshrl.u32 %v8743, 7
    %v8745 = vsub.s32 1, %v8744
    %v8746 = vrot.slane %v8703, %v8745
    %v8749 = vmul.f32 %v8734, %v8742
    %v8750 = vmul.f32 %v8735, %v8746
    %v8751 = vmul.f32 %v8736, %v8742
    %v8752 = vmul.f32 %v8737, %v8746
    %v8754 = vlaneseq
    %v8755 = vshrl.u32 %v8754, 7
    %v8756 = vsub.s32 0, %v8755
    %v8757 = vrot.slane %v8705, %v8756
    %v8758 = vlaneseq
    %v8759 = vshrl.u32 %v8758, 7
    %v8760 = vsub.s32 1, %v8759
    %v8761 = vrot.slane %v8705, %v8760
    %v8764 = vadd.f32 %v8749, %v8757
    %v8765 = vadd.f32 %v8750, %v8761
    %v8766 = vadd.f32 %v8751, %v8757
    %v8767 = vadd.f32 %v8752, %v8761
    %v8768 = vpack.c.bf16 %v8766, %v8764
    %v8769 = vpack.c.bf16 %v8767, %v8765
    %s8770 = scalar_lea.vmem [#allocation5], 2304
    %v8771 = vld [vmem:[%s8770] sm:$0xff]
    %v8772 = vld [vmem:[%s8770 + $0x8] sm:$0xff]
    %v8773 = vld [vmem:[%s8770 + $0x10] sm:$0xff]
    %v8774 = vld [vmem:[%s8770 + $0x18] sm:$0xff]
    %v8775 = vld [vmem:[%s8770 + $0x20] sm:$0xff]
    %v8776 = vld [vmem:[%s8770 + $0x28] sm:$0xff]
    %v8777 = vld [vmem:[%s8770 + $0x30] sm:$0xff]
    %v8778 = vld [vmem:[%s8770 + $0x38] sm:$0xff]
    %v8779 = vld [vmem:[%s8770 + $0x40] sm:$0xff]
    %v8780 = vld [vmem:[%s8770 + $0x48] sm:$0xff]
    %v8781 = vld [vmem:[%s8770 + $0x50] sm:$0xff]
    %v8782 = vld [vmem:[%s8770 + $0x58] sm:$0xff]
    %v8783 = vld [vmem:[%s8770 + $0x60] sm:$0xff]
    %v8784 = vld [vmem:[%s8770 + $0x68] sm:$0xff]
    %v8785 = vld [vmem:[%s8770 + $0x70] sm:$0xff]
    %v8786 = vld [vmem:[%s8770 + $0x78] sm:$0xff]
    %v8787 = vld [vmem:[%s8770 + $0x80] sm:$0xff]
    %v8788 = vld [vmem:[%s8770 + $0x88] sm:$0xff]
    %v8789 = vld [vmem:[%s8770 + $0x90] sm:$0xff]
    %v8790 = vld [vmem:[%s8770 + $0x98] sm:$0xff]
    %v8791 = vld [vmem:[%s8770 + $0xa0] sm:$0xff]
    %v8792 = vld [vmem:[%s8770 + $0xa8] sm:$0xff]
    %v8793 = vld [vmem:[%s8770 + $0xb0] sm:$0xff]
    %v8794 = vld [vmem:[%s8770 + $0xb8] sm:$0xff]
    %v8795 = vld [vmem:[%s8770 + $0xc0] sm:$0xff]
    %v8796 = vld [vmem:[%s8770 + $0xc8] sm:$0xff]
    %v8797 = vld [vmem:[%s8770 + $0xd0] sm:$0xff]
    %v8798 = vld [vmem:[%s8770 + $0xd8] sm:$0xff]
    %v8799 = vld [vmem:[%s8770 + $0xe0] sm:$0xff]
    %v8800 = vld [vmem:[%s8770 + $0xe8] sm:$0xff]
    %v8801 = vld [vmem:[%s8770 + $0xf0] sm:$0xff]
    %v8802 = vld [vmem:[%s8770 + $0xf8] sm:$0xff]
    %v8803 = vld [vmem:[%s8770 + $0x100] sm:$0xff]
    %v8804 = vld [vmem:[%s8770 + $0x108] sm:$0xff]
    %v8805 = vld [vmem:[%s8770 + $0x110] sm:$0xff]
    %v8806 = vld [vmem:[%s8770 + $0x118] sm:$0xff]
    %v8807 = vld [vmem:[%s8770 + $0x120] sm:$0xff]
    %v8808 = vld [vmem:[%s8770 + $0x128] sm:$0xff]
    %v8809 = vld [vmem:[%s8770 + $0x130] sm:$0xff]
    %v8810 = vld [vmem:[%s8770 + $0x138] sm:$0xff]
    %v8811 = vld [vmem:[%s8770 + $0x140] sm:$0xff]
    %v8812 = vld [vmem:[%s8770 + $0x148] sm:$0xff]
    %v8813 = vld [vmem:[%s8770 + $0x150] sm:$0xff]
    %v8814 = vld [vmem:[%s8770 + $0x158] sm:$0xff]
    %v8815 = vld [vmem:[%s8770 + $0x160] sm:$0xff]
    %v8816 = vld [vmem:[%s8770 + $0x168] sm:$0xff]
    %v8817 = vld [vmem:[%s8770 + $0x170] sm:$0xff]
    %v8818 = vld [vmem:[%s8770 + $0x178] sm:$0xff]
    %v8819 = vld [vmem:[%s8770 + $0x180] sm:$0xff]
    %v8820 = vld [vmem:[%s8770 + $0x188] sm:$0xff]
    %v8821 = vld [vmem:[%s8770 + $0x190] sm:$0xff]
    %v8822 = vld [vmem:[%s8770 + $0x198] sm:$0xff]
    %v8823 = vld [vmem:[%s8770 + $0x1a0] sm:$0xff]
    %v8824 = vld [vmem:[%s8770 + $0x1a8] sm:$0xff]
    %v8825 = vld [vmem:[%s8770 + $0x1b0] sm:$0xff]
    %v8826 = vld [vmem:[%s8770 + $0x1b8] sm:$0xff]
    %v8827 = vld [vmem:[%s8770 + $0x1c0] sm:$0xff]
    %v8828 = vld [vmem:[%s8770 + $0x1c8] sm:$0xff]
    %v8829 = vld [vmem:[%s8770 + $0x1d0] sm:$0xff]
    %v8830 = vld [vmem:[%s8770 + $0x1d8] sm:$0xff]
    %v8831 = vld [vmem:[%s8770 + $0x1e0] sm:$0xff]
    %v8832 = vld [vmem:[%s8770 + $0x1e8] sm:$0xff]
    %v8833 = vld [vmem:[%s8770 + $0x1f0] sm:$0xff]
    %v8834 = vld [vmem:[%s8770 + $0x1f8] sm:$0xff]
    %v8835 = vld [vmem:[%s8770 + $0x200] sm:$0xff]
    %v8836 = vld [vmem:[%s8770 + $0x208] sm:$0xff]
    %v8837 = vld [vmem:[%s8770 + $0x210] sm:$0xff]
    %v8838 = vld [vmem:[%s8770 + $0x218] sm:$0xff]
    %v8839 = vld [vmem:[%s8770 + $0x220] sm:$0xff]
    %v8840 = vld [vmem:[%s8770 + $0x228] sm:$0xff]
    %v8841 = vld [vmem:[%s8770 + $0x230] sm:$0xff]
    %v8842 = vld [vmem:[%s8770 + $0x238] sm:$0xff]
    %v8843 = vld [vmem:[%s8770 + $0x240] sm:$0xff]
    %v8844 = vld [vmem:[%s8770 + $0x248] sm:$0xff]
    %v8845 = vld [vmem:[%s8770 + $0x250] sm:$0xff]
    %v8846 = vld [vmem:[%s8770 + $0x258] sm:$0xff]
    %v8847 = vld [vmem:[%s8770 + $0x260] sm:$0xff]
    %v8848 = vld [vmem:[%s8770 + $0x268] sm:$0xff]
    %v8849 = vld [vmem:[%s8770 + $0x270] sm:$0xff]
    %v8850 = vld [vmem:[%s8770 + $0x278] sm:$0xff]
    %v8851 = vld [vmem:[%s8770 + $0x280] sm:$0xff]
    %v8852 = vld [vmem:[%s8770 + $0x288] sm:$0xff]
    %v8853 = vld [vmem:[%s8770 + $0x290] sm:$0xff]
    %v8854 = vld [vmem:[%s8770 + $0x298] sm:$0xff]
    %v8855 = vld [vmem:[%s8770 + $0x2a0] sm:$0xff]
    %v8856 = vld [vmem:[%s8770 + $0x2a8] sm:$0xff]
    %v8857 = vld [vmem:[%s8770 + $0x2b0] sm:$0xff]
    %v8858 = vld [vmem:[%s8770 + $0x2b8] sm:$0xff]
    %v8859 = vld [vmem:[%s8770 + $0x2c0] sm:$0xff]
    %v8860 = vld [vmem:[%s8770 + $0x2c8] sm:$0xff]
    %v8861 = vld [vmem:[%s8770 + $0x2d0] sm:$0xff]
    %v8862 = vld [vmem:[%s8770 + $0x2d8] sm:$0xff]
    %v8863 = vld [vmem:[%s8770 + $0x2e0] sm:$0xff]
    %v8864 = vld [vmem:[%s8770 + $0x2e8] sm:$0xff]
    %v8865 = vld [vmem:[%s8770 + $0x2f0] sm:$0xff]
    %v8866 = vld [vmem:[%s8770 + $0x2f8] sm:$0xff]
    %s8867 = scalar_lea.vmem [#allocation7], 18
    %v8868 = vld [vmem:[%s8867] sm:$0x3f]
    %v8870 = vlaneseq
    %v8871 = vshrl.u32 %v8870, 7
    %v8872 = vsub.s32 0, %v8871
    %v8873 = vrot.slane %v8868, %v8872
    %v8874 = vlaneseq
    %v8875 = vshrl.u32 %v8874, 7
    %v8876 = vsub.s32 1, %v8875
    %v8877 = vrot.slane %v8868, %v8876
    %v8878 = vlaneseq
    %v8879 = vshrl.u32 %v8878, 7
    %v8880 = vsub.s32 2, %v8879
    %v8881 = vrot.slane %v8868, %v8880
    %v8882 = vlaneseq
    %v8883 = vshrl.u32 %v8882, 7
    %v8884 = vsub.s32 3, %v8883
    %v8885 = vrot.slane %v8868, %v8884
    %v8886 = vlaneseq
    %v8887 = vshrl.u32 %v8886, 7
    %v8888 = vsub.s32 4, %v8887
    %v8889 = vrot.slane %v8868, %v8888
    %v8890 = vlaneseq
    %v8891 = vshrl.u32 %v8890, 7
    %v8892 = vsub.s32 5, %v8891
    %v8893 = vrot.slane %v8868, %v8892
    %v8996 = vunpack.c.l.b16 %v8771
    %v8997 = vunpack.c.h.b16 %v8771
    %v8998 = vunpack.c.l.b16 %v8772
    %v8999 = vunpack.c.h.b16 %v8772
    %v9000 = vunpack.c.l.b16 %v8773
    %v9001 = vunpack.c.h.b16 %v8773
    %v9002 = vunpack.c.l.b16 %v8774
    %v9003 = vunpack.c.h.b16 %v8774
    %v9004 = vunpack.c.l.b16 %v8775
    %v9005 = vunpack.c.h.b16 %v8775
    %v9006 = vunpack.c.l.b16 %v8776
    %v9007 = vunpack.c.h.b16 %v8776
    %v9008 = vunpack.c.l.b16 %v8777
    %v9009 = vunpack.c.h.b16 %v8777
    %v9010 = vunpack.c.l.b16 %v8778
    %v9011 = vunpack.c.h.b16 %v8778
    %v9012 = vunpack.c.l.b16 %v8779
    %v9013 = vunpack.c.h.b16 %v8779
    %v9014 = vunpack.c.l.b16 %v8780
    %v9015 = vunpack.c.h.b16 %v8780
    %v9016 = vunpack.c.l.b16 %v8781
    %v9017 = vunpack.c.h.b16 %v8781
    %v9018 = vunpack.c.l.b16 %v8782
    %v9019 = vunpack.c.h.b16 %v8782
    %v9020 = vunpack.c.l.b16 %v8783
    %v9021 = vunpack.c.h.b16 %v8783
    %v9022 = vunpack.c.l.b16 %v8784
    %v9023 = vunpack.c.h.b16 %v8784
    %v9024 = vunpack.c.l.b16 %v8785
    %v9025 = vunpack.c.h.b16 %v8785
    %v9026 = vunpack.c.l.b16 %v8786
    %v9027 = vunpack.c.h.b16 %v8786
    %v9028 = vunpack.c.l.b16 %v8787
    %v9029 = vunpack.c.h.b16 %v8787
    %v9030 = vunpack.c.l.b16 %v8788
    %v9031 = vunpack.c.h.b16 %v8788
    %v9032 = vunpack.c.l.b16 %v8789
    %v9033 = vunpack.c.h.b16 %v8789
    %v9034 = vunpack.c.l.b16 %v8790
    %v9035 = vunpack.c.h.b16 %v8790
    %v9036 = vunpack.c.l.b16 %v8791
    %v9037 = vunpack.c.h.b16 %v8791
    %v9038 = vunpack.c.l.b16 %v8792
    %v9039 = vunpack.c.h.b16 %v8792
    %v9040 = vunpack.c.l.b16 %v8793
    %v9041 = vunpack.c.h.b16 %v8793
    %v9042 = vunpack.c.l.b16 %v8794
    %v9043 = vunpack.c.h.b16 %v8794
    %v9044 = vunpack.c.l.b16 %v8795
    %v9045 = vunpack.c.h.b16 %v8795
    %v9046 = vunpack.c.l.b16 %v8796
    %v9047 = vunpack.c.h.b16 %v8796
    %v9048 = vunpack.c.l.b16 %v8797
    %v9049 = vunpack.c.h.b16 %v8797
    %v9050 = vunpack.c.l.b16 %v8798
    %v9051 = vunpack.c.h.b16 %v8798
    %v9052 = vunpack.c.l.b16 %v8799
    %v9053 = vunpack.c.h.b16 %v8799
    %v9054 = vunpack.c.l.b16 %v8800
    %v9055 = vunpack.c.h.b16 %v8800
    %v9056 = vunpack.c.l.b16 %v8801
    %v9057 = vunpack.c.h.b16 %v8801
    %v9058 = vunpack.c.l.b16 %v8802
    %v9059 = vunpack.c.h.b16 %v8802
    %v9060 = vunpack.c.l.b16 %v8803
    %v9061 = vunpack.c.h.b16 %v8803
    %v9062 = vunpack.c.l.b16 %v8804
    %v9063 = vunpack.c.h.b16 %v8804
    %v9064 = vunpack.c.l.b16 %v8805
    %v9065 = vunpack.c.h.b16 %v8805
    %v9066 = vunpack.c.l.b16 %v8806
    %v9067 = vunpack.c.h.b16 %v8806
    %v9068 = vunpack.c.l.b16 %v8807
    %v9069 = vunpack.c.h.b16 %v8807
    %v9070 = vunpack.c.l.b16 %v8808
    %v9071 = vunpack.c.h.b16 %v8808
    %v9072 = vunpack.c.l.b16 %v8809
    %v9073 = vunpack.c.h.b16 %v8809
    %v9074 = vunpack.c.l.b16 %v8810
    %v9075 = vunpack.c.h.b16 %v8810
    %v9076 = vunpack.c.l.b16 %v8811
    %v9077 = vunpack.c.h.b16 %v8811
    %v9078 = vunpack.c.l.b16 %v8812
    %v9079 = vunpack.c.h.b16 %v8812
    %v9080 = vunpack.c.l.b16 %v8813
    %v9081 = vunpack.c.h.b16 %v8813
    %v9082 = vunpack.c.l.b16 %v8814
    %v9083 = vunpack.c.h.b16 %v8814
    %v9084 = vunpack.c.l.b16 %v8815
    %v9085 = vunpack.c.h.b16 %v8815
    %v9086 = vunpack.c.l.b16 %v8816
    %v9087 = vunpack.c.h.b16 %v8816
    %v9088 = vunpack.c.l.b16 %v8817
    %v9089 = vunpack.c.h.b16 %v8817
    %v9090 = vunpack.c.l.b16 %v8818
    %v9091 = vunpack.c.h.b16 %v8818
    %v9092 = vunpack.c.l.b16 %v8819
    %v9093 = vunpack.c.h.b16 %v8819
    %v9094 = vunpack.c.l.b16 %v8820
    %v9095 = vunpack.c.h.b16 %v8820
    %v9096 = vunpack.c.l.b16 %v8821
    %v9097 = vunpack.c.h.b16 %v8821
    %v9098 = vunpack.c.l.b16 %v8822
    %v9099 = vunpack.c.h.b16 %v8822
    %v9100 = vunpack.c.l.b16 %v8823
    %v9101 = vunpack.c.h.b16 %v8823
    %v9102 = vunpack.c.l.b16 %v8824
    %v9103 = vunpack.c.h.b16 %v8824
    %v9104 = vunpack.c.l.b16 %v8825
    %v9105 = vunpack.c.h.b16 %v8825
    %v9106 = vunpack.c.l.b16 %v8826
    %v9107 = vunpack.c.h.b16 %v8826
    %v9108 = vunpack.c.l.b16 %v8827
    %v9109 = vunpack.c.h.b16 %v8827
    %v9110 = vunpack.c.l.b16 %v8828
    %v9111 = vunpack.c.h.b16 %v8828
    %v9112 = vunpack.c.l.b16 %v8829
    %v9113 = vunpack.c.h.b16 %v8829
    %v9114 = vunpack.c.l.b16 %v8830
    %v9115 = vunpack.c.h.b16 %v8830
    %v9116 = vunpack.c.l.b16 %v8831
    %v9117 = vunpack.c.h.b16 %v8831
    %v9118 = vunpack.c.l.b16 %v8832
    %v9119 = vunpack.c.h.b16 %v8832
    %v9120 = vunpack.c.l.b16 %v8833
    %v9121 = vunpack.c.h.b16 %v8833
    %v9122 = vunpack.c.l.b16 %v8834
    %v9123 = vunpack.c.h.b16 %v8834
    %v9124 = vunpack.c.l.b16 %v8835
    %v9125 = vunpack.c.h.b16 %v8835
    %v9126 = vunpack.c.l.b16 %v8836
    %v9127 = vunpack.c.h.b16 %v8836
    %v9128 = vunpack.c.l.b16 %v8837
    %v9129 = vunpack.c.h.b16 %v8837
    %v9130 = vunpack.c.l.b16 %v8838
    %v9131 = vunpack.c.h.b16 %v8838
    %v9132 = vunpack.c.l.b16 %v8839
    %v9133 = vunpack.c.h.b16 %v8839
    %v9134 = vunpack.c.l.b16 %v8840
    %v9135 = vunpack.c.h.b16 %v8840
    %v9136 = vunpack.c.l.b16 %v8841
    %v9137 = vunpack.c.h.b16 %v8841
    %v9138 = vunpack.c.l.b16 %v8842
    %v9139 = vunpack.c.h.b16 %v8842
    %v9140 = vunpack.c.l.b16 %v8843
    %v9141 = vunpack.c.h.b16 %v8843
    %v9142 = vunpack.c.l.b16 %v8844
    %v9143 = vunpack.c.h.b16 %v8844
    %v9144 = vunpack.c.l.b16 %v8845
    %v9145 = vunpack.c.h.b16 %v8845
    %v9146 = vunpack.c.l.b16 %v8846
    %v9147 = vunpack.c.h.b16 %v8846
    %v9148 = vunpack.c.l.b16 %v8847
    %v9149 = vunpack.c.h.b16 %v8847
    %v9150 = vunpack.c.l.b16 %v8848
    %v9151 = vunpack.c.h.b16 %v8848
    %v9152 = vunpack.c.l.b16 %v8849
    %v9153 = vunpack.c.h.b16 %v8849
    %v9154 = vunpack.c.l.b16 %v8850
    %v9155 = vunpack.c.h.b16 %v8850
    %v9156 = vunpack.c.l.b16 %v8851
    %v9157 = vunpack.c.h.b16 %v8851
    %v9158 = vunpack.c.l.b16 %v8852
    %v9159 = vunpack.c.h.b16 %v8852
    %v9160 = vunpack.c.l.b16 %v8853
    %v9161 = vunpack.c.h.b16 %v8853
    %v9162 = vunpack.c.l.b16 %v8854
    %v9163 = vunpack.c.h.b16 %v8854
    %v9164 = vunpack.c.l.b16 %v8855
    %v9165 = vunpack.c.h.b16 %v8855
    %v9166 = vunpack.c.l.b16 %v8856
    %v9167 = vunpack.c.h.b16 %v8856
    %v9168 = vunpack.c.l.b16 %v8857
    %v9169 = vunpack.c.h.b16 %v8857
    %v9170 = vunpack.c.l.b16 %v8858
    %v9171 = vunpack.c.h.b16 %v8858
    %v9172 = vunpack.c.l.b16 %v8859
    %v9173 = vunpack.c.h.b16 %v8859
    %v9174 = vunpack.c.l.b16 %v8860
    %v9175 = vunpack.c.h.b16 %v8860
    %v9176 = vunpack.c.l.b16 %v8861
    %v9177 = vunpack.c.h.b16 %v8861
    %v9178 = vunpack.c.l.b16 %v8862
    %v9179 = vunpack.c.h.b16 %v8862
    %v9180 = vunpack.c.l.b16 %v8863
    %v9181 = vunpack.c.h.b16 %v8863
    %v9182 = vunpack.c.l.b16 %v8864
    %v9183 = vunpack.c.h.b16 %v8864
    %v9184 = vunpack.c.l.b16 %v8865
    %v9185 = vunpack.c.h.b16 %v8865
    %v9186 = vunpack.c.l.b16 %v8866
    %v9187 = vunpack.c.h.b16 %v8866
    %v9188 = vpack.c.b16 %v9002, %v8996
    %v9189 = vpack.c.b16 %v9003, %v8997
    %v9190 = vpack.c.b16 %v9004, %v8998
    %v9191 = vpack.c.b16 %v9005, %v8999
    %v9192 = vpack.c.b16 %v9006, %v9000
    %v9193 = vpack.c.b16 %v9007, %v9001
    %v9194 = vpack.c.b16 %v9014, %v9008
    %v9195 = vpack.c.b16 %v9015, %v9009
    %v9196 = vpack.c.b16 %v9016, %v9010
    %v9197 = vpack.c.b16 %v9017, %v9011
    %v9198 = vpack.c.b16 %v9018, %v9012
    %v9199 = vpack.c.b16 %v9019, %v9013
    %v9200 = vpack.c.b16 %v9026, %v9020
    %v9201 = vpack.c.b16 %v9027, %v9021
    %v9202 = vpack.c.b16 %v9028, %v9022
    %v9203 = vpack.c.b16 %v9029, %v9023
    %v9204 = vpack.c.b16 %v9030, %v9024
    %v9205 = vpack.c.b16 %v9031, %v9025
    %v9206 = vpack.c.b16 %v9038, %v9032
    %v9207 = vpack.c.b16 %v9039, %v9033
    %v9208 = vpack.c.b16 %v9040, %v9034
    %v9209 = vpack.c.b16 %v9041, %v9035
    %v9210 = vpack.c.b16 %v9042, %v9036
    %v9211 = vpack.c.b16 %v9043, %v9037
    %v9212 = vpack.c.b16 %v9050, %v9044
    %v9213 = vpack.c.b16 %v9051, %v9045
    %v9214 = vpack.c.b16 %v9052, %v9046
    %v9215 = vpack.c.b16 %v9053, %v9047
    %v9216 = vpack.c.b16 %v9054, %v9048
    %v9217 = vpack.c.b16 %v9055, %v9049
    %v9218 = vpack.c.b16 %v9062, %v9056
    %v9219 = vpack.c.b16 %v9063, %v9057
    %v9220 = vpack.c.b16 %v9064, %v9058
    %v9221 = vpack.c.b16 %v9065, %v9059
    %v9222 = vpack.c.b16 %v9066, %v9060
    %v9223 = vpack.c.b16 %v9067, %v9061
    %v9224 = vpack.c.b16 %v9074, %v9068
    %v9225 = vpack.c.b16 %v9075, %v9069
    %v9226 = vpack.c.b16 %v9076, %v9070
    %v9227 = vpack.c.b16 %v9077, %v9071
    %v9228 = vpack.c.b16 %v9078, %v9072
    %v9229 = vpack.c.b16 %v9079, %v9073
    %v9230 = vpack.c.b16 %v9086, %v9080
    %v9231 = vpack.c.b16 %v9087, %v9081
    %v9232 = vpack.c.b16 %v9088, %v9082
    %v9233 = vpack.c.b16 %v9089, %v9083
    %v9234 = vpack.c.b16 %v9090, %v9084
    %v9235 = vpack.c.b16 %v9091, %v9085
    %v9236 = vpack.c.b16 %v9098, %v9092
    %v9237 = vpack.c.b16 %v9099, %v9093
    %v9238 = vpack.c.b16 %v9100, %v9094
    %v9239 = vpack.c.b16 %v9101, %v9095
    %v9240 = vpack.c.b16 %v9102, %v9096
    %v9241 = vpack.c.b16 %v9103, %v9097
    %v9242 = vpack.c.b16 %v9110, %v9104
    %v9243 = vpack.c.b16 %v9111, %v9105
    %v9244 = vpack.c.b16 %v9112, %v9106
    %v9245 = vpack.c.b16 %v9113, %v9107
    %v9246 = vpack.c.b16 %v9114, %v9108
    %v9247 = vpack.c.b16 %v9115, %v9109
    %v9248 = vpack.c.b16 %v9122, %v9116
    %v9249 = vpack.c.b16 %v9123, %v9117
    %v9250 = vpack.c.b16 %v9124, %v9118
    %v9251 = vpack.c.b16 %v9125, %v9119
    %v9252 = vpack.c.b16 %v9126, %v9120
    %v9253 = vpack.c.b16 %v9127, %v9121
    %v9254 = vpack.c.b16 %v9134, %v9128
    %v9255 = vpack.c.b16 %v9135, %v9129
    %v9256 = vpack.c.b16 %v9136, %v9130
    %v9257 = vpack.c.b16 %v9137, %v9131
    %v9258 = vpack.c.b16 %v9138, %v9132
    %v9259 = vpack.c.b16 %v9139, %v9133
    %v9260 = vpack.c.b16 %v9146, %v9140
    %v9261 = vpack.c.b16 %v9147, %v9141
    %v9262 = vpack.c.b16 %v9148, %v9142
    %v9263 = vpack.c.b16 %v9149, %v9143
    %v9264 = vpack.c.b16 %v9150, %v9144
    %v9265 = vpack.c.b16 %v9151, %v9145
    %v9266 = vpack.c.b16 %v9158, %v9152
    %v9267 = vpack.c.b16 %v9159, %v9153
    %v9268 = vpack.c.b16 %v9160, %v9154
    %v9269 = vpack.c.b16 %v9161, %v9155
    %v9270 = vpack.c.b16 %v9162, %v9156
    %v9271 = vpack.c.b16 %v9163, %v9157
    %v9272 = vpack.c.b16 %v9170, %v9164
    %v9273 = vpack.c.b16 %v9171, %v9165
    %v9274 = vpack.c.b16 %v9172, %v9166
    %v9275 = vpack.c.b16 %v9173, %v9167
    %v9276 = vpack.c.b16 %v9174, %v9168
    %v9277 = vpack.c.b16 %v9175, %v9169
    %v9278 = vpack.c.b16 %v9182, %v9176
    %v9279 = vpack.c.b16 %v9183, %v9177
    %v9280 = vpack.c.b16 %v9184, %v9178
    %v9281 = vpack.c.b16 %v9185, %v9179
    %v9282 = vpack.c.b16 %v9186, %v9180
    %v9283 = vpack.c.b16 %v9187, %v9181
    %9380 = vmatprep.subr.bf16.mxu0 %v9189
    %9381 = vmatpush1.bf16.msra.mxu0 %v9188
    %9382 = vmatprep.subr.bf16.mxu0 %v9195
    %9383 = vmatpush1.bf16.msra.mxu0 %v9194
    %9384 = vmatprep.subr.bf16.mxu0 %v9201
    %9385 = vmatpush1.bf16.msra.mxu0 %v9200
    %9386 = vmatprep.subr.bf16.mxu0 %v9207
    %9387 = vmatpush1.bf16.msra.mxu0 %v9206
    %9388 = vmatprep.subr.bf16.mxu0 %v9213
    %9389 = vmatpush1.bf16.msra.mxu0 %v9212
    %9390 = vmatprep.subr.bf16.mxu0 %v9219
    %9391 = vmatpush1.bf16.msra.mxu0 %v9218
    %9392 = vmatprep.subr.bf16.mxu0 %v9225
    %9393 = vmatpush1.bf16.msra.mxu0 %v9224
    %9394 = vmatprep.subr.bf16.mxu0 %v9231
    %9395 = vmatpush1.bf16.msra.mxu0 %v9230
    %9396 = vmatprep.subr.bf16.mxu0 %v9237
    %9397 = vmatpush1.bf16.msra.mxu0 %v9236
    %9398 = vmatprep.subr.bf16.mxu0 %v9243
    %9399 = vmatpush1.bf16.msra.mxu0 %v9242
    %9400 = vmatprep.subr.bf16.mxu0 %v9249
    %9401 = vmatpush1.bf16.msra.mxu0 %v9248
    %9402 = vmatprep.subr.bf16.mxu0 %v9255
    %9403 = vmatpush1.bf16.msra.mxu0 %v9254
    %9404 = vmatprep.subr.bf16.mxu0 %v9261
    %9405 = vmatpush1.bf16.msra.mxu0 %v9260
    %9406 = vmatprep.subr.bf16.mxu0 %v9267
    %9407 = vmatpush1.bf16.msra.mxu0 %v9266
    %9408 = vmatprep.subr.bf16.mxu0 %v9273
    %9409 = vmatpush1.bf16.msra.mxu0 %v9272
    %9410 = vmatprep.subr.bf16.mxu0 %v9279
    %9411 = vmatpush1.bf16.msra.mxu0 %v9278
    %9412 = vmatprep.mubr.bf16.mxu0 %v8769
    %9413 = vmatmul.mubr.bf16.gmra.mrb[0].mxu0 %v8768
    %v9414 = vpop.f32.mrb[0].mxu0
    %v9415 = vadd.f32 %v8873, %v9414
    %v9416 = vpop.f32.mrb[0].mxu0
    %v9417 = vadd.f32 %v8877, %v9416
    %v9418 = vpop.f32.mrb[0].mxu0
    %v9419 = vadd.f32 %v8873, %v9418
    %v9420 = vpop.f32.mrb[0].mxu0
    %v9421 = vadd.f32 %v8877, %v9420
    %9422 = vdwg.mxu0
    %9423 = vmatprep.subr.bf16.mxu0 %v9191
    %9424 = vmatpush1.bf16.msra.mxu0 %v9190
    %9425 = vmatprep.subr.bf16.mxu0 %v9197
    %9426 = vmatpush1.bf16.msra.mxu0 %v9196
    %9427 = vmatprep.subr.bf16.mxu0 %v9203
    %9428 = vmatpush1.bf16.msra.mxu0 %v9202
    %9429 = vmatprep.subr.bf16.mxu0 %v9209
    %9430 = vmatpush1.bf16.msra.mxu0 %v9208
    %9431 = vmatprep.subr.bf16.mxu0 %v9215
    %9432 = vmatpush1.bf16.msra.mxu0 %v9214
    %9433 = vmatprep.subr.bf16.mxu0 %v9221
    %9434 = vmatpush1.bf16.msra.mxu0 %v9220
    %9435 = vmatprep.subr.bf16.mxu0 %v9227
    %9436 = vmatpush1.bf16.msra.mxu0 %v9226
    %9437 = vmatprep.subr.bf16.mxu0 %v9233
    %9438 = vmatpush1.bf16.msra.mxu0 %v9232
    %9439 = vmatprep.subr.bf16.mxu0 %v9239
    %9440 = vmatpush1.bf16.msra.mxu0 %v9238
    %9441 = vmatprep.subr.bf16.mxu0 %v9245
    %9442 = vmatpush1.bf16.msra.mxu0 %v9244
    %9443 = vmatprep.subr.bf16.mxu0 %v9251
    %9444 = vmatpush1.bf16.msra.mxu0 %v9250
    %9445 = vmatprep.subr.bf16.mxu0 %v9257
    %9446 = vmatpush1.bf16.msra.mxu0 %v9256
    %9447 = vmatprep.subr.bf16.mxu0 %v9263
    %9448 = vmatpush1.bf16.msra.mxu0 %v9262
    %9449 = vmatprep.subr.bf16.mxu0 %v9269
    %9450 = vmatpush1.bf16.msra.mxu0 %v9268
    %9451 = vmatprep.subr.bf16.mxu0 %v9275
    %9452 = vmatpush1.bf16.msra.mxu0 %v9274
    %9453 = vmatprep.subr.bf16.mxu0 %v9281
    %9454 = vmatpush1.bf16.msra.mxu0 %v9280
    %9455 = vmatprep.mubr.bf16.mxu0 %v8769
    %9456 = vmatmul.mubr.bf16.gmra.mrb[0].mxu0 %v8768
    %v9457 = vpop.f32.mrb[0].mxu0
    %v9458 = vadd.f32 %v8881, %v9457
    %v9459 = vpop.f32.mrb[0].mxu0
    %v9460 = vadd.f32 %v8885, %v9459
    %v9461 = vpop.f32.mrb[0].mxu0
    %v9462 = vadd.f32 %v8881, %v9461
    %v9463 = vpop.f32.mrb[0].mxu0
    %v9464 = vadd.f32 %v8885, %v9463
    %9465 = vdwg.mxu0
    %9466 = vmatprep.subr.bf16.mxu0 %v9193
    %9467 = vmatpush1.bf16.msra.mxu0 %v9192
    %9468 = vmatprep.subr.bf16.mxu0 %v9199
    %9469 = vmatpush1.bf16.msra.mxu0 %v9198
    %9470 = vmatprep.subr.bf16.mxu0 %v9205
    %9471 = vmatpush1.bf16.msra.mxu0 %v9204
    %9472 = vmatprep.subr.bf16.mxu0 %v9211
    %9473 = vmatpush1.bf16.msra.mxu0 %v9210
    %9474 = vmatprep.subr.bf16.mxu0 %v9217
    %9475 = vmatpush1.bf16.msra.mxu0 %v9216
    %9476 = vmatprep.subr.bf16.mxu0 %v9223
    %9477 = vmatpush1.bf16.msra.mxu0 %v9222
    %9478 = vmatprep.subr.bf16.mxu0 %v9229
    %9479 = vmatpush1.bf16.msra.mxu0 %v9228
    %9480 = vmatprep.subr.bf16.mxu0 %v9235
    %9481 = vmatpush1.bf16.msra.mxu0 %v9234
    %9482 = vmatprep.subr.bf16.mxu0 %v9241
    %9483 = vmatpush1.bf16.msra.mxu0 %v9240
    %9484 = vmatprep.subr.bf16.mxu0 %v9247
    %9485 = vmatpush1.bf16.msra.mxu0 %v9246
    %9486 = vmatprep.subr.bf16.mxu0 %v9253
    %9487 = vmatpush1.bf16.msra.mxu0 %v9252
    %9488 = vmatprep.subr.bf16.mxu0 %v9259
    %9489 = vmatpush1.bf16.msra.mxu0 %v9258
    %9490 = vmatprep.subr.bf16.mxu0 %v9265
    %9491 = vmatpush1.bf16.msra.mxu0 %v9264
    %9492 = vmatprep.subr.bf16.mxu0 %v9271
    %9493 = vmatpush1.bf16.msra.mxu0 %v9270
    %9494 = vmatprep.subr.bf16.mxu0 %v9277
    %9495 = vmatpush1.bf16.msra.mxu0 %v9276
    %9496 = vmatprep.subr.bf16.mxu0 %v9283
    %9497 = vmatpush1.bf16.msra.mxu0 %v9282
    %9498 = vmatprep.mubr.bf16.mxu0 %v8769
    %9499 = vmatmul.mubr.bf16.gmra.mrb[0].mxu0 %v8768
    %v9500 = vpop.f32.mrb[0].mxu0
    %v9501 = vadd.f32 %v8889, %v9500
    %v9502 = vpop.f32.mrb[0].mxu0
    %v9503 = vadd.f32 %v8893, %v9502
    %v9504 = vpop.f32.mrb[0].mxu0
    %v9505 = vadd.f32 %v8889, %v9504
    %v9506 = vpop.f32.mrb[0].mxu0
    %v9507 = vadd.f32 %v8893, %v9506
    %9508 = vdwg.mxu0
    %v9509 = vpack.c.bf16 %v9415, %v9415
    %v9510 = vpack.c.bf16 %v9419, %v9419
    %v9511 = vpack.c.bf16 %v9458, %v9458
    %v9512 = vpack.c.bf16 %v9462, %v9462
    %9513 = vmatprep.subr.bf16.mxu0 0
    %9514 = vmatpush1.bf16.xpose.msra.mxu0 %v9511
    %9515 = vmatprep.subr.bf16.mxu0 0
    %9516 = vmatpush1.bf16.xpose.msra.mxu0 0
    %9517 = vmatprep.subr.bf16.mxu0 0
    %9518 = vmatpush1.bf16.xpose.msra.mxu0 0
    %9519 = vmatprep.subr.bf16.mxu0 0
    %9520 = vmatpush1.bf16.xpose.msra.mxu0 0
    %9521 = vmatprep.subr.bf16.mxu0 0
    %9522 = vmatpush1.bf16.xpose.msra.mxu0 0
    %9523 = vmatprep.subr.bf16.mxu0 0
    %9524 = vmatpush1.bf16.xpose.msra.mxu0 0
    %9525 = vmatprep.subr.bf16.mxu0 0
    %9526 = vmatpush1.bf16.xpose.msra.mxu0 0
    %9527 = vmatprep.subr.bf16.mxu0 0
    %9528 = vmatpush1.bf16.xpose.msra.mxu0 0
    %9529 = vmatprep.subr.bf16.mxu0 0
    %9530 = vmatpush1.bf16.xpose.msra.mxu0 0
    %9531 = vmatprep.subr.bf16.mxu0 0
    %9532 = vmatpush1.bf16.xpose.msra.mxu0 0
    %9533 = vmatprep.subr.bf16.mxu0 0
    %9534 = vmatpush1.bf16.xpose.msra.mxu0 0
    %9535 = vmatprep.subr.bf16.mxu0 0
    %9536 = vmatpush1.bf16.xpose.msra.mxu0 0
    %9537 = vmatprep.subr.bf16.mxu0 0
    %9538 = vmatpush1.bf16.xpose.msra.mxu0 0
    %9539 = vmatprep.subr.bf16.mxu0 0
    %9540 = vmatpush1.bf16.xpose.msra.mxu0 0
    %9541 = vmatprep.subr.bf16.mxu0 0
    %9542 = vmatpush1.bf16.xpose.msra.mxu0 0
    %9543 = vmatprep.subr.bf16.mxu0 0
    %9544 = vmatpush1.bf16.xpose.msra.mxu0 0
    %9545 = vmatprep.mubr.bf16.mxu0 0
    %9546 = vmatmul.mubr.bf16.gmra.mrb[0].mxu0 %v9509
    %v9547 = vpop.f32.mrb[0].mxu0
    %v9548 = vadd.f32 0.0, %v9547
    %v9549 = vpop.f32.mrb[0].mxu0
    %v9550 = vpop.f32.mrb[0].mxu0
    %v9551 = vpop.f32.mrb[0].mxu0
    %9552 = vdwg.mxu0
    %9553 = vmatprep.subr.bf16.mxu0 0
    %9554 = vmatpush1.bf16.xpose.msra.mxu0 %v9512
    %9555 = vmatprep.subr.bf16.mxu0 0
    %9556 = vmatpush1.bf16.xpose.msra.mxu0 0
    %9557 = vmatprep.subr.bf16.mxu0 0
    %9558 = vmatpush1.bf16.xpose.msra.mxu0 0
    %9559 = vmatprep.subr.bf16.mxu0 0
    %9560 = vmatpush1.bf16.xpose.msra.mxu0 0
    %9561 = vmatprep.subr.bf16.mxu0 0
    %9562 = vmatpush1.bf16.xpose.msra.mxu0 0
    %9563 = vmatprep.subr.bf16.mxu0 0
    %9564 = vmatpush1.bf16.xpose.msra.mxu0 0
    %9565 = vmatprep.subr.bf16.mxu0 0
    %9566 = vmatpush1.bf16.xpose.msra.mxu0 0
    %9567 = vmatprep.subr.bf16.mxu0 0
    %9568 = vmatpush1.bf16.xpose.msra.mxu0 0
    %9569 = vmatprep.subr.bf16.mxu0 0
    %9570 = vmatpush1.bf16.xpose.msra.mxu0 0
    %9571 = vmatprep.subr.bf16.mxu0 0
    %9572 = vmatpush1.bf16.xpose.msra.mxu0 0
    %9573 = vmatprep.subr.bf16.mxu0 0
    %9574 = vmatpush1.bf16.xpose.msra.mxu0 0
    %9575 = vmatprep.subr.bf16.mxu0 0
    %9576 = vmatpush1.bf16.xpose.msra.mxu0 0
    %9577 = vmatprep.subr.bf16.mxu0 0
    %9578 = vmatpush1.bf16.xpose.msra.mxu0 0
    %9579 = vmatprep.subr.bf16.mxu0 0
    %9580 = vmatpush1.bf16.xpose.msra.mxu0 0
    %9581 = vmatprep.subr.bf16.mxu0 0
    %9582 = vmatpush1.bf16.xpose.msra.mxu0 0
    %9583 = vmatprep.subr.bf16.mxu0 0
    %9584 = vmatpush1.bf16.xpose.msra.mxu0 0
    %9585 = vmatprep.mubr.bf16.mxu0 0
    %9586 = vmatmul.mubr.bf16.gmra.mrb[0].mxu0 %v9510
    %v9587 = vpop.f32.mrb[0].mxu0
    %v9588 = vadd.f32 0.0, %v9587
    %v9589 = vpop.f32.mrb[0].mxu0
    %v9590 = vpop.f32.mrb[0].mxu0
    %v9591 = vpop.f32.mrb[0].mxu0
    %9592 = vdwg.mxu0
    %v9593 = vmul.f32 %v9548, 0.088388346
    %v9594 = vmul.f32 %v9588, 0.088388346
    %v9595 = vsel %vm1058, %v9593, -inf
    %9596 = vmax.xlane.f32.xlu0 %v9595
    %v9597 = vpop.xlane.xlu0 %9596
    %v9598 = vsel %vm1058, %v9594, -inf
    %9599 = vmax.xlane.f32.xlu0 %v9598
    %v9600 = vpop.xlane.xlu0 %9599
    %v9601 = vsub.f32 %v9593, %v9597
    %v9602 = vsub.f32 %v9594, %v9600
    %v9603 = vmul.f32 %v9601, 1.442695
    %v9604 = vpow.pop %v9603
    %v9605 = vmul.f32 %v9602, 1.442695
    %v9606 = vpow.pop %v9605
    %v9607 = vsel %vm1058, %v9604, 0.0
    %9608 = vadd.xlane.f32.xlu0 %v9607
    %v9609 = vpop.xlane.xlu0 %9608
    %v9610 = vsel %vm1058, %v9606, 0.0
    %9611 = vadd.xlane.f32.xlu0 %v9610
    %v9612 = vpop.xlane.xlu0 %9611
    %v9613 = vrcp.pop %v9609
    %v9614 = vrcp.pop %v9612
    %v9615 = vmul.f32 %v9604, %v9613
    %v9616 = vmul.f32 %v9606, %v9614
    %v9617 = vpack.c.bf16 %v9615, %v9615
    %v9618 = vpack.c.bf16 %v9616, %v9616
    %v9619 = vpack.c.bf16 %v9501, %v9501
    %v9620 = vpack.c.bf16 %v9505, %v9505
    %v9622 = vsel %vm1058, %v9617, 0
    %v9625 = vsel %vm1088, %v9619, 0
    %9627 = vmatprep.subr.bf16.mxu0 0
    %9628 = vmatpush1.bf16.msra.mxu0 %v9625
    %9629 = vmatprep.subr.bf16.mxu0 0
    %9630 = vmatpush1.bf16.msra.mxu0 0
    %9631 = vmatprep.subr.bf16.mxu0 0
    %9632 = vmatpush1.bf16.msra.mxu0 0
    %9633 = vmatprep.subr.bf16.mxu0 0
    %9634 = vmatpush1.bf16.msra.mxu0 0
    %9635 = vmatprep.subr.bf16.mxu0 0
    %9636 = vmatpush1.bf16.msra.mxu0 0
    %9637 = vmatprep.subr.bf16.mxu0 0
    %9638 = vmatpush1.bf16.msra.mxu0 0
    %9639 = vmatprep.subr.bf16.mxu0 0
    %9640 = vmatpush1.bf16.msra.mxu0 0
    %9641 = vmatprep.subr.bf16.mxu0 0
    %9642 = vmatpush1.bf16.msra.mxu0 0
    %9643 = vmatprep.subr.bf16.mxu0 0
    %9644 = vmatpush1.bf16.msra.mxu0 0
    %9645 = vmatprep.subr.bf16.mxu0 0
    %9646 = vmatpush1.bf16.msra.mxu0 0
    %9647 = vmatprep.subr.bf16.mxu0 0
    %9648 = vmatpush1.bf16.msra.mxu0 0
    %9649 = vmatprep.subr.bf16.mxu0 0
    %9650 = vmatpush1.bf16.msra.mxu0 0
    %9651 = vmatprep.subr.bf16.mxu0 0
    %9652 = vmatpush1.bf16.msra.mxu0 0
    %9653 = vmatprep.subr.bf16.mxu0 0
    %9654 = vmatpush1.bf16.msra.mxu0 0
    %9655 = vmatprep.subr.bf16.mxu0 0
    %9656 = vmatpush1.bf16.msra.mxu0 0
    %9657 = vmatprep.subr.bf16.mxu0 0
    %9658 = vmatpush1.bf16.msra.mxu0 0
    %9659 = vmatprep.mubr.bf16.mxu0 0
    %9660 = vmatmul.mubr.bf16.gmra.mrb[0].mxu0 %v9622
    %v9661 = vpop.f32.mrb[0].mxu0
    %v9662 = vadd.f32 0.0, %v9661
    %v9663 = vpop.f32.mrb[0].mxu0
    %v9664 = vpop.f32.mrb[0].mxu0
    %v9665 = vpop.f32.mrb[0].mxu0
    %9666 = vdwg.mxu0
    %v9668 = vsel %vm1058, %v9618, 0
    %v9671 = vsel %vm1088, %v9620, 0
    %9673 = vmatprep.subr.bf16.mxu0 0
    %9674 = vmatpush1.bf16.msra.mxu0 %v9671
    %9675 = vmatprep.subr.bf16.mxu0 0
    %9676 = vmatpush1.bf16.msra.mxu0 0
    %9677 = vmatprep.subr.bf16.mxu0 0
    %9678 = vmatpush1.bf16.msra.mxu0 0
    %9679 = vmatprep.subr.bf16.mxu0 0
    %9680 = vmatpush1.bf16.msra.mxu0 0
    %9681 = vmatprep.subr.bf16.mxu0 0
    %9682 = vmatpush1.bf16.msra.mxu0 0
    %9683 = vmatprep.subr.bf16.mxu0 0
    %9684 = vmatpush1.bf16.msra.mxu0 0
    %9685 = vmatprep.subr.bf16.mxu0 0
    %9686 = vmatpush1.bf16.msra.mxu0 0
    %9687 = vmatprep.subr.bf16.mxu0 0
    %9688 = vmatpush1.bf16.msra.mxu0 0
    %9689 = vmatprep.subr.bf16.mxu0 0
    %9690 = vmatpush1.bf16.msra.mxu0 0
    %9691 = vmatprep.subr.bf16.mxu0 0
    %9692 = vmatpush1.bf16.msra.mxu0 0
    %9693 = vmatprep.subr.bf16.mxu0 0
    %9694 = vmatpush1.bf16.msra.mxu0 0
    %9695 = vmatprep.subr.bf16.mxu0 0
    %9696 = vmatpush1.bf16.msra.mxu0 0
    %9697 = vmatprep.subr.bf16.mxu0 0
    %9698 = vmatpush1.bf16.msra.mxu0 0
    %9699 = vmatprep.subr.bf16.mxu0 0
    %9700 = vmatpush1.bf16.msra.mxu0 0
    %9701 = vmatprep.subr.bf16.mxu0 0
    %9702 = vmatpush1.bf16.msra.mxu0 0
    %9703 = vmatprep.subr.bf16.mxu0 0
    %9704 = vmatpush1.bf16.msra.mxu0 0
    %9705 = vmatprep.mubr.bf16.mxu0 0
    %9706 = vmatmul.mubr.bf16.gmra.mrb[0].mxu0 %v9668
    %v9707 = vpop.f32.mrb[0].mxu0
    %v9708 = vadd.f32 0.0, %v9707
    %v9709 = vpop.f32.mrb[0].mxu0
    %v9710 = vpop.f32.mrb[0].mxu0
    %v9711 = vpop.f32.mrb[0].mxu0
    %9712 = vdwg.mxu0
    %v9713 = vpack.c.bf16 %v9417, %v9417
    %v9714 = vpack.c.bf16 %v9421, %v9421
    %v9715 = vpack.c.bf16 %v9460, %v9460
    %v9716 = vpack.c.bf16 %v9464, %v9464
    %9717 = vmatprep.subr.bf16.mxu0 0
    %9718 = vmatpush1.bf16.xpose.msra.mxu0 %v9715
    %9719 = vmatprep.subr.bf16.mxu0 0
    %9720 = vmatpush1.bf16.xpose.msra.mxu0 0
    %9721 = vmatprep.subr.bf16.mxu0 0
    %9722 = vmatpush1.bf16.xpose.msra.mxu0 0
    %9723 = vmatprep.subr.bf16.mxu0 0
    %9724 = vmatpush1.bf16.xpose.msra.mxu0 0
    %9725 = vmatprep.subr.bf16.mxu0 0
    %9726 = vmatpush1.bf16.xpose.msra.mxu0 0
    %9727 = vmatprep.subr.bf16.mxu0 0
    %9728 = vmatpush1.bf16.xpose.msra.mxu0 0
    %9729 = vmatprep.subr.bf16.mxu0 0
    %9730 = vmatpush1.bf16.xpose.msra.mxu0 0
    %9731 = vmatprep.subr.bf16.mxu0 0
    %9732 = vmatpush1.bf16.xpose.msra.mxu0 0
    %9733 = vmatprep.subr.bf16.mxu0 0
    %9734 = vmatpush1.bf16.xpose.msra.mxu0 0
    %9735 = vmatprep.subr.bf16.mxu0 0
    %9736 = vmatpush1.bf16.xpose.msra.mxu0 0
    %9737 = vmatprep.subr.bf16.mxu0 0
    %9738 = vmatpush1.bf16.xpose.msra.mxu0 0
    %9739 = vmatprep.subr.bf16.mxu0 0
    %9740 = vmatpush1.bf16.xpose.msra.mxu0 0
    %9741 = vmatprep.subr.bf16.mxu0 0
    %9742 = vmatpush1.bf16.xpose.msra.mxu0 0
    %9743 = vmatprep.subr.bf16.mxu0 0
    %9744 = vmatpush1.bf16.xpose.msra.mxu0 0
    %9745 = vmatprep.subr.bf16.mxu0 0
    %9746 = vmatpush1.bf16.xpose.msra.mxu0 0
    %9747 = vmatprep.subr.bf16.mxu0 0
    %9748 = vmatpush1.bf16.xpose.msra.mxu0 0
    %9749 = vmatprep.mubr.bf16.mxu0 0
    %9750 = vmatmul.mubr.bf16.gmra.mrb[0].mxu0 %v9713
    %v9751 = vpop.f32.mrb[0].mxu0
    %v9752 = vadd.f32 0.0, %v9751
    %v9753 = vpop.f32.mrb[0].mxu0
    %v9754 = vpop.f32.mrb[0].mxu0
    %v9755 = vpop.f32.mrb[0].mxu0
    %9756 = vdwg.mxu0
    %9757 = vmatprep.subr.bf16.mxu0 0
    %9758 = vmatpush1.bf16.xpose.msra.mxu0 %v9716
    %9759 = vmatprep.subr.bf16.mxu0 0
    %9760 = vmatpush1.bf16.xpose.msra.mxu0 0
    %9761 = vmatprep.subr.bf16.mxu0 0
    %9762 = vmatpush1.bf16.xpose.msra.mxu0 0
    %9763 = vmatprep.subr.bf16.mxu0 0
    %9764 = vmatpush1.bf16.xpose.msra.mxu0 0
    %9765 = vmatprep.subr.bf16.mxu0 0
    %9766 = vmatpush1.bf16.xpose.msra.mxu0 0
    %9767 = vmatprep.subr.bf16.mxu0 0
    %9768 = vmatpush1.bf16.xpose.msra.mxu0 0
    %9769 = vmatprep.subr.bf16.mxu0 0
    %9770 = vmatpush1.bf16.xpose.msra.mxu0 0
    %9771 = vmatprep.subr.bf16.mxu0 0
    %9772 = vmatpush1.bf16.xpose.msra.mxu0 0
    %9773 = vmatprep.subr.bf16.mxu0 0
    %9774 = vmatpush1.bf16.xpose.msra.mxu0 0
    %9775 = vmatprep.subr.bf16.mxu0 0
    %9776 = vmatpush1.bf16.xpose.msra.mxu0 0
    %9777 = vmatprep.subr.bf16.mxu0 0
    %9778 = vmatpush1.bf16.xpose.msra.mxu0 0
    %9779 = vmatprep.subr.bf16.mxu0 0
    %9780 = vmatpush1.bf16.xpose.msra.mxu0 0
    %9781 = vmatprep.subr.bf16.mxu0 0
    %9782 = vmatpush1.bf16.xpose.msra.mxu0 0
    %9783 = vmatprep.subr.bf16.mxu0 0
    %9784 = vmatpush1.bf16.xpose.msra.mxu0 0
    %9785 = vmatprep.subr.bf16.mxu0 0
    %9786 = vmatpush1.bf16.xpose.msra.mxu0 0
    %9787 = vmatprep.subr.bf16.mxu0 0
    %9788 = vmatpush1.bf16.xpose.msra.mxu0 0
    %9789 = vmatprep.mubr.bf16.mxu0 0
    %9790 = vmatmul.mubr.bf16.gmra.mrb[0].mxu0 %v9714
    %v9791 = vpop.f32.mrb[0].mxu0
    %v9792 = vadd.f32 0.0, %v9791
    %v9793 = vpop.f32.mrb[0].mxu0
    %v9794 = vpop.f32.mrb[0].mxu0
    %v9795 = vpop.f32.mrb[0].mxu0
    %9796 = vdwg.mxu0
    %v9797 = vmul.f32 %v9752, 0.088388346
    %v9798 = vmul.f32 %v9792, 0.088388346
    %v9799 = vsel %vm1058, %v9797, -inf
    %9800 = vmax.xlane.f32.xlu0 %v9799
    %v9801 = vpop.xlane.xlu0 %9800
    %v9802 = vsel %vm1058, %v9798, -inf
    %9803 = vmax.xlane.f32.xlu0 %v9802
    %v9804 = vpop.xlane.xlu0 %9803
    %v9805 = vsub.f32 %v9797, %v9801
    %v9806 = vsub.f32 %v9798, %v9804
    %v9807 = vmul.f32 %v9805, 1.442695
    %v9808 = vpow.pop %v9807
    %v9809 = vmul.f32 %v9806, 1.442695
    %v9810 = vpow.pop %v9809
    %v9811 = vsel %vm1058, %v9808, 0.0
    %9812 = vadd.xlane.f32.xlu0 %v9811
    %v9813 = vpop.xlane.xlu0 %9812
    %v9814 = vsel %vm1058, %v9810, 0.0
    %9815 = vadd.xlane.f32.xlu0 %v9814
    %v9816 = vpop.xlane.xlu0 %9815
    %v9817 = vrcp.pop %v9813
    %v9818 = vrcp.pop %v9816
    %v9819 = vmul.f32 %v9808, %v9817
    %v9820 = vmul.f32 %v9810, %v9818
    %v9821 = vpack.c.bf16 %v9819, %v9819
    %v9822 = vpack.c.bf16 %v9820, %v9820
    %v9823 = vpack.c.bf16 %v9503, %v9503
    %v9824 = vpack.c.bf16 %v9507, %v9507
    %v9826 = vsel %vm1058, %v9821, 0
    %v9829 = vsel %vm1088, %v9823, 0
    %9831 = vmatprep.subr.bf16.mxu0 0
    %9832 = vmatpush1.bf16.msra.mxu0 %v9829
    %9833 = vmatprep.subr.bf16.mxu0 0
    %9834 = vmatpush1.bf16.msra.mxu0 0
    %9835 = vmatprep.subr.bf16.mxu0 0
    %9836 = vmatpush1.bf16.msra.mxu0 0
    %9837 = vmatprep.subr.bf16.mxu0 0
    %9838 = vmatpush1.bf16.msra.mxu0 0
    %9839 = vmatprep.subr.bf16.mxu0 0
    %9840 = vmatpush1.bf16.msra.mxu0 0
    %9841 = vmatprep.subr.bf16.mxu0 0
    %9842 = vmatpush1.bf16.msra.mxu0 0
    %9843 = vmatprep.subr.bf16.mxu0 0
    %9844 = vmatpush1.bf16.msra.mxu0 0
    %9845 = vmatprep.subr.bf16.mxu0 0
    %9846 = vmatpush1.bf16.msra.mxu0 0
    %9847 = vmatprep.subr.bf16.mxu0 0
    %9848 = vmatpush1.bf16.msra.mxu0 0
    %9849 = vmatprep.subr.bf16.mxu0 0
    %9850 = vmatpush1.bf16.msra.mxu0 0
    %9851 = vmatprep.subr.bf16.mxu0 0
    %9852 = vmatpush1.bf16.msra.mxu0 0
    %9853 = vmatprep.subr.bf16.mxu0 0
    %9854 = vmatpush1.bf16.msra.mxu0 0
    %9855 = vmatprep.subr.bf16.mxu0 0
    %9856 = vmatpush1.bf16.msra.mxu0 0
    %9857 = vmatprep.subr.bf16.mxu0 0
    %9858 = vmatpush1.bf16.msra.mxu0 0
    %9859 = vmatprep.subr.bf16.mxu0 0
    %9860 = vmatpush1.bf16.msra.mxu0 0
    %9861 = vmatprep.subr.bf16.mxu0 0
    %9862 = vmatpush1.bf16.msra.mxu0 0
    %9863 = vmatprep.mubr.bf16.mxu0 0
    %9864 = vmatmul.mubr.bf16.gmra.mrb[0].mxu0 %v9826
    %v9865 = vpop.f32.mrb[0].mxu0
    %v9866 = vadd.f32 0.0, %v9865
    %v9867 = vpop.f32.mrb[0].mxu0
    %v9868 = vpop.f32.mrb[0].mxu0
    %v9869 = vpop.f32.mrb[0].mxu0
    %9870 = vdwg.mxu0
    %v9872 = vsel %vm1058, %v9822, 0
    %v9875 = vsel %vm1088, %v9824, 0
    %9877 = vmatprep.subr.bf16.mxu0 0
    %9878 = vmatpush1.bf16.msra.mxu0 %v9875
    %9879 = vmatprep.subr.bf16.mxu0 0
    %9880 = vmatpush1.bf16.msra.mxu0 0
    %9881 = vmatprep.subr.bf16.mxu0 0
    %9882 = vmatpush1.bf16.msra.mxu0 0
    %9883 = vmatprep.subr.bf16.mxu0 0
    %9884 = vmatpush1.bf16.msra.mxu0 0
    %9885 = vmatprep.subr.bf16.mxu0 0
    %9886 = vmatpush1.bf16.msra.mxu0 0
    %9887 = vmatprep.subr.bf16.mxu0 0
    %9888 = vmatpush1.bf16.msra.mxu0 0
    %9889 = vmatprep.subr.bf16.mxu0 0
    %9890 = vmatpush1.bf16.msra.mxu0 0
    %9891 = vmatprep.subr.bf16.mxu0 0
    %9892 = vmatpush1.bf16.msra.mxu0 0
    %9893 = vmatprep.subr.bf16.mxu0 0
    %9894 = vmatpush1.bf16.msra.mxu0 0
    %9895 = vmatprep.subr.bf16.mxu0 0
    %9896 = vmatpush1.bf16.msra.mxu0 0
    %9897 = vmatprep.subr.bf16.mxu0 0
    %9898 = vmatpush1.bf16.msra.mxu0 0
    %9899 = vmatprep.subr.bf16.mxu0 0
    %9900 = vmatpush1.bf16.msra.mxu0 0
    %9901 = vmatprep.subr.bf16.mxu0 0
    %9902 = vmatpush1.bf16.msra.mxu0 0
    %9903 = vmatprep.subr.bf16.mxu0 0
    %9904 = vmatpush1.bf16.msra.mxu0 0
    %9905 = vmatprep.subr.bf16.mxu0 0
    %9906 = vmatpush1.bf16.msra.mxu0 0
    %9907 = vmatprep.subr.bf16.mxu0 0
    %9908 = vmatpush1.bf16.msra.mxu0 0
    %9909 = vmatprep.mubr.bf16.mxu0 0
    %9910 = vmatmul.mubr.bf16.gmra.mrb[0].mxu0 %v9872
    %v9911 = vpop.f32.mrb[0].mxu0
    %v9912 = vadd.f32 0.0, %v9911
    %v9913 = vpop.f32.mrb[0].mxu0
    %v9914 = vpop.f32.mrb[0].mxu0
    %v9915 = vpop.f32.mrb[0].mxu0
    %9916 = vdwg.mxu0
    %v9917 = vpack.c.bf16 %v9708, %v9662
    %v9918 = vpack.c.bf16 %v9912, %v9866
    %s9919 = scalar_lea.vmem [#allocation8], 768
    %v9920 = vld [vmem:[%s9919] sm:$0xff]
    %v9921 = vld [vmem:[%s9919 + $0x8] sm:$0xff]
    %v9922 = vld [vmem:[%s9919 + $0x10] sm:$0xff]
    %v9923 = vld [vmem:[%s9919 + $0x18] sm:$0xff]
    %v9924 = vld [vmem:[%s9919 + $0x20] sm:$0xff]
    %v9925 = vld [vmem:[%s9919 + $0x28] sm:$0xff]
    %v9926 = vld [vmem:[%s9919 + $0x30] sm:$0xff]
    %v9927 = vld [vmem:[%s9919 + $0x38] sm:$0xff]
    %v9928 = vld [vmem:[%s9919 + $0x40] sm:$0xff]
    %v9929 = vld [vmem:[%s9919 + $0x48] sm:$0xff]
    %v9930 = vld [vmem:[%s9919 + $0x50] sm:$0xff]
    %v9931 = vld [vmem:[%s9919 + $0x58] sm:$0xff]
    %v9932 = vld [vmem:[%s9919 + $0x60] sm:$0xff]
    %v9933 = vld [vmem:[%s9919 + $0x68] sm:$0xff]
    %v9934 = vld [vmem:[%s9919 + $0x70] sm:$0xff]
    %v9935 = vld [vmem:[%s9919 + $0x78] sm:$0xff]
    %v9936 = vld [vmem:[%s9919 + $0x80] sm:$0xff]
    %v9937 = vld [vmem:[%s9919 + $0x88] sm:$0xff]
    %v9938 = vld [vmem:[%s9919 + $0x90] sm:$0xff]
    %v9939 = vld [vmem:[%s9919 + $0x98] sm:$0xff]
    %v9940 = vld [vmem:[%s9919 + $0xa0] sm:$0xff]
    %v9941 = vld [vmem:[%s9919 + $0xa8] sm:$0xff]
    %v9942 = vld [vmem:[%s9919 + $0xb0] sm:$0xff]
    %v9943 = vld [vmem:[%s9919 + $0xb8] sm:$0xff]
    %v9944 = vld [vmem:[%s9919 + $0xc0] sm:$0xff]
    %v9945 = vld [vmem:[%s9919 + $0xc8] sm:$0xff]
    %v9946 = vld [vmem:[%s9919 + $0xd0] sm:$0xff]
    %v9947 = vld [vmem:[%s9919 + $0xd8] sm:$0xff]
    %v9948 = vld [vmem:[%s9919 + $0xe0] sm:$0xff]
    %v9949 = vld [vmem:[%s9919 + $0xe8] sm:$0xff]
    %v9950 = vld [vmem:[%s9919 + $0xf0] sm:$0xff]
    %v9951 = vld [vmem:[%s9919 + $0xf8] sm:$0xff]
    %s9952 = scalar_lea.vmem [#allocation10], 6
    %v9953 = vld [vmem:[%s9952] sm:$0x3]
    %v9955 = vlaneseq
    %v9956 = vshrl.u32 %v9955, 7
    %v9957 = vsub.s32 0, %v9956
    %v9958 = vrot.slane %v9953, %v9957
    %v9959 = vlaneseq
    %v9960 = vshrl.u32 %v9959, 7
    %v9961 = vsub.s32 1, %v9960
    %v9962 = vrot.slane %v9953, %v9961
    %v9997 = vunpack.c.l.b16 %v9920
    %v9998 = vunpack.c.h.b16 %v9920
    %v9999 = vunpack.c.l.b16 %v9921
    %v10000 = vunpack.c.h.b16 %v9921
    %v10001 = vunpack.c.l.b16 %v9922
    %v10002 = vunpack.c.h.b16 %v9922
    %v10003 = vunpack.c.l.b16 %v9923
    %v10004 = vunpack.c.h.b16 %v9923
    %v10005 = vunpack.c.l.b16 %v9924
    %v10006 = vunpack.c.h.b16 %v9924
    %v10007 = vunpack.c.l.b16 %v9925
    %v10008 = vunpack.c.h.b16 %v9925
    %v10009 = vunpack.c.l.b16 %v9926
    %v10010 = vunpack.c.h.b16 %v9926
    %v10011 = vunpack.c.l.b16 %v9927
    %v10012 = vunpack.c.h.b16 %v9927
    %v10013 = vunpack.c.l.b16 %v9928
    %v10014 = vunpack.c.h.b16 %v9928
    %v10015 = vunpack.c.l.b16 %v9929
    %v10016 = vunpack.c.h.b16 %v9929
    %v10017 = vunpack.c.l.b16 %v9930
    %v10018 = vunpack.c.h.b16 %v9930
    %v10019 = vunpack.c.l.b16 %v9931
    %v10020 = vunpack.c.h.b16 %v9931
    %v10021 = vunpack.c.l.b16 %v9932
    %v10022 = vunpack.c.h.b16 %v9932
    %v10023 = vunpack.c.l.b16 %v9933
    %v10024 = vunpack.c.h.b16 %v9933
    %v10025 = vunpack.c.l.b16 %v9934
    %v10026 = vunpack.c.h.b16 %v9934
    %v10027 = vunpack.c.l.b16 %v9935
    %v10028 = vunpack.c.h.b16 %v9935
    %v10029 = vunpack.c.l.b16 %v9936
    %v10030 = vunpack.c.h.b16 %v9936
    %v10031 = vunpack.c.l.b16 %v9937
    %v10032 = vunpack.c.h.b16 %v9937
    %v10033 = vunpack.c.l.b16 %v9938
    %v10034 = vunpack.c.h.b16 %v9938
    %v10035 = vunpack.c.l.b16 %v9939
    %v10036 = vunpack.c.h.b16 %v9939
    %v10037 = vunpack.c.l.b16 %v9940
    %v10038 = vunpack.c.h.b16 %v9940
    %v10039 = vunpack.c.l.b16 %v9941
    %v10040 = vunpack.c.h.b16 %v9941
    %v10041 = vunpack.c.l.b16 %v9942
    %v10042 = vunpack.c.h.b16 %v9942
    %v10043 = vunpack.c.l.b16 %v9943
    %v10044 = vunpack.c.h.b16 %v9943
    %v10045 = vunpack.c.l.b16 %v9944
    %v10046 = vunpack.c.h.b16 %v9944
    %v10047 = vunpack.c.l.b16 %v9945
    %v10048 = vunpack.c.h.b16 %v9945
    %v10049 = vunpack.c.l.b16 %v9946
    %v10050 = vunpack.c.h.b16 %v9946
    %v10051 = vunpack.c.l.b16 %v9947
    %v10052 = vunpack.c.h.b16 %v9947
    %v10053 = vunpack.c.l.b16 %v9948
    %v10054 = vunpack.c.h.b16 %v9948
    %v10055 = vunpack.c.l.b16 %v9949
    %v10056 = vunpack.c.h.b16 %v9949
    %v10057 = vunpack.c.l.b16 %v9950
    %v10058 = vunpack.c.h.b16 %v9950
    %v10059 = vunpack.c.l.b16 %v9951
    %v10060 = vunpack.c.h.b16 %v9951
    %v10061 = vpack.c.b16 %v9999, %v9997
    %v10062 = vpack.c.b16 %v10000, %v9998
    %v10063 = vpack.c.b16 %v10003, %v10001
    %v10064 = vpack.c.b16 %v10004, %v10002
    %v10065 = vpack.c.b16 %v10007, %v10005
    %v10066 = vpack.c.b16 %v10008, %v10006
    %v10067 = vpack.c.b16 %v10011, %v10009
    %v10068 = vpack.c.b16 %v10012, %v10010
    %v10069 = vpack.c.b16 %v10015, %v10013
    %v10070 = vpack.c.b16 %v10016, %v10014
    %v10071 = vpack.c.b16 %v10019, %v10017
    %v10072 = vpack.c.b16 %v10020, %v10018
    %v10073 = vpack.c.b16 %v10023, %v10021
    %v10074 = vpack.c.b16 %v10024, %v10022
    %v10075 = vpack.c.b16 %v10027, %v10025
    %v10076 = vpack.c.b16 %v10028, %v10026
    %v10077 = vpack.c.b16 %v10031, %v10029
    %v10078 = vpack.c.b16 %v10032, %v10030
    %v10079 = vpack.c.b16 %v10035, %v10033
    %v10080 = vpack.c.b16 %v10036, %v10034
    %v10081 = vpack.c.b16 %v10039, %v10037
    %v10082 = vpack.c.b16 %v10040, %v10038
    %v10083 = vpack.c.b16 %v10043, %v10041
    %v10084 = vpack.c.b16 %v10044, %v10042
    %v10085 = vpack.c.b16 %v10047, %v10045
    %v10086 = vpack.c.b16 %v10048, %v10046
    %v10087 = vpack.c.b16 %v10051, %v10049
    %v10088 = vpack.c.b16 %v10052, %v10050
    %v10089 = vpack.c.b16 %v10055, %v10053
    %v10090 = vpack.c.b16 %v10056, %v10054
    %v10091 = vpack.c.b16 %v10059, %v10057
    %v10092 = vpack.c.b16 %v10060, %v10058
    %10125 = vmatprep.subr.bf16.mxu0 %v10062
    %10126 = vmatpush1.bf16.msra.mxu0 %v10061
    %10127 = vmatprep.subr.bf16.mxu0 %v10064
    %10128 = vmatpush1.bf16.msra.mxu0 %v10063
    %10129 = vmatprep.subr.bf16.mxu0 %v10066
    %10130 = vmatpush1.bf16.msra.mxu0 %v10065
    %10131 = vmatprep.subr.bf16.mxu0 %v10068
    %10132 = vmatpush1.bf16.msra.mxu0 %v10067
    %10133 = vmatprep.subr.bf16.mxu0 %v10070
    %10134 = vmatpush1.bf16.msra.mxu0 %v10069
    %10135 = vmatprep.subr.bf16.mxu0 %v10072
    %10136 = vmatpush1.bf16.msra.mxu0 %v10071
    %10137 = vmatprep.subr.bf16.mxu0 %v10074
    %10138 = vmatpush1.bf16.msra.mxu0 %v10073
    %10139 = vmatprep.subr.bf16.mxu0 %v10076
    %10140 = vmatpush1.bf16.msra.mxu0 %v10075
    %10141 = vmatprep.subr.bf16.mxu0 %v10078
    %10142 = vmatpush1.bf16.msra.mxu0 %v10077
    %10143 = vmatprep.subr.bf16.mxu0 %v10080
    %10144 = vmatpush1.bf16.msra.mxu0 %v10079
    %10145 = vmatprep.subr.bf16.mxu0 %v10082
    %10146 = vmatpush1.bf16.msra.mxu0 %v10081
    %10147 = vmatprep.subr.bf16.mxu0 %v10084
    %10148 = vmatpush1.bf16.msra.mxu0 %v10083
    %10149 = vmatprep.subr.bf16.mxu0 %v10086
    %10150 = vmatpush1.bf16.msra.mxu0 %v10085
    %10151 = vmatprep.subr.bf16.mxu0 %v10088
    %10152 = vmatpush1.bf16.msra.mxu0 %v10087
    %10153 = vmatprep.subr.bf16.mxu0 %v10090
    %10154 = vmatpush1.bf16.msra.mxu0 %v10089
    %10155 = vmatprep.subr.bf16.mxu0 %v10092
    %10156 = vmatpush1.bf16.msra.mxu0 %v10091
    %10157 = vmatprep.mubr.bf16.mxu0 %v9918
    %10158 = vmatmul.mubr.bf16.gmra.mrb[0].mxu0 %v9917
    %v10159 = vpop.f32.mrb[0].mxu0
    %v10160 = vadd.f32 %v9958, %v10159
    %v10161 = vpop.f32.mrb[0].mxu0
    %v10162 = vadd.f32 %v9962, %v10161
    %v10163 = vpop.f32.mrb[0].mxu0
    %v10164 = vadd.f32 %v9958, %v10163
    %v10165 = vpop.f32.mrb[0].mxu0
    %v10166 = vadd.f32 %v9962, %v10165
    %10167 = vdwg.mxu0
    %v10168 = vadd.f32 %v8764, %v10160
    %v10169 = vadd.f32 %v8765, %v10162
    %v10170 = vadd.f32 %v8766, %v10164
    %v10171 = vadd.f32 %v8767, %v10166
    %s10172 = scalar_lea.vmem [#allocation17], 6
    %v10173 = vld [vmem:[%s10172] sm:$0x3]
    %s10174 = scalar_lea.vmem [#allocation19], 6
    %v10175 = vld [vmem:[%s10174] sm:$0x3]
    %v10176 = vadd.f32 %v10168, %v10169
    %10177 = vadd.xlane.f32.xlu0 %v10176
    %v10178 = vpop.xlane.xlu0 %10177
    %v10179 = vadd.f32 %v10170, %v10171
    %10180 = vadd.xlane.f32.xlu0 %v10179
    %v10181 = vpop.xlane.xlu0 %10180
    %v10182 = vmul.f32 %v10178, %v1643
    %v10183 = vmul.f32 %v10181, %v1643
    %v10184 = vsub.f32 %v10168, %v10182
    %v10185 = vsub.f32 %v10169, %v10182
    %v10186 = vsub.f32 %v10170, %v10183
    %v10187 = vsub.f32 %v10171, %v10183
    %v10188 = vmul.f32 %v10184, %v10184
    %v10189 = vmul.f32 %v10185, %v10185
    %v10190 = vmul.f32 %v10186, %v10186
    %v10191 = vmul.f32 %v10187, %v10187
    %v10192 = vadd.f32 %v10188, %v10189
    %10193 = vadd.xlane.f32.xlu0 %v10192
    %v10194 = vpop.xlane.xlu0 %10193
    %v10195 = vadd.f32 %v10190, %v10191
    %10196 = vadd.xlane.f32.xlu0 %v10195
    %v10197 = vpop.xlane.xlu0 %10196
    %v10198 = vmul.f32 %v10194, %v1643
    %v10199 = vmul.f32 %v10197, %v1643
    %v10200 = vadd.f32 %v10198, 1e-05
    %v10201 = vadd.f32 %v10199, 1e-05
    %v10202 = vrsqrt.pop %v10200
    %v10203 = vrsqrt.pop %v10201
    %v10204 = vmul.f32 %v10184, %v10202
    %v10205 = vmul.f32 %v10185, %v10202
    %v10206 = vmul.f32 %v10186, %v10203
    %v10207 = vmul.f32 %v10187, %v10203
    %v10209 = vlaneseq
    %v10210 = vshrl.u32 %v10209, 7
    %v10211 = vsub.s32 0, %v10210
    %v10212 = vrot.slane %v10173, %v10211
    %v10213 = vlaneseq
    %v10214 = vshrl.u32 %v10213, 7
    %v10215 = vsub.s32 1, %v10214
    %v10216 = vrot.slane %v10173, %v10215
    %v10219 = vmul.f32 %v10204, %v10212
    %v10220 = vmul.f32 %v10205, %v10216
    %v10221 = vmul.f32 %v10206, %v10212
    %v10222 = vmul.f32 %v10207, %v10216
    %v10224 = vlaneseq
    %v10225 = vshrl.u32 %v10224, 7
    %v10226 = vsub.s32 0, %v10225
    %v10227 = vrot.slane %v10175, %v10226
    %v10228 = vlaneseq
    %v10229 = vshrl.u32 %v10228, 7
    %v10230 = vsub.s32 1, %v10229
    %v10231 = vrot.slane %v10175, %v10230
    %v10234 = vadd.f32 %v10219, %v10227
    %v10235 = vadd.f32 %v10220, %v10231
    %v10236 = vadd.f32 %v10221, %v10227
    %v10237 = vadd.f32 %v10222, %v10231
    %v10238 = vpack.c.bf16 %v10236, %v10234
    %v10239 = vpack.c.bf16 %v10237, %v10235
    %s10240 = scalar_lea.vmem [#allocation11], 1920
    %v10241 = vld [vmem:[%s10240] sm:$0xff]
    %v10242 = vld [vmem:[%s10240 + $0x8] sm:$0xff]
    %v10243 = vld [vmem:[%s10240 + $0x10] sm:$0xf]
    %v10244 = vld [vmem:[%s10240 + $0x14] sm:$0xff]
    %v10245 = vld [vmem:[%s10240 + $0x1c] sm:$0xff]
    %v10246 = vld [vmem:[%s10240 + $0x24] sm:$0xf]
    %v10247 = vld [vmem:[%s10240 + $0x28] sm:$0xff]
    %v10248 = vld [vmem:[%s10240 + $0x30] sm:$0xff]
    %v10249 = vld [vmem:[%s10240 + $0x38] sm:$0xf]
    %v10250 = vld [vmem:[%s10240 + $0x3c] sm:$0xff]
    %v10251 = vld [vmem:[%s10240 + $0x44] sm:$0xff]
    %v10252 = vld [vmem:[%s10240 + $0x4c] sm:$0xf]
    %v10253 = vld [vmem:[%s10240 + $0x50] sm:$0xff]
    %v10254 = vld [vmem:[%s10240 + $0x58] sm:$0xff]
    %v10255 = vld [vmem:[%s10240 + $0x60] sm:$0xf]
    %v10256 = vld [vmem:[%s10240 + $0x64] sm:$0xff]
    %v10257 = vld [vmem:[%s10240 + $0x6c] sm:$0xff]
    %v10258 = vld [vmem:[%s10240 + $0x74] sm:$0xf]
    %v10259 = vld [vmem:[%s10240 + $0x78] sm:$0xff]
    %v10260 = vld [vmem:[%s10240 + $0x80] sm:$0xff]
    %v10261 = vld [vmem:[%s10240 + $0x88] sm:$0xf]
    %v10262 = vld [vmem:[%s10240 + $0x8c] sm:$0xff]
    %v10263 = vld [vmem:[%s10240 + $0x94] sm:$0xff]
    %v10264 = vld [vmem:[%s10240 + $0x9c] sm:$0xf]
    %v10265 = vld [vmem:[%s10240 + $0xa0] sm:$0xff]
    %v10266 = vld [vmem:[%s10240 + $0xa8] sm:$0xff]
    %v10267 = vld [vmem:[%s10240 + $0xb0] sm:$0xf]
    %v10268 = vld [vmem:[%s10240 + $0xb4] sm:$0xff]
    %v10269 = vld [vmem:[%s10240 + $0xbc] sm:$0xff]
    %v10270 = vld [vmem:[%s10240 + $0xc4] sm:$0xf]
    %v10271 = vld [vmem:[%s10240 + $0xc8] sm:$0xff]
    %v10272 = vld [vmem:[%s10240 + $0xd0] sm:$0xff]
    %v10273 = vld [vmem:[%s10240 + $0xd8] sm:$0xf]
    %v10274 = vld [vmem:[%s10240 + $0xdc] sm:$0xff]
    %v10275 = vld [vmem:[%s10240 + $0xe4] sm:$0xff]
    %v10276 = vld [vmem:[%s10240 + $0xec] sm:$0xf]
    %v10277 = vld [vmem:[%s10240 + $0xf0] sm:$0xff]
    %v10278 = vld [vmem:[%s10240 + $0xf8] sm:$0xff]
    %v10279 = vld [vmem:[%s10240 + $0x100] sm:$0xf]
    %v10280 = vld [vmem:[%s10240 + $0x104] sm:$0xff]
    %v10281 = vld [vmem:[%s10240 + $0x10c] sm:$0xff]
    %v10282 = vld [vmem:[%s10240 + $0x114] sm:$0xf]
    %v10283 = vld [vmem:[%s10240 + $0x118] sm:$0xff]
    %v10284 = vld [vmem:[%s10240 + $0x120] sm:$0xff]
    %v10285 = vld [vmem:[%s10240 + $0x128] sm:$0xf]
    %v10286 = vld [vmem:[%s10240 + $0x12c] sm:$0xff]
    %v10287 = vld [vmem:[%s10240 + $0x134] sm:$0xff]
    %v10288 = vld [vmem:[%s10240 + $0x13c] sm:$0xf]
    %v10289 = vld [vmem:[%s10240 + $0x140] sm:$0xff]
    %v10290 = vld [vmem:[%s10240 + $0x148] sm:$0xff]
    %v10291 = vld [vmem:[%s10240 + $0x150] sm:$0xf]
    %v10292 = vld [vmem:[%s10240 + $0x154] sm:$0xff]
    %v10293 = vld [vmem:[%s10240 + $0x15c] sm:$0xff]
    %v10294 = vld [vmem:[%s10240 + $0x164] sm:$0xf]
    %v10295 = vld [vmem:[%s10240 + $0x168] sm:$0xff]
    %v10296 = vld [vmem:[%s10240 + $0x170] sm:$0xff]
    %v10297 = vld [vmem:[%s10240 + $0x178] sm:$0xf]
    %v10298 = vld [vmem:[%s10240 + $0x17c] sm:$0xff]
    %v10299 = vld [vmem:[%s10240 + $0x184] sm:$0xff]
    %v10300 = vld [vmem:[%s10240 + $0x18c] sm:$0xf]
    %v10301 = vld [vmem:[%s10240 + $0x190] sm:$0xff]
    %v10302 = vld [vmem:[%s10240 + $0x198] sm:$0xff]
    %v10303 = vld [vmem:[%s10240 + $0x1a0] sm:$0xf]
    %v10304 = vld [vmem:[%s10240 + $0x1a4] sm:$0xff]
    %v10305 = vld [vmem:[%s10240 + $0x1ac] sm:$0xff]
    %v10306 = vld [vmem:[%s10240 + $0x1b4] sm:$0xf]
    %v10307 = vld [vmem:[%s10240 + $0x1b8] sm:$0xff]
    %v10308 = vld [vmem:[%s10240 + $0x1c0] sm:$0xff]
    %v10309 = vld [vmem:[%s10240 + $0x1c8] sm:$0xf]
    %v10310 = vld [vmem:[%s10240 + $0x1cc] sm:$0xff]
    %v10311 = vld [vmem:[%s10240 + $0x1d4] sm:$0xff]
    %v10312 = vld [vmem:[%s10240 + $0x1dc] sm:$0xf]
    %v10313 = vld [vmem:[%s10240 + $0x1e0] sm:$0xff]
    %v10314 = vld [vmem:[%s10240 + $0x1e8] sm:$0xff]
    %v10315 = vld [vmem:[%s10240 + $0x1f0] sm:$0xf]
    %v10316 = vld [vmem:[%s10240 + $0x1f4] sm:$0xff]
    %v10317 = vld [vmem:[%s10240 + $0x1fc] sm:$0xff]
    %v10318 = vld [vmem:[%s10240 + $0x204] sm:$0xf]
    %v10319 = vld [vmem:[%s10240 + $0x208] sm:$0xff]
    %v10320 = vld [vmem:[%s10240 + $0x210] sm:$0xff]
    %v10321 = vld [vmem:[%s10240 + $0x218] sm:$0xf]
    %v10322 = vld [vmem:[%s10240 + $0x21c] sm:$0xff]
    %v10323 = vld [vmem:[%s10240 + $0x224] sm:$0xff]
    %v10324 = vld [vmem:[%s10240 + $0x22c] sm:$0xf]
    %v10325 = vld [vmem:[%s10240 + $0x230] sm:$0xff]
    %v10326 = vld [vmem:[%s10240 + $0x238] sm:$0xff]
    %v10327 = vld [vmem:[%s10240 + $0x240] sm:$0xf]
    %v10328 = vld [vmem:[%s10240 + $0x244] sm:$0xff]
    %v10329 = vld [vmem:[%s10240 + $0x24c] sm:$0xff]
    %v10330 = vld [vmem:[%s10240 + $0x254] sm:$0xf]
    %v10331 = vld [vmem:[%s10240 + $0x258] sm:$0xff]
    %v10332 = vld [vmem:[%s10240 + $0x260] sm:$0xff]
    %v10333 = vld [vmem:[%s10240 + $0x268] sm:$0xf]
    %v10334 = vld [vmem:[%s10240 + $0x26c] sm:$0xff]
    %v10335 = vld [vmem:[%s10240 + $0x274] sm:$0xff]
    %v10336 = vld [vmem:[%s10240 + $0x27c] sm:$0xf]
    %s10337 = scalar_lea.vmem [#allocation13], 15
    %v10338 = vld [vmem:[%s10337] sm:$0x1f]
    %v10340 = vlaneseq
    %v10341 = vshrl.u32 %v10340, 7
    %v10342 = vsub.s32 0, %v10341
    %v10343 = vrot.slane %v10338, %v10342
    %v10344 = vlaneseq
    %v10345 = vshrl.u32 %v10344, 7
    %v10346 = vsub.s32 1, %v10345
    %v10347 = vrot.slane %v10338, %v10346
    %v10348 = vlaneseq
    %v10349 = vshrl.u32 %v10348, 7
    %v10350 = vsub.s32 2, %v10349
    %v10351 = vrot.slane %v10338, %v10350
    %v10352 = vlaneseq
    %v10353 = vshrl.u32 %v10352, 7
    %v10354 = vsub.s32 3, %v10353
    %v10355 = vrot.slane %v10338, %v10354
    %v10356 = vlaneseq
    %v10357 = vshrl.u32 %v10356, 7
    %v10358 = vsub.s32 4, %v10357
    %v10359 = vrot.slane %v10338, %v10358
    %v10461 = vunpack.c.l.b16 %v10241
    %v10462 = vunpack.c.h.b16 %v10241
    %v10463 = vunpack.c.l.b16 %v10242
    %v10464 = vunpack.c.h.b16 %v10242
    %v10465 = vunpack.c.l.b16 %v10243
    %v10466 = vunpack.c.l.b16 %v10244
    %v10467 = vunpack.c.h.b16 %v10244
    %v10468 = vunpack.c.l.b16 %v10245
    %v10469 = vunpack.c.h.b16 %v10245
    %v10470 = vunpack.c.l.b16 %v10246
    %v10471 = vunpack.c.l.b16 %v10247
    %v10472 = vunpack.c.h.b16 %v10247
    %v10473 = vunpack.c.l.b16 %v10248
    %v10474 = vunpack.c.h.b16 %v10248
    %v10475 = vunpack.c.l.b16 %v10249
    %v10476 = vunpack.c.l.b16 %v10250
    %v10477 = vunpack.c.h.b16 %v10250
    %v10478 = vunpack.c.l.b16 %v10251
    %v10479 = vunpack.c.h.b16 %v10251
    %v10480 = vunpack.c.l.b16 %v10252
    %v10481 = vunpack.c.l.b16 %v10253
    %v10482 = vunpack.c.h.b16 %v10253
    %v10483 = vunpack.c.l.b16 %v10254
    %v10484 = vunpack.c.h.b16 %v10254
    %v10485 = vunpack.c.l.b16 %v10255
    %v10486 = vunpack.c.l.b16 %v10256
    %v10487 = vunpack.c.h.b16 %v10256
    %v10488 = vunpack.c.l.b16 %v10257
    %v10489 = vunpack.c.h.b16 %v10257
    %v10490 = vunpack.c.l.b16 %v10258
    %v10491 = vunpack.c.l.b16 %v10259
    %v10492 = vunpack.c.h.b16 %v10259
    %v10493 = vunpack.c.l.b16 %v10260
    %v10494 = vunpack.c.h.b16 %v10260
    %v10495 = vunpack.c.l.b16 %v10261
    %v10496 = vunpack.c.l.b16 %v10262
    %v10497 = vunpack.c.h.b16 %v10262
    %v10498 = vunpack.c.l.b16 %v10263
    %v10499 = vunpack.c.h.b16 %v10263
    %v10500 = vunpack.c.l.b16 %v10264
    %v10501 = vunpack.c.l.b16 %v10265
    %v10502 = vunpack.c.h.b16 %v10265
    %v10503 = vunpack.c.l.b16 %v10266
    %v10504 = vunpack.c.h.b16 %v10266
    %v10505 = vunpack.c.l.b16 %v10267
    %v10506 = vunpack.c.l.b16 %v10268
    %v10507 = vunpack.c.h.b16 %v10268
    %v10508 = vunpack.c.l.b16 %v10269
    %v10509 = vunpack.c.h.b16 %v10269
    %v10510 = vunpack.c.l.b16 %v10270
    %v10511 = vunpack.c.l.b16 %v10271
    %v10512 = vunpack.c.h.b16 %v10271
    %v10513 = vunpack.c.l.b16 %v10272
    %v10514 = vunpack.c.h.b16 %v10272
    %v10515 = vunpack.c.l.b16 %v10273
    %v10516 = vunpack.c.l.b16 %v10274
    %v10517 = vunpack.c.h.b16 %v10274
    %v10518 = vunpack.c.l.b16 %v10275
    %v10519 = vunpack.c.h.b16 %v10275
    %v10520 = vunpack.c.l.b16 %v10276
    %v10521 = vunpack.c.l.b16 %v10277
    %v10522 = vunpack.c.h.b16 %v10277
    %v10523 = vunpack.c.l.b16 %v10278
    %v10524 = vunpack.c.h.b16 %v10278
    %v10525 = vunpack.c.l.b16 %v10279
    %v10526 = vunpack.c.l.b16 %v10280
    %v10527 = vunpack.c.h.b16 %v10280
    %v10528 = vunpack.c.l.b16 %v10281
    %v10529 = vunpack.c.h.b16 %v10281
    %v10530 = vunpack.c.l.b16 %v10282
    %v10531 = vunpack.c.l.b16 %v10283
    %v10532 = vunpack.c.h.b16 %v10283
    %v10533 = vunpack.c.l.b16 %v10284
    %v10534 = vunpack.c.h.b16 %v10284
    %v10535 = vunpack.c.l.b16 %v10285
    %v10536 = vunpack.c.l.b16 %v10286
    %v10537 = vunpack.c.h.b16 %v10286
    %v10538 = vunpack.c.l.b16 %v10287
    %v10539 = vunpack.c.h.b16 %v10287
    %v10540 = vunpack.c.l.b16 %v10288
    %v10541 = vunpack.c.l.b16 %v10289
    %v10542 = vunpack.c.h.b16 %v10289
    %v10543 = vunpack.c.l.b16 %v10290
    %v10544 = vunpack.c.h.b16 %v10290
    %v10545 = vunpack.c.l.b16 %v10291
    %v10546 = vunpack.c.l.b16 %v10292
    %v10547 = vunpack.c.h.b16 %v10292
    %v10548 = vunpack.c.l.b16 %v10293
    %v10549 = vunpack.c.h.b16 %v10293
    %v10550 = vunpack.c.l.b16 %v10294
    %v10551 = vunpack.c.l.b16 %v10295
    %v10552 = vunpack.c.h.b16 %v10295
    %v10553 = vunpack.c.l.b16 %v10296
    %v10554 = vunpack.c.h.b16 %v10296
    %v10555 = vunpack.c.l.b16 %v10297
    %v10556 = vunpack.c.l.b16 %v10298
    %v10557 = vunpack.c.h.b16 %v10298
    %v10558 = vunpack.c.l.b16 %v10299
    %v10559 = vunpack.c.h.b16 %v10299
    %v10560 = vunpack.c.l.b16 %v10300
    %v10561 = vunpack.c.l.b16 %v10301
    %v10562 = vunpack.c.h.b16 %v10301
    %v10563 = vunpack.c.l.b16 %v10302
    %v10564 = vunpack.c.h.b16 %v10302
    %v10565 = vunpack.c.l.b16 %v10303
    %v10566 = vunpack.c.l.b16 %v10304
    %v10567 = vunpack.c.h.b16 %v10304
    %v10568 = vunpack.c.l.b16 %v10305
    %v10569 = vunpack.c.h.b16 %v10305
    %v10570 = vunpack.c.l.b16 %v10306
    %v10571 = vunpack.c.l.b16 %v10307
    %v10572 = vunpack.c.h.b16 %v10307
    %v10573 = vunpack.c.l.b16 %v10308
    %v10574 = vunpack.c.h.b16 %v10308
    %v10575 = vunpack.c.l.b16 %v10309
    %v10576 = vunpack.c.l.b16 %v10310
    %v10577 = vunpack.c.h.b16 %v10310
    %v10578 = vunpack.c.l.b16 %v10311
    %v10579 = vunpack.c.h.b16 %v10311
    %v10580 = vunpack.c.l.b16 %v10312
    %v10581 = vunpack.c.l.b16 %v10313
    %v10582 = vunpack.c.h.b16 %v10313
    %v10583 = vunpack.c.l.b16 %v10314
    %v10584 = vunpack.c.h.b16 %v10314
    %v10585 = vunpack.c.l.b16 %v10315
    %v10586 = vunpack.c.l.b16 %v10316
    %v10587 = vunpack.c.h.b16 %v10316
    %v10588 = vunpack.c.l.b16 %v10317
    %v10589 = vunpack.c.h.b16 %v10317
    %v10590 = vunpack.c.l.b16 %v10318
    %v10591 = vunpack.c.l.b16 %v10319
    %v10592 = vunpack.c.h.b16 %v10319
    %v10593 = vunpack.c.l.b16 %v10320
    %v10594 = vunpack.c.h.b16 %v10320
    %v10595 = vunpack.c.l.b16 %v10321
    %v10596 = vunpack.c.l.b16 %v10322
    %v10597 = vunpack.c.h.b16 %v10322
    %v10598 = vunpack.c.l.b16 %v10323
    %v10599 = vunpack.c.h.b16 %v10323
    %v10600 = vunpack.c.l.b16 %v10324
    %v10601 = vunpack.c.l.b16 %v10325
    %v10602 = vunpack.c.h.b16 %v10325
    %v10603 = vunpack.c.l.b16 %v10326
    %v10604 = vunpack.c.h.b16 %v10326
    %v10605 = vunpack.c.l.b16 %v10327
    %v10606 = vunpack.c.l.b16 %v10328
    %v10607 = vunpack.c.h.b16 %v10328
    %v10608 = vunpack.c.l.b16 %v10329
    %v10609 = vunpack.c.h.b16 %v10329
    %v10610 = vunpack.c.l.b16 %v10330
    %v10611 = vunpack.c.l.b16 %v10331
    %v10612 = vunpack.c.h.b16 %v10331
    %v10613 = vunpack.c.l.b16 %v10332
    %v10614 = vunpack.c.h.b16 %v10332
    %v10615 = vunpack.c.l.b16 %v10333
    %v10616 = vunpack.c.l.b16 %v10334
    %v10617 = vunpack.c.h.b16 %v10334
    %v10618 = vunpack.c.l.b16 %v10335
    %v10619 = vunpack.c.h.b16 %v10335
    %v10620 = vunpack.c.l.b16 %v10336
    %v10621 = vpack.c.b16 %v10466, %v10461
    %v10622 = vpack.c.b16 %v10467, %v10462
    %v10623 = vpack.c.b16 %v10468, %v10463
    %v10624 = vpack.c.b16 %v10469, %v10464
    %v10625 = vpack.c.b16 %v10470, %v10465
    %v10626 = vpack.c.b16 %v10476, %v10471
    %v10627 = vpack.c.b16 %v10477, %v10472
    %v10628 = vpack.c.b16 %v10478, %v10473
    %v10629 = vpack.c.b16 %v10479, %v10474
    %v10630 = vpack.c.b16 %v10480, %v10475
    %v10631 = vpack.c.b16 %v10486, %v10481
    %v10632 = vpack.c.b16 %v10487, %v10482
    %v10633 = vpack.c.b16 %v10488, %v10483
    %v10634 = vpack.c.b16 %v10489, %v10484
    %v10635 = vpack.c.b16 %v10490, %v10485
    %v10636 = vpack.c.b16 %v10496, %v10491
    %v10637 = vpack.c.b16 %v10497, %v10492
    %v10638 = vpack.c.b16 %v10498, %v10493
    %v10639 = vpack.c.b16 %v10499, %v10494
    %v10640 = vpack.c.b16 %v10500, %v10495
    %v10641 = vpack.c.b16 %v10506, %v10501
    %v10642 = vpack.c.b16 %v10507, %v10502
    %v10643 = vpack.c.b16 %v10508, %v10503
    %v10644 = vpack.c.b16 %v10509, %v10504
    %v10645 = vpack.c.b16 %v10510, %v10505
    %v10646 = vpack.c.b16 %v10516, %v10511
    %v10647 = vpack.c.b16 %v10517, %v10512
    %v10648 = vpack.c.b16 %v10518, %v10513
    %v10649 = vpack.c.b16 %v10519, %v10514
    %v10650 = vpack.c.b16 %v10520, %v10515
    %v10651 = vpack.c.b16 %v10526, %v10521
    %v10652 = vpack.c.b16 %v10527, %v10522
    %v10653 = vpack.c.b16 %v10528, %v10523
    %v10654 = vpack.c.b16 %v10529, %v10524
    %v10655 = vpack.c.b16 %v10530, %v10525
    %v10656 = vpack.c.b16 %v10536, %v10531
    %v10657 = vpack.c.b16 %v10537, %v10532
    %v10658 = vpack.c.b16 %v10538, %v10533
    %v10659 = vpack.c.b16 %v10539, %v10534
    %v10660 = vpack.c.b16 %v10540, %v10535
    %v10661 = vpack.c.b16 %v10546, %v10541
    %v10662 = vpack.c.b16 %v10547, %v10542
    %v10663 = vpack.c.b16 %v10548, %v10543
    %v10664 = vpack.c.b16 %v10549, %v10544
    %v10665 = vpack.c.b16 %v10550, %v10545
    %v10666 = vpack.c.b16 %v10556, %v10551
    %v10667 = vpack.c.b16 %v10557, %v10552
    %v10668 = vpack.c.b16 %v10558, %v10553
    %v10669 = vpack.c.b16 %v10559, %v10554
    %v10670 = vpack.c.b16 %v10560, %v10555
    %v10671 = vpack.c.b16 %v10566, %v10561
    %v10672 = vpack.c.b16 %v10567, %v10562
    %v10673 = vpack.c.b16 %v10568, %v10563
    %v10674 = vpack.c.b16 %v10569, %v10564
    %v10675 = vpack.c.b16 %v10570, %v10565
    %v10676 = vpack.c.b16 %v10576, %v10571
    %v10677 = vpack.c.b16 %v10577, %v10572
    %v10678 = vpack.c.b16 %v10578, %v10573
    %v10679 = vpack.c.b16 %v10579, %v10574
    %v10680 = vpack.c.b16 %v10580, %v10575
    %v10681 = vpack.c.b16 %v10586, %v10581
    %v10682 = vpack.c.b16 %v10587, %v10582
    %v10683 = vpack.c.b16 %v10588, %v10583
    %v10684 = vpack.c.b16 %v10589, %v10584
    %v10685 = vpack.c.b16 %v10590, %v10585
    %v10686 = vpack.c.b16 %v10596, %v10591
    %v10687 = vpack.c.b16 %v10597, %v10592
    %v10688 = vpack.c.b16 %v10598, %v10593
    %v10689 = vpack.c.b16 %v10599, %v10594
    %v10690 = vpack.c.b16 %v10600, %v10595
    %v10691 = vpack.c.b16 %v10606, %v10601
    %v10692 = vpack.c.b16 %v10607, %v10602
    %v10693 = vpack.c.b16 %v10608, %v10603
    %v10694 = vpack.c.b16 %v10609, %v10604
    %v10695 = vpack.c.b16 %v10610, %v10605
    %v10696 = vpack.c.b16 %v10616, %v10611
    %v10697 = vpack.c.b16 %v10617, %v10612
    %v10698 = vpack.c.b16 %v10618, %v10613
    %v10699 = vpack.c.b16 %v10619, %v10614
    %v10700 = vpack.c.b16 %v10620, %v10615
    %10781 = vmatprep.subr.bf16.mxu0 %v10622
    %10782 = vmatpush1.bf16.msra.mxu0 %v10621
    %10783 = vmatprep.subr.bf16.mxu0 %v10627
    %10784 = vmatpush1.bf16.msra.mxu0 %v10626
    %10785 = vmatprep.subr.bf16.mxu0 %v10632
    %10786 = vmatpush1.bf16.msra.mxu0 %v10631
    %10787 = vmatprep.subr.bf16.mxu0 %v10637
    %10788 = vmatpush1.bf16.msra.mxu0 %v10636
    %10789 = vmatprep.subr.bf16.mxu0 %v10642
    %10790 = vmatpush1.bf16.msra.mxu0 %v10641
    %10791 = vmatprep.subr.bf16.mxu0 %v10647
    %10792 = vmatpush1.bf16.msra.mxu0 %v10646
    %10793 = vmatprep.subr.bf16.mxu0 %v10652
    %10794 = vmatpush1.bf16.msra.mxu0 %v10651
    %10795 = vmatprep.subr.bf16.mxu0 %v10657
    %10796 = vmatpush1.bf16.msra.mxu0 %v10656
    %10797 = vmatprep.subr.bf16.mxu0 %v10662
    %10798 = vmatpush1.bf16.msra.mxu0 %v10661
    %10799 = vmatprep.subr.bf16.mxu0 %v10667
    %10800 = vmatpush1.bf16.msra.mxu0 %v10666
    %10801 = vmatprep.subr.bf16.mxu0 %v10672
    %10802 = vmatpush1.bf16.msra.mxu0 %v10671
    %10803 = vmatprep.subr.bf16.mxu0 %v10677
    %10804 = vmatpush1.bf16.msra.mxu0 %v10676
    %10805 = vmatprep.subr.bf16.mxu0 %v10682
    %10806 = vmatpush1.bf16.msra.mxu0 %v10681
    %10807 = vmatprep.subr.bf16.mxu0 %v10687
    %10808 = vmatpush1.bf16.msra.mxu0 %v10686
    %10809 = vmatprep.subr.bf16.mxu0 %v10692
    %10810 = vmatpush1.bf16.msra.mxu0 %v10691
    %10811 = vmatprep.subr.bf16.mxu0 %v10697
    %10812 = vmatpush1.bf16.msra.mxu0 %v10696
    %10813 = vmatprep.mubr.bf16.mxu0 %v10239
    %10814 = vmatmul.mubr.bf16.gmra.mrb[0].mxu0 %v10238
    %v10815 = vpop.f32.mrb[0].mxu0
    %v10816 = vadd.f32 %v10343, %v10815
    %v10817 = vpop.f32.mrb[0].mxu0
    %v10818 = vadd.f32 %v10347, %v10817
    %v10819 = vpop.f32.mrb[0].mxu0
    %v10820 = vadd.f32 %v10343, %v10819
    %v10821 = vpop.f32.mrb[0].mxu0
    %v10822 = vadd.f32 %v10347, %v10821
    %10823 = vdwg.mxu0
    %10824 = vmatprep.subr.bf16.mxu0 %v10624
    %10825 = vmatpush1.bf16.msra.mxu0 %v10623
    %10826 = vmatprep.subr.bf16.mxu0 %v10629
    %10827 = vmatpush1.bf16.msra.mxu0 %v10628
    %10828 = vmatprep.subr.bf16.mxu0 %v10634
    %10829 = vmatpush1.bf16.msra.mxu0 %v10633
    %10830 = vmatprep.subr.bf16.mxu0 %v10639
    %10831 = vmatpush1.bf16.msra.mxu0 %v10638
    %10832 = vmatprep.subr.bf16.mxu0 %v10644
    %10833 = vmatpush1.bf16.msra.mxu0 %v10643
    %10834 = vmatprep.subr.bf16.mxu0 %v10649
    %10835 = vmatpush1.bf16.msra.mxu0 %v10648
    %10836 = vmatprep.subr.bf16.mxu0 %v10654
    %10837 = vmatpush1.bf16.msra.mxu0 %v10653
    %10838 = vmatprep.subr.bf16.mxu0 %v10659
    %10839 = vmatpush1.bf16.msra.mxu0 %v10658
    %10840 = vmatprep.subr.bf16.mxu0 %v10664
    %10841 = vmatpush1.bf16.msra.mxu0 %v10663
    %10842 = vmatprep.subr.bf16.mxu0 %v10669
    %10843 = vmatpush1.bf16.msra.mxu0 %v10668
    %10844 = vmatprep.subr.bf16.mxu0 %v10674
    %10845 = vmatpush1.bf16.msra.mxu0 %v10673
    %10846 = vmatprep.subr.bf16.mxu0 %v10679
    %10847 = vmatpush1.bf16.msra.mxu0 %v10678
    %10848 = vmatprep.subr.bf16.mxu0 %v10684
    %10849 = vmatpush1.bf16.msra.mxu0 %v10683
    %10850 = vmatprep.subr.bf16.mxu0 %v10689
    %10851 = vmatpush1.bf16.msra.mxu0 %v10688
    %10852 = vmatprep.subr.bf16.mxu0 %v10694
    %10853 = vmatpush1.bf16.msra.mxu0 %v10693
    %10854 = vmatprep.subr.bf16.mxu0 %v10699
    %10855 = vmatpush1.bf16.msra.mxu0 %v10698
    %10856 = vmatprep.mubr.bf16.mxu0 %v10239
    %10857 = vmatmul.mubr.bf16.gmra.mrb[0].mxu0 %v10238
    %v10858 = vpop.f32.mrb[0].mxu0
    %v10859 = vadd.f32 %v10351, %v10858
    %v10860 = vpop.f32.mrb[0].mxu0
    %v10861 = vadd.f32 %v10355, %v10860
    %v10862 = vpop.f32.mrb[0].mxu0
    %v10863 = vadd.f32 %v10351, %v10862
    %v10864 = vpop.f32.mrb[0].mxu0
    %v10865 = vadd.f32 %v10355, %v10864
    %10866 = vdwg.mxu0
    %10867 = vmatprep.subr.bf16.mxu0 0
    %10868 = vmatpush1.bf16.msra.mxu0 %v10625
    %10869 = vmatprep.subr.bf16.mxu0 0
    %10870 = vmatpush1.bf16.msra.mxu0 %v10630
    %10871 = vmatprep.subr.bf16.mxu0 0
    %10872 = vmatpush1.bf16.msra.mxu0 %v10635
    %10873 = vmatprep.subr.bf16.mxu0 0
    %10874 = vmatpush1.bf16.msra.mxu0 %v10640
    %10875 = vmatprep.subr.bf16.mxu0 0
    %10876 = vmatpush1.bf16.msra.mxu0 %v10645
    %10877 = vmatprep.subr.bf16.mxu0 0
    %10878 = vmatpush1.bf16.msra.mxu0 %v10650
    %10879 = vmatprep.subr.bf16.mxu0 0
    %10880 = vmatpush1.bf16.msra.mxu0 %v10655
    %10881 = vmatprep.subr.bf16.mxu0 0
    %10882 = vmatpush1.bf16.msra.mxu0 %v10660
    %10883 = vmatprep.subr.bf16.mxu0 0
    %10884 = vmatpush1.bf16.msra.mxu0 %v10665
    %10885 = vmatprep.subr.bf16.mxu0 0
    %10886 = vmatpush1.bf16.msra.mxu0 %v10670
    %10887 = vmatprep.subr.bf16.mxu0 0
    %10888 = vmatpush1.bf16.msra.mxu0 %v10675
    %10889 = vmatprep.subr.bf16.mxu0 0
    %10890 = vmatpush1.bf16.msra.mxu0 %v10680
    %10891 = vmatprep.subr.bf16.mxu0 0
    %10892 = vmatpush1.bf16.msra.mxu0 %v10685
    %10893 = vmatprep.subr.bf16.mxu0 0
    %10894 = vmatpush1.bf16.msra.mxu0 %v10690
    %10895 = vmatprep.subr.bf16.mxu0 0
    %10896 = vmatpush1.bf16.msra.mxu0 %v10695
    %10897 = vmatprep.subr.bf16.mxu0 0
    %10898 = vmatpush1.bf16.msra.mxu0 %v10700
    %10899 = vmatprep.mubr.bf16.mxu0 %v10239
    %10900 = vmatmul.mubr.bf16.gmra.mrb[0].mxu0 %v10238
    %v10901 = vpop.f32.mrb[0].mxu0
    %v10902 = vadd.f32 %v10359, %v10901
    %v10903 = vpop.f32.mrb[0].mxu0
    %v10904 = vpop.f32.mrb[0].mxu0
    %v10905 = vadd.f32 %v10359, %v10904
    %v10906 = vpop.f32.mrb[0].mxu0
    %10907 = vdwg.mxu0
    %v10908 = vmax.f32 %v10816, 0.0
    %v10909 = vmax.f32 %v10818, 0.0
    %v10910 = vmax.f32 %v10859, 0.0
    %v10911 = vmax.f32 %v10861, 0.0
    %v10912 = vmax.f32 %v10902, 0.0
    %v10913 = vmax.f32 %v10820, 0.0
    %v10914 = vmax.f32 %v10822, 0.0
    %v10915 = vmax.f32 %v10863, 0.0
    %v10916 = vmax.f32 %v10865, 0.0
    %v10917 = vmax.f32 %v10905, 0.0
    %v10918 = vpack.c.bf16 %v10913, %v10908
    %v10919 = vpack.c.bf16 %v10914, %v10909
    %v10920 = vpack.c.bf16 %v10915, %v10910
    %v10921 = vpack.c.bf16 %v10916, %v10911
    %v10922 = vpack.c.bf16 %v10917, %v10912
    %s10923 = scalar_lea.vmem [#allocation14], 1920
    %v10924 = vld [vmem:[%s10923] sm:$0xff]
    %v10925 = vld [vmem:[%s10923 + $0x8] sm:$0xff]
    %v10926 = vld [vmem:[%s10923 + $0x10] sm:$0xff]
    %v10927 = vld [vmem:[%s10923 + $0x18] sm:$0xff]
    %v10928 = vld [vmem:[%s10923 + $0x20] sm:$0xff]
    %v10929 = vld [vmem:[%s10923 + $0x28] sm:$0xff]
    %v10930 = vld [vmem:[%s10923 + $0x30] sm:$0xff]
    %v10931 = vld [vmem:[%s10923 + $0x38] sm:$0xff]
    %v10932 = vld [vmem:[%s10923 + $0x40] sm:$0xff]
    %v10933 = vld [vmem:[%s10923 + $0x48] sm:$0xff]
    %v10934 = vld [vmem:[%s10923 + $0x50] sm:$0xff]
    %v10935 = vld [vmem:[%s10923 + $0x58] sm:$0xff]
    %v10936 = vld [vmem:[%s10923 + $0x60] sm:$0xff]
    %v10937 = vld [vmem:[%s10923 + $0x68] sm:$0xff]
    %v10938 = vld [vmem:[%s10923 + $0x70] sm:$0xff]
    %v10939 = vld [vmem:[%s10923 + $0x78] sm:$0xff]
    %v10940 = vld [vmem:[%s10923 + $0x80] sm:$0xff]
    %v10941 = vld [vmem:[%s10923 + $0x88] sm:$0xff]
    %v10942 = vld [vmem:[%s10923 + $0x90] sm:$0xff]
    %v10943 = vld [vmem:[%s10923 + $0x98] sm:$0xff]
    %v10944 = vld [vmem:[%s10923 + $0xa0] sm:$0xff]
    %v10945 = vld [vmem:[%s10923 + $0xa8] sm:$0xff]
    %v10946 = vld [vmem:[%s10923 + $0xb0] sm:$0xff]
    %v10947 = vld [vmem:[%s10923 + $0xb8] sm:$0xff]
    %v10948 = vld [vmem:[%s10923 + $0xc0] sm:$0xff]
    %v10949 = vld [vmem:[%s10923 + $0xc8] sm:$0xff]
    %v10950 = vld [vmem:[%s10923 + $0xd0] sm:$0xff]
    %v10951 = vld [vmem:[%s10923 + $0xd8] sm:$0xff]
    %v10952 = vld [vmem:[%s10923 + $0xe0] sm:$0xff]
    %v10953 = vld [vmem:[%s10923 + $0xe8] sm:$0xff]
    %v10954 = vld [vmem:[%s10923 + $0xf0] sm:$0xff]
    %v10955 = vld [vmem:[%s10923 + $0xf8] sm:$0xff]
    %v10956 = vld [vmem:[%s10923 + $0x100] sm:$0xff]
    %v10957 = vld [vmem:[%s10923 + $0x108] sm:$0xff]
    %v10958 = vld [vmem:[%s10923 + $0x110] sm:$0xff]
    %v10959 = vld [vmem:[%s10923 + $0x118] sm:$0xff]
    %v10960 = vld [vmem:[%s10923 + $0x120] sm:$0xff]
    %v10961 = vld [vmem:[%s10923 + $0x128] sm:$0xff]
    %v10962 = vld [vmem:[%s10923 + $0x130] sm:$0xff]
    %v10963 = vld [vmem:[%s10923 + $0x138] sm:$0xff]
    %v10964 = vld [vmem:[%s10923 + $0x140] sm:$0xff]
    %v10965 = vld [vmem:[%s10923 + $0x148] sm:$0xff]
    %v10966 = vld [vmem:[%s10923 + $0x150] sm:$0xff]
    %v10967 = vld [vmem:[%s10923 + $0x158] sm:$0xff]
    %v10968 = vld [vmem:[%s10923 + $0x160] sm:$0xff]
    %v10969 = vld [vmem:[%s10923 + $0x168] sm:$0xff]
    %v10970 = vld [vmem:[%s10923 + $0x170] sm:$0xff]
    %v10971 = vld [vmem:[%s10923 + $0x178] sm:$0xff]
    %v10972 = vld [vmem:[%s10923 + $0x180] sm:$0xff]
    %v10973 = vld [vmem:[%s10923 + $0x188] sm:$0xff]
    %v10974 = vld [vmem:[%s10923 + $0x190] sm:$0xff]
    %v10975 = vld [vmem:[%s10923 + $0x198] sm:$0xff]
    %v10976 = vld [vmem:[%s10923 + $0x1a0] sm:$0xff]
    %v10977 = vld [vmem:[%s10923 + $0x1a8] sm:$0xff]
    %v10978 = vld [vmem:[%s10923 + $0x1b0] sm:$0xff]
    %v10979 = vld [vmem:[%s10923 + $0x1b8] sm:$0xff]
    %v10980 = vld [vmem:[%s10923 + $0x1c0] sm:$0xff]
    %v10981 = vld [vmem:[%s10923 + $0x1c8] sm:$0xff]
    %v10982 = vld [vmem:[%s10923 + $0x1d0] sm:$0xff]
    %v10983 = vld [vmem:[%s10923 + $0x1d8] sm:$0xff]
    %v10984 = vld [vmem:[%s10923 + $0x1e0] sm:$0xff]
    %v10985 = vld [vmem:[%s10923 + $0x1e8] sm:$0xff]
    %v10986 = vld [vmem:[%s10923 + $0x1f0] sm:$0xff]
    %v10987 = vld [vmem:[%s10923 + $0x1f8] sm:$0xff]
    %v10988 = vld [vmem:[%s10923 + $0x200] sm:$0xff]
    %v10989 = vld [vmem:[%s10923 + $0x208] sm:$0xff]
    %v10990 = vld [vmem:[%s10923 + $0x210] sm:$0xff]
    %v10991 = vld [vmem:[%s10923 + $0x218] sm:$0xff]
    %v10992 = vld [vmem:[%s10923 + $0x220] sm:$0xff]
    %v10993 = vld [vmem:[%s10923 + $0x228] sm:$0xff]
    %v10994 = vld [vmem:[%s10923 + $0x230] sm:$0xff]
    %v10995 = vld [vmem:[%s10923 + $0x238] sm:$0xff]
    %v10996 = vld [vmem:[%s10923 + $0x240] sm:$0xff]
    %v10997 = vld [vmem:[%s10923 + $0x248] sm:$0xff]
    %v10998 = vld [vmem:[%s10923 + $0x250] sm:$0xff]
    %v10999 = vld [vmem:[%s10923 + $0x258] sm:$0xff]
    %v11000 = vld [vmem:[%s10923 + $0x260] sm:$0xff]
    %v11001 = vld [vmem:[%s10923 + $0x268] sm:$0xff]
    %v11002 = vld [vmem:[%s10923 + $0x270] sm:$0xff]
    %v11003 = vld [vmem:[%s10923 + $0x278] sm:$0xff]
    %s11004 = scalar_lea.vmem [#allocation16], 6
    %v11005 = vld [vmem:[%s11004] sm:$0x3]
    %v11007 = vlaneseq
    %v11008 = vshrl.u32 %v11007, 7
    %v11009 = vsub.s32 0, %v11008
    %v11010 = vrot.slane %v11005, %v11009
    %v11011 = vlaneseq
    %v11012 = vshrl.u32 %v11011, 7
    %v11013 = vsub.s32 1, %v11012
    %v11014 = vrot.slane %v11005, %v11013
    %v11097 = vunpack.c.l.b16 %v10924
    %v11098 = vunpack.c.h.b16 %v10924
    %v11099 = vunpack.c.l.b16 %v10925
    %v11100 = vunpack.c.h.b16 %v10925
    %v11101 = vunpack.c.l.b16 %v10926
    %v11102 = vunpack.c.h.b16 %v10926
    %v11103 = vunpack.c.l.b16 %v10927
    %v11104 = vunpack.c.h.b16 %v10927
    %v11105 = vunpack.c.l.b16 %v10928
    %v11106 = vunpack.c.h.b16 %v10928
    %v11107 = vunpack.c.l.b16 %v10929
    %v11108 = vunpack.c.h.b16 %v10929
    %v11109 = vunpack.c.l.b16 %v10930
    %v11110 = vunpack.c.h.b16 %v10930
    %v11111 = vunpack.c.l.b16 %v10931
    %v11112 = vunpack.c.h.b16 %v10931
    %v11113 = vunpack.c.l.b16 %v10932
    %v11114 = vunpack.c.h.b16 %v10932
    %v11115 = vunpack.c.l.b16 %v10933
    %v11116 = vunpack.c.h.b16 %v10933
    %v11117 = vunpack.c.l.b16 %v10934
    %v11118 = vunpack.c.h.b16 %v10934
    %v11119 = vunpack.c.l.b16 %v10935
    %v11120 = vunpack.c.h.b16 %v10935
    %v11121 = vunpack.c.l.b16 %v10936
    %v11122 = vunpack.c.h.b16 %v10936
    %v11123 = vunpack.c.l.b16 %v10937
    %v11124 = vunpack.c.h.b16 %v10937
    %v11125 = vunpack.c.l.b16 %v10938
    %v11126 = vunpack.c.h.b16 %v10938
    %v11127 = vunpack.c.l.b16 %v10939
    %v11128 = vunpack.c.h.b16 %v10939
    %v11129 = vunpack.c.l.b16 %v10940
    %v11130 = vunpack.c.h.b16 %v10940
    %v11131 = vunpack.c.l.b16 %v10941
    %v11132 = vunpack.c.h.b16 %v10941
    %v11133 = vunpack.c.l.b16 %v10942
    %v11134 = vunpack.c.h.b16 %v10942
    %v11135 = vunpack.c.l.b16 %v10943
    %v11136 = vunpack.c.h.b16 %v10943
    %v11137 = vunpack.c.l.b16 %v10944
    %v11138 = vunpack.c.h.b16 %v10944
    %v11139 = vunpack.c.l.b16 %v10945
    %v11140 = vunpack.c.h.b16 %v10945
    %v11141 = vunpack.c.l.b16 %v10946
    %v11142 = vunpack.c.h.b16 %v10946
    %v11143 = vunpack.c.l.b16 %v10947
    %v11144 = vunpack.c.h.b16 %v10947
    %v11145 = vunpack.c.l.b16 %v10948
    %v11146 = vunpack.c.h.b16 %v10948
    %v11147 = vunpack.c.l.b16 %v10949
    %v11148 = vunpack.c.h.b16 %v10949
    %v11149 = vunpack.c.l.b16 %v10950
    %v11150 = vunpack.c.h.b16 %v10950
    %v11151 = vunpack.c.l.b16 %v10951
    %v11152 = vunpack.c.h.b16 %v10951
    %v11153 = vunpack.c.l.b16 %v10952
    %v11154 = vunpack.c.h.b16 %v10952
    %v11155 = vunpack.c.l.b16 %v10953
    %v11156 = vunpack.c.h.b16 %v10953
    %v11157 = vunpack.c.l.b16 %v10954
    %v11158 = vunpack.c.h.b16 %v10954
    %v11159 = vunpack.c.l.b16 %v10955
    %v11160 = vunpack.c.h.b16 %v10955
    %v11161 = vunpack.c.l.b16 %v10956
    %v11162 = vunpack.c.h.b16 %v10956
    %v11163 = vunpack.c.l.b16 %v10957
    %v11164 = vunpack.c.h.b16 %v10957
    %v11165 = vunpack.c.l.b16 %v10958
    %v11166 = vunpack.c.h.b16 %v10958
    %v11167 = vunpack.c.l.b16 %v10959
    %v11168 = vunpack.c.h.b16 %v10959
    %v11169 = vunpack.c.l.b16 %v10960
    %v11170 = vunpack.c.h.b16 %v10960
    %v11171 = vunpack.c.l.b16 %v10961
    %v11172 = vunpack.c.h.b16 %v10961
    %v11173 = vunpack.c.l.b16 %v10962
    %v11174 = vunpack.c.h.b16 %v10962
    %v11175 = vunpack.c.l.b16 %v10963
    %v11176 = vunpack.c.h.b16 %v10963
    %v11177 = vunpack.c.l.b16 %v10964
    %v11178 = vunpack.c.h.b16 %v10964
    %v11179 = vunpack.c.l.b16 %v10965
    %v11180 = vunpack.c.h.b16 %v10965
    %v11181 = vunpack.c.l.b16 %v10966
    %v11182 = vunpack.c.h.b16 %v10966
    %v11183 = vunpack.c.l.b16 %v10967
    %v11184 = vunpack.c.h.b16 %v10967
    %v11185 = vunpack.c.l.b16 %v10968
    %v11186 = vunpack.c.h.b16 %v10968
    %v11187 = vunpack.c.l.b16 %v10969
    %v11188 = vunpack.c.h.b16 %v10969
    %v11189 = vunpack.c.l.b16 %v10970
    %v11190 = vunpack.c.h.b16 %v10970
    %v11191 = vunpack.c.l.b16 %v10971
    %v11192 = vunpack.c.h.b16 %v10971
    %v11193 = vunpack.c.l.b16 %v10972
    %v11194 = vunpack.c.h.b16 %v10972
    %v11195 = vunpack.c.l.b16 %v10973
    %v11196 = vunpack.c.h.b16 %v10973
    %v11197 = vunpack.c.l.b16 %v10974
    %v11198 = vunpack.c.h.b16 %v10974
    %v11199 = vunpack.c.l.b16 %v10975
    %v11200 = vunpack.c.h.b16 %v10975
    %v11201 = vunpack.c.l.b16 %v10976
    %v11202 = vunpack.c.h.b16 %v10976
    %v11203 = vunpack.c.l.b16 %v10977
    %v11204 = vunpack.c.h.b16 %v10977
    %v11205 = vunpack.c.l.b16 %v10978
    %v11206 = vunpack.c.h.b16 %v10978
    %v11207 = vunpack.c.l.b16 %v10979
    %v11208 = vunpack.c.h.b16 %v10979
    %v11209 = vunpack.c.l.b16 %v10980
    %v11210 = vunpack.c.h.b16 %v10980
    %v11211 = vunpack.c.l.b16 %v10981
    %v11212 = vunpack.c.h.b16 %v10981
    %v11213 = vunpack.c.l.b16 %v10982
    %v11214 = vunpack.c.h.b16 %v10982
    %v11215 = vunpack.c.l.b16 %v10983
    %v11216 = vunpack.c.h.b16 %v10983
    %v11217 = vunpack.c.l.b16 %v10984
    %v11218 = vunpack.c.h.b16 %v10984
    %v11219 = vunpack.c.l.b16 %v10985
    %v11220 = vunpack.c.h.b16 %v10985
    %v11221 = vunpack.c.l.b16 %v10986
    %v11222 = vunpack.c.h.b16 %v10986
    %v11223 = vunpack.c.l.b16 %v10987
    %v11224 = vunpack.c.h.b16 %v10987
    %v11225 = vunpack.c.l.b16 %v10988
    %v11226 = vunpack.c.h.b16 %v10988
    %v11227 = vunpack.c.l.b16 %v10989
    %v11228 = vunpack.c.h.b16 %v10989
    %v11229 = vunpack.c.l.b16 %v10990
    %v11230 = vunpack.c.h.b16 %v10990
    %v11231 = vunpack.c.l.b16 %v10991
    %v11232 = vunpack.c.h.b16 %v10991
    %v11233 = vunpack.c.l.b16 %v10992
    %v11234 = vunpack.c.h.b16 %v10992
    %v11235 = vunpack.c.l.b16 %v10993
    %v11236 = vunpack.c.h.b16 %v10993
    %v11237 = vunpack.c.l.b16 %v10994
    %v11238 = vunpack.c.h.b16 %v10994
    %v11239 = vunpack.c.l.b16 %v10995
    %v11240 = vunpack.c.h.b16 %v10995
    %v11241 = vunpack.c.l.b16 %v10996
    %v11242 = vunpack.c.h.b16 %v10996
    %v11243 = vunpack.c.l.b16 %v10997
    %v11244 = vunpack.c.h.b16 %v10997
    %v11245 = vunpack.c.l.b16 %v10998
    %v11246 = vunpack.c.h.b16 %v10998
    %v11247 = vunpack.c.l.b16 %v10999
    %v11248 = vunpack.c.h.b16 %v10999
    %v11249 = vunpack.c.l.b16 %v11000
    %v11250 = vunpack.c.h.b16 %v11000
    %v11251 = vunpack.c.l.b16 %v11001
    %v11252 = vunpack.c.h.b16 %v11001
    %v11253 = vunpack.c.l.b16 %v11002
    %v11254 = vunpack.c.h.b16 %v11002
    %v11255 = vunpack.c.l.b16 %v11003
    %v11256 = vunpack.c.h.b16 %v11003
    %v11257 = vpack.c.b16 %v11099, %v11097
    %v11258 = vpack.c.b16 %v11100, %v11098
    %v11259 = vpack.c.b16 %v11103, %v11101
    %v11260 = vpack.c.b16 %v11104, %v11102
    %v11261 = vpack.c.b16 %v11107, %v11105
    %v11262 = vpack.c.b16 %v11108, %v11106
    %v11263 = vpack.c.b16 %v11111, %v11109
    %v11264 = vpack.c.b16 %v11112, %v11110
    %v11265 = vpack.c.b16 %v11115, %v11113
    %v11266 = vpack.c.b16 %v11116, %v11114
    %v11267 = vpack.c.b16 %v11119, %v11117
    %v11268 = vpack.c.b16 %v11120, %v11118
    %v11269 = vpack.c.b16 %v11123, %v11121
    %v11270 = vpack.c.b16 %v11124, %v11122
    %v11271 = vpack.c.b16 %v11127, %v11125
    %v11272 = vpack.c.b16 %v11128, %v11126
    %v11273 = vpack.c.b16 %v11131, %v11129
    %v11274 = vpack.c.b16 %v11132, %v11130
    %v11275 = vpack.c.b16 %v11135, %v11133
    %v11276 = vpack.c.b16 %v11136, %v11134
    %v11277 = vpack.c.b16 %v11139, %v11137
    %v11278 = vpack.c.b16 %v11140, %v11138
    %v11279 = vpack.c.b16 %v11143, %v11141
    %v11280 = vpack.c.b16 %v11144, %v11142
    %v11281 = vpack.c.b16 %v11147, %v11145
    %v11282 = vpack.c.b16 %v11148, %v11146
    %v11283 = vpack.c.b16 %v11151, %v11149
    %v11284 = vpack.c.b16 %v11152, %v11150
    %v11285 = vpack.c.b16 %v11155, %v11153
    %v11286 = vpack.c.b16 %v11156, %v11154
    %v11287 = vpack.c.b16 %v11159, %v11157
    %v11288 = vpack.c.b16 %v11160, %v11158
    %v11289 = vpack.c.b16 %v11163, %v11161
    %v11290 = vpack.c.b16 %v11164, %v11162
    %v11291 = vpack.c.b16 %v11167, %v11165
    %v11292 = vpack.c.b16 %v11168, %v11166
    %v11293 = vpack.c.b16 %v11171, %v11169
    %v11294 = vpack.c.b16 %v11172, %v11170
    %v11295 = vpack.c.b16 %v11175, %v11173
    %v11296 = vpack.c.b16 %v11176, %v11174
    %v11297 = vpack.c.b16 %v11179, %v11177
    %v11298 = vpack.c.b16 %v11180, %v11178
    %v11299 = vpack.c.b16 %v11183, %v11181
    %v11300 = vpack.c.b16 %v11184, %v11182
    %v11301 = vpack.c.b16 %v11187, %v11185
    %v11302 = vpack.c.b16 %v11188, %v11186
    %v11303 = vpack.c.b16 %v11191, %v11189
    %v11304 = vpack.c.b16 %v11192, %v11190
    %v11305 = vpack.c.b16 %v11195, %v11193
    %v11306 = vpack.c.b16 %v11196, %v11194
    %v11307 = vpack.c.b16 %v11199, %v11197
    %v11308 = vpack.c.b16 %v11200, %v11198
    %v11309 = vpack.c.b16 %v11203, %v11201
    %v11310 = vpack.c.b16 %v11204, %v11202
    %v11311 = vpack.c.b16 %v11207, %v11205
    %v11312 = vpack.c.b16 %v11208, %v11206
    %v11313 = vpack.c.b16 %v11211, %v11209
    %v11314 = vpack.c.b16 %v11212, %v11210
    %v11315 = vpack.c.b16 %v11215, %v11213
    %v11316 = vpack.c.b16 %v11216, %v11214
    %v11317 = vpack.c.b16 %v11219, %v11217
    %v11318 = vpack.c.b16 %v11220, %v11218
    %v11319 = vpack.c.b16 %v11223, %v11221
    %v11320 = vpack.c.b16 %v11224, %v11222
    %v11321 = vpack.c.b16 %v11227, %v11225
    %v11322 = vpack.c.b16 %v11228, %v11226
    %v11323 = vpack.c.b16 %v11231, %v11229
    %v11324 = vpack.c.b16 %v11232, %v11230
    %v11325 = vpack.c.b16 %v11235, %v11233
    %v11326 = vpack.c.b16 %v11236, %v11234
    %v11327 = vpack.c.b16 %v11239, %v11237
    %v11328 = vpack.c.b16 %v11240, %v11238
    %v11329 = vpack.c.b16 %v11243, %v11241
    %v11330 = vpack.c.b16 %v11244, %v11242
    %v11331 = vpack.c.b16 %v11247, %v11245
    %v11332 = vpack.c.b16 %v11248, %v11246
    %v11333 = vpack.c.b16 %v11251, %v11249
    %v11334 = vpack.c.b16 %v11252, %v11250
    %v11335 = vpack.c.b16 %v11255, %v11253
    %v11336 = vpack.c.b16 %v11256, %v11254
    %11417 = vmatprep.subr.bf16.mxu0 %v11258
    %11418 = vmatpush1.bf16.msra.mxu0 %v11257
    %11419 = vmatprep.subr.bf16.mxu0 %v11260
    %11420 = vmatpush1.bf16.msra.mxu0 %v11259
    %11421 = vmatprep.subr.bf16.mxu0 %v11262
    %11422 = vmatpush1.bf16.msra.mxu0 %v11261
    %11423 = vmatprep.subr.bf16.mxu0 %v11264
    %11424 = vmatpush1.bf16.msra.mxu0 %v11263
    %11425 = vmatprep.subr.bf16.mxu0 %v11266
    %11426 = vmatpush1.bf16.msra.mxu0 %v11265
    %11427 = vmatprep.subr.bf16.mxu0 %v11268
    %11428 = vmatpush1.bf16.msra.mxu0 %v11267
    %11429 = vmatprep.subr.bf16.mxu0 %v11270
    %11430 = vmatpush1.bf16.msra.mxu0 %v11269
    %11431 = vmatprep.subr.bf16.mxu0 %v11272
    %11432 = vmatpush1.bf16.msra.mxu0 %v11271
    %11433 = vmatprep.subr.bf16.mxu0 %v11274
    %11434 = vmatpush1.bf16.msra.mxu0 %v11273
    %11435 = vmatprep.subr.bf16.mxu0 %v11276
    %11436 = vmatpush1.bf16.msra.mxu0 %v11275
    %11437 = vmatprep.subr.bf16.mxu0 %v11278
    %11438 = vmatpush1.bf16.msra.mxu0 %v11277
    %11439 = vmatprep.subr.bf16.mxu0 %v11280
    %11440 = vmatpush1.bf16.msra.mxu0 %v11279
    %11441 = vmatprep.subr.bf16.mxu0 %v11282
    %11442 = vmatpush1.bf16.msra.mxu0 %v11281
    %11443 = vmatprep.subr.bf16.mxu0 %v11284
    %11444 = vmatpush1.bf16.msra.mxu0 %v11283
    %11445 = vmatprep.subr.bf16.mxu0 %v11286
    %11446 = vmatpush1.bf16.msra.mxu0 %v11285
    %11447 = vmatprep.subr.bf16.mxu0 %v11288
    %11448 = vmatpush1.bf16.msra.mxu0 %v11287
    %11449 = vmatprep.mubr.bf16.mxu0 %v10919
    %11450 = vmatmul.mubr.bf16.gmra.mrb[0].mxu0 %v10918
    %v11451 = vpop.f32.mrb[0].mxu0
    %v11452 = vadd.f32 %v11010, %v11451
    %v11453 = vpop.f32.mrb[0].mxu0
    %v11454 = vadd.f32 %v11014, %v11453
    %v11455 = vpop.f32.mrb[0].mxu0
    %v11456 = vadd.f32 %v11010, %v11455
    %v11457 = vpop.f32.mrb[0].mxu0
    %v11458 = vadd.f32 %v11014, %v11457
    %11459 = vdwg.mxu0
    %11460 = vmatprep.subr.bf16.mxu0 %v11290
    %11461 = vmatpush1.bf16.msra.mxu0 %v11289
    %11462 = vmatprep.subr.bf16.mxu0 %v11292
    %11463 = vmatpush1.bf16.msra.mxu0 %v11291
    %11464 = vmatprep.subr.bf16.mxu0 %v11294
    %11465 = vmatpush1.bf16.msra.mxu0 %v11293
    %11466 = vmatprep.subr.bf16.mxu0 %v11296
    %11467 = vmatpush1.bf16.msra.mxu0 %v11295
    %11468 = vmatprep.subr.bf16.mxu0 %v11298
    %11469 = vmatpush1.bf16.msra.mxu0 %v11297
    %11470 = vmatprep.subr.bf16.mxu0 %v11300
    %11471 = vmatpush1.bf16.msra.mxu0 %v11299
    %11472 = vmatprep.subr.bf16.mxu0 %v11302
    %11473 = vmatpush1.bf16.msra.mxu0 %v11301
    %11474 = vmatprep.subr.bf16.mxu0 %v11304
    %11475 = vmatpush1.bf16.msra.mxu0 %v11303
    %11476 = vmatprep.subr.bf16.mxu0 %v11306
    %11477 = vmatpush1.bf16.msra.mxu0 %v11305
    %11478 = vmatprep.subr.bf16.mxu0 %v11308
    %11479 = vmatpush1.bf16.msra.mxu0 %v11307
    %11480 = vmatprep.subr.bf16.mxu0 %v11310
    %11481 = vmatpush1.bf16.msra.mxu0 %v11309
    %11482 = vmatprep.subr.bf16.mxu0 %v11312
    %11483 = vmatpush1.bf16.msra.mxu0 %v11311
    %11484 = vmatprep.subr.bf16.mxu0 %v11314
    %11485 = vmatpush1.bf16.msra.mxu0 %v11313
    %11486 = vmatprep.subr.bf16.mxu0 %v11316
    %11487 = vmatpush1.bf16.msra.mxu0 %v11315
    %11488 = vmatprep.subr.bf16.mxu0 %v11318
    %11489 = vmatpush1.bf16.msra.mxu0 %v11317
    %11490 = vmatprep.subr.bf16.mxu0 %v11320
    %11491 = vmatpush1.bf16.msra.mxu0 %v11319
    %11492 = vmatprep.mubr.bf16.mxu0 %v10921
    %11493 = vmatmul.mubr.bf16.gmra.mrb[0].mxu0 %v10920
    %v11494 = vpop.f32.mrb[0].mxu0
    %v11495 = vadd.f32 %v11452, %v11494
    %v11496 = vpop.f32.mrb[0].mxu0
    %v11497 = vadd.f32 %v11454, %v11496
    %v11498 = vpop.f32.mrb[0].mxu0
    %v11499 = vadd.f32 %v11456, %v11498
    %v11500 = vpop.f32.mrb[0].mxu0
    %v11501 = vadd.f32 %v11458, %v11500
    %11502 = vdwg.mxu0
    %11503 = vmatprep.subr.bf16.mxu0 %v11322
    %11504 = vmatpush1.bf16.msra.mxu0 %v11321
    %11505 = vmatprep.subr.bf16.mxu0 %v11324
    %11506 = vmatpush1.bf16.msra.mxu0 %v11323
    %11507 = vmatprep.subr.bf16.mxu0 %v11326
    %11508 = vmatpush1.bf16.msra.mxu0 %v11325
    %11509 = vmatprep.subr.bf16.mxu0 %v11328
    %11510 = vmatpush1.bf16.msra.mxu0 %v11327
    %11511 = vmatprep.subr.bf16.mxu0 %v11330
    %11512 = vmatpush1.bf16.msra.mxu0 %v11329
    %11513 = vmatprep.subr.bf16.mxu0 %v11332
    %11514 = vmatpush1.bf16.msra.mxu0 %v11331
    %11515 = vmatprep.subr.bf16.mxu0 %v11334
    %11516 = vmatpush1.bf16.msra.mxu0 %v11333
    %11517 = vmatprep.subr.bf16.mxu0 %v11336
    %11518 = vmatpush1.bf16.msra.mxu0 %v11335
    %11519 = vmatprep.subr.bf16.mxu0 0
    %11520 = vmatpush1.bf16.msra.mxu0 0
    %11521 = vmatprep.subr.bf16.mxu0 0
    %11522 = vmatpush1.bf16.msra.mxu0 0
    %11523 = vmatprep.subr.bf16.mxu0 0
    %11524 = vmatpush1.bf16.msra.mxu0 0
    %11525 = vmatprep.subr.bf16.mxu0 0
    %11526 = vmatpush1.bf16.msra.mxu0 0
    %11527 = vmatprep.subr.bf16.mxu0 0
    %11528 = vmatpush1.bf16.msra.mxu0 0
    %11529 = vmatprep.subr.bf16.mxu0 0
    %11530 = vmatpush1.bf16.msra.mxu0 0
    %11531 = vmatprep.subr.bf16.mxu0 0
    %11532 = vmatpush1.bf16.msra.mxu0 0
    %11533 = vmatprep.subr.bf16.mxu0 0
    %11534 = vmatpush1.bf16.msra.mxu0 0
    %11535 = vmatprep.mubr.bf16.mxu0 0
    %11536 = vmatmul.mubr.bf16.gmra.mrb[0].mxu0 %v10922
    %v11537 = vpop.f32.mrb[0].mxu0
    %v11538 = vadd.f32 %v11495, %v11537
    %v11539 = vpop.f32.mrb[0].mxu0
    %v11540 = vadd.f32 %v11497, %v11539
    %v11541 = vpop.f32.mrb[0].mxu0
    %v11542 = vadd.f32 %v11499, %v11541
    %v11543 = vpop.f32.mrb[0].mxu0
    %v11544 = vadd.f32 %v11501, %v11543
    %11545 = vdwg.mxu0
    %v11546 = vadd.f32 %v10234, %v11538
    %v11547 = vadd.f32 %v10235, %v11540
    %v11548 = vadd.f32 %v10236, %v11542
    %v11549 = vadd.f32 %v10237, %v11544
    %s11550 = scalar_lea.vmem [#allocation20], 6
    %v11551 = vld [vmem:[%s11550] sm:$0x3]
    %s11552 = scalar_lea.vmem [#allocation22], 6
    %v11553 = vld [vmem:[%s11552] sm:$0x3]
    %v11554 = vadd.f32 %v11546, %v11547
    %11555 = vadd.xlane.f32.xlu0 %v11554
    %v11556 = vpop.xlane.xlu0 %11555
    %v11557 = vadd.f32 %v11548, %v11549
    %11558 = vadd.xlane.f32.xlu0 %v11557
    %v11559 = vpop.xlane.xlu0 %11558
    %v11560 = vmul.f32 %v11556, %v1643
    %v11561 = vmul.f32 %v11559, %v1643
    %v11562 = vsub.f32 %v11546, %v11560
    %v11563 = vsub.f32 %v11547, %v11560
    %v11564 = vsub.f32 %v11548, %v11561
    %v11565 = vsub.f32 %v11549, %v11561
    %v11566 = vmul.f32 %v11562, %v11562
    %v11567 = vmul.f32 %v11563, %v11563
    %v11568 = vmul.f32 %v11564, %v11564
    %v11569 = vmul.f32 %v11565, %v11565
    %v11570 = vadd.f32 %v11566, %v11567
    %11571 = vadd.xlane.f32.xlu0 %v11570
    %v11572 = vpop.xlane.xlu0 %11571
    %v11573 = vadd.f32 %v11568, %v11569
    %11574 = vadd.xlane.f32.xlu0 %v11573
    %v11575 = vpop.xlane.xlu0 %11574
    %v11576 = vmul.f32 %v11572, %v1643
    %v11577 = vmul.f32 %v11575, %v1643
    %v11578 = vadd.f32 %v11576, 1e-05
    %v11579 = vadd.f32 %v11577, 1e-05
    %v11580 = vrsqrt.pop %v11578
    %v11581 = vrsqrt.pop %v11579
    %v11582 = vmul.f32 %v11562, %v11580
    %v11583 = vmul.f32 %v11563, %v11580
    %v11584 = vmul.f32 %v11564, %v11581
    %v11585 = vmul.f32 %v11565, %v11581
    %v11587 = vlaneseq
    %v11588 = vshrl.u32 %v11587, 7
    %v11589 = vsub.s32 0, %v11588
    %v11590 = vrot.slane %v11551, %v11589
    %v11591 = vlaneseq
    %v11592 = vshrl.u32 %v11591, 7
    %v11593 = vsub.s32 1, %v11592
    %v11594 = vrot.slane %v11551, %v11593
    %v11597 = vmul.f32 %v11582, %v11590
    %v11598 = vmul.f32 %v11583, %v11594
    %v11599 = vmul.f32 %v11584, %v11590
    %v11600 = vmul.f32 %v11585, %v11594
    %v11602 = vlaneseq
    %v11603 = vshrl.u32 %v11602, 7
    %v11604 = vsub.s32 0, %v11603
    %v11605 = vrot.slane %v11553, %v11604
    %v11606 = vlaneseq
    %v11607 = vshrl.u32 %v11606, 7
    %v11608 = vsub.s32 1, %v11607
    %v11609 = vrot.slane %v11553, %v11608
    %v11612 = vadd.f32 %v11597, %v11605
    %v11613 = vadd.f32 %v11598, %v11609
    %v11614 = vadd.f32 %v11599, %v11605
    %v11615 = vadd.f32 %v11600, %v11609
    %v11616 = vld [vmem:[%s13] sm:$0xff]
    %v11617 = vld [vmem:[%s13 + $0x8] sm:$0xff]
    %v11618 = vld [vmem:[%s13 + $0x10] sm:$0xff]
    %v11619 = vld [vmem:[%s13 + $0x18] sm:$0xff]
    %v11620 = vld [vmem:[%s13 + $0x20] sm:$0xff]
    %v11621 = vld [vmem:[%s13 + $0x28] sm:$0xff]
    %v11622 = vld [vmem:[%s13 + $0x30] sm:$0xff]
    %v11623 = vld [vmem:[%s13 + $0x38] sm:$0xff]
    %v11624 = vld [vmem:[%s13 + $0x40] sm:$0xff]
    %v11625 = vld [vmem:[%s13 + $0x48] sm:$0xff]
    %v11626 = vld [vmem:[%s13 + $0x50] sm:$0xff]
    %v11627 = vld [vmem:[%s13 + $0x58] sm:$0xff]
    %v11628 = vld [vmem:[%s13 + $0x60] sm:$0xff]
    %v11629 = vld [vmem:[%s13 + $0x68] sm:$0xff]
    %v11630 = vld [vmem:[%s13 + $0x70] sm:$0xff]
    %v11631 = vld [vmem:[%s13 + $0x78] sm:$0xff]
    %v11632 = vld [vmem:[%s13 + $0x80] sm:$0xff]
    %v11633 = vld [vmem:[%s13 + $0x88] sm:$0xff]
    %v11634 = vld [vmem:[%s13 + $0x90] sm:$0xff]
    %v11635 = vld [vmem:[%s13 + $0x98] sm:$0xff]
    %v11636 = vld [vmem:[%s13 + $0xa0] sm:$0xff]
    %v11637 = vld [vmem:[%s13 + $0xa8] sm:$0xff]
    %v11638 = vld [vmem:[%s13 + $0xb0] sm:$0xff]
    %v11639 = vld [vmem:[%s13 + $0xb8] sm:$0xff]
    %v11640 = vld [vmem:[%s13 + $0xc0] sm:$0xff]
    %v11641 = vld [vmem:[%s13 + $0xc8] sm:$0xff]
    %v11642 = vld [vmem:[%s13 + $0xd0] sm:$0xff]
    %v11643 = vld [vmem:[%s13 + $0xd8] sm:$0xff]
    %v11644 = vld [vmem:[%s13 + $0xe0] sm:$0xff]
    %v11645 = vld [vmem:[%s13 + $0xe8] sm:$0xff]
    %v11646 = vld [vmem:[%s13 + $0xf0] sm:$0xff]
    %v11647 = vld [vmem:[%s13 + $0xf8] sm:$0xff]
    %v11648 = vld [vmem:[#allocation2] sm:$0x1]
    %v11650 = vlaneseq
    %v11651 = vshrl.u32 %v11650, 7
    %v11652 = vsub.s32 0, %v11651
    %v11653 = vrot.slane %v11648, %v11652
    %v11659 = vrot.slane %v11614, 7
    %vm11660 = vcmask 1041409
    %v11661 = vsel %vm11660, %v11659, %v11612
    %v11662 = vrot.slane %v11615, 7
    %v11663 = vsel %vm11660, %v11662, %v11613
    %11666 = vmatprep.subr.mxu0 0.0
    %11667 = vmatpush1.msra.mxu0 %v11616
    %11668 = vmatprep.subr.mxu0 0.0
    %11669 = vmatpush1.msra.mxu0 %v11617
    %11670 = vmatprep.subr.mxu0 0.0
    %11671 = vmatpush1.msra.mxu0 %v11618
    %11672 = vmatprep.subr.mxu0 0.0
    %11673 = vmatpush1.msra.mxu0 %v11619
    %11674 = vmatprep.subr.mxu0 0.0
    %11675 = vmatpush1.msra.mxu0 %v11620
    %11676 = vmatprep.subr.mxu0 0.0
    %11677 = vmatpush1.msra.mxu0 %v11621
    %11678 = vmatprep.subr.mxu0 0.0
    %11679 = vmatpush1.msra.mxu0 %v11622
    %11680 = vmatprep.subr.mxu0 0.0
    %11681 = vmatpush1.msra.mxu0 %v11623
    %11682 = vmatprep.subr.mxu0 0.0
    %11683 = vmatpush1.msra.mxu0 %v11624
    %11684 = vmatprep.subr.mxu0 0.0
    %11685 = vmatpush1.msra.mxu0 %v11625
    %11686 = vmatprep.subr.mxu0 0.0
    %11687 = vmatpush1.msra.mxu0 %v11626
    %11688 = vmatprep.subr.mxu0 0.0
    %11689 = vmatpush1.msra.mxu0 %v11627
    %11690 = vmatprep.subr.mxu0 0.0
    %11691 = vmatpush1.msra.mxu0 %v11628
    %11692 = vmatprep.subr.mxu0 0.0
    %11693 = vmatpush1.msra.mxu0 %v11629
    %11694 = vmatprep.subr.mxu0 0.0
    %11695 = vmatpush1.msra.mxu0 %v11630
    %11696 = vmatprep.subr.mxu0 0.0
    %11697 = vmatpush1.msra.mxu0 %v11631
    %11698 = vmatprep.subr.mxu0 0.0
    %11699 = vmatpush1.msra.mxu0 %v11632
    %11700 = vmatprep.subr.mxu0 0.0
    %11701 = vmatpush1.msra.mxu0 %v11633
    %11702 = vmatprep.subr.mxu0 0.0
    %11703 = vmatpush1.msra.mxu0 %v11634
    %11704 = vmatprep.subr.mxu0 0.0
    %11705 = vmatpush1.msra.mxu0 %v11635
    %11706 = vmatprep.subr.mxu0 0.0
    %11707 = vmatpush1.msra.mxu0 %v11636
    %11708 = vmatprep.subr.mxu0 0.0
    %11709 = vmatpush1.msra.mxu0 %v11637
    %11710 = vmatprep.subr.mxu0 0.0
    %11711 = vmatpush1.msra.mxu0 %v11638
    %11712 = vmatprep.subr.mxu0 0.0
    %11713 = vmatpush1.msra.mxu0 %v11639
    %11714 = vmatprep.subr.mxu0 0.0
    %11715 = vmatpush1.msra.mxu0 %v11640
    %11716 = vmatprep.subr.mxu0 0.0
    %11717 = vmatpush1.msra.mxu0 %v11641
    %11718 = vmatprep.subr.mxu0 0.0
    %11719 = vmatpush1.msra.mxu0 %v11642
    %11720 = vmatprep.subr.mxu0 0.0
    %11721 = vmatpush1.msra.mxu0 %v11643
    %11722 = vmatprep.subr.mxu0 0.0
    %11723 = vmatpush1.msra.mxu0 %v11644
    %11724 = vmatprep.subr.mxu0 0.0
    %11725 = vmatpush1.msra.mxu0 %v11645
    %11726 = vmatprep.subr.mxu0 0.0
    %11727 = vmatpush1.msra.mxu0 %v11646
    %11728 = vmatprep.subr.mxu0 0.0
    %11729 = vmatpush1.msra.mxu0 %v11647
    %11730 = vmatprep.mubr.f32.mxu0 %v11663
    %11731 = vmatmul.mubr.f32.gmra.mrb[0].mxu0 %v11661
    %v11732 = vpop.f32.mrb[0].mxu0
    %v11733 = vadd.f32 %v11653, %v11732
    %v11734 = vpop.f32.mrb[0].mxu0
    %11735 = vdwg.mxu0
    %vm11736 = vcmask 1024
    %11737 = vst.msk [vmem:[%s15] sm:$0x3] %vm11736, %v11733
    // Predicated region
    $region114: #{tpu_custom_call.1} parent=1 // pred_check
      _
    $region115: #{tpu_custom_call.1} parent=1 // pred_check_branch
      %11739 = sbr.rel (0) target = $region117
    $region116: #{tpu_custom_call.1} parent=1 // pred_region
      _
    $region117: #{tpu_custom_call.1} parent=1 // pred_fallthru
      _
    // Predicated region
    $region118: #{tpu_custom_call.1} parent=1 // pred_check
      _
    $region119: #{tpu_custom_call.1} parent=1 // pred_check_branch
      %11741 = sbr.rel (0) target = $region121
    $region120: #{tpu_custom_call.1} parent=1 // pred_region
      _
    $region121: #{tpu_custom_call.1} parent=1 // pred_fallthru
      _
    %11742 = vsyncpa [#allocation4], 1
    %11743 = vsyncpa [#allocation6], 1
    %11744 = vsyncpa [#allocation9], 1
    %11745 = vsyncpa [#allocation12], 1
    %11746 = vsyncpa [#allocation15], 1
    %11747 = vsyncpa [#allocation18], 1
    %11748 = vsyncpa [#allocation21], 1

</llo_original>
